<compile_context>
chip_gen: v6e
topology: v6e:2x2x1
jax: 0.10.0
libtpu: 0.0.40
codegen_flags: <defaults>
</compile_context>

<pallas_src>
import functools

import jax
import jax.numpy as jnp
from jax.experimental import pallas as pl
from jax.experimental.pallas import tpu as pltpu


# ----------------------------------------------------------------------------
# Fused MicroBlock kernel
# ----------------------------------------------------------------------------
def _micro_block_kernel(x_ref, w1_ref, w2_ref, o_ref, xp_ref, ap_ref, rs_ref,
                        *, H, W, C):
    # x_ref : (1, H, W, C)   one batch element
    # w*_ref: (3, 3, C, C)   HWIO weights
    # o_ref : (1, H, W, C)
    # xp_ref: ((H+3)*(W+2), C)  zero-padded x, flattened (pad: top 1, bottom 2, L/R 1)
    # ap_ref: ((H+3)*(W+2), C)  zero-padded activation, flattened (same geometry)
    # rs_ref: (H*(W+2), C)      staged result slab
    Wp = W + 2                      # padded width
    M = H * Wp                      # whole-image slab: all valid rows x padded width
    f32 = jnp.float32

    # ---- in-kernel zero padding of x (no padded HBM copy) -------------------
    xp_ref[...] = jnp.zeros_like(xp_ref)
    for h in range(H):              # tiny static-offset copies; H is small
        xp_ref[pl.ds((h + 1) * Wp + 1, W), :] = x_ref[0, h]

    # ---- conv1: 9 whole-slab MXU matmuls, each at a constant ref offset -----
    acc = jnp.zeros((M, C), f32)
    for kh in range(3):
        for kw in range(3):
            acc = acc + jnp.dot(xp_ref[pl.ds(kh * Wp + kw, M), :],
                                w1_ref[kh, kw],
                                preferred_element_type=f32)

    # ---- StudentT2(alpha=1), first output: log(1 + z^2) / (2*1) -------------
    # (matches torch.log(d) / (2*alpha) of the reference exactly; log1p has no
    #  guaranteed Mosaic lowering, and the reference itself uses log(1+z^2).)
    a = 0.5 * jnp.log(1.0 + acc * acc)

    # ---- re-pad `a` in VMEM with ONE shifted store ---------------------------
    # The slab also carries 2 junk columns per row (w' >= W); zeroed here, they
    # land exactly on the pad columns of the shifted destination.
    col = jax.lax.broadcasted_iota(jnp.int32, (M, C), 0) % Wp
    a = jnp.where(col < W, a, 0.0).astype(ap_ref.dtype)
    ap_ref[...] = jnp.zeros_like(ap_ref)
    ap_ref[pl.ds(Wp + 1, M), :] = a

    # ---- conv2 + residual (residual read from the resident padded-x slab) ---
    acc2 = xp_ref[pl.ds(Wp + 1, M), :].astype(f32)
    for kh in range(3):
        for kw in range(3):
            acc2 = acc2 + jnp.dot(ap_ref[pl.ds(kh * Wp + kw, M), :],
                                  w2_ref[kh, kw],
                                  preferred_element_type=f32)

    # ---- stage result slab, then store only the valid columns row-by-row ----
    # TODO(synk): with W*C a multiple of 128 a lane-dense (H, W*C) output slab
    #             would avoid masked stores; with C=8 at this size the relayout
    #             cost outweighs the saving.
    rs_ref[...] = acc2.astype(rs_ref.dtype)
    for h in range(H):              # ref-side offset loads, static offsets
        o_ref[0, h] = rs_ref[pl.ds(h * Wp, W), :]


# ----------------------------------------------------------------------------
# Wrapper
# ----------------------------------------------------------------------------
def micro_block(x, w1, w2):
    """Fused MicroBlock forward:  x + conv2( StudentT2(conv1(x))[0] ).

    x : (N, H, W, C) NHWC.   w1, w2 : (3, 3, C, C) HWIO (bias-free 3x3, pad 1).
    Works for f32 or bf16 storage (accumulation is always f32).
    """
    N, H, W, C = x.shape
    assert w1.shape == (3, 3, C, C) and w2.shape == (3, 3, C, C)
    Wp = W + 2
    P = (H + 3) * Wp                 # padded flat length (top 1, bottom 2, L/R 1)
    M = H * Wp

    kernel = functools.partial(_micro_block_kernel, H=H, W=W, C=C)
    return pl.pallas_call(
        kernel,
        out_shape=jax.ShapeDtypeStruct((N, H, W, C), x.dtype),
        grid=(N,),
        in_specs=[
            pl.BlockSpec((1, H, W, C), lambda n: (n, 0, 0, 0)),
            pl.BlockSpec((3, 3, C, C), lambda n: (0, 0, 0, 0)),
            pl.BlockSpec((3, 3, C, C), lambda n: (0, 0, 0, 0)),
        ],
        out_specs=pl.BlockSpec((1, H, W, C), lambda n: (n, 0, 0, 0)),
        scratch_shapes=[
            pltpu.VMEM((P, C), x.dtype),   # padded x, flat
            pltpu.VMEM((P, C), x.dtype),   # padded activation, flat
            pltpu.VMEM((M, C), x.dtype),   # staged result slab
        ],
        compiler_params=pltpu.CompilerParams(
            dimension_semantics=("parallel",)),
    )(x, w1, w2)


# ----------------------------------------------------------------------------
if __name__ == "__main__":
    key = jax.random.PRNGKey(0)
    kx, k1, k2 = jax.random.split(key, 3)

    N, H, W, C = 2, 16, 16, 8
    x = jax.random.normal(kx, (N, H, W, C), jnp.float32)
    # PyTorch Conv2d weights are OIHW; HWIO equivalent is weight.transpose(2, 3, 1, 0).
    w1 = 0.1 * jax.random.normal(k1, (3, 3, C, C), jnp.float32)
    w2 = 0.1 * jax.random.normal(k2, (3, 3, C, C), jnp.float32)

    out = jax.block_until_ready(jax.jit(micro_block)(x, w1, w2))
    assert out.shape == (N, H, W, C)

    # Pure-XLA reference check of the fused kernel.
    def conv_ref(v, w):
        return jax.lax.conv_general_dilated(
            v, w, window_strides=(1, 1), padding="SAME",
            dimension_numbers=("NHWC", "HWIO", "NHWC"),
            precision=jax.lax.Precision.HIGHEST)

    a_ref = 0.5 * jnp.log(1.0 + conv_ref(x, w1) ** 2)
    ref = x + conv_ref(a_ref, w2)
    err = float(jnp.max(jnp.abs(out - ref)))
    assert jnp.allclose(out, ref, atol=1e-4, rtol=1e-4), err

    print("KERNEL_OK")
</pallas_src>

<mosaic_0001>
module attributes {stable_mosaic.version = 11 : i64} {
  func.func @_micro_block_kernel(%arg0: i32, %arg1: memref<1x16x16x8xf32, #tpu.memory_space<vmem>>, %arg2: memref<3x3x8x8xf32, #tpu.memory_space<vmem>>, %arg3: memref<3x3x8x8xf32, #tpu.memory_space<vmem>>, %arg4: memref<1x16x16x8xf32, #tpu.memory_space<vmem>>, %arg5: memref<342x8xf32, #tpu.memory_space<vmem>>, %arg6: memref<342x8xf32, #tpu.memory_space<vmem>>, %arg7: memref<288x8xf32, #tpu.memory_space<vmem>>) attributes {dimension_semantics = [#tpu.dimension_semantics<parallel>], iteration_bounds = array<i64: 2>, scalar_prefetch = 0 : i64, scratch_operands = 3 : i64, tpu.core_type = #tpu.core_type<tc>, window_params = [{transform_indices = @transform_0, window_bounds = array<i64: 1, 16, 16, 8>}, {pipeline_mode = #tpu.pipeline_mode<synchronous>, transform_indices = @transform_1, window_bounds = array<i64: 3, 3, 8, 8>}, {pipeline_mode = #tpu.pipeline_mode<synchronous>, transform_indices = @transform_2, window_bounds = array<i64: 3, 3, 8, 8>}, {transform_indices = @transform_3, window_bounds = array<i64: 1, 16, 16, 8>}]} {
    %cst = arith.constant 0.000000e+00 : f32
    %0 = vector.broadcast %cst : f32 to vector<342x8xf32>
    %c0 = arith.constant 0 : index
    %c0_0 = arith.constant 0 : index
    %1 = vector.load %arg5[%c0, %c0_0] : memref<342x8xf32, #tpu.memory_space<vmem>>, vector<342x8xf32>
    tpu.vector_store %arg5[%c0, %c0_0], %0 {strides = array<i32>} : memref<342x8xf32, #tpu.memory_space<vmem>>, vector<342x8xf32>,
    %c0_1 = arith.constant 0 : index
    %c0_2 = arith.constant 0 : index
    %c0_3 = arith.constant 0 : index
    %c0_4 = arith.constant 0 : index
    %2 = vector.load %arg1[%c0_1, %c0_2, %c0_3, %c0_4] : memref<1x16x16x8xf32, #tpu.memory_space<vmem>>, vector<1x1x16x8xf32>
    %3 = vector.shape_cast %2 : vector<1x1x16x8xf32> to vector<16x8xf32>
    %c19 = arith.constant 19 : index
    %c0_5 = arith.constant 0 : index
    %4 = vector.load %arg5[%c19, %c0_5] : memref<342x8xf32, #tpu.memory_space<vmem>>, vector<16x8xf32>
    tpu.vector_store %arg5[%c19, %c0_5], %3 {strides = array<i32>} : memref<342x8xf32, #tpu.memory_space<vmem>>, vector<16x8xf32>,
    %c0_6 = arith.constant 0 : index
    %c1 = arith.constant 1 : index
    %c0_7 = arith.constant 0 : index
    %c0_8 = arith.constant 0 : index
    %5 = vector.load %arg1[%c0_6, %c1, %c0_7, %c0_8] : memref<1x16x16x8xf32, #tpu.memory_space<vmem>>, vector<1x1x16x8xf32>
    %6 = vector.shape_cast %5 : vector<1x1x16x8xf32> to vector<16x8xf32>
    %c37 = arith.constant 37 : index
    %c0_9 = arith.constant 0 : index
    %7 = vector.load %arg5[%c37, %c0_9] : memref<342x8xf32, #tpu.memory_space<vmem>>, vector<16x8xf32>
    tpu.vector_store %arg5[%c37, %c0_9], %6 {strides = array<i32>} : memref<342x8xf32, #tpu.memory_space<vmem>>, vector<16x8xf32>,
    %c0_10 = arith.constant 0 : index
    %c2 = arith.constant 2 : index
    %c0_11 = arith.constant 0 : index
    %c0_12 = arith.constant 0 : index
    %8 = vector.load %arg1[%c0_10, %c2, %c0_11, %c0_12] : memref<1x16x16x8xf32, #tpu.memory_space<vmem>>, vector<1x1x16x8xf32>
    %9 = vector.shape_cast %8 : vector<1x1x16x8xf32> to vector<16x8xf32>
    %c55 = arith.constant 55 : index
    %c0_13 = arith.constant 0 : index
    %10 = vector.load %arg5[%c55, %c0_13] : memref<342x8xf32, #tpu.memory_space<vmem>>, vector<16x8xf32>
    tpu.vector_store %arg5[%c55, %c0_13], %9 {strides = array<i32>} : memref<342x8xf32, #tpu.memory_space<vmem>>, vector<16x8xf32>,
    %c0_14 = arith.constant 0 : index
    %c3 = arith.constant 3 : index
    %c0_15 = arith.constant 0 : index
    %c0_16 = arith.constant 0 : index
    %11 = vector.load %arg1[%c0_14, %c3, %c0_15, %c0_16] : memref<1x16x16x8xf32, #tpu.memory_space<vmem>>, vector<1x1x16x8xf32>
    %12 = vector.shape_cast %11 : vector<1x1x16x8xf32> to vector<16x8xf32>
    %c73 = arith.constant 73 : index
    %c0_17 = arith.constant 0 : index
    %13 = vector.load %arg5[%c73, %c0_17] : memref<342x8xf32, #tpu.memory_space<vmem>>, vector<16x8xf32>
    tpu.vector_store %arg5[%c73, %c0_17], %12 {strides = array<i32>} : memref<342x8xf32, #tpu.memory_space<vmem>>, vector<16x8xf32>,
    %c0_18 = arith.constant 0 : index
    %c4 = arith.constant 4 : index
    %c0_19 = arith.constant 0 : index
    %c0_20 = arith.constant 0 : index
    %14 = vector.load %arg1[%c0_18, %c4, %c0_19, %c0_20] : memref<1x16x16x8xf32, #tpu.memory_space<vmem>>, vector<1x1x16x8xf32>
    %15 = vector.shape_cast %14 : vector<1x1x16x8xf32> to vector<16x8xf32>
    %c91 = arith.constant 91 : index
    %c0_21 = arith.constant 0 : index
    %16 = vector.load %arg5[%c91, %c0_21] : memref<342x8xf32, #tpu.memory_space<vmem>>, vector<16x8xf32>
    tpu.vector_store %arg5[%c91, %c0_21], %15 {strides = array<i32>} : memref<342x8xf32, #tpu.memory_space<vmem>>, vector<16x8xf32>,
    %c0_22 = arith.constant 0 : index
    %c5 = arith.constant 5 : index
    %c0_23 = arith.constant 0 : index
    %c0_24 = arith.constant 0 : index
    %17 = vector.load %arg1[%c0_22, %c5, %c0_23, %c0_24] : memref<1x16x16x8xf32, #tpu.memory_space<vmem>>, vector<1x1x16x8xf32>
    %18 = vector.shape_cast %17 : vector<1x1x16x8xf32> to vector<16x8xf32>
    %c109 = arith.constant 109 : index
    %c0_25 = arith.constant 0 : index
    %19 = vector.load %arg5[%c109, %c0_25] : memref<342x8xf32, #tpu.memory_space<vmem>>, vector<16x8xf32>
    tpu.vector_store %arg5[%c109, %c0_25], %18 {strides = array<i32>} : memref<342x8xf32, #tpu.memory_space<vmem>>, vector<16x8xf32>,
    %c0_26 = arith.constant 0 : index
    %c6 = arith.constant 6 : index
    %c0_27 = arith.constant 0 : index
    %c0_28 = arith.constant 0 : index
    %20 = vector.load %arg1[%c0_26, %c6, %c0_27, %c0_28] : memref<1x16x16x8xf32, #tpu.memory_space<vmem>>, vector<1x1x16x8xf32>
    %21 = vector.shape_cast %20 : vector<1x1x16x8xf32> to vector<16x8xf32>
    %c127 = arith.constant 127 : index
    %c0_29 = arith.constant 0 : index
    %22 = vector.load %arg5[%c127, %c0_29] : memref<342x8xf32, #tpu.memory_space<vmem>>, vector<16x8xf32>
    tpu.vector_store %arg5[%c127, %c0_29], %21 {strides = array<i32>} : memref<342x8xf32, #tpu.memory_space<vmem>>, vector<16x8xf32>,
    %c0_30 = arith.constant 0 : index
    %c7 = arith.constant 7 : index
    %c0_31 = arith.constant 0 : index
    %c0_32 = arith.constant 0 : index
    %23 = vector.load %arg1[%c0_30, %c7, %c0_31, %c0_32] : memref<1x16x16x8xf32, #tpu.memory_space<vmem>>, vector<1x1x16x8xf32>
    %24 = vector.shape_cast %23 : vector<1x1x16x8xf32> to vector<16x8xf32>
    %c145 = arith.constant 145 : index
    %c0_33 = arith.constant 0 : index
    %25 = vector.load %arg5[%c145, %c0_33] : memref<342x8xf32, #tpu.memory_space<vmem>>, vector<16x8xf32>
    tpu.vector_store %arg5[%c145, %c0_33], %24 {strides = array<i32>} : memref<342x8xf32, #tpu.memory_space<vmem>>, vector<16x8xf32>,
    %c0_34 = arith.constant 0 : index
    %c8 = arith.constant 8 : index
    %c0_35 = arith.constant 0 : index
    %c0_36 = arith.constant 0 : index
    %26 = vector.load %arg1[%c0_34, %c8, %c0_35, %c0_36] : memref<1x16x16x8xf32, #tpu.memory_space<vmem>>, vector<1x1x16x8xf32>
    %27 = vector.shape_cast %26 : vector<1x1x16x8xf32> to vector<16x8xf32>
    %c163 = arith.constant 163 : index
    %c0_37 = arith.constant 0 : index
    %28 = vector.load %arg5[%c163, %c0_37] : memref<342x8xf32, #tpu.memory_space<vmem>>, vector<16x8xf32>
    tpu.vector_store %arg5[%c163, %c0_37], %27 {strides = array<i32>} : memref<342x8xf32, #tpu.memory_space<vmem>>, vector<16x8xf32>,
    %c0_38 = arith.constant 0 : index
    %c9 = arith.constant 9 : index
    %c0_39 = arith.constant 0 : index
    %c0_40 = arith.constant 0 : index
    %29 = vector.load %arg1[%c0_38, %c9, %c0_39, %c0_40] : memref<1x16x16x8xf32, #tpu.memory_space<vmem>>, vector<1x1x16x8xf32>
    %30 = vector.shape_cast %29 : vector<1x1x16x8xf32> to vector<16x8xf32>
    %c181 = arith.constant 181 : index
    %c0_41 = arith.constant 0 : index
    %31 = vector.load %arg5[%c181, %c0_41] : memref<342x8xf32, #tpu.memory_space<vmem>>, vector<16x8xf32>
    tpu.vector_store %arg5[%c181, %c0_41], %30 {strides = array<i32>} : memref<342x8xf32, #tpu.memory_space<vmem>>, vector<16x8xf32>,
    %c0_42 = arith.constant 0 : index
    %c10 = arith.constant 10 : index
    %c0_43 = arith.constant 0 : index
    %c0_44 = arith.constant 0 : index
    %32 = vector.load %arg1[%c0_42, %c10, %c0_43, %c0_44] : memref<1x16x16x8xf32, #tpu.memory_space<vmem>>, vector<1x1x16x8xf32>
    %33 = vector.shape_cast %32 : vector<1x1x16x8xf32> to vector<16x8xf32>
    %c199 = arith.constant 199 : index
    %c0_45 = arith.constant 0 : index
    %34 = vector.load %arg5[%c199, %c0_45] : memref<342x8xf32, #tpu.memory_space<vmem>>, vector<16x8xf32>
    tpu.vector_store %arg5[%c199, %c0_45], %33 {strides = array<i32>} : memref<342x8xf32, #tpu.memory_space<vmem>>, vector<16x8xf32>,
    %c0_46 = arith.constant 0 : index
    %c11 = arith.constant 11 : index
    %c0_47 = arith.constant 0 : index
    %c0_48 = arith.constant 0 : index
    %35 = vector.load %arg1[%c0_46, %c11, %c0_47, %c0_48] : memref<1x16x16x8xf32, #tpu.memory_space<vmem>>, vector<1x1x16x8xf32>
    %36 = vector.shape_cast %35 : vector<1x1x16x8xf32> to vector<16x8xf32>
    %c217 = arith.constant 217 : index
    %c0_49 = arith.constant 0 : index
    %37 = vector.load %arg5[%c217, %c0_49] : memref<342x8xf32, #tpu.memory_space<vmem>>, vector<16x8xf32>
    tpu.vector_store %arg5[%c217, %c0_49], %36 {strides = array<i32>} : memref<342x8xf32, #tpu.memory_space<vmem>>, vector<16x8xf32>,
    %c0_50 = arith.constant 0 : index
    %c12 = arith.constant 12 : index
    %c0_51 = arith.constant 0 : index
    %c0_52 = arith.constant 0 : index
    %38 = vector.load %arg1[%c0_50, %c12, %c0_51, %c0_52] : memref<1x16x16x8xf32, #tpu.memory_space<vmem>>, vector<1x1x16x8xf32>
    %39 = vector.shape_cast %38 : vector<1x1x16x8xf32> to vector<16x8xf32>
    %c235 = arith.constant 235 : index
    %c0_53 = arith.constant 0 : index
    %40 = vector.load %arg5[%c235, %c0_53] : memref<342x8xf32, #tpu.memory_space<vmem>>, vector<16x8xf32>
    tpu.vector_store %arg5[%c235, %c0_53], %39 {strides = array<i32>} : memref<342x8xf32, #tpu.memory_space<vmem>>, vector<16x8xf32>,
    %c0_54 = arith.constant 0 : index
    %c13 = arith.constant 13 : index
    %c0_55 = arith.constant 0 : index
    %c0_56 = arith.constant 0 : index
    %41 = vector.load %arg1[%c0_54, %c13, %c0_55, %c0_56] : memref<1x16x16x8xf32, #tpu.memory_space<vmem>>, vector<1x1x16x8xf32>
    %42 = vector.shape_cast %41 : vector<1x1x16x8xf32> to vector<16x8xf32>
    %c253 = arith.constant 253 : index
    %c0_57 = arith.constant 0 : index
    %43 = vector.load %arg5[%c253, %c0_57] : memref<342x8xf32, #tpu.memory_space<vmem>>, vector<16x8xf32>
    tpu.vector_store %arg5[%c253, %c0_57], %42 {strides = array<i32>} : memref<342x8xf32, #tpu.memory_space<vmem>>, vector<16x8xf32>,
    %c0_58 = arith.constant 0 : index
    %c14 = arith.constant 14 : index
    %c0_59 = arith.constant 0 : index
    %c0_60 = arith.constant 0 : index
    %44 = vector.load %arg1[%c0_58, %c14, %c0_59, %c0_60] : memref<1x16x16x8xf32, #tpu.memory_space<vmem>>, vector<1x1x16x8xf32>
    %45 = vector.shape_cast %44 : vector<1x1x16x8xf32> to vector<16x8xf32>
    %c271 = arith.constant 271 : index
    %c0_61 = arith.constant 0 : index
    %46 = vector.load %arg5[%c271, %c0_61] : memref<342x8xf32, #tpu.memory_space<vmem>>, vector<16x8xf32>
    tpu.vector_store %arg5[%c271, %c0_61], %45 {strides = array<i32>} : memref<342x8xf32, #tpu.memory_space<vmem>>, vector<16x8xf32>,
    %c0_62 = arith.constant 0 : index
    %c15 = arith.constant 15 : index
    %c0_63 = arith.constant 0 : index
    %c0_64 = arith.constant 0 : index
    %47 = vector.load %arg1[%c0_62, %c15, %c0_63, %c0_64] : memref<1x16x16x8xf32, #tpu.memory_space<vmem>>, vector<1x1x16x8xf32>
    %48 = vector.shape_cast %47 : vector<1x1x16x8xf32> to vector<16x8xf32>
    %c289 = arith.constant 289 : index
    %c0_65 = arith.constant 0 : index
    %49 = vector.load %arg5[%c289, %c0_65] : memref<342x8xf32, #tpu.memory_space<vmem>>, vector<16x8xf32>
    tpu.vector_store %arg5[%c289, %c0_65], %48 {strides = array<i32>} : memref<342x8xf32, #tpu.memory_space<vmem>>, vector<16x8xf32>,
    %cst_66 = arith.constant 0.000000e+00 : f32
    %50 = vector.broadcast %cst_66 : f32 to vector<288x8xf32>
    %c0_67 = arith.constant 0 : index
    %c0_68 = arith.constant 0 : index
    %51 = vector.load %arg5[%c0_67, %c0_68] : memref<342x8xf32, #tpu.memory_space<vmem>>, vector<288x8xf32>
    %c0_69 = arith.constant 0 : index
    %c0_70 = arith.constant 0 : index
    %c0_71 = arith.constant 0 : index
    %c0_72 = arith.constant 0 : index
    %52 = vector.load %arg2[%c0_69, %c0_70, %c0_71, %c0_72] : memref<3x3x8x8xf32, #tpu.memory_space<vmem>>, vector<1x1x8x8xf32>
    %53 = vector.shape_cast %52 : vector<1x1x8x8xf32> to vector<8x8xf32>
    %cst_73 = arith.constant dense<0.000000e+00> : vector<288x8xf32>
    %54 = tpu.matmul %51, %53, %cst_73 {dimension_numbers = #tpu.dot_dimension_numbers<[1], [0], [0], [1], [0, 0, 1, 1], [], []>} : vector<288x8xf32>, vector<8x8xf32>, vector<288x8xf32> -> vector<288x8xf32>
    %55 = arith.addf %50, %54 : vector<288x8xf32>
    %c1_74 = arith.constant 1 : index
    %c0_75 = arith.constant 0 : index
    %56 = vector.load %arg5[%c1_74, %c0_75] : memref<342x8xf32, #tpu.memory_space<vmem>>, vector<288x8xf32>
    %c0_76 = arith.constant 0 : index
    %c1_77 = arith.constant 1 : index
    %c0_78 = arith.constant 0 : index
    %c0_79 = arith.constant 0 : index
    %57 = vector.load %arg2[%c0_76, %c1_77, %c0_78, %c0_79] : memref<3x3x8x8xf32, #tpu.memory_space<vmem>>, vector<1x1x8x8xf32>
    %58 = vector.shape_cast %57 : vector<1x1x8x8xf32> to vector<8x8xf32>
    %cst_80 = arith.constant dense<0.000000e+00> : vector<288x8xf32>
    %59 = tpu.matmul %56, %58, %cst_80 {dimension_numbers = #tpu.dot_dimension_numbers<[1], [0], [0], [1], [0, 0, 1, 1], [], []>} : vector<288x8xf32>, vector<8x8xf32>, vector<288x8xf32> -> vector<288x8xf32>
    %60 = arith.addf %55, %59 : vector<288x8xf32>
    %c2_81 = arith.constant 2 : index
    %c0_82 = arith.constant 0 : index
    %61 = vector.load %arg5[%c2_81, %c0_82] : memref<342x8xf32, #tpu.memory_space<vmem>>, vector<288x8xf32>
    %c0_83 = arith.constant 0 : index
    %c2_84 = arith.constant 2 : index
    %c0_85 = arith.constant 0 : index
    %c0_86 = arith.constant 0 : index
    %62 = vector.load %arg2[%c0_83, %c2_84, %c0_85, %c0_86] : memref<3x3x8x8xf32, #tpu.memory_space<vmem>>, vector<1x1x8x8xf32>
    %63 = vector.shape_cast %62 : vector<1x1x8x8xf32> to vector<8x8xf32>
    %cst_87 = arith.constant dense<0.000000e+00> : vector<288x8xf32>
    %64 = tpu.matmul %61, %63, %cst_87 {dimension_numbers = #tpu.dot_dimension_numbers<[1], [0], [0], [1], [0, 0, 1, 1], [], []>} : vector<288x8xf32>, vector<8x8xf32>, vector<288x8xf32> -> vector<288x8xf32>
    %65 = arith.addf %60, %64 : vector<288x8xf32>
    %c18 = arith.constant 18 : index
    %c0_88 = arith.constant 0 : index
    %66 = vector.load %arg5[%c18, %c0_88] : memref<342x8xf32, #tpu.memory_space<vmem>>, vector<288x8xf32>
    %c1_89 = arith.constant 1 : index
    %c0_90 = arith.constant 0 : index
    %c0_91 = arith.constant 0 : index
    %c0_92 = arith.constant 0 : index
    %67 = vector.load %arg2[%c1_89, %c0_90, %c0_91, %c0_92] : memref<3x3x8x8xf32, #tpu.memory_space<vmem>>, vector<1x1x8x8xf32>
    %68 = vector.shape_cast %67 : vector<1x1x8x8xf32> to vector<8x8xf32>
    %cst_93 = arith.constant dense<0.000000e+00> : vector<288x8xf32>
    %69 = tpu.matmul %66, %68, %cst_93 {dimension_numbers = #tpu.dot_dimension_numbers<[1], [0], [0], [1], [0, 0, 1, 1], [], []>} : vector<288x8xf32>, vector<8x8xf32>, vector<288x8xf32> -> vector<288x8xf32>
    %70 = arith.addf %65, %69 : vector<288x8xf32>
    %c19_94 = arith.constant 19 : index
    %c0_95 = arith.constant 0 : index
    %71 = vector.load %arg5[%c19_94, %c0_95] : memref<342x8xf32, #tpu.memory_space<vmem>>, vector<288x8xf32>
    %c1_96 = arith.constant 1 : index
    %c1_97 = arith.constant 1 : index
    %c0_98 = arith.constant 0 : index
    %c0_99 = arith.constant 0 : index
    %72 = vector.load %arg2[%c1_96, %c1_97, %c0_98, %c0_99] : memref<3x3x8x8xf32, #tpu.memory_space<vmem>>, vector<1x1x8x8xf32>
    %73 = vector.shape_cast %72 : vector<1x1x8x8xf32> to vector<8x8xf32>
    %cst_100 = arith.constant dense<0.000000e+00> : vector<288x8xf32>
    %74 = tpu.matmul %71, %73, %cst_100 {dimension_numbers = #tpu.dot_dimension_numbers<[1], [0], [0], [1], [0, 0, 1, 1], [], []>} : vector<288x8xf32>, vector<8x8xf32>, vector<288x8xf32> -> vector<288x8xf32>
    %75 = arith.addf %70, %74 : vector<288x8xf32>
    %c20 = arith.constant 20 : index
    %c0_101 = arith.constant 0 : index
    %76 = vector.load %arg5[%c20, %c0_101] : memref<342x8xf32, #tpu.memory_space<vmem>>, vector<288x8xf32>
    %c1_102 = arith.constant 1 : index
    %c2_103 = arith.constant 2 : index
    %c0_104 = arith.constant 0 : index
    %c0_105 = arith.constant 0 : index
    %77 = vector.load %arg2[%c1_102, %c2_103, %c0_104, %c0_105] : memref<3x3x8x8xf32, #tpu.memory_space<vmem>>, vector<1x1x8x8xf32>
    %78 = vector.shape_cast %77 : vector<1x1x8x8xf32> to vector<8x8xf32>
    %cst_106 = arith.constant dense<0.000000e+00> : vector<288x8xf32>
    %79 = tpu.matmul %76, %78, %cst_106 {dimension_numbers = #tpu.dot_dimension_numbers<[1], [0], [0], [1], [0, 0, 1, 1], [], []>} : vector<288x8xf32>, vector<8x8xf32>, vector<288x8xf32> -> vector<288x8xf32>
    %80 = arith.addf %75, %79 : vector<288x8xf32>
    %c36 = arith.constant 36 : index
    %c0_107 = arith.constant 0 : index
    %81 = vector.load %arg5[%c36, %c0_107] : memref<342x8xf32, #tpu.memory_space<vmem>>, vector<288x8xf32>
    %c2_108 = arith.constant 2 : index
    %c0_109 = arith.constant 0 : index
    %c0_110 = arith.constant 0 : index
    %c0_111 = arith.constant 0 : index
    %82 = vector.load %arg2[%c2_108, %c0_109, %c0_110, %c0_111] : memref<3x3x8x8xf32, #tpu.memory_space<vmem>>, vector<1x1x8x8xf32>
    %83 = vector.shape_cast %82 : vector<1x1x8x8xf32> to vector<8x8xf32>
    %cst_112 = arith.constant dense<0.000000e+00> : vector<288x8xf32>
    %84 = tpu.matmul %81, %83, %cst_112 {dimension_numbers = #tpu.dot_dimension_numbers<[1], [0], [0], [1], [0, 0, 1, 1], [], []>} : vector<288x8xf32>, vector<8x8xf32>, vector<288x8xf32> -> vector<288x8xf32>
    %85 = arith.addf %80, %84 : vector<288x8xf32>
    %c37_113 = arith.constant 37 : index
    %c0_114 = arith.constant 0 : index
    %86 = vector.load %arg5[%c37_113, %c0_114] : memref<342x8xf32, #tpu.memory_space<vmem>>, vector<288x8xf32>
    %c2_115 = arith.constant 2 : index
    %c1_116 = arith.constant 1 : index
    %c0_117 = arith.constant 0 : index
    %c0_118 = arith.constant 0 : index
    %87 = vector.load %arg2[%c2_115, %c1_116, %c0_117, %c0_118] : memref<3x3x8x8xf32, #tpu.memory_space<vmem>>, vector<1x1x8x8xf32>
    %88 = vector.shape_cast %87 : vector<1x1x8x8xf32> to vector<8x8xf32>
    %cst_119 = arith.constant dense<0.000000e+00> : vector<288x8xf32>
    %89 = tpu.matmul %86, %88, %cst_119 {dimension_numbers = #tpu.dot_dimension_numbers<[1], [0], [0], [1], [0, 0, 1, 1], [], []>} : vector<288x8xf32>, vector<8x8xf32>, vector<288x8xf32> -> vector<288x8xf32>
    %90 = arith.addf %85, %89 : vector<288x8xf32>
    %c38 = arith.constant 38 : index
    %c0_120 = arith.constant 0 : index
    %91 = vector.load %arg5[%c38, %c0_120] : memref<342x8xf32, #tpu.memory_space<vmem>>, vector<288x8xf32>
    %c2_121 = arith.constant 2 : index
    %c2_122 = arith.constant 2 : index
    %c0_123 = arith.constant 0 : index
    %c0_124 = arith.constant 0 : index
    %92 = vector.load %arg2[%c2_121, %c2_122, %c0_123, %c0_124] : memref<3x3x8x8xf32, #tpu.memory_space<vmem>>, vector<1x1x8x8xf32>
    %93 = vector.shape_cast %92 : vector<1x1x8x8xf32> to vector<8x8xf32>
    %cst_125 = arith.constant dense<0.000000e+00> : vector<288x8xf32>
    %94 = tpu.matmul %91, %93, %cst_125 {dimension_numbers = #tpu.dot_dimension_numbers<[1], [0], [0], [1], [0, 0, 1, 1], [], []>} : vector<288x8xf32>, vector<8x8xf32>, vector<288x8xf32> -> vector<288x8xf32>
    %95 = arith.addf %90, %94 : vector<288x8xf32>
    %96 = arith.mulf %95, %95 : vector<288x8xf32>
    %cst_126 = arith.constant 1.000000e+00 : f32
    %97 = vector.broadcast %cst_126 : f32 to vector<288x8xf32>
    %98 = arith.addf %97, %96 : vector<288x8xf32>
    %99 = math.log %98 : vector<288x8xf32>
    %cst_127 = arith.constant 5.000000e-01 : f32
    %100 = vector.broadcast %cst_127 : f32 to vector<288x8xf32>
    %101 = arith.mulf %100, %99 : vector<288x8xf32>
    %102 = tpu.iota {dimensions = array<i32: 0>} : vector<288x8xi32>
    %c18_i32 = arith.constant 18 : i32
    %c0_i32 = arith.constant 0 : i32
    %103 = arith.cmpi eq, %c18_i32, %c0_i32 : i32
    %c1_i32 = arith.constant 1 : i32
    %104 = arith.select %103, %c1_i32, %c18_i32 : i32
    %105 = vector.broadcast %104 : i32 to vector<288x8xi32>
    %106 = arith.remsi %102, %105 : vector<288x8xi32>
    %c0_i32_128 = arith.constant 0 : i32
    %107 = vector.broadcast %c0_i32_128 : i32 to vector<288x8xi32>
    %108 = arith.cmpi ne, %106, %107 : vector<288x8xi32>
    %c0_i32_129 = arith.constant 0 : i32
    %109 = vector.broadcast %c0_i32_129 : i32 to vector<288x8xi32>
    %110 = arith.cmpi slt, %106, %109 : vector<288x8xi32>
    %c0_i32_130 = arith.constant 0 : i32
    %111 = arith.cmpi slt, %104, %c0_i32_130 : i32
    %112 = vector.broadcast %111 : i1 to vector<288x8xi1>
    %113 = vector.broadcast %112 : vector<288x8xi1> to vector<288x8xi1>
    %114 = arith.xori %110, %113 : vector<288x8xi1>
    %115 = arith.andi %114, %108 : vector<288x8xi1>
    %116 = vector.broadcast %104 : i32 to vector<288x8xi32>
    %117 = arith.addi %106, %116 : vector<288x8xi32>
    %118 = arith.select %115, %117, %106 : vector<288x8xi1>, vector<288x8xi32>
    %c16_i32 = arith.constant 16 : i32
    %119 = vector.broadcast %c16_i32 : i32 to vector<288x8xi32>
    %120 = arith.cmpi slt, %118, %119 : vector<288x8xi32>
    %cst_131 = arith.constant 0.000000e+00 : f32
    %121 = vector.broadcast %cst_131 : f32 to vector<288x8xf32>
    %122 = arith.select %120, %101, %121 : vector<288x8xi1>, vector<288x8xf32>
    %cst_132 = arith.constant 0.000000e+00 : f32
    %123 = vector.broadcast %cst_132 : f32 to vector<342x8xf32>
    %c0_133 = arith.constant 0 : index
    %c0_134 = arith.constant 0 : index
    %124 = vector.load %arg6[%c0_133, %c0_134] : memref<342x8xf32, #tpu.memory_space<vmem>>, vector<342x8xf32>
    tpu.vector_store %arg6[%c0_133, %c0_134], %123 {strides = array<i32>} : memref<342x8xf32, #tpu.memory_space<vmem>>, vector<342x8xf32>,
    %c19_135 = arith.constant 19 : index
    %c0_136 = arith.constant 0 : index
    %125 = vector.load %arg6[%c19_135, %c0_136] : memref<342x8xf32, #tpu.memory_space<vmem>>, vector<288x8xf32>
    tpu.vector_store %arg6[%c19_135, %c0_136], %122 {strides = array<i32>} : memref<342x8xf32, #tpu.memory_space<vmem>>, vector<288x8xf32>,
    %c19_137 = arith.constant 19 : index
    %c0_138 = arith.constant 0 : index
    %126 = vector.load %arg5[%c19_137, %c0_138] : memref<342x8xf32, #tpu.memory_space<vmem>>, vector<288x8xf32>
    %c0_139 = arith.constant 0 : index
    %c0_140 = arith.constant 0 : index
    %127 = vector.load %arg6[%c0_139, %c0_140] : memref<342x8xf32, #tpu.memory_space<vmem>>, vector<288x8xf32>
    %c0_141 = arith.constant 0 : index
    %c0_142 = arith.constant 0 : index
    %c0_143 = arith.constant 0 : index
    %c0_144 = arith.constant 0 : index
    %128 = vector.load %arg3[%c0_141, %c0_142, %c0_143, %c0_144] : memref<3x3x8x8xf32, #tpu.memory_space<vmem>>, vector<1x1x8x8xf32>
    %129 = vector.shape_cast %128 : vector<1x1x8x8xf32> to vector<8x8xf32>
    %cst_145 = arith.constant dense<0.000000e+00> : vector<288x8xf32>
    %130 = tpu.matmul %127, %129, %cst_145 {dimension_numbers = #tpu.dot_dimension_numbers<[1], [0], [0], [1], [0, 0, 1, 1], [], []>} : vector<288x8xf32>, vector<8x8xf32>, vector<288x8xf32> -> vector<288x8xf32>
    %131 = arith.addf %126, %130 : vector<288x8xf32>
    %c1_146 = arith.constant 1 : index
    %c0_147 = arith.constant 0 : index
    %132 = vector.load %arg6[%c1_146, %c0_147] : memref<342x8xf32, #tpu.memory_space<vmem>>, vector<288x8xf32>
    %c0_148 = arith.constant 0 : index
    %c1_149 = arith.constant 1 : index
    %c0_150 = arith.constant 0 : index
    %c0_151 = arith.constant 0 : index
    %133 = vector.load %arg3[%c0_148, %c1_149, %c0_150, %c0_151] : memref<3x3x8x8xf32, #tpu.memory_space<vmem>>, vector<1x1x8x8xf32>
    %134 = vector.shape_cast %133 : vector<1x1x8x8xf32> to vector<8x8xf32>
    %cst_152 = arith.constant dense<0.000000e+00> : vector<288x8xf32>
    %135 = tpu.matmul %132, %134, %cst_152 {dimension_numbers = #tpu.dot_dimension_numbers<[1], [0], [0], [1], [0, 0, 1, 1], [], []>} : vector<288x8xf32>, vector<8x8xf32>, vector<288x8xf32> -> vector<288x8xf32>
    %136 = arith.addf %131, %135 : vector<288x8xf32>
    %c2_153 = arith.constant 2 : index
    %c0_154 = arith.constant 0 : index
    %137 = vector.load %arg6[%c2_153, %c0_154] : memref<342x8xf32, #tpu.memory_space<vmem>>, vector<288x8xf32>
    %c0_155 = arith.constant 0 : index
    %c2_156 = arith.constant 2 : index
    %c0_157 = arith.constant 0 : index
    %c0_158 = arith.constant 0 : index
    %138 = vector.load %arg3[%c0_155, %c2_156, %c0_157, %c0_158] : memref<3x3x8x8xf32, #tpu.memory_space<vmem>>, vector<1x1x8x8xf32>
    %139 = vector.shape_cast %138 : vector<1x1x8x8xf32> to vector<8x8xf32>
    %cst_159 = arith.constant dense<0.000000e+00> : vector<288x8xf32>
    %140 = tpu.matmul %137, %139, %cst_159 {dimension_numbers = #tpu.dot_dimension_numbers<[1], [0], [0], [1], [0, 0, 1, 1], [], []>} : vector<288x8xf32>, vector<8x8xf32>, vector<288x8xf32> -> vector<288x8xf32>
    %141 = arith.addf %136, %140 : vector<288x8xf32>
    %c18_160 = arith.constant 18 : index
    %c0_161 = arith.constant 0 : index
    %142 = vector.load %arg6[%c18_160, %c0_161] : memref<342x8xf32, #tpu.memory_space<vmem>>, vector<288x8xf32>
    %c1_162 = arith.constant 1 : index
    %c0_163 = arith.constant 0 : index
    %c0_164 = arith.constant 0 : index
    %c0_165 = arith.constant 0 : index
    %143 = vector.load %arg3[%c1_162, %c0_163, %c0_164, %c0_165] : memref<3x3x8x8xf32, #tpu.memory_space<vmem>>, vector<1x1x8x8xf32>
    %144 = vector.shape_cast %143 : vector<1x1x8x8xf32> to vector<8x8xf32>
    %cst_166 = arith.constant dense<0.000000e+00> : vector<288x8xf32>
    %145 = tpu.matmul %142, %144, %cst_166 {dimension_numbers = #tpu.dot_dimension_numbers<[1], [0], [0], [1], [0, 0, 1, 1], [], []>} : vector<288x8xf32>, vector<8x8xf32>, vector<288x8xf32> -> vector<288x8xf32>
    %146 = arith.addf %141, %145 : vector<288x8xf32>
    %c19_167 = arith.constant 19 : index
    %c0_168 = arith.constant 0 : index
    %147 = vector.load %arg6[%c19_167, %c0_168] : memref<342x8xf32, #tpu.memory_space<vmem>>, vector<288x8xf32>
    %c1_169 = arith.constant 1 : index
    %c1_170 = arith.constant 1 : index
    %c0_171 = arith.constant 0 : index
    %c0_172 = arith.constant 0 : index
    %148 = vector.load %arg3[%c1_169, %c1_170, %c0_171, %c0_172] : memref<3x3x8x8xf32, #tpu.memory_space<vmem>>, vector<1x1x8x8xf32>
    %149 = vector.shape_cast %148 : vector<1x1x8x8xf32> to vector<8x8xf32>
    %cst_173 = arith.constant dense<0.000000e+00> : vector<288x8xf32>
    %150 = tpu.matmul %147, %149, %cst_173 {dimension_numbers = #tpu.dot_dimension_numbers<[1], [0], [0], [1], [0, 0, 1, 1], [], []>} : vector<288x8xf32>, vector<8x8xf32>, vector<288x8xf32> -> vector<288x8xf32>
    %151 = arith.addf %146, %150 : vector<288x8xf32>
    %c20_174 = arith.constant 20 : index
    %c0_175 = arith.constant 0 : index
    %152 = vector.load %arg6[%c20_174, %c0_175] : memref<342x8xf32, #tpu.memory_space<vmem>>, vector<288x8xf32>
    %c1_176 = arith.constant 1 : index
    %c2_177 = arith.constant 2 : index
    %c0_178 = arith.constant 0 : index
    %c0_179 = arith.constant 0 : index
    %153 = vector.load %arg3[%c1_176, %c2_177, %c0_178, %c0_179] : memref<3x3x8x8xf32, #tpu.memory_space<vmem>>, vector<1x1x8x8xf32>
    %154 = vector.shape_cast %153 : vector<1x1x8x8xf32> to vector<8x8xf32>
    %cst_180 = arith.constant dense<0.000000e+00> : vector<288x8xf32>
    %155 = tpu.matmul %152, %154, %cst_180 {dimension_numbers = #tpu.dot_dimension_numbers<[1], [0], [0], [1], [0, 0, 1, 1], [], []>} : vector<288x8xf32>, vector<8x8xf32>, vector<288x8xf32> -> vector<288x8xf32>
    %156 = arith.addf %151, %155 : vector<288x8xf32>
    %c36_181 = arith.constant 36 : index
    %c0_182 = arith.constant 0 : index
    %157 = vector.load %arg6[%c36_181, %c0_182] : memref<342x8xf32, #tpu.memory_space<vmem>>, vector<288x8xf32>
    %c2_183 = arith.constant 2 : index
    %c0_184 = arith.constant 0 : index
    %c0_185 = arith.constant 0 : index
    %c0_186 = arith.constant 0 : index
    %158 = vector.load %arg3[%c2_183, %c0_184, %c0_185, %c0_186] : memref<3x3x8x8xf32, #tpu.memory_space<vmem>>, vector<1x1x8x8xf32>
    %159 = vector.shape_cast %158 : vector<1x1x8x8xf32> to vector<8x8xf32>
    %cst_187 = arith.constant dense<0.000000e+00> : vector<288x8xf32>
    %160 = tpu.matmul %157, %159, %cst_187 {dimension_numbers = #tpu.dot_dimension_numbers<[1], [0], [0], [1], [0, 0, 1, 1], [], []>} : vector<288x8xf32>, vector<8x8xf32>, vector<288x8xf32> -> vector<288x8xf32>
    %161 = arith.addf %156, %160 : vector<288x8xf32>
    %c37_188 = arith.constant 37 : index
    %c0_189 = arith.constant 0 : index
    %162 = vector.load %arg6[%c37_188, %c0_189] : memref<342x8xf32, #tpu.memory_space<vmem>>, vector<288x8xf32>
    %c2_190 = arith.constant 2 : index
    %c1_191 = arith.constant 1 : index
    %c0_192 = arith.constant 0 : index
    %c0_193 = arith.constant 0 : index
    %163 = vector.load %arg3[%c2_190, %c1_191, %c0_192, %c0_193] : memref<3x3x8x8xf32, #tpu.memory_space<vmem>>, vector<1x1x8x8xf32>
    %164 = vector.shape_cast %163 : vector<1x1x8x8xf32> to vector<8x8xf32>
    %cst_194 = arith.constant dense<0.000000e+00> : vector<288x8xf32>
    %165 = tpu.matmul %162, %164, %cst_194 {dimension_numbers = #tpu.dot_dimension_numbers<[1], [0], [0], [1], [0, 0, 1, 1], [], []>} : vector<288x8xf32>, vector<8x8xf32>, vector<288x8xf32> -> vector<288x8xf32>
    %166 = arith.addf %161, %165 : vector<288x8xf32>
    %c38_195 = arith.constant 38 : index
    %c0_196 = arith.constant 0 : index
    %167 = vector.load %arg6[%c38_195, %c0_196] : memref<342x8xf32, #tpu.memory_space<vmem>>, vector<288x8xf32>
    %c2_197 = arith.constant 2 : index
    %c2_198 = arith.constant 2 : index
    %c0_199 = arith.constant 0 : index
    %c0_200 = arith.constant 0 : index
    %168 = vector.load %arg3[%c2_197, %c2_198, %c0_199, %c0_200] : memref<3x3x8x8xf32, #tpu.memory_space<vmem>>, vector<1x1x8x8xf32>
    %169 = vector.shape_cast %168 : vector<1x1x8x8xf32> to vector<8x8xf32>
    %cst_201 = arith.constant dense<0.000000e+00> : vector<288x8xf32>
    %170 = tpu.matmul %167, %169, %cst_201 {dimension_numbers = #tpu.dot_dimension_numbers<[1], [0], [0], [1], [0, 0, 1, 1], [], []>} : vector<288x8xf32>, vector<8x8xf32>, vector<288x8xf32> -> vector<288x8xf32>
    %171 = arith.addf %166, %170 : vector<288x8xf32>
    %c0_202 = arith.constant 0 : index
    %c0_203 = arith.constant 0 : index
    %172 = vector.load %arg7[%c0_202, %c0_203] : memref<288x8xf32, #tpu.memory_space<vmem>>, vector<288x8xf32>
    tpu.vector_store %arg7[%c0_202, %c0_203], %171 {strides = array<i32>} : memref<288x8xf32, #tpu.memory_space<vmem>>, vector<288x8xf32>,
    %c0_204 = arith.constant 0 : index
    %c0_205 = arith.constant 0 : index
    %173 = vector.load %arg7[%c0_204, %c0_205] : memref<288x8xf32, #tpu.memory_space<vmem>>, vector<16x8xf32>
    %c0_206 = arith.constant 0 : index
    %c0_207 = arith.constant 0 : index
    %c0_208 = arith.constant 0 : index
    %c0_209 = arith.constant 0 : index
    %174 = vector.load %arg4[%c0_206, %c0_207, %c0_208, %c0_209] : memref<1x16x16x8xf32, #tpu.memory_space<vmem>>, vector<1x1x16x8xf32>
    %175 = vector.shape_cast %174 : vector<1x1x16x8xf32> to vector<16x8xf32>
    %176 = vector.shape_cast %173 : vector<16x8xf32> to vector<1x1x16x8xf32>
    tpu.vector_store %arg4[%c0_206, %c0_207, %c0_208, %c0_209], %176 {strides = array<i32>} : memref<1x16x16x8xf32, #tpu.memory_space<vmem>>, vector<1x1x16x8xf32>,
    %c18_210 = arith.constant 18 : index
    %c0_211 = arith.constant 0 : index
    %177 = vector.load %arg7[%c18_210, %c0_211] : memref<288x8xf32, #tpu.memory_space<vmem>>, vector<16x8xf32>
    %c0_212 = arith.constant 0 : index
    %c1_213 = arith.constant 1 : index
    %c0_214 = arith.constant 0 : index
    %c0_215 = arith.constant 0 : index
    %178 = vector.load %arg4[%c0_212, %c1_213, %c0_214, %c0_215] : memref<1x16x16x8xf32, #tpu.memory_space<vmem>>, vector<1x1x16x8xf32>
    %179 = vector.shape_cast %178 : vector<1x1x16x8xf32> to vector<16x8xf32>
    %180 = vector.shape_cast %177 : vector<16x8xf32> to vector<1x1x16x8xf32>
    tpu.vector_store %arg4[%c0_212, %c1_213, %c0_214, %c0_215], %180 {strides = array<i32>} : memref<1x16x16x8xf32, #tpu.memory_space<vmem>>, vector<1x1x16x8xf32>,
    %c36_216 = arith.constant 36 : index
    %c0_217 = arith.constant 0 : index
    %181 = vector.load %arg7[%c36_216, %c0_217] : memref<288x8xf32, #tpu.memory_space<vmem>>, vector<16x8xf32>
    %c0_218 = arith.constant 0 : index
    %c2_219 = arith.constant 2 : index
    %c0_220 = arith.constant 0 : index
    %c0_221 = arith.constant 0 : index
    %182 = vector.load %arg4[%c0_218, %c2_219, %c0_220, %c0_221] : memref<1x16x16x8xf32, #tpu.memory_space<vmem>>, vector<1x1x16x8xf32>
    %183 = vector.shape_cast %182 : vector<1x1x16x8xf32> to vector<16x8xf32>
    %184 = vector.shape_cast %181 : vector<16x8xf32> to vector<1x1x16x8xf32>
    tpu.vector_store %arg4[%c0_218, %c2_219, %c0_220, %c0_221], %184 {strides = array<i32>} : memref<1x16x16x8xf32, #tpu.memory_space<vmem>>, vector<1x1x16x8xf32>,
    %c54 = arith.constant 54 : index
    %c0_222 = arith.constant 0 : index
    %185 = vector.load %arg7[%c54, %c0_222] : memref<288x8xf32, #tpu.memory_space<vmem>>, vector<16x8xf32>
    %c0_223 = arith.constant 0 : index
    %c3_224 = arith.constant 3 : index
    %c0_225 = arith.constant 0 : index
    %c0_226 = arith.constant 0 : index
    %186 = vector.load %arg4[%c0_223, %c3_224, %c0_225, %c0_226] : memref<1x16x16x8xf32, #tpu.memory_space<vmem>>, vector<1x1x16x8xf32>
    %187 = vector.shape_cast %186 : vector<1x1x16x8xf32> to vector<16x8xf32>
    %188 = vector.shape_cast %185 : vector<16x8xf32> to vector<1x1x16x8xf32>
    tpu.vector_store %arg4[%c0_223, %c3_224, %c0_225, %c0_226], %188 {strides = array<i32>} : memref<1x16x16x8xf32, #tpu.memory_space<vmem>>, vector<1x1x16x8xf32>,
    %c72 = arith.constant 72 : index
    %c0_227 = arith.constant 0 : index
    %189 = vector.load %arg7[%c72, %c0_227] : memref<288x8xf32, #tpu.memory_space<vmem>>, vector<16x8xf32>
    %c0_228 = arith.constant 0 : index
    %c4_229 = arith.constant 4 : index
    %c0_230 = arith.constant 0 : index
    %c0_231 = arith.constant 0 : index
    %190 = vector.load %arg4[%c0_228, %c4_229, %c0_230, %c0_231] : memref<1x16x16x8xf32, #tpu.memory_space<vmem>>, vector<1x1x16x8xf32>
    %191 = vector.shape_cast %190 : vector<1x1x16x8xf32> to vector<16x8xf32>
    %192 = vector.shape_cast %189 : vector<16x8xf32> to vector<1x1x16x8xf32>
    tpu.vector_store %arg4[%c0_228, %c4_229, %c0_230, %c0_231], %192 {strides = array<i32>} : memref<1x16x16x8xf32, #tpu.memory_space<vmem>>, vector<1x1x16x8xf32>,
    %c90 = arith.constant 90 : index
    %c0_232 = arith.constant 0 : index
    %193 = vector.load %arg7[%c90, %c0_232] : memref<288x8xf32, #tpu.memory_space<vmem>>, vector<16x8xf32>
    %c0_233 = arith.constant 0 : index
    %c5_234 = arith.constant 5 : index
    %c0_235 = arith.constant 0 : index
    %c0_236 = arith.constant 0 : index
    %194 = vector.load %arg4[%c0_233, %c5_234, %c0_235, %c0_236] : memref<1x16x16x8xf32, #tpu.memory_space<vmem>>, vector<1x1x16x8xf32>
    %195 = vector.shape_cast %194 : vector<1x1x16x8xf32> to vector<16x8xf32>
    %196 = vector.shape_cast %193 : vector<16x8xf32> to vector<1x1x16x8xf32>
    tpu.vector_store %arg4[%c0_233, %c5_234, %c0_235, %c0_236], %196 {strides = array<i32>} : memref<1x16x16x8xf32, #tpu.memory_space<vmem>>, vector<1x1x16x8xf32>,
    %c108 = arith.constant 108 : index
    %c0_237 = arith.constant 0 : index
    %197 = vector.load %arg7[%c108, %c0_237] : memref<288x8xf32, #tpu.memory_space<vmem>>, vector<16x8xf32>
    %c0_238 = arith.constant 0 : index
    %c6_239 = arith.constant 6 : index
    %c0_240 = arith.constant 0 : index
    %c0_241 = arith.constant 0 : index
    %198 = vector.load %arg4[%c0_238, %c6_239, %c0_240, %c0_241] : memref<1x16x16x8xf32, #tpu.memory_space<vmem>>, vector<1x1x16x8xf32>
    %199 = vector.shape_cast %198 : vector<1x1x16x8xf32> to vector<16x8xf32>
    %200 = vector.shape_cast %197 : vector<16x8xf32> to vector<1x1x16x8xf32>
    tpu.vector_store %arg4[%c0_238, %c6_239, %c0_240, %c0_241], %200 {strides = array<i32>} : memref<1x16x16x8xf32, #tpu.memory_space<vmem>>, vector<1x1x16x8xf32>,
    %c126 = arith.constant 126 : index
    %c0_242 = arith.constant 0 : index
    %201 = vector.load %arg7[%c126, %c0_242] : memref<288x8xf32, #tpu.memory_space<vmem>>, vector<16x8xf32>
    %c0_243 = arith.constant 0 : index
    %c7_244 = arith.constant 7 : index
    %c0_245 = arith.constant 0 : index
    %c0_246 = arith.constant 0 : index
    %202 = vector.load %arg4[%c0_243, %c7_244, %c0_245, %c0_246] : memref<1x16x16x8xf32, #tpu.memory_space<vmem>>, vector<1x1x16x8xf32>
    %203 = vector.shape_cast %202 : vector<1x1x16x8xf32> to vector<16x8xf32>
    %204 = vector.shape_cast %201 : vector<16x8xf32> to vector<1x1x16x8xf32>
    tpu.vector_store %arg4[%c0_243, %c7_244, %c0_245, %c0_246], %204 {strides = array<i32>} : memref<1x16x16x8xf32, #tpu.memory_space<vmem>>, vector<1x1x16x8xf32>,
    %c144 = arith.constant 144 : index
    %c0_247 = arith.constant 0 : index
    %205 = vector.load %arg7[%c144, %c0_247] : memref<288x8xf32, #tpu.memory_space<vmem>>, vector<16x8xf32>
    %c0_248 = arith.constant 0 : index
    %c8_249 = arith.constant 8 : index
    %c0_250 = arith.constant 0 : index
    %c0_251 = arith.constant 0 : index
    %206 = vector.load %arg4[%c0_248, %c8_249, %c0_250, %c0_251] : memref<1x16x16x8xf32, #tpu.memory_space<vmem>>, vector<1x1x16x8xf32>
    %207 = vector.shape_cast %206 : vector<1x1x16x8xf32> to vector<16x8xf32>
    %208 = vector.shape_cast %205 : vector<16x8xf32> to vector<1x1x16x8xf32>
    tpu.vector_store %arg4[%c0_248, %c8_249, %c0_250, %c0_251], %208 {strides = array<i32>} : memref<1x16x16x8xf32, #tpu.memory_space<vmem>>, vector<1x1x16x8xf32>,
    %c162 = arith.constant 162 : index
    %c0_252 = arith.constant 0 : index
    %209 = vector.load %arg7[%c162, %c0_252] : memref<288x8xf32, #tpu.memory_space<vmem>>, vector<16x8xf32>
    %c0_253 = arith.constant 0 : index
    %c9_254 = arith.constant 9 : index
    %c0_255 = arith.constant 0 : index
    %c0_256 = arith.constant 0 : index
    %210 = vector.load %arg4[%c0_253, %c9_254, %c0_255, %c0_256] : memref<1x16x16x8xf32, #tpu.memory_space<vmem>>, vector<1x1x16x8xf32>
    %211 = vector.shape_cast %210 : vector<1x1x16x8xf32> to vector<16x8xf32>
    %212 = vector.shape_cast %209 : vector<16x8xf32> to vector<1x1x16x8xf32>
    tpu.vector_store %arg4[%c0_253, %c9_254, %c0_255, %c0_256], %212 {strides = array<i32>} : memref<1x16x16x8xf32, #tpu.memory_space<vmem>>, vector<1x1x16x8xf32>,
    %c180 = arith.constant 180 : index
    %c0_257 = arith.constant 0 : index
    %213 = vector.load %arg7[%c180, %c0_257] : memref<288x8xf32, #tpu.memory_space<vmem>>, vector<16x8xf32>
    %c0_258 = arith.constant 0 : index
    %c10_259 = arith.constant 10 : index
    %c0_260 = arith.constant 0 : index
    %c0_261 = arith.constant 0 : index
    %214 = vector.load %arg4[%c0_258, %c10_259, %c0_260, %c0_261] : memref<1x16x16x8xf32, #tpu.memory_space<vmem>>, vector<1x1x16x8xf32>
    %215 = vector.shape_cast %214 : vector<1x1x16x8xf32> to vector<16x8xf32>
    %216 = vector.shape_cast %213 : vector<16x8xf32> to vector<1x1x16x8xf32>
    tpu.vector_store %arg4[%c0_258, %c10_259, %c0_260, %c0_261], %216 {strides = array<i32>} : memref<1x16x16x8xf32, #tpu.memory_space<vmem>>, vector<1x1x16x8xf32>,
    %c198 = arith.constant 198 : index
    %c0_262 = arith.constant 0 : index
    %217 = vector.load %arg7[%c198, %c0_262] : memref<288x8xf32, #tpu.memory_space<vmem>>, vector<16x8xf32>
    %c0_263 = arith.constant 0 : index
    %c11_264 = arith.constant 11 : index
    %c0_265 = arith.constant 0 : index
    %c0_266 = arith.constant 0 : index
    %218 = vector.load %arg4[%c0_263, %c11_264, %c0_265, %c0_266] : memref<1x16x16x8xf32, #tpu.memory_space<vmem>>, vector<1x1x16x8xf32>
    %219 = vector.shape_cast %218 : vector<1x1x16x8xf32> to vector<16x8xf32>
    %220 = vector.shape_cast %217 : vector<16x8xf32> to vector<1x1x16x8xf32>
    tpu.vector_store %arg4[%c0_263, %c11_264, %c0_265, %c0_266], %220 {strides = array<i32>} : memref<1x16x16x8xf32, #tpu.memory_space<vmem>>, vector<1x1x16x8xf32>,
    %c216 = arith.constant 216 : index
    %c0_267 = arith.constant 0 : index
    %221 = vector.load %arg7[%c216, %c0_267] : memref<288x8xf32, #tpu.memory_space<vmem>>, vector<16x8xf32>
    %c0_268 = arith.constant 0 : index
    %c12_269 = arith.constant 12 : index
    %c0_270 = arith.constant 0 : index
    %c0_271 = arith.constant 0 : index
    %222 = vector.load %arg4[%c0_268, %c12_269, %c0_270, %c0_271] : memref<1x16x16x8xf32, #tpu.memory_space<vmem>>, vector<1x1x16x8xf32>
    %223 = vector.shape_cast %222 : vector<1x1x16x8xf32> to vector<16x8xf32>
    %224 = vector.shape_cast %221 : vector<16x8xf32> to vector<1x1x16x8xf32>
    tpu.vector_store %arg4[%c0_268, %c12_269, %c0_270, %c0_271], %224 {strides = array<i32>} : memref<1x16x16x8xf32, #tpu.memory_space<vmem>>, vector<1x1x16x8xf32>,
    %c234 = arith.constant 234 : index
    %c0_272 = arith.constant 0 : index
    %225 = vector.load %arg7[%c234, %c0_272] : memref<288x8xf32, #tpu.memory_space<vmem>>, vector<16x8xf32>
    %c0_273 = arith.constant 0 : index
    %c13_274 = arith.constant 13 : index
    %c0_275 = arith.constant 0 : index
    %c0_276 = arith.constant 0 : index
    %226 = vector.load %arg4[%c0_273, %c13_274, %c0_275, %c0_276] : memref<1x16x16x8xf32, #tpu.memory_space<vmem>>, vector<1x1x16x8xf32>
    %227 = vector.shape_cast %226 : vector<1x1x16x8xf32> to vector<16x8xf32>
    %228 = vector.shape_cast %225 : vector<16x8xf32> to vector<1x1x16x8xf32>
    tpu.vector_store %arg4[%c0_273, %c13_274, %c0_275, %c0_276], %228 {strides = array<i32>} : memref<1x16x16x8xf32, #tpu.memory_space<vmem>>, vector<1x1x16x8xf32>,
    %c252 = arith.constant 252 : index
    %c0_277 = arith.constant 0 : index
    %229 = vector.load %arg7[%c252, %c0_277] : memref<288x8xf32, #tpu.memory_space<vmem>>, vector<16x8xf32>
    %c0_278 = arith.constant 0 : index
    %c14_279 = arith.constant 14 : index
    %c0_280 = arith.constant 0 : index
    %c0_281 = arith.constant 0 : index
    %230 = vector.load %arg4[%c0_278, %c14_279, %c0_280, %c0_281] : memref<1x16x16x8xf32, #tpu.memory_space<vmem>>, vector<1x1x16x8xf32>
    %231 = vector.shape_cast %230 : vector<1x1x16x8xf32> to vector<16x8xf32>
    %232 = vector.shape_cast %229 : vector<16x8xf32> to vector<1x1x16x8xf32>
    tpu.vector_store %arg4[%c0_278, %c14_279, %c0_280, %c0_281], %232 {strides = array<i32>} : memref<1x16x16x8xf32, #tpu.memory_space<vmem>>, vector<1x1x16x8xf32>,
    %c270 = arith.constant 270 : index
    %c0_282 = arith.constant 0 : index
    %233 = vector.load %arg7[%c270, %c0_282] : memref<288x8xf32, #tpu.memory_space<vmem>>, vector<16x8xf32>
    %c0_283 = arith.constant 0 : index
    %c15_284 = arith.constant 15 : index
    %c0_285 = arith.constant 0 : index
    %c0_286 = arith.constant 0 : index
    %234 = vector.load %arg4[%c0_283, %c15_284, %c0_285, %c0_286] : memref<1x16x16x8xf32, #tpu.memory_space<vmem>>, vector<1x1x16x8xf32>
    %235 = vector.shape_cast %234 : vector<1x1x16x8xf32> to vector<16x8xf32>
    %236 = vector.shape_cast %233 : vector<16x8xf32> to vector<1x1x16x8xf32>
    tpu.vector_store %arg4[%c0_283, %c15_284, %c0_285, %c0_286], %236 {strides = array<i32>} : memref<1x16x16x8xf32, #tpu.memory_space<vmem>>, vector<1x1x16x8xf32>,
    return
  }
  func.func @transform_0(%arg0: i32) -> (i32, i32, i32, i32) {
    %c0_i32 = arith.constant 0 : i32
    %c0_i32_0 = arith.constant 0 : i32
    %c0_i32_1 = arith.constant 0 : i32
    %c0_i32_2 = arith.constant 0 : i32
    return %arg0, %c0_i32, %c0_i32_0, %c0_i32_1 : i32, i32, i32, i32
  }
  func.func @transform_1(%arg0: i32) -> (i32, i32, i32, i32) {
    %c0_i32 = arith.constant 0 : i32
    %c0_i32_0 = arith.constant 0 : i32
    %c0_i32_1 = arith.constant 0 : i32
    %c0_i32_2 = arith.constant 0 : i32
    %c0_i32_3 = arith.constant 0 : i32
    return %c0_i32, %c0_i32_0, %c0_i32_1, %c0_i32_2 : i32, i32, i32, i32
  }
  func.func @transform_2(%arg0: i32) -> (i32, i32, i32, i32) {
    %c0_i32 = arith.constant 0 : i32
    %c0_i32_0 = arith.constant 0 : i32
    %c0_i32_1 = arith.constant 0 : i32
    %c0_i32_2 = arith.constant 0 : i32
    %c0_i32_3 = arith.constant 0 : i32
    return %c0_i32, %c0_i32_0, %c0_i32_1, %c0_i32_2 : i32, i32, i32, i32
  }
  func.func @transform_3(%arg0: i32) -> (i32, i32, i32, i32) {
    %c0_i32 = arith.constant 0 : i32
    %c0_i32_0 = arith.constant 0 : i32
    %c0_i32_1 = arith.constant 0 : i32
    %c0_i32_2 = arith.constant 0 : i32
    return %arg0, %c0_i32, %c0_i32_0, %c0_i32_1 : i32, i32, i32, i32
  }
}

</mosaic_0001>

<llo_original>
// kernel: micro_block.1
$region0: #{micro_block.1}
  #allocation0 [shape = 'u32[]', space=smem, size = 0x4, offset = 0x4, fixed_abs, tag = 'smem constant byte address 0x4 - core index']
  #allocation1 [shape = 'u32[144,128]{1,0:T(1,128)}', space=vmem, size = 0x12000, scoped, tag = 'internal scratch']
  #allocation2 [shape = 'f32[342,8]{1,0:T(8,128)}', space=vmem, size = 0x2b000, scoped, tag = 'scratch operand']
  #allocation3 [shape = 'f32[342,8]{1,0:T(8,128)}', space=vmem, size = 0x2b000, scoped, tag = 'scratch operand']
  #allocation4 [shape = 'f32[288,8]{1,0:T(8,128)}', space=vmem, size = 0x24000, scoped, tag = 'scratch operand']
  %s0 = inlined_call_operand.vmem [shape: f32[2,16,16,8], index: 0, kind: input, shape index: {}]
  %s1 = inlined_call_operand.vmem [shape: f32[3,3,8,8], index: 1, kind: input, shape index: {}]
  %s2 = inlined_call_operand.vmem [shape: f32[3,3,8,8], index: 2, kind: input, shape index: {}]
  %s3 = inlined_call_operand.vmem [shape: f32[2,16,16,8], index: 3, kind: output, shape index: {}]
  %s4 = sld [smem:[#allocation0]]
  $region45: #{micro_block.1} parent=0
    _
  %s6 = ssub.s32 1, %s4
  %s7 = scalar_select 0, %s6, %s4
  loop: start=0, step=1, limit=4
  $region2: #{micro_block.1} parent=0 // loop_pre_header
    _
  $region3: #{micro_block.1} parent=0 // loop_header
    %s9 = sphi 0, %s13
    %p10 = scmp.ge.s32.totalorder %s9, 4
    %s19 = sphi 0, %s21
    %s22 = sphi 0, %s19
    %s23 = sphi 0, %s22
    %s39 = sphi 0, %s23
    %s43 = sphi 0, %s43
    %s45 = sphi 0, %s43
    %s46 = sphi 0, %s45
    %s60 = sphi 0, %s46
    %s64 = sphi 0, %s64
    %s66 = sphi 0, %s64
    %s67 = sphi 0, %s66
    %s81 = sphi 0, %s67
    %s87 = sphi 0, %s89
    %s90 = sphi 0, %s87
    %s91 = sphi 0, %s90
    %s107 = sphi 0, %s91
  $region4: #{micro_block.1} parent=0 // loop_header_branch
    %12 = sbr.rel (%p10) target = $region8
  $region5: #{micro_block.1} parent=0 // loop_body
    %s14 = ssub.s32 %s9, 1
    %s15 = ssub.s32 %s9, 2
    %s16 = sadd.s32 %s9, 1
    %s17 = ssub.s32 %s9, %s16
    %p18 = scmp.eq.s32.totalorder %s17, 0
    %s20 = sadd.s32 %s19, 1
    %s21 = scalar_select %p18, %s19, %s20
    %p24 = pneg %p18
    %p25 = scmp.eq.s32.totalorder %s9, 1
    %p26 = por %p24, %p25
    %p27 = scmp.ne.s32.totalorder %s19, %s22
    %p28 = scmp.eq.s32.totalorder %s9, 0
    %p29 = por %p27, %p28
    %p30 = scmp.ne.s32.totalorder %s19, %s22
    %p31 = scmp.eq.s32.totalorder %s14, 1
    %p32 = por %p30, %p31
    %p33 = scmp.ne.s32.totalorder %s22, %s23
    %p34 = scmp.eq.s32.totalorder %s14, 0
    %p35 = por %p33, %p34
    %p36 = scmp.ne.s32.totalorder %s22, %s23
    %p37 = scmp.eq.s32.totalorder %s15, 1
    %p38 = por %p36, %p37
    %p40 = scmp.ne.s32.totalorder %s23, %s39
    %p41 = scmp.eq.s32.totalorder %s15, 0
    %p42 = por %p40, %p41
    %s44 = sadd.s32 %s43, 1
    %p47 = scmp.eq.s32.totalorder %s9, 1
    %p48 = scmp.ne.s32.totalorder %s43, %s45
    %p49 = scmp.eq.s32.totalorder %s9, 0
    %p50 = por %p48, %p49
    %p51 = scmp.ne.s32.totalorder %s43, %s45
    %p52 = scmp.eq.s32.totalorder %s14, 1
    %p53 = por %p51, %p52
    %p54 = scmp.ne.s32.totalorder %s45, %s46
    %p55 = scmp.eq.s32.totalorder %s14, 0
    %p56 = por %p54, %p55
    %p57 = scmp.ne.s32.totalorder %s45, %s46
    %p58 = scmp.eq.s32.totalorder %s15, 1
    %p59 = por %p57, %p58
    %p61 = scmp.ne.s32.totalorder %s46, %s60
    %p62 = scmp.eq.s32.totalorder %s15, 0
    %p63 = por %p61, %p62
    %s65 = sadd.s32 %s64, 1
    %p68 = scmp.eq.s32.totalorder %s9, 1
    %p69 = scmp.ne.s32.totalorder %s64, %s66
    %p70 = scmp.eq.s32.totalorder %s9, 0
    %p71 = por %p69, %p70
    %p72 = scmp.ne.s32.totalorder %s64, %s66
    %p73 = scmp.eq.s32.totalorder %s14, 1
    %p74 = por %p72, %p73
    %p75 = scmp.ne.s32.totalorder %s66, %s67
    %p76 = scmp.eq.s32.totalorder %s14, 0
    %p77 = por %p75, %p76
    %p78 = scmp.ne.s32.totalorder %s66, %s67
    %p79 = scmp.eq.s32.totalorder %s15, 1
    %p80 = por %p78, %p79
    %p82 = scmp.ne.s32.totalorder %s67, %s81
    %p83 = scmp.eq.s32.totalorder %s15, 0
    %p84 = por %p82, %p83
    %s85 = ssub.s32 %s9, %s16
    %p86 = scmp.eq.s32.totalorder %s85, 0
    %s88 = sadd.s32 %s87, 1
    %s89 = scalar_select %p86, %s87, %s88
    %p92 = pneg %p86
    %p93 = scmp.eq.s32.totalorder %s9, 1
    %p94 = por %p92, %p93
    %p95 = scmp.ne.s32.totalorder %s87, %s90
    %p96 = scmp.eq.s32.totalorder %s9, 0
    %p97 = por %p95, %p96
    %p98 = scmp.ne.s32.totalorder %s87, %s90
    %p99 = scmp.eq.s32.totalorder %s14, 1
    %p100 = por %p98, %p99
    %p101 = scmp.ne.s32.totalorder %s90, %s91
    %p102 = scmp.eq.s32.totalorder %s14, 0
    %p103 = por %p101, %p102
    %p104 = scmp.ne.s32.totalorder %s90, %s91
    %p105 = scmp.eq.s32.totalorder %s15, 1
    %p106 = por %p104, %p105
    %p108 = scmp.ne.s32.totalorder %s91, %s107
    %p109 = scmp.eq.s32.totalorder %s15, 0
    %p110 = por %p108, %p109
    %p111 = scmp.le.s32.totalorder 1, %s9
    %p112 = scmp.lt.s32.totalorder %s9, 3
    %p113 = pnand %p111, %p112
    %p114 = pneg %p113
    // Predicated region
    $region9: #{micro_block.1} parent=5 // pred_check
      _
    $region10: #{micro_block.1} parent=5 // pred_check_branch
      %116 = sbr.rel (%p113) target = $region12
    $region11: #{micro_block.1} parent=5 // pred_region
      %s117 = ssub.s32 %s9, 1
      // Predicated region
      $region13: #{micro_block.1} parent=11 // pred_check
        %p118 = pneg %p56
      $region14: #{micro_block.1} parent=11 // pred_check_branch
        %120 = sbr.rel (%p118) target = $region16
      $region15: #{micro_block.1} parent=11 // pred_region
        _
      $region16: #{micro_block.1} parent=11 // pred_fallthru
        _
      // Predicated region
      $region17: #{micro_block.1} parent=11 // pred_check
        %p121 = pneg %p77
      $region18: #{micro_block.1} parent=11 // pred_check_branch
        %123 = sbr.rel (%p121) target = $region20
      $region19: #{micro_block.1} parent=11 // pred_region
        _
      $region20: #{micro_block.1} parent=11 // pred_fallthru
        _
    $region12: #{micro_block.1} parent=5 // pred_fallthru
      _
    %p124 = scmp.lt.s32.totalorder %s9, 2
    // Predicated region
    $region21: #{micro_block.1} parent=5 // pred_check
      %p125 = pneg %p124
    $region22: #{micro_block.1} parent=5 // pred_check_branch
      %127 = sbr.rel (%p125) target = $region24
    $region23: #{micro_block.1} parent=5 // pred_region
      // Predicated region
      $region25: #{micro_block.1} parent=23 // pred_check
        %p128 = pneg %p29
      $region26: #{micro_block.1} parent=23 // pred_check_branch
        %130 = sbr.rel (%p128) target = $region28
      $region27: #{micro_block.1} parent=23 // pred_region
        %p131 = scmp.lt.s32.totalorder %s9, 1
        %s132 = scalar_select %p131, %s9, 1
        %s133 = smul.addr %s132, 32
        %s134 = smul.addr %s133, 8
        %s135 = scalar_lea.vmem %s0, %s134
      $region28: #{micro_block.1} parent=23 // pred_fallthru
        _
    $region24: #{micro_block.1} parent=5 // pred_fallthru
      _
    %p136 = scmp.le.s32.totalorder 1, %s9
    %p137 = scmp.lt.s32.totalorder %s9, 3
    %p138 = pnand %p136, %p137
    %p139 = pneg %p138
    // Predicated region
    $region29: #{micro_block.1} parent=5 // pred_check
      _
    $region30: #{micro_block.1} parent=5 // pred_check_branch
      %141 = sbr.rel (%p138) target = $region32
    $region31: #{micro_block.1} parent=5 // pred_region
      %s142 = ssub.s32 %s9, 1
      %p143 = scmp.lt.s32.totalorder %s14, 1
      %s144 = scalar_select %p143, %s14, 1
      %s145 = smul.addr %s144, 32
      %s146 = smul.addr %s145, 8
      %s147 = scalar_lea.vmem %s0, %s146
      %p148 = pneg %p35
      %p149 = pneg %p32
      %p150 = pneg %p56
      %p151 = pneg %p53
      %p152 = pneg %p77
      %p153 = pneg %p74
      %p154 = pneg %p103
      %p155 = pneg %p100
      %p156 = scmp.lt.s32.totalorder %s14, 1
      %s157 = scalar_select %p156, %s14, 1
      %s158 = smul.addr %s157, 32
      %s159 = smul.addr %s158, 8
      %s160 = scalar_lea.vmem %s3, %s159
      %p161 = scmp.lt.s32.totalorder %s14, 1
      %s162 = scalar_select %p161, %s14, 1
      %s163 = smul.addr %s162, 32
      %s164 = smul.addr %s163, 8
      %s165 = scalar_lea.vmem %s0, %s164
      %p166 = scmp.lt.s32.totalorder %s14, 1
      %s167 = scalar_select %p166, %s14, 1
      %s168 = smul.addr %s167, 32
      %s169 = smul.addr %s168, 8
      %s170 = scalar_lea.vmem %s3, %s169
      %vm171 = vcmask 64512
      %172 = vst.msk [vmem:[#allocation2] sm:$0xff] %vm171, 0.0
      %173 = vst.msk [vmem:[#allocation2 + $0x8] sm:$0xff] %vm171, 0.0
      %174 = vst.msk [vmem:[#allocation2 + $0x10] sm:$0xff] %vm171, 0.0
      %175 = vst.msk [vmem:[#allocation2 + $0x18] sm:$0xff] %vm171, 0.0
      %176 = vst.msk [vmem:[#allocation2 + $0x20] sm:$0xff] %vm171, 0.0
      %177 = vst.msk [vmem:[#allocation2 + $0x28] sm:$0xff] %vm171, 0.0
      %178 = vst.msk [vmem:[#allocation2 + $0x30] sm:$0xff] %vm171, 0.0
      %179 = vst.msk [vmem:[#allocation2 + $0x38] sm:$0xff] %vm171, 0.0
      %180 = vst.msk [vmem:[#allocation2 + $0x40] sm:$0xff] %vm171, 0.0
      %181 = vst.msk [vmem:[#allocation2 + $0x48] sm:$0xff] %vm171, 0.0
      %182 = vst.msk [vmem:[#allocation2 + $0x50] sm:$0xff] %vm171, 0.0
      %183 = vst.msk [vmem:[#allocation2 + $0x58] sm:$0xff] %vm171, 0.0
      %184 = vst.msk [vmem:[#allocation2 + $0x60] sm:$0xff] %vm171, 0.0
      %185 = vst.msk [vmem:[#allocation2 + $0x68] sm:$0xff] %vm171, 0.0
      %186 = vst.msk [vmem:[#allocation2 + $0x70] sm:$0xff] %vm171, 0.0
      %187 = vst.msk [vmem:[#allocation2 + $0x78] sm:$0xff] %vm171, 0.0
      %188 = vst.msk [vmem:[#allocation2 + $0x80] sm:$0xff] %vm171, 0.0
      %189 = vst.msk [vmem:[#allocation2 + $0x88] sm:$0xff] %vm171, 0.0
      %190 = vst.msk [vmem:[#allocation2 + $0x90] sm:$0xff] %vm171, 0.0
      %191 = vst.msk [vmem:[#allocation2 + $0x98] sm:$0xff] %vm171, 0.0
      %192 = vst.msk [vmem:[#allocation2 + $0xa0] sm:$0xff] %vm171, 0.0
      %193 = vst.msk [vmem:[#allocation2 + $0xa8] sm:$0xff] %vm171, 0.0
      %194 = vst.msk [vmem:[#allocation2 + $0xb0] sm:$0xff] %vm171, 0.0
      %195 = vst.msk [vmem:[#allocation2 + $0xb8] sm:$0xff] %vm171, 0.0
      %196 = vst.msk [vmem:[#allocation2 + $0xc0] sm:$0xff] %vm171, 0.0
      %197 = vst.msk [vmem:[#allocation2 + $0xc8] sm:$0xff] %vm171, 0.0
      %198 = vst.msk [vmem:[#allocation2 + $0xd0] sm:$0xff] %vm171, 0.0
      %199 = vst.msk [vmem:[#allocation2 + $0xd8] sm:$0xff] %vm171, 0.0
      %200 = vst.msk [vmem:[#allocation2 + $0xe0] sm:$0xff] %vm171, 0.0
      %201 = vst.msk [vmem:[#allocation2 + $0xe8] sm:$0xff] %vm171, 0.0
      %202 = vst.msk [vmem:[#allocation2 + $0xf0] sm:$0xff] %vm171, 0.0
      %203 = vst.msk [vmem:[#allocation2 + $0xf8] sm:$0xff] %vm171, 0.0
      %204 = vst.msk [vmem:[#allocation2 + $0x100] sm:$0xff] %vm171, 0.0
      %205 = vst.msk [vmem:[#allocation2 + $0x108] sm:$0xff] %vm171, 0.0
      %206 = vst.msk [vmem:[#allocation2 + $0x110] sm:$0xff] %vm171, 0.0
      %207 = vst.msk [vmem:[#allocation2 + $0x118] sm:$0xff] %vm171, 0.0
      %208 = vst.msk [vmem:[#allocation2 + $0x120] sm:$0xff] %vm171, 0.0
      %209 = vst.msk [vmem:[#allocation2 + $0x128] sm:$0xff] %vm171, 0.0
      %210 = vst.msk [vmem:[#allocation2 + $0x130] sm:$0xff] %vm171, 0.0
      %211 = vst.msk [vmem:[#allocation2 + $0x138] sm:$0xff] %vm171, 0.0
      %212 = vst.msk [vmem:[#allocation2 + $0x140] sm:$0xff] %vm171, 0.0
      %213 = vst.msk [vmem:[#allocation2 + $0x148] sm:$0xff] %vm171, 0.0
      %vm214 = vcmask 62464
      %215 = vst.msk [vmem:[#allocation2 + $0x150] sm:$0x3f] %vm214, 0.0
      %v216 = vld [vmem:[%s165] sm:$0xff]
      %v217 = vld [vmem:[%s165 + $0x8] sm:$0xff]
      %218 = vst.msk [vmem:[#allocation2 + $0x13] sm:$0xff] %vm171, %v216
      %219 = vst.msk [vmem:[#allocation2 + $0x1b] sm:$0xff] %vm171, %v217
      %s220 = scalar_lea.vmem %s165, 16
      %v221 = vld [vmem:[%s220] sm:$0xff]
      %v222 = vld [vmem:[%s220 + $0x8] sm:$0xff]
      %223 = vst.msk [vmem:[#allocation2 + $0x25] sm:$0xff] %vm171, %v221
      %224 = vst.msk [vmem:[#allocation2 + $0x2d] sm:$0xff] %vm171, %v222
      %s225 = scalar_lea.vmem %s165, 32
      %v226 = vld [vmem:[%s225] sm:$0xff]
      %v227 = vld [vmem:[%s225 + $0x8] sm:$0xff]
      %228 = vst.msk [vmem:[#allocation2 + $0x37] sm:$0xff] %vm171, %v226
      %229 = vst.msk [vmem:[#allocation2 + $0x3f] sm:$0xff] %vm171, %v227
      %s230 = scalar_lea.vmem %s165, 48
      %v231 = vld [vmem:[%s230] sm:$0xff]
      %v232 = vld [vmem:[%s230 + $0x8] sm:$0xff]
      %233 = vst.msk [vmem:[#allocation2 + $0x49] sm:$0xff] %vm171, %v231
      %234 = vst.msk [vmem:[#allocation2 + $0x51] sm:$0xff] %vm171, %v232
      %s235 = scalar_lea.vmem %s165, 64
      %v236 = vld [vmem:[%s235] sm:$0xff]
      %v237 = vld [vmem:[%s235 + $0x8] sm:$0xff]
      %238 = vst.msk [vmem:[#allocation2 + $0x5b] sm:$0xff] %vm171, %v236
      %239 = vst.msk [vmem:[#allocation2 + $0x63] sm:$0xff] %vm171, %v237
      %s240 = scalar_lea.vmem %s165, 80
      %v241 = vld [vmem:[%s240] sm:$0xff]
      %v242 = vld [vmem:[%s240 + $0x8] sm:$0xff]
      %243 = vst.msk [vmem:[#allocation2 + $0x6d] sm:$0xff] %vm171, %v241
      %244 = vst.msk [vmem:[#allocation2 + $0x75] sm:$0xff] %vm171, %v242
      %s245 = scalar_lea.vmem %s165, 96
      %v246 = vld [vmem:[%s245] sm:$0xff]
      %v247 = vld [vmem:[%s245 + $0x8] sm:$0xff]
      %248 = vst.msk [vmem:[#allocation2 + $0x7f] sm:$0xff] %vm171, %v246
      %249 = vst.msk [vmem:[#allocation2 + $0x87] sm:$0xff] %vm171, %v247
      %s250 = scalar_lea.vmem %s165, 112
      %v251 = vld [vmem:[%s250] sm:$0xff]
      %v252 = vld [vmem:[%s250 + $0x8] sm:$0xff]
      %253 = vst.msk [vmem:[#allocation2 + $0x91] sm:$0xff] %vm171, %v251
      %254 = vst.msk [vmem:[#allocation2 + $0x99] sm:$0xff] %vm171, %v252
      %s255 = scalar_lea.vmem %s165, 128
      %v256 = vld [vmem:[%s255] sm:$0xff]
      %v257 = vld [vmem:[%s255 + $0x8] sm:$0xff]
      %258 = vst.msk [vmem:[#allocation2 + $0xa3] sm:$0xff] %vm171, %v256
      %259 = vst.msk [vmem:[#allocation2 + $0xab] sm:$0xff] %vm171, %v257
      %s260 = scalar_lea.vmem %s165, 144
      %v261 = vld [vmem:[%s260] sm:$0xff]
      %v262 = vld [vmem:[%s260 + $0x8] sm:$0xff]
      %263 = vst.msk [vmem:[#allocation2 + $0xb5] sm:$0xff] %vm171, %v261
      %264 = vst.msk [vmem:[#allocation2 + $0xbd] sm:$0xff] %vm171, %v262
      %s265 = scalar_lea.vmem %s165, 160
      %v266 = vld [vmem:[%s265] sm:$0xff]
      %v267 = vld [vmem:[%s265 + $0x8] sm:$0xff]
      %268 = vst.msk [vmem:[#allocation2 + $0xc7] sm:$0xff] %vm171, %v266
      %269 = vst.msk [vmem:[#allocation2 + $0xcf] sm:$0xff] %vm171, %v267
      %s270 = scalar_lea.vmem %s165, 176
      %v271 = vld [vmem:[%s270] sm:$0xff]
      %v272 = vld [vmem:[%s270 + $0x8] sm:$0xff]
      %273 = vst.msk [vmem:[#allocation2 + $0xd9] sm:$0xff] %vm171, %v271
      %274 = vst.msk [vmem:[#allocation2 + $0xe1] sm:$0xff] %vm171, %v272
      %s275 = scalar_lea.vmem %s165, 192
      %v276 = vld [vmem:[%s275] sm:$0xff]
      %v277 = vld [vmem:[%s275 + $0x8] sm:$0xff]
      %278 = vst.msk [vmem:[#allocation2 + $0xeb] sm:$0xff] %vm171, %v276
      %279 = vst.msk [vmem:[#allocation2 + $0xf3] sm:$0xff] %vm171, %v277
      %s280 = scalar_lea.vmem %s165, 208
      %v281 = vld [vmem:[%s280] sm:$0xff]
      %v282 = vld [vmem:[%s280 + $0x8] sm:$0xff]
      %283 = vst.msk [vmem:[#allocation2 + $0xfd] sm:$0xff] %vm171, %v281
      %284 = vst.msk [vmem:[#allocation2 + $0x105] sm:$0xff] %vm171, %v282
      %s285 = scalar_lea.vmem %s165, 224
      %v286 = vld [vmem:[%s285] sm:$0xff]
      %v287 = vld [vmem:[%s285 + $0x8] sm:$0xff]
      %288 = vst.msk [vmem:[#allocation2 + $0x10f] sm:$0xff] %vm171, %v286
      %289 = vst.msk [vmem:[#allocation2 + $0x117] sm:$0xff] %vm171, %v287
      %s290 = scalar_lea.vmem %s165, 240
      %v291 = vld [vmem:[%s290] sm:$0xff]
      %v292 = vld [vmem:[%s290 + $0x8] sm:$0xff]
      %293 = vst.msk [vmem:[#allocation2 + $0x121] sm:$0xff] %vm171, %v291
      %294 = vst.msk [vmem:[#allocation2 + $0x129] sm:$0xff] %vm171, %v292
      %v295 = vld [vmem:[#allocation2] sm:$0xff]
      %v296 = vld [vmem:[#allocation2 + $0x8] sm:$0xff]
      %v297 = vld [vmem:[#allocation2 + $0x10] sm:$0xff]
      %v298 = vld [vmem:[#allocation2 + $0x18] sm:$0xff]
      %v299 = vld [vmem:[#allocation2 + $0x20] sm:$0xff]
      %v300 = vld [vmem:[#allocation2 + $0x28] sm:$0xff]
      %v301 = vld [vmem:[#allocation2 + $0x30] sm:$0xff]
      %v302 = vld [vmem:[#allocation2 + $0x38] sm:$0xff]
      %v303 = vld [vmem:[#allocation2 + $0x40] sm:$0xff]
      %v304 = vld [vmem:[#allocation2 + $0x48] sm:$0xff]
      %v305 = vld [vmem:[#allocation2 + $0x50] sm:$0xff]
      %v306 = vld [vmem:[#allocation2 + $0x58] sm:$0xff]
      %v307 = vld [vmem:[#allocation2 + $0x60] sm:$0xff]
      %v308 = vld [vmem:[#allocation2 + $0x68] sm:$0xff]
      %v309 = vld [vmem:[#allocation2 + $0x70] sm:$0xff]
      %v310 = vld [vmem:[#allocation2 + $0x78] sm:$0xff]
      %v311 = vld [vmem:[#allocation2 + $0x80] sm:$0xff]
      %v312 = vld [vmem:[#allocation2 + $0x88] sm:$0xff]
      %v313 = vld [vmem:[#allocation2 + $0x90] sm:$0xff]
      %v314 = vld [vmem:[#allocation2 + $0x98] sm:$0xff]
      %v315 = vld [vmem:[#allocation2 + $0xa0] sm:$0xff]
      %v316 = vld [vmem:[#allocation2 + $0xa8] sm:$0xff]
      %v317 = vld [vmem:[#allocation2 + $0xb0] sm:$0xff]
      %v318 = vld [vmem:[#allocation2 + $0xb8] sm:$0xff]
      %v319 = vld [vmem:[#allocation2 + $0xc0] sm:$0xff]
      %v320 = vld [vmem:[#allocation2 + $0xc8] sm:$0xff]
      %v321 = vld [vmem:[#allocation2 + $0xd0] sm:$0xff]
      %v322 = vld [vmem:[#allocation2 + $0xd8] sm:$0xff]
      %v323 = vld [vmem:[#allocation2 + $0xe0] sm:$0xff]
      %v324 = vld [vmem:[#allocation2 + $0xe8] sm:$0xff]
      %v325 = vld [vmem:[#allocation2 + $0xf0] sm:$0xff]
      %v326 = vld [vmem:[#allocation2 + $0xf8] sm:$0xff]
      %v327 = vld [vmem:[#allocation2 + $0x100] sm:$0xff]
      %v328 = vld [vmem:[#allocation2 + $0x108] sm:$0xff]
      %v329 = vld [vmem:[#allocation2 + $0x110] sm:$0xff]
      %v330 = vld [vmem:[#allocation2 + $0x118] sm:$0xff]
      %v331 = vld [vmem:[%s1] sm:$0xff]
      %v332 = vld [vmem:[#allocation2 + $0x1] sm:$0xff]
      %v333 = vld [vmem:[#allocation2 + $0x9] sm:$0xff]
      %v334 = vld [vmem:[#allocation2 + $0x11] sm:$0xff]
      %v335 = vld [vmem:[#allocation2 + $0x19] sm:$0xff]
      %v336 = vld [vmem:[#allocation2 + $0x21] sm:$0xff]
      %v337 = vld [vmem:[#allocation2 + $0x29] sm:$0xff]
      %v338 = vld [vmem:[#allocation2 + $0x31] sm:$0xff]
      %v339 = vld [vmem:[#allocation2 + $0x39] sm:$0xff]
      %v340 = vld [vmem:[#allocation2 + $0x41] sm:$0xff]
      %v341 = vld [vmem:[#allocation2 + $0x49] sm:$0xff]
      %v342 = vld [vmem:[#allocation2 + $0x51] sm:$0xff]
      %v343 = vld [vmem:[#allocation2 + $0x59] sm:$0xff]
      %v344 = vld [vmem:[#allocation2 + $0x61] sm:$0xff]
      %v345 = vld [vmem:[#allocation2 + $0x69] sm:$0xff]
      %v346 = vld [vmem:[#allocation2 + $0x71] sm:$0xff]
      %v347 = vld [vmem:[#allocation2 + $0x79] sm:$0xff]
      %v348 = vld [vmem:[#allocation2 + $0x81] sm:$0xff]
      %v349 = vld [vmem:[#allocation2 + $0x89] sm:$0xff]
      %v350 = vld [vmem:[#allocation2 + $0x91] sm:$0xff]
      %v351 = vld [vmem:[#allocation2 + $0x99] sm:$0xff]
      %v352 = vld [vmem:[#allocation2 + $0xa1] sm:$0xff]
      %v353 = vld [vmem:[#allocation2 + $0xa9] sm:$0xff]
      %v354 = vld [vmem:[#allocation2 + $0xb1] sm:$0xff]
      %v355 = vld [vmem:[#allocation2 + $0xb9] sm:$0xff]
      %v356 = vld [vmem:[#allocation2 + $0xc1] sm:$0xff]
      %v357 = vld [vmem:[#allocation2 + $0xc9] sm:$0xff]
      %v358 = vld [vmem:[#allocation2 + $0xd1] sm:$0xff]
      %v359 = vld [vmem:[#allocation2 + $0xd9] sm:$0xff]
      %v360 = vld [vmem:[#allocation2 + $0xe1] sm:$0xff]
      %v361 = vld [vmem:[#allocation2 + $0xe9] sm:$0xff]
      %v362 = vld [vmem:[#allocation2 + $0xf1] sm:$0xff]
      %v363 = vld [vmem:[#allocation2 + $0xf9] sm:$0xff]
      %v364 = vld [vmem:[#allocation2 + $0x101] sm:$0xff]
      %v365 = vld [vmem:[#allocation2 + $0x109] sm:$0xff]
      %v366 = vld [vmem:[#allocation2 + $0x111] sm:$0xff]
      %v367 = vld [vmem:[#allocation2 + $0x119] sm:$0xff]
      %s368 = scalar_lea.vmem %s1, 8
      %v369 = vld [vmem:[%s368] sm:$0xff]
      %v371 = vsel %vm171, %v332, 0
      %v374 = vsel %vm171, %v333, 0
      %v377 = vsel %vm171, %v334, 0
      %v380 = vsel %vm171, %v335, 0
      %v383 = vsel %vm171, %v336, 0
      %v386 = vsel %vm171, %v337, 0
      %v389 = vsel %vm171, %v338, 0
      %v392 = vsel %vm171, %v339, 0
      %v395 = vsel %vm171, %v340, 0
      %v398 = vsel %vm171, %v341, 0
      %v401 = vsel %vm171, %v342, 0
      %v404 = vsel %vm171, %v343, 0
      %v407 = vsel %vm171, %v344, 0
      %v410 = vsel %vm171, %v345, 0
      %v413 = vsel %vm171, %v346, 0
      %v416 = vsel %vm171, %v347, 0
      %v419 = vsel %vm171, %v348, 0
      %v422 = vsel %vm171, %v349, 0
      %v425 = vsel %vm171, %v350, 0
      %v428 = vsel %vm171, %v351, 0
      %v431 = vsel %vm171, %v352, 0
      %v434 = vsel %vm171, %v353, 0
      %v437 = vsel %vm171, %v354, 0
      %v440 = vsel %vm171, %v355, 0
      %v443 = vsel %vm171, %v356, 0
      %v446 = vsel %vm171, %v357, 0
      %v449 = vsel %vm171, %v358, 0
      %v452 = vsel %vm171, %v359, 0
      %v455 = vsel %vm171, %v360, 0
      %v458 = vsel %vm171, %v361, 0
      %v461 = vsel %vm171, %v362, 0
      %v464 = vsel %vm171, %v363, 0
      %v467 = vsel %vm171, %v364, 0
      %v470 = vsel %vm171, %v365, 0
      %v473 = vsel %vm171, %v366, 0
      %v476 = vsel %vm171, %v367, 0
      %478 = vmatprep.subr.mxu0 0.0
      %479 = vmatpush1.msra.mxu0 0.0
      %480 = vmatprep.subr.mxu0 0.0
      %481 = vmatpush1.msra.mxu0 0.0
      %482 = vmatprep.subr.mxu0 0.0
      %483 = vmatpush1.msra.mxu0 0.0
      %484 = vmatprep.subr.mxu0 0.0
      %485 = vmatpush1.msra.mxu0 0.0
      %486 = vmatprep.subr.mxu0 0.0
      %487 = vmatpush1.msra.mxu0 0.0
      %488 = vmatprep.subr.mxu0 0.0
      %489 = vmatpush1.msra.mxu0 0.0
      %490 = vmatprep.subr.mxu0 0.0
      %491 = vmatpush1.msra.mxu0 0.0
      %492 = vmatprep.subr.mxu0 0.0
      %493 = vmatpush1.msra.mxu0 0.0
      %494 = vmatprep.subr.mxu0 0.0
      %495 = vmatpush1.msra.mxu0 0.0
      %496 = vmatprep.subr.mxu0 0.0
      %497 = vmatpush1.msra.mxu0 0.0
      %498 = vmatprep.subr.mxu0 0.0
      %499 = vmatpush1.msra.mxu0 0.0
      %500 = vmatprep.subr.mxu0 0.0
      %501 = vmatpush1.msra.mxu0 0.0
      %502 = vmatprep.subr.mxu0 0.0
      %503 = vmatpush1.msra.mxu0 0.0
      %504 = vmatprep.subr.mxu0 0.0
      %505 = vmatpush1.msra.mxu0 0.0
      %506 = vmatprep.subr.mxu0 0.0
      %507 = vmatpush1.msra.mxu0 0.0
      %508 = vmatprep.subr.mxu0 0.0
      %509 = vmatpush1.msra.mxu0 %v369
      %510 = vmatprep.subr.mxu0 0.0
      %511 = vmatpush2.msra.mxu0 0.0
      %512 = vmatprep.subr.mxu0 0.0
      %513 = vmatpush2.msra.mxu0 0.0
      %514 = vmatprep.subr.mxu0 0.0
      %515 = vmatpush2.msra.mxu0 0.0
      %516 = vmatprep.subr.mxu0 0.0
      %517 = vmatpush2.msra.mxu0 0.0
      %518 = vmatprep.subr.mxu0 0.0
      %519 = vmatpush2.msra.mxu0 0.0
      %520 = vmatprep.subr.mxu0 0.0
      %521 = vmatpush2.msra.mxu0 0.0
      %522 = vmatprep.subr.mxu0 0.0
      %523 = vmatpush2.msra.mxu0 0.0
      %524 = vmatprep.subr.mxu0 0.0
      %525 = vmatpush2.msra.mxu0 0.0
      %526 = vmatprep.subr.mxu0 0.0
      %527 = vmatpush2.msra.mxu0 0.0
      %528 = vmatprep.subr.mxu0 0.0
      %529 = vmatpush2.msra.mxu0 0.0
      %530 = vmatprep.subr.mxu0 0.0
      %531 = vmatpush2.msra.mxu0 0.0
      %532 = vmatprep.subr.mxu0 0.0
      %533 = vmatpush2.msra.mxu0 0.0
      %534 = vmatprep.subr.mxu0 0.0
      %535 = vmatpush2.msra.mxu0 0.0
      %536 = vmatprep.subr.mxu0 0.0
      %537 = vmatpush2.msra.mxu0 0.0
      %538 = vmatprep.subr.mxu0 0.0
      %539 = vmatpush2.msra.mxu0 0.0
      %540 = vmatprep.subr.mxu0 0.0
      %541 = vmatpush2.msra.mxu0 0.0
      %542 = vmatprep.mubr.f32.mxu0 0.0
      %543 = vmatmul.mubr.f32.gmra.mxu0 %v371
      %v544 = vpop.f32.mrf.mxu0
      %v545 = vadd.f32 0.0, %v544
      %v546 = vpop.f32.mrf.mxu0
      %547 = vmatprep.mubr.f32.mxu0 0.0
      %548 = vmatmul.mubr.f32.gmra.mxu0 %v374
      %v549 = vpop.f32.mrf.mxu0
      %v550 = vadd.f32 0.0, %v549
      %v551 = vpop.f32.mrf.mxu0
      %552 = vmatprep.mubr.f32.mxu0 0.0
      %553 = vmatmul.mubr.f32.gmra.mxu0 %v377
      %v554 = vpop.f32.mrf.mxu0
      %v555 = vadd.f32 0.0, %v554
      %v556 = vpop.f32.mrf.mxu0
      %557 = vmatprep.mubr.f32.mxu0 0.0
      %558 = vmatmul.mubr.f32.gmra.mxu0 %v380
      %v559 = vpop.f32.mrf.mxu0
      %v560 = vadd.f32 0.0, %v559
      %v561 = vpop.f32.mrf.mxu0
      %562 = vmatprep.mubr.f32.mxu0 0.0
      %563 = vmatmul.mubr.f32.gmra.mxu0 %v383
      %v564 = vpop.f32.mrf.mxu0
      %v565 = vadd.f32 0.0, %v564
      %v566 = vpop.f32.mrf.mxu0
      %567 = vmatprep.mubr.f32.mxu0 0.0
      %568 = vmatmul.mubr.f32.gmra.mxu0 %v386
      %v569 = vpop.f32.mrf.mxu0
      %v570 = vadd.f32 0.0, %v569
      %v571 = vpop.f32.mrf.mxu0
      %572 = vmatprep.mubr.f32.mxu0 0.0
      %573 = vmatmul.mubr.f32.gmra.mxu0 %v389
      %v574 = vpop.f32.mrf.mxu0
      %v575 = vadd.f32 0.0, %v574
      %v576 = vpop.f32.mrf.mxu0
      %577 = vmatprep.mubr.f32.mxu0 0.0
      %578 = vmatmul.mubr.f32.gmra.mxu0 %v392
      %v579 = vpop.f32.mrf.mxu0
      %v580 = vadd.f32 0.0, %v579
      %v581 = vpop.f32.mrf.mxu0
      %582 = vmatprep.mubr.f32.mxu0 0.0
      %583 = vmatmul.mubr.f32.gmra.mxu0 %v395
      %v584 = vpop.f32.mrf.mxu0
      %v585 = vadd.f32 0.0, %v584
      %v586 = vpop.f32.mrf.mxu0
      %587 = vmatprep.mubr.f32.mxu0 0.0
      %588 = vmatmul.mubr.f32.gmra.mxu0 %v398
      %v589 = vpop.f32.mrf.mxu0
      %v590 = vadd.f32 0.0, %v589
      %v591 = vpop.f32.mrf.mxu0
      %592 = vmatprep.mubr.f32.mxu0 0.0
      %593 = vmatmul.mubr.f32.gmra.mxu0 %v401
      %v594 = vpop.f32.mrf.mxu0
      %v595 = vadd.f32 0.0, %v594
      %v596 = vpop.f32.mrf.mxu0
      %597 = vmatprep.mubr.f32.mxu0 0.0
      %598 = vmatmul.mubr.f32.gmra.mxu0 %v404
      %v599 = vpop.f32.mrf.mxu0
      %v600 = vadd.f32 0.0, %v599
      %v601 = vpop.f32.mrf.mxu0
      %602 = vmatprep.mubr.f32.mxu0 0.0
      %603 = vmatmul.mubr.f32.gmra.mxu0 %v407
      %v604 = vpop.f32.mrf.mxu0
      %v605 = vadd.f32 0.0, %v604
      %v606 = vpop.f32.mrf.mxu0
      %607 = vmatprep.mubr.f32.mxu0 0.0
      %608 = vmatmul.mubr.f32.gmra.mxu0 %v410
      %v609 = vpop.f32.mrf.mxu0
      %v610 = vadd.f32 0.0, %v609
      %v611 = vpop.f32.mrf.mxu0
      %612 = vmatprep.mubr.f32.mxu0 0.0
      %613 = vmatmul.mubr.f32.gmra.mxu0 %v413
      %v614 = vpop.f32.mrf.mxu0
      %v615 = vadd.f32 0.0, %v614
      %v616 = vpop.f32.mrf.mxu0
      %617 = vmatprep.mubr.f32.mxu0 0.0
      %618 = vmatmul.mubr.f32.gmra.mxu0 %v416
      %v619 = vpop.f32.mrf.mxu0
      %v620 = vadd.f32 0.0, %v619
      %v621 = vpop.f32.mrf.mxu0
      %622 = vmatprep.mubr.f32.mxu0 0.0
      %623 = vmatmul.mubr.f32.gmra.mxu0 %v419
      %v624 = vpop.f32.mrf.mxu0
      %v625 = vadd.f32 0.0, %v624
      %v626 = vpop.f32.mrf.mxu0
      %627 = vmatprep.mubr.f32.mxu0 0.0
      %628 = vmatmul.mubr.f32.gmra.mxu0 %v422
      %v629 = vpop.f32.mrf.mxu0
      %v630 = vadd.f32 0.0, %v629
      %v631 = vpop.f32.mrf.mxu0
      %632 = vmatprep.mubr.f32.mxu0 0.0
      %633 = vmatmul.mubr.f32.gmra.mxu0 %v425
      %v634 = vpop.f32.mrf.mxu0
      %v635 = vadd.f32 0.0, %v634
      %v636 = vpop.f32.mrf.mxu0
      %637 = vmatprep.mubr.f32.mxu0 0.0
      %638 = vmatmul.mubr.f32.gmra.mxu0 %v428
      %v639 = vpop.f32.mrf.mxu0
      %v640 = vadd.f32 0.0, %v639
      %v641 = vpop.f32.mrf.mxu0
      %642 = vmatprep.mubr.f32.mxu0 0.0
      %643 = vmatmul.mubr.f32.gmra.mxu0 %v431
      %v644 = vpop.f32.mrf.mxu0
      %v645 = vadd.f32 0.0, %v644
      %v646 = vpop.f32.mrf.mxu0
      %647 = vmatprep.mubr.f32.mxu0 0.0
      %648 = vmatmul.mubr.f32.gmra.mxu0 %v434
      %v649 = vpop.f32.mrf.mxu0
      %v650 = vadd.f32 0.0, %v649
      %v651 = vpop.f32.mrf.mxu0
      %652 = vmatprep.mubr.f32.mxu0 0.0
      %653 = vmatmul.mubr.f32.gmra.mxu0 %v437
      %v654 = vpop.f32.mrf.mxu0
      %v655 = vadd.f32 0.0, %v654
      %v656 = vpop.f32.mrf.mxu0
      %657 = vmatprep.mubr.f32.mxu0 0.0
      %658 = vmatmul.mubr.f32.gmra.mxu0 %v440
      %v659 = vpop.f32.mrf.mxu0
      %v660 = vadd.f32 0.0, %v659
      %v661 = vpop.f32.mrf.mxu0
      %662 = vmatprep.mubr.f32.mxu0 0.0
      %663 = vmatmul.mubr.f32.gmra.mxu0 %v443
      %v664 = vpop.f32.mrf.mxu0
      %v665 = vadd.f32 0.0, %v664
      %v666 = vpop.f32.mrf.mxu0
      %667 = vmatprep.mubr.f32.mxu0 0.0
      %668 = vmatmul.mubr.f32.gmra.mxu0 %v446
      %v669 = vpop.f32.mrf.mxu0
      %v670 = vadd.f32 0.0, %v669
      %v671 = vpop.f32.mrf.mxu0
      %672 = vmatprep.mubr.f32.mxu0 0.0
      %673 = vmatmul.mubr.f32.gmra.mxu0 %v449
      %v674 = vpop.f32.mrf.mxu0
      %v675 = vadd.f32 0.0, %v674
      %v676 = vpop.f32.mrf.mxu0
      %677 = vmatprep.mubr.f32.mxu0 0.0
      %678 = vmatmul.mubr.f32.gmra.mxu0 %v452
      %v679 = vpop.f32.mrf.mxu0
      %v680 = vadd.f32 0.0, %v679
      %v681 = vpop.f32.mrf.mxu0
      %682 = vmatprep.mubr.f32.mxu0 0.0
      %683 = vmatmul.mubr.f32.gmra.mxu0 %v455
      %v684 = vpop.f32.mrf.mxu0
      %v685 = vadd.f32 0.0, %v684
      %v686 = vpop.f32.mrf.mxu0
      %687 = vmatprep.mubr.f32.mxu0 0.0
      %688 = vmatmul.mubr.f32.gmra.mxu0 %v458
      %v689 = vpop.f32.mrf.mxu0
      %v690 = vadd.f32 0.0, %v689
      %v691 = vpop.f32.mrf.mxu0
      %692 = vmatprep.mubr.f32.mxu0 0.0
      %693 = vmatmul.mubr.f32.gmra.mxu0 %v461
      %v694 = vpop.f32.mrf.mxu0
      %v695 = vadd.f32 0.0, %v694
      %v696 = vpop.f32.mrf.mxu0
      %697 = vmatprep.mubr.f32.mxu0 0.0
      %698 = vmatmul.mubr.f32.gmra.mxu0 %v464
      %v699 = vpop.f32.mrf.mxu0
      %v700 = vadd.f32 0.0, %v699
      %v701 = vpop.f32.mrf.mxu0
      %702 = vmatprep.mubr.f32.mxu0 0.0
      %703 = vmatmul.mubr.f32.gmra.mxu0 %v467
      %v704 = vpop.f32.mrf.mxu0
      %v705 = vadd.f32 0.0, %v704
      %v706 = vpop.f32.mrf.mxu0
      %707 = vmatprep.mubr.f32.mxu0 0.0
      %708 = vmatmul.mubr.f32.gmra.mxu0 %v470
      %v709 = vpop.f32.mrf.mxu0
      %v710 = vadd.f32 0.0, %v709
      %v711 = vpop.f32.mrf.mxu0
      %712 = vmatprep.mubr.f32.mxu0 0.0
      %713 = vmatmul.mubr.f32.gmra.mxu0 %v473
      %v714 = vpop.f32.mrf.mxu0
      %v715 = vadd.f32 0.0, %v714
      %v716 = vpop.f32.mrf.mxu0
      %717 = vmatprep.mubr.f32.mxu0 0.0
      %718 = vmatmul.mubr.f32.gmra.mxu0 %v476
      %v719 = vpop.f32.mrf.mxu0
      %v720 = vadd.f32 0.0, %v719
      %v721 = vpop.f32.mrf.mxu0
      %722 = vdwg.mxu0
      %v724 = vsel %vm171, %v295, 0
      %v727 = vsel %vm171, %v296, 0
      %v730 = vsel %vm171, %v297, 0
      %v733 = vsel %vm171, %v298, 0
      %v736 = vsel %vm171, %v299, 0
      %v739 = vsel %vm171, %v300, 0
      %v742 = vsel %vm171, %v301, 0
      %v745 = vsel %vm171, %v302, 0
      %v748 = vsel %vm171, %v303, 0
      %v751 = vsel %vm171, %v304, 0
      %v754 = vsel %vm171, %v305, 0
      %v757 = vsel %vm171, %v306, 0
      %v760 = vsel %vm171, %v307, 0
      %v763 = vsel %vm171, %v308, 0
      %v766 = vsel %vm171, %v309, 0
      %v769 = vsel %vm171, %v310, 0
      %v772 = vsel %vm171, %v311, 0
      %v775 = vsel %vm171, %v312, 0
      %v778 = vsel %vm171, %v313, 0
      %v781 = vsel %vm171, %v314, 0
      %v784 = vsel %vm171, %v315, 0
      %v787 = vsel %vm171, %v316, 0
      %v790 = vsel %vm171, %v317, 0
      %v793 = vsel %vm171, %v318, 0
      %v796 = vsel %vm171, %v319, 0
      %v799 = vsel %vm171, %v320, 0
      %v802 = vsel %vm171, %v321, 0
      %v805 = vsel %vm171, %v322, 0
      %v808 = vsel %vm171, %v323, 0
      %v811 = vsel %vm171, %v324, 0
      %v814 = vsel %vm171, %v325, 0
      %v817 = vsel %vm171, %v326, 0
      %v820 = vsel %vm171, %v327, 0
      %v823 = vsel %vm171, %v328, 0
      %v826 = vsel %vm171, %v329, 0
      %v829 = vsel %vm171, %v330, 0
      %831 = vmatprep.subr.mxu0 0.0
      %832 = vmatpush1.msra.mxu0 0.0
      %833 = vmatprep.subr.mxu0 0.0
      %834 = vmatpush1.msra.mxu0 0.0
      %835 = vmatprep.subr.mxu0 0.0
      %836 = vmatpush1.msra.mxu0 0.0
      %837 = vmatprep.subr.mxu0 0.0
      %838 = vmatpush1.msra.mxu0 0.0
      %839 = vmatprep.subr.mxu0 0.0
      %840 = vmatpush1.msra.mxu0 0.0
      %841 = vmatprep.subr.mxu0 0.0
      %842 = vmatpush1.msra.mxu0 0.0
      %843 = vmatprep.subr.mxu0 0.0
      %844 = vmatpush1.msra.mxu0 0.0
      %845 = vmatprep.subr.mxu0 0.0
      %846 = vmatpush1.msra.mxu0 0.0
      %847 = vmatprep.subr.mxu0 0.0
      %848 = vmatpush1.msra.mxu0 0.0
      %849 = vmatprep.subr.mxu0 0.0
      %850 = vmatpush1.msra.mxu0 0.0
      %851 = vmatprep.subr.mxu0 0.0
      %852 = vmatpush1.msra.mxu0 0.0
      %853 = vmatprep.subr.mxu0 0.0
      %854 = vmatpush1.msra.mxu0 0.0
      %855 = vmatprep.subr.mxu0 0.0
      %856 = vmatpush1.msra.mxu0 0.0
      %857 = vmatprep.subr.mxu0 0.0
      %858 = vmatpush1.msra.mxu0 0.0
      %859 = vmatprep.subr.mxu0 0.0
      %860 = vmatpush1.msra.mxu0 0.0
      %861 = vmatprep.subr.mxu0 0.0
      %862 = vmatpush1.msra.mxu0 %v331
      %863 = vmatprep.subr.mxu0 0.0
      %864 = vmatpush2.msra.mxu0 0.0
      %865 = vmatprep.subr.mxu0 0.0
      %866 = vmatpush2.msra.mxu0 0.0
      %867 = vmatprep.subr.mxu0 0.0
      %868 = vmatpush2.msra.mxu0 0.0
      %869 = vmatprep.subr.mxu0 0.0
      %870 = vmatpush2.msra.mxu0 0.0
      %871 = vmatprep.subr.mxu0 0.0
      %872 = vmatpush2.msra.mxu0 0.0
      %873 = vmatprep.subr.mxu0 0.0
      %874 = vmatpush2.msra.mxu0 0.0
      %875 = vmatprep.subr.mxu0 0.0
      %876 = vmatpush2.msra.mxu0 0.0
      %877 = vmatprep.subr.mxu0 0.0
      %878 = vmatpush2.msra.mxu0 0.0
      %879 = vmatprep.subr.mxu0 0.0
      %880 = vmatpush2.msra.mxu0 0.0
      %881 = vmatprep.subr.mxu0 0.0
      %882 = vmatpush2.msra.mxu0 0.0
      %883 = vmatprep.subr.mxu0 0.0
      %884 = vmatpush2.msra.mxu0 0.0
      %885 = vmatprep.subr.mxu0 0.0
      %886 = vmatpush2.msra.mxu0 0.0
      %887 = vmatprep.subr.mxu0 0.0
      %888 = vmatpush2.msra.mxu0 0.0
      %889 = vmatprep.subr.mxu0 0.0
      %890 = vmatpush2.msra.mxu0 0.0
      %891 = vmatprep.subr.mxu0 0.0
      %892 = vmatpush2.msra.mxu0 0.0
      %893 = vmatprep.subr.mxu0 0.0
      %894 = vmatpush2.msra.mxu0 0.0
      %895 = vmatprep.mubr.f32.mxu0 0.0
      %896 = vmatmul.mubr.f32.gmra.mxu0 %v724
      %v897 = vpop.f32.mrf.mxu0
      %v898 = vadd.f32 %v545, %v897
      %v899 = vpop.f32.mrf.mxu0
      %900 = vmatprep.mubr.f32.mxu0 0.0
      %901 = vmatmul.mubr.f32.gmra.mxu0 %v727
      %v902 = vpop.f32.mrf.mxu0
      %v903 = vadd.f32 %v550, %v902
      %v904 = vpop.f32.mrf.mxu0
      %905 = vmatprep.mubr.f32.mxu0 0.0
      %906 = vmatmul.mubr.f32.gmra.mxu0 %v730
      %v907 = vpop.f32.mrf.mxu0
      %v908 = vadd.f32 %v555, %v907
      %v909 = vpop.f32.mrf.mxu0
      %910 = vmatprep.mubr.f32.mxu0 0.0
      %911 = vmatmul.mubr.f32.gmra.mxu0 %v733
      %v912 = vpop.f32.mrf.mxu0
      %v913 = vadd.f32 %v560, %v912
      %v914 = vpop.f32.mrf.mxu0
      %915 = vmatprep.mubr.f32.mxu0 0.0
      %916 = vmatmul.mubr.f32.gmra.mxu0 %v736
      %v917 = vpop.f32.mrf.mxu0
      %v918 = vadd.f32 %v565, %v917
      %v919 = vpop.f32.mrf.mxu0
      %920 = vmatprep.mubr.f32.mxu0 0.0
      %921 = vmatmul.mubr.f32.gmra.mxu0 %v739
      %v922 = vpop.f32.mrf.mxu0
      %v923 = vadd.f32 %v570, %v922
      %v924 = vpop.f32.mrf.mxu0
      %925 = vmatprep.mubr.f32.mxu0 0.0
      %926 = vmatmul.mubr.f32.gmra.mxu0 %v742
      %v927 = vpop.f32.mrf.mxu0
      %v928 = vadd.f32 %v575, %v927
      %v929 = vpop.f32.mrf.mxu0
      %930 = vmatprep.mubr.f32.mxu0 0.0
      %931 = vmatmul.mubr.f32.gmra.mxu0 %v745
      %v932 = vpop.f32.mrf.mxu0
      %v933 = vadd.f32 %v580, %v932
      %v934 = vpop.f32.mrf.mxu0
      %935 = vmatprep.mubr.f32.mxu0 0.0
      %936 = vmatmul.mubr.f32.gmra.mxu0 %v748
      %v937 = vpop.f32.mrf.mxu0
      %v938 = vadd.f32 %v585, %v937
      %v939 = vpop.f32.mrf.mxu0
      %940 = vmatprep.mubr.f32.mxu0 0.0
      %941 = vmatmul.mubr.f32.gmra.mxu0 %v751
      %v942 = vpop.f32.mrf.mxu0
      %v943 = vadd.f32 %v590, %v942
      %v944 = vpop.f32.mrf.mxu0
      %945 = vmatprep.mubr.f32.mxu0 0.0
      %946 = vmatmul.mubr.f32.gmra.mxu0 %v754
      %v947 = vpop.f32.mrf.mxu0
      %v948 = vadd.f32 %v595, %v947
      %v949 = vpop.f32.mrf.mxu0
      %950 = vmatprep.mubr.f32.mxu0 0.0
      %951 = vmatmul.mubr.f32.gmra.mxu0 %v757
      %v952 = vpop.f32.mrf.mxu0
      %v953 = vadd.f32 %v600, %v952
      %v954 = vpop.f32.mrf.mxu0
      %955 = vmatprep.mubr.f32.mxu0 0.0
      %956 = vmatmul.mubr.f32.gmra.mxu0 %v760
      %v957 = vpop.f32.mrf.mxu0
      %v958 = vadd.f32 %v605, %v957
      %v959 = vpop.f32.mrf.mxu0
      %960 = vmatprep.mubr.f32.mxu0 0.0
      %961 = vmatmul.mubr.f32.gmra.mxu0 %v763
      %v962 = vpop.f32.mrf.mxu0
      %v963 = vadd.f32 %v610, %v962
      %v964 = vpop.f32.mrf.mxu0
      %965 = vmatprep.mubr.f32.mxu0 0.0
      %966 = vmatmul.mubr.f32.gmra.mxu0 %v766
      %v967 = vpop.f32.mrf.mxu0
      %v968 = vadd.f32 %v615, %v967
      %v969 = vpop.f32.mrf.mxu0
      %970 = vmatprep.mubr.f32.mxu0 0.0
      %971 = vmatmul.mubr.f32.gmra.mxu0 %v769
      %v972 = vpop.f32.mrf.mxu0
      %v973 = vadd.f32 %v620, %v972
      %v974 = vpop.f32.mrf.mxu0
      %975 = vmatprep.mubr.f32.mxu0 0.0
      %976 = vmatmul.mubr.f32.gmra.mxu0 %v772
      %v977 = vpop.f32.mrf.mxu0
      %v978 = vadd.f32 %v625, %v977
      %v979 = vpop.f32.mrf.mxu0
      %980 = vmatprep.mubr.f32.mxu0 0.0
      %981 = vmatmul.mubr.f32.gmra.mxu0 %v775
      %v982 = vpop.f32.mrf.mxu0
      %v983 = vadd.f32 %v630, %v982
      %v984 = vpop.f32.mrf.mxu0
      %985 = vmatprep.mubr.f32.mxu0 0.0
      %986 = vmatmul.mubr.f32.gmra.mxu0 %v778
      %v987 = vpop.f32.mrf.mxu0
      %v988 = vadd.f32 %v635, %v987
      %v989 = vpop.f32.mrf.mxu0
      %990 = vmatprep.mubr.f32.mxu0 0.0
      %991 = vmatmul.mubr.f32.gmra.mxu0 %v781
      %v992 = vpop.f32.mrf.mxu0
      %v993 = vadd.f32 %v640, %v992
      %v994 = vpop.f32.mrf.mxu0
      %995 = vmatprep.mubr.f32.mxu0 0.0
      %996 = vmatmul.mubr.f32.gmra.mxu0 %v784
      %v997 = vpop.f32.mrf.mxu0
      %v998 = vadd.f32 %v645, %v997
      %v999 = vpop.f32.mrf.mxu0
      %1000 = vmatprep.mubr.f32.mxu0 0.0
      %1001 = vmatmul.mubr.f32.gmra.mxu0 %v787
      %v1002 = vpop.f32.mrf.mxu0
      %v1003 = vadd.f32 %v650, %v1002
      %v1004 = vpop.f32.mrf.mxu0
      %1005 = vmatprep.mubr.f32.mxu0 0.0
      %1006 = vmatmul.mubr.f32.gmra.mxu0 %v790
      %v1007 = vpop.f32.mrf.mxu0
      %v1008 = vadd.f32 %v655, %v1007
      %v1009 = vpop.f32.mrf.mxu0
      %1010 = vmatprep.mubr.f32.mxu0 0.0
      %1011 = vmatmul.mubr.f32.gmra.mxu0 %v793
      %v1012 = vpop.f32.mrf.mxu0
      %v1013 = vadd.f32 %v660, %v1012
      %v1014 = vpop.f32.mrf.mxu0
      %1015 = vmatprep.mubr.f32.mxu0 0.0
      %1016 = vmatmul.mubr.f32.gmra.mxu0 %v796
      %v1017 = vpop.f32.mrf.mxu0
      %v1018 = vadd.f32 %v665, %v1017
      %v1019 = vpop.f32.mrf.mxu0
      %1020 = vmatprep.mubr.f32.mxu0 0.0
      %1021 = vmatmul.mubr.f32.gmra.mxu0 %v799
      %v1022 = vpop.f32.mrf.mxu0
      %v1023 = vadd.f32 %v670, %v1022
      %v1024 = vpop.f32.mrf.mxu0
      %1025 = vmatprep.mubr.f32.mxu0 0.0
      %1026 = vmatmul.mubr.f32.gmra.mxu0 %v802
      %v1027 = vpop.f32.mrf.mxu0
      %v1028 = vadd.f32 %v675, %v1027
      %v1029 = vpop.f32.mrf.mxu0
      %1030 = vmatprep.mubr.f32.mxu0 0.0
      %1031 = vmatmul.mubr.f32.gmra.mxu0 %v805
      %v1032 = vpop.f32.mrf.mxu0
      %v1033 = vadd.f32 %v680, %v1032
      %v1034 = vpop.f32.mrf.mxu0
      %1035 = vmatprep.mubr.f32.mxu0 0.0
      %1036 = vmatmul.mubr.f32.gmra.mxu0 %v808
      %v1037 = vpop.f32.mrf.mxu0
      %v1038 = vadd.f32 %v685, %v1037
      %v1039 = vpop.f32.mrf.mxu0
      %1040 = vmatprep.mubr.f32.mxu0 0.0
      %1041 = vmatmul.mubr.f32.gmra.mxu0 %v811
      %v1042 = vpop.f32.mrf.mxu0
      %v1043 = vadd.f32 %v690, %v1042
      %v1044 = vpop.f32.mrf.mxu0
      %1045 = vmatprep.mubr.f32.mxu0 0.0
      %1046 = vmatmul.mubr.f32.gmra.mxu0 %v814
      %v1047 = vpop.f32.mrf.mxu0
      %v1048 = vadd.f32 %v695, %v1047
      %v1049 = vpop.f32.mrf.mxu0
      %1050 = vmatprep.mubr.f32.mxu0 0.0
      %1051 = vmatmul.mubr.f32.gmra.mxu0 %v817
      %v1052 = vpop.f32.mrf.mxu0
      %v1053 = vadd.f32 %v700, %v1052
      %v1054 = vpop.f32.mrf.mxu0
      %1055 = vmatprep.mubr.f32.mxu0 0.0
      %1056 = vmatmul.mubr.f32.gmra.mxu0 %v820
      %v1057 = vpop.f32.mrf.mxu0
      %v1058 = vadd.f32 %v705, %v1057
      %v1059 = vpop.f32.mrf.mxu0
      %1060 = vmatprep.mubr.f32.mxu0 0.0
      %1061 = vmatmul.mubr.f32.gmra.mxu0 %v823
      %v1062 = vpop.f32.mrf.mxu0
      %v1063 = vadd.f32 %v710, %v1062
      %v1064 = vpop.f32.mrf.mxu0
      %1065 = vmatprep.mubr.f32.mxu0 0.0
      %1066 = vmatmul.mubr.f32.gmra.mxu0 %v826
      %v1067 = vpop.f32.mrf.mxu0
      %v1068 = vadd.f32 %v715, %v1067
      %v1069 = vpop.f32.mrf.mxu0
      %1070 = vmatprep.mubr.f32.mxu0 0.0
      %1071 = vmatmul.mubr.f32.gmra.mxu0 %v829
      %v1072 = vpop.f32.mrf.mxu0
      %v1073 = vadd.f32 %v720, %v1072
      %v1074 = vpop.f32.mrf.mxu0
      %1075 = vdwg.mxu0
      %v1076 = vld [vmem:[#allocation2 + $0x2] sm:$0xff]
      %v1077 = vld [vmem:[#allocation2 + $0xa] sm:$0xff]
      %v1078 = vld [vmem:[#allocation2 + $0x12] sm:$0xff]
      %v1079 = vld [vmem:[#allocation2 + $0x1a] sm:$0xff]
      %v1080 = vld [vmem:[#allocation2 + $0x22] sm:$0xff]
      %v1081 = vld [vmem:[#allocation2 + $0x2a] sm:$0xff]
      %v1082 = vld [vmem:[#allocation2 + $0x32] sm:$0xff]
      %v1083 = vld [vmem:[#allocation2 + $0x3a] sm:$0xff]
      %v1084 = vld [vmem:[#allocation2 + $0x42] sm:$0xff]
      %v1085 = vld [vmem:[#allocation2 + $0x4a] sm:$0xff]
      %v1086 = vld [vmem:[#allocation2 + $0x52] sm:$0xff]
      %v1087 = vld [vmem:[#allocation2 + $0x5a] sm:$0xff]
      %v1088 = vld [vmem:[#allocation2 + $0x62] sm:$0xff]
      %v1089 = vld [vmem:[#allocation2 + $0x6a] sm:$0xff]
      %v1090 = vld [vmem:[#allocation2 + $0x72] sm:$0xff]
      %v1091 = vld [vmem:[#allocation2 + $0x7a] sm:$0xff]
      %v1092 = vld [vmem:[#allocation2 + $0x82] sm:$0xff]
      %v1093 = vld [vmem:[#allocation2 + $0x8a] sm:$0xff]
      %v1094 = vld [vmem:[#allocation2 + $0x92] sm:$0xff]
      %v1095 = vld [vmem:[#allocation2 + $0x9a] sm:$0xff]
      %v1096 = vld [vmem:[#allocation2 + $0xa2] sm:$0xff]
      %v1097 = vld [vmem:[#allocation2 + $0xaa] sm:$0xff]
      %v1098 = vld [vmem:[#allocation2 + $0xb2] sm:$0xff]
      %v1099 = vld [vmem:[#allocation2 + $0xba] sm:$0xff]
      %v1100 = vld [vmem:[#allocation2 + $0xc2] sm:$0xff]
      %v1101 = vld [vmem:[#allocation2 + $0xca] sm:$0xff]
      %v1102 = vld [vmem:[#allocation2 + $0xd2] sm:$0xff]
      %v1103 = vld [vmem:[#allocation2 + $0xda] sm:$0xff]
      %v1104 = vld [vmem:[#allocation2 + $0xe2] sm:$0xff]
      %v1105 = vld [vmem:[#allocation2 + $0xea] sm:$0xff]
      %v1106 = vld [vmem:[#allocation2 + $0xf2] sm:$0xff]
      %v1107 = vld [vmem:[#allocation2 + $0xfa] sm:$0xff]
      %v1108 = vld [vmem:[#allocation2 + $0x102] sm:$0xff]
      %v1109 = vld [vmem:[#allocation2 + $0x10a] sm:$0xff]
      %v1110 = vld [vmem:[#allocation2 + $0x112] sm:$0xff]
      %v1111 = vld [vmem:[#allocation2 + $0x11a] sm:$0xff]
      %s1112 = scalar_lea.vmem %s1, 16
      %v1113 = vld [vmem:[%s1112] sm:$0xff]
      %v1115 = vsel %vm171, %v1076, 0
      %v1118 = vsel %vm171, %v1077, 0
      %v1121 = vsel %vm171, %v1078, 0
      %v1124 = vsel %vm171, %v1079, 0
      %v1127 = vsel %vm171, %v1080, 0
      %v1130 = vsel %vm171, %v1081, 0
      %v1133 = vsel %vm171, %v1082, 0
      %v1136 = vsel %vm171, %v1083, 0
      %v1139 = vsel %vm171, %v1084, 0
      %v1142 = vsel %vm171, %v1085, 0
      %v1145 = vsel %vm171, %v1086, 0
      %v1148 = vsel %vm171, %v1087, 0
      %v1151 = vsel %vm171, %v1088, 0
      %v1154 = vsel %vm171, %v1089, 0
      %v1157 = vsel %vm171, %v1090, 0
      %v1160 = vsel %vm171, %v1091, 0
      %v1163 = vsel %vm171, %v1092, 0
      %v1166 = vsel %vm171, %v1093, 0
      %v1169 = vsel %vm171, %v1094, 0
      %v1172 = vsel %vm171, %v1095, 0
      %v1175 = vsel %vm171, %v1096, 0
      %v1178 = vsel %vm171, %v1097, 0
      %v1181 = vsel %vm171, %v1098, 0
      %v1184 = vsel %vm171, %v1099, 0
      %v1187 = vsel %vm171, %v1100, 0
      %v1190 = vsel %vm171, %v1101, 0
      %v1193 = vsel %vm171, %v1102, 0
      %v1196 = vsel %vm171, %v1103, 0
      %v1199 = vsel %vm171, %v1104, 0
      %v1202 = vsel %vm171, %v1105, 0
      %v1205 = vsel %vm171, %v1106, 0
      %v1208 = vsel %vm171, %v1107, 0
      %v1211 = vsel %vm171, %v1108, 0
      %v1214 = vsel %vm171, %v1109, 0
      %v1217 = vsel %vm171, %v1110, 0
      %v1220 = vsel %vm171, %v1111, 0
      %1222 = vmatprep.subr.mxu0 0.0
      %1223 = vmatpush1.msra.mxu0 0.0
      %1224 = vmatprep.subr.mxu0 0.0
      %1225 = vmatpush1.msra.mxu0 0.0
      %1226 = vmatprep.subr.mxu0 0.0
      %1227 = vmatpush1.msra.mxu0 0.0
      %1228 = vmatprep.subr.mxu0 0.0
      %1229 = vmatpush1.msra.mxu0 0.0
      %1230 = vmatprep.subr.mxu0 0.0
      %1231 = vmatpush1.msra.mxu0 0.0
      %1232 = vmatprep.subr.mxu0 0.0
      %1233 = vmatpush1.msra.mxu0 0.0
      %1234 = vmatprep.subr.mxu0 0.0
      %1235 = vmatpush1.msra.mxu0 0.0
      %1236 = vmatprep.subr.mxu0 0.0
      %1237 = vmatpush1.msra.mxu0 0.0
      %1238 = vmatprep.subr.mxu0 0.0
      %1239 = vmatpush1.msra.mxu0 0.0
      %1240 = vmatprep.subr.mxu0 0.0
      %1241 = vmatpush1.msra.mxu0 0.0
      %1242 = vmatprep.subr.mxu0 0.0
      %1243 = vmatpush1.msra.mxu0 0.0
      %1244 = vmatprep.subr.mxu0 0.0
      %1245 = vmatpush1.msra.mxu0 0.0
      %1246 = vmatprep.subr.mxu0 0.0
      %1247 = vmatpush1.msra.mxu0 0.0
      %1248 = vmatprep.subr.mxu0 0.0
      %1249 = vmatpush1.msra.mxu0 0.0
      %1250 = vmatprep.subr.mxu0 0.0
      %1251 = vmatpush1.msra.mxu0 0.0
      %1252 = vmatprep.subr.mxu0 0.0
      %1253 = vmatpush1.msra.mxu0 %v1113
      %1254 = vmatprep.subr.mxu0 0.0
      %1255 = vmatpush2.msra.mxu0 0.0
      %1256 = vmatprep.subr.mxu0 0.0
      %1257 = vmatpush2.msra.mxu0 0.0
      %1258 = vmatprep.subr.mxu0 0.0
      %1259 = vmatpush2.msra.mxu0 0.0
      %1260 = vmatprep.subr.mxu0 0.0
      %1261 = vmatpush2.msra.mxu0 0.0
      %1262 = vmatprep.subr.mxu0 0.0
      %1263 = vmatpush2.msra.mxu0 0.0
      %1264 = vmatprep.subr.mxu0 0.0
      %1265 = vmatpush2.msra.mxu0 0.0
      %1266 = vmatprep.subr.mxu0 0.0
      %1267 = vmatpush2.msra.mxu0 0.0
      %1268 = vmatprep.subr.mxu0 0.0
      %1269 = vmatpush2.msra.mxu0 0.0
      %1270 = vmatprep.subr.mxu0 0.0
      %1271 = vmatpush2.msra.mxu0 0.0
      %1272 = vmatprep.subr.mxu0 0.0
      %1273 = vmatpush2.msra.mxu0 0.0
      %1274 = vmatprep.subr.mxu0 0.0
      %1275 = vmatpush2.msra.mxu0 0.0
      %1276 = vmatprep.subr.mxu0 0.0
      %1277 = vmatpush2.msra.mxu0 0.0
      %1278 = vmatprep.subr.mxu0 0.0
      %1279 = vmatpush2.msra.mxu0 0.0
      %1280 = vmatprep.subr.mxu0 0.0
      %1281 = vmatpush2.msra.mxu0 0.0
      %1282 = vmatprep.subr.mxu0 0.0
      %1283 = vmatpush2.msra.mxu0 0.0
      %1284 = vmatprep.subr.mxu0 0.0
      %1285 = vmatpush2.msra.mxu0 0.0
      %1286 = vmatprep.mubr.f32.mxu0 0.0
      %1287 = vmatmul.mubr.f32.gmra.mxu0 %v1115
      %v1288 = vpop.f32.mrf.mxu0
      %v1289 = vadd.f32 0.0, %v1288
      %v1290 = vpop.f32.mrf.mxu0
      %1291 = vmatprep.mubr.f32.mxu0 0.0
      %1292 = vmatmul.mubr.f32.gmra.mxu0 %v1118
      %v1293 = vpop.f32.mrf.mxu0
      %v1294 = vadd.f32 0.0, %v1293
      %v1295 = vpop.f32.mrf.mxu0
      %1296 = vmatprep.mubr.f32.mxu0 0.0
      %1297 = vmatmul.mubr.f32.gmra.mxu0 %v1121
      %v1298 = vpop.f32.mrf.mxu0
      %v1299 = vadd.f32 0.0, %v1298
      %v1300 = vpop.f32.mrf.mxu0
      %1301 = vmatprep.mubr.f32.mxu0 0.0
      %1302 = vmatmul.mubr.f32.gmra.mxu0 %v1124
      %v1303 = vpop.f32.mrf.mxu0
      %v1304 = vadd.f32 0.0, %v1303
      %v1305 = vpop.f32.mrf.mxu0
      %1306 = vmatprep.mubr.f32.mxu0 0.0
      %1307 = vmatmul.mubr.f32.gmra.mxu0 %v1127
      %v1308 = vpop.f32.mrf.mxu0
      %v1309 = vadd.f32 0.0, %v1308
      %v1310 = vpop.f32.mrf.mxu0
      %1311 = vmatprep.mubr.f32.mxu0 0.0
      %1312 = vmatmul.mubr.f32.gmra.mxu0 %v1130
      %v1313 = vpop.f32.mrf.mxu0
      %v1314 = vadd.f32 0.0, %v1313
      %v1315 = vpop.f32.mrf.mxu0
      %1316 = vmatprep.mubr.f32.mxu0 0.0
      %1317 = vmatmul.mubr.f32.gmra.mxu0 %v1133
      %v1318 = vpop.f32.mrf.mxu0
      %v1319 = vadd.f32 0.0, %v1318
      %v1320 = vpop.f32.mrf.mxu0
      %1321 = vmatprep.mubr.f32.mxu0 0.0
      %1322 = vmatmul.mubr.f32.gmra.mxu0 %v1136
      %v1323 = vpop.f32.mrf.mxu0
      %v1324 = vadd.f32 0.0, %v1323
      %v1325 = vpop.f32.mrf.mxu0
      %1326 = vmatprep.mubr.f32.mxu0 0.0
      %1327 = vmatmul.mubr.f32.gmra.mxu0 %v1139
      %v1328 = vpop.f32.mrf.mxu0
      %v1329 = vadd.f32 0.0, %v1328
      %v1330 = vpop.f32.mrf.mxu0
      %1331 = vmatprep.mubr.f32.mxu0 0.0
      %1332 = vmatmul.mubr.f32.gmra.mxu0 %v1142
      %v1333 = vpop.f32.mrf.mxu0
      %v1334 = vadd.f32 0.0, %v1333
      %v1335 = vpop.f32.mrf.mxu0
      %1336 = vmatprep.mubr.f32.mxu0 0.0
      %1337 = vmatmul.mubr.f32.gmra.mxu0 %v1145
      %v1338 = vpop.f32.mrf.mxu0
      %v1339 = vadd.f32 0.0, %v1338
      %v1340 = vpop.f32.mrf.mxu0
      %1341 = vmatprep.mubr.f32.mxu0 0.0
      %1342 = vmatmul.mubr.f32.gmra.mxu0 %v1148
      %v1343 = vpop.f32.mrf.mxu0
      %v1344 = vadd.f32 0.0, %v1343
      %v1345 = vpop.f32.mrf.mxu0
      %1346 = vmatprep.mubr.f32.mxu0 0.0
      %1347 = vmatmul.mubr.f32.gmra.mxu0 %v1151
      %v1348 = vpop.f32.mrf.mxu0
      %v1349 = vadd.f32 0.0, %v1348
      %v1350 = vpop.f32.mrf.mxu0
      %1351 = vmatprep.mubr.f32.mxu0 0.0
      %1352 = vmatmul.mubr.f32.gmra.mxu0 %v1154
      %v1353 = vpop.f32.mrf.mxu0
      %v1354 = vadd.f32 0.0, %v1353
      %v1355 = vpop.f32.mrf.mxu0
      %1356 = vmatprep.mubr.f32.mxu0 0.0
      %1357 = vmatmul.mubr.f32.gmra.mxu0 %v1157
      %v1358 = vpop.f32.mrf.mxu0
      %v1359 = vadd.f32 0.0, %v1358
      %v1360 = vpop.f32.mrf.mxu0
      %1361 = vmatprep.mubr.f32.mxu0 0.0
      %1362 = vmatmul.mubr.f32.gmra.mxu0 %v1160
      %v1363 = vpop.f32.mrf.mxu0
      %v1364 = vadd.f32 0.0, %v1363
      %v1365 = vpop.f32.mrf.mxu0
      %1366 = vmatprep.mubr.f32.mxu0 0.0
      %1367 = vmatmul.mubr.f32.gmra.mxu0 %v1163
      %v1368 = vpop.f32.mrf.mxu0
      %v1369 = vadd.f32 0.0, %v1368
      %v1370 = vpop.f32.mrf.mxu0
      %1371 = vmatprep.mubr.f32.mxu0 0.0
      %1372 = vmatmul.mubr.f32.gmra.mxu0 %v1166
      %v1373 = vpop.f32.mrf.mxu0
      %v1374 = vadd.f32 0.0, %v1373
      %v1375 = vpop.f32.mrf.mxu0
      %1376 = vmatprep.mubr.f32.mxu0 0.0
      %1377 = vmatmul.mubr.f32.gmra.mxu0 %v1169
      %v1378 = vpop.f32.mrf.mxu0
      %v1379 = vadd.f32 0.0, %v1378
      %v1380 = vpop.f32.mrf.mxu0
      %1381 = vmatprep.mubr.f32.mxu0 0.0
      %1382 = vmatmul.mubr.f32.gmra.mxu0 %v1172
      %v1383 = vpop.f32.mrf.mxu0
      %v1384 = vadd.f32 0.0, %v1383
      %v1385 = vpop.f32.mrf.mxu0
      %1386 = vmatprep.mubr.f32.mxu0 0.0
      %1387 = vmatmul.mubr.f32.gmra.mxu0 %v1175
      %v1388 = vpop.f32.mrf.mxu0
      %v1389 = vadd.f32 0.0, %v1388
      %v1390 = vpop.f32.mrf.mxu0
      %1391 = vmatprep.mubr.f32.mxu0 0.0
      %1392 = vmatmul.mubr.f32.gmra.mxu0 %v1178
      %v1393 = vpop.f32.mrf.mxu0
      %v1394 = vadd.f32 0.0, %v1393
      %v1395 = vpop.f32.mrf.mxu0
      %1396 = vmatprep.mubr.f32.mxu0 0.0
      %1397 = vmatmul.mubr.f32.gmra.mxu0 %v1181
      %v1398 = vpop.f32.mrf.mxu0
      %v1399 = vadd.f32 0.0, %v1398
      %v1400 = vpop.f32.mrf.mxu0
      %1401 = vmatprep.mubr.f32.mxu0 0.0
      %1402 = vmatmul.mubr.f32.gmra.mxu0 %v1184
      %v1403 = vpop.f32.mrf.mxu0
      %v1404 = vadd.f32 0.0, %v1403
      %v1405 = vpop.f32.mrf.mxu0
      %1406 = vmatprep.mubr.f32.mxu0 0.0
      %1407 = vmatmul.mubr.f32.gmra.mxu0 %v1187
      %v1408 = vpop.f32.mrf.mxu0
      %v1409 = vadd.f32 0.0, %v1408
      %v1410 = vpop.f32.mrf.mxu0
      %1411 = vmatprep.mubr.f32.mxu0 0.0
      %1412 = vmatmul.mubr.f32.gmra.mxu0 %v1190
      %v1413 = vpop.f32.mrf.mxu0
      %v1414 = vadd.f32 0.0, %v1413
      %v1415 = vpop.f32.mrf.mxu0
      %1416 = vmatprep.mubr.f32.mxu0 0.0
      %1417 = vmatmul.mubr.f32.gmra.mxu0 %v1193
      %v1418 = vpop.f32.mrf.mxu0
      %v1419 = vadd.f32 0.0, %v1418
      %v1420 = vpop.f32.mrf.mxu0
      %1421 = vmatprep.mubr.f32.mxu0 0.0
      %1422 = vmatmul.mubr.f32.gmra.mxu0 %v1196
      %v1423 = vpop.f32.mrf.mxu0
      %v1424 = vadd.f32 0.0, %v1423
      %v1425 = vpop.f32.mrf.mxu0
      %1426 = vmatprep.mubr.f32.mxu0 0.0
      %1427 = vmatmul.mubr.f32.gmra.mxu0 %v1199
      %v1428 = vpop.f32.mrf.mxu0
      %v1429 = vadd.f32 0.0, %v1428
      %v1430 = vpop.f32.mrf.mxu0
      %1431 = vmatprep.mubr.f32.mxu0 0.0
      %1432 = vmatmul.mubr.f32.gmra.mxu0 %v1202
      %v1433 = vpop.f32.mrf.mxu0
      %v1434 = vadd.f32 0.0, %v1433
      %v1435 = vpop.f32.mrf.mxu0
      %1436 = vmatprep.mubr.f32.mxu0 0.0
      %1437 = vmatmul.mubr.f32.gmra.mxu0 %v1205
      %v1438 = vpop.f32.mrf.mxu0
      %v1439 = vadd.f32 0.0, %v1438
      %v1440 = vpop.f32.mrf.mxu0
      %1441 = vmatprep.mubr.f32.mxu0 0.0
      %1442 = vmatmul.mubr.f32.gmra.mxu0 %v1208
      %v1443 = vpop.f32.mrf.mxu0
      %v1444 = vadd.f32 0.0, %v1443
      %v1445 = vpop.f32.mrf.mxu0
      %1446 = vmatprep.mubr.f32.mxu0 0.0
      %1447 = vmatmul.mubr.f32.gmra.mxu0 %v1211
      %v1448 = vpop.f32.mrf.mxu0
      %v1449 = vadd.f32 0.0, %v1448
      %v1450 = vpop.f32.mrf.mxu0
      %1451 = vmatprep.mubr.f32.mxu0 0.0
      %1452 = vmatmul.mubr.f32.gmra.mxu0 %v1214
      %v1453 = vpop.f32.mrf.mxu0
      %v1454 = vadd.f32 0.0, %v1453
      %v1455 = vpop.f32.mrf.mxu0
      %1456 = vmatprep.mubr.f32.mxu0 0.0
      %1457 = vmatmul.mubr.f32.gmra.mxu0 %v1217
      %v1458 = vpop.f32.mrf.mxu0
      %v1459 = vadd.f32 0.0, %v1458
      %v1460 = vpop.f32.mrf.mxu0
      %1461 = vmatprep.mubr.f32.mxu0 0.0
      %1462 = vmatmul.mubr.f32.gmra.mxu0 %v1220
      %v1463 = vpop.f32.mrf.mxu0
      %v1464 = vadd.f32 0.0, %v1463
      %v1465 = vpop.f32.mrf.mxu0
      %1466 = vdwg.mxu0
      %v1467 = vadd.f32 %v898, %v1289
      %v1468 = vadd.f32 %v903, %v1294
      %v1469 = vadd.f32 %v908, %v1299
      %v1470 = vadd.f32 %v913, %v1304
      %v1471 = vadd.f32 %v918, %v1309
      %v1472 = vadd.f32 %v923, %v1314
      %v1473 = vadd.f32 %v928, %v1319
      %v1474 = vadd.f32 %v933, %v1324
      %v1475 = vadd.f32 %v938, %v1329
      %v1476 = vadd.f32 %v943, %v1334
      %v1477 = vadd.f32 %v948, %v1339
      %v1478 = vadd.f32 %v953, %v1344
      %v1479 = vadd.f32 %v958, %v1349
      %v1480 = vadd.f32 %v963, %v1354
      %v1481 = vadd.f32 %v968, %v1359
      %v1482 = vadd.f32 %v973, %v1364
      %v1483 = vadd.f32 %v978, %v1369
      %v1484 = vadd.f32 %v983, %v1374
      %v1485 = vadd.f32 %v988, %v1379
      %v1486 = vadd.f32 %v993, %v1384
      %v1487 = vadd.f32 %v998, %v1389
      %v1488 = vadd.f32 %v1003, %v1394
      %v1489 = vadd.f32 %v1008, %v1399
      %v1490 = vadd.f32 %v1013, %v1404
      %v1491 = vadd.f32 %v1018, %v1409
      %v1492 = vadd.f32 %v1023, %v1414
      %v1493 = vadd.f32 %v1028, %v1419
      %v1494 = vadd.f32 %v1033, %v1424
      %v1495 = vadd.f32 %v1038, %v1429
      %v1496 = vadd.f32 %v1043, %v1434
      %v1497 = vadd.f32 %v1048, %v1439
      %v1498 = vadd.f32 %v1053, %v1444
      %v1499 = vadd.f32 %v1058, %v1449
      %v1500 = vadd.f32 %v1063, %v1454
      %v1501 = vadd.f32 %v1068, %v1459
      %v1502 = vadd.f32 %v1073, %v1464
      %v1503 = vld [vmem:[#allocation2 + $0x12] sm:$0xff]
      %v1504 = vld [vmem:[#allocation2 + $0x1a] sm:$0xff]
      %v1505 = vld [vmem:[#allocation2 + $0x22] sm:$0xff]
      %v1506 = vld [vmem:[#allocation2 + $0x2a] sm:$0xff]
      %v1507 = vld [vmem:[#allocation2 + $0x32] sm:$0xff]
      %v1508 = vld [vmem:[#allocation2 + $0x3a] sm:$0xff]
      %v1509 = vld [vmem:[#allocation2 + $0x42] sm:$0xff]
      %v1510 = vld [vmem:[#allocation2 + $0x4a] sm:$0xff]
      %v1511 = vld [vmem:[#allocation2 + $0x52] sm:$0xff]
      %v1512 = vld [vmem:[#allocation2 + $0x5a] sm:$0xff]
      %v1513 = vld [vmem:[#allocation2 + $0x62] sm:$0xff]
      %v1514 = vld [vmem:[#allocation2 + $0x6a] sm:$0xff]
      %v1515 = vld [vmem:[#allocation2 + $0x72] sm:$0xff]
      %v1516 = vld [vmem:[#allocation2 + $0x7a] sm:$0xff]
      %v1517 = vld [vmem:[#allocation2 + $0x82] sm:$0xff]
      %v1518 = vld [vmem:[#allocation2 + $0x8a] sm:$0xff]
      %v1519 = vld [vmem:[#allocation2 + $0x92] sm:$0xff]
      %v1520 = vld [vmem:[#allocation2 + $0x9a] sm:$0xff]
      %v1521 = vld [vmem:[#allocation2 + $0xa2] sm:$0xff]
      %v1522 = vld [vmem:[#allocation2 + $0xaa] sm:$0xff]
      %v1523 = vld [vmem:[#allocation2 + $0xb2] sm:$0xff]
      %v1524 = vld [vmem:[#allocation2 + $0xba] sm:$0xff]
      %v1525 = vld [vmem:[#allocation2 + $0xc2] sm:$0xff]
      %v1526 = vld [vmem:[#allocation2 + $0xca] sm:$0xff]
      %v1527 = vld [vmem:[#allocation2 + $0xd2] sm:$0xff]
      %v1528 = vld [vmem:[#allocation2 + $0xda] sm:$0xff]
      %v1529 = vld [vmem:[#allocation2 + $0xe2] sm:$0xff]
      %v1530 = vld [vmem:[#allocation2 + $0xea] sm:$0xff]
      %v1531 = vld [vmem:[#allocation2 + $0xf2] sm:$0xff]
      %v1532 = vld [vmem:[#allocation2 + $0xfa] sm:$0xff]
      %v1533 = vld [vmem:[#allocation2 + $0x102] sm:$0xff]
      %v1534 = vld [vmem:[#allocation2 + $0x10a] sm:$0xff]
      %v1535 = vld [vmem:[#allocation2 + $0x112] sm:$0xff]
      %v1536 = vld [vmem:[#allocation2 + $0x11a] sm:$0xff]
      %v1537 = vld [vmem:[#allocation2 + $0x122] sm:$0xff]
      %v1538 = vld [vmem:[#allocation2 + $0x12a] sm:$0xff]
      %s1539 = scalar_lea.vmem %s1, 24
      %v1540 = vld [vmem:[%s1539] sm:$0xff]
      %v1542 = vsel %vm171, %v1503, 0
      %v1545 = vsel %vm171, %v1504, 0
      %v1548 = vsel %vm171, %v1505, 0
      %v1551 = vsel %vm171, %v1506, 0
      %v1554 = vsel %vm171, %v1507, 0
      %v1557 = vsel %vm171, %v1508, 0
      %v1560 = vsel %vm171, %v1509, 0
      %v1563 = vsel %vm171, %v1510, 0
      %v1566 = vsel %vm171, %v1511, 0
      %v1569 = vsel %vm171, %v1512, 0
      %v1572 = vsel %vm171, %v1513, 0
      %v1575 = vsel %vm171, %v1514, 0
      %v1578 = vsel %vm171, %v1515, 0
      %v1581 = vsel %vm171, %v1516, 0
      %v1584 = vsel %vm171, %v1517, 0
      %v1587 = vsel %vm171, %v1518, 0
      %v1590 = vsel %vm171, %v1519, 0
      %v1593 = vsel %vm171, %v1520, 0
      %v1596 = vsel %vm171, %v1521, 0
      %v1599 = vsel %vm171, %v1522, 0
      %v1602 = vsel %vm171, %v1523, 0
      %v1605 = vsel %vm171, %v1524, 0
      %v1608 = vsel %vm171, %v1525, 0
      %v1611 = vsel %vm171, %v1526, 0
      %v1614 = vsel %vm171, %v1527, 0
      %v1617 = vsel %vm171, %v1528, 0
      %v1620 = vsel %vm171, %v1529, 0
      %v1623 = vsel %vm171, %v1530, 0
      %v1626 = vsel %vm171, %v1531, 0
      %v1629 = vsel %vm171, %v1532, 0
      %v1632 = vsel %vm171, %v1533, 0
      %v1635 = vsel %vm171, %v1534, 0
      %v1638 = vsel %vm171, %v1535, 0
      %v1641 = vsel %vm171, %v1536, 0
      %v1644 = vsel %vm171, %v1537, 0
      %v1647 = vsel %vm171, %v1538, 0
      %1649 = vmatprep.subr.mxu0 0.0
      %1650 = vmatpush1.msra.mxu0 0.0
      %1651 = vmatprep.subr.mxu0 0.0
      %1652 = vmatpush1.msra.mxu0 0.0
      %1653 = vmatprep.subr.mxu0 0.0
      %1654 = vmatpush1.msra.mxu0 0.0
      %1655 = vmatprep.subr.mxu0 0.0
      %1656 = vmatpush1.msra.mxu0 0.0
      %1657 = vmatprep.subr.mxu0 0.0
      %1658 = vmatpush1.msra.mxu0 0.0
      %1659 = vmatprep.subr.mxu0 0.0
      %1660 = vmatpush1.msra.mxu0 0.0
      %1661 = vmatprep.subr.mxu0 0.0
      %1662 = vmatpush1.msra.mxu0 0.0
      %1663 = vmatprep.subr.mxu0 0.0
      %1664 = vmatpush1.msra.mxu0 0.0
      %1665 = vmatprep.subr.mxu0 0.0
      %1666 = vmatpush1.msra.mxu0 0.0
      %1667 = vmatprep.subr.mxu0 0.0
      %1668 = vmatpush1.msra.mxu0 0.0
      %1669 = vmatprep.subr.mxu0 0.0
      %1670 = vmatpush1.msra.mxu0 0.0
      %1671 = vmatprep.subr.mxu0 0.0
      %1672 = vmatpush1.msra.mxu0 0.0
      %1673 = vmatprep.subr.mxu0 0.0
      %1674 = vmatpush1.msra.mxu0 0.0
      %1675 = vmatprep.subr.mxu0 0.0
      %1676 = vmatpush1.msra.mxu0 0.0
      %1677 = vmatprep.subr.mxu0 0.0
      %1678 = vmatpush1.msra.mxu0 0.0
      %1679 = vmatprep.subr.mxu0 0.0
      %1680 = vmatpush1.msra.mxu0 %v1540
      %1681 = vmatprep.subr.mxu0 0.0
      %1682 = vmatpush2.msra.mxu0 0.0
      %1683 = vmatprep.subr.mxu0 0.0
      %1684 = vmatpush2.msra.mxu0 0.0
      %1685 = vmatprep.subr.mxu0 0.0
      %1686 = vmatpush2.msra.mxu0 0.0
      %1687 = vmatprep.subr.mxu0 0.0
      %1688 = vmatpush2.msra.mxu0 0.0
      %1689 = vmatprep.subr.mxu0 0.0
      %1690 = vmatpush2.msra.mxu0 0.0
      %1691 = vmatprep.subr.mxu0 0.0
      %1692 = vmatpush2.msra.mxu0 0.0
      %1693 = vmatprep.subr.mxu0 0.0
      %1694 = vmatpush2.msra.mxu0 0.0
      %1695 = vmatprep.subr.mxu0 0.0
      %1696 = vmatpush2.msra.mxu0 0.0
      %1697 = vmatprep.subr.mxu0 0.0
      %1698 = vmatpush2.msra.mxu0 0.0
      %1699 = vmatprep.subr.mxu0 0.0
      %1700 = vmatpush2.msra.mxu0 0.0
      %1701 = vmatprep.subr.mxu0 0.0
      %1702 = vmatpush2.msra.mxu0 0.0
      %1703 = vmatprep.subr.mxu0 0.0
      %1704 = vmatpush2.msra.mxu0 0.0
      %1705 = vmatprep.subr.mxu0 0.0
      %1706 = vmatpush2.msra.mxu0 0.0
      %1707 = vmatprep.subr.mxu0 0.0
      %1708 = vmatpush2.msra.mxu0 0.0
      %1709 = vmatprep.subr.mxu0 0.0
      %1710 = vmatpush2.msra.mxu0 0.0
      %1711 = vmatprep.subr.mxu0 0.0
      %1712 = vmatpush2.msra.mxu0 0.0
      %1713 = vmatprep.mubr.f32.mxu0 0.0
      %1714 = vmatmul.mubr.f32.gmra.mxu0 %v1542
      %v1715 = vpop.f32.mrf.mxu0
      %v1716 = vadd.f32 0.0, %v1715
      %v1717 = vpop.f32.mrf.mxu0
      %1718 = vmatprep.mubr.f32.mxu0 0.0
      %1719 = vmatmul.mubr.f32.gmra.mxu0 %v1545
      %v1720 = vpop.f32.mrf.mxu0
      %v1721 = vadd.f32 0.0, %v1720
      %v1722 = vpop.f32.mrf.mxu0
      %1723 = vmatprep.mubr.f32.mxu0 0.0
      %1724 = vmatmul.mubr.f32.gmra.mxu0 %v1548
      %v1725 = vpop.f32.mrf.mxu0
      %v1726 = vadd.f32 0.0, %v1725
      %v1727 = vpop.f32.mrf.mxu0
      %1728 = vmatprep.mubr.f32.mxu0 0.0
      %1729 = vmatmul.mubr.f32.gmra.mxu0 %v1551
      %v1730 = vpop.f32.mrf.mxu0
      %v1731 = vadd.f32 0.0, %v1730
      %v1732 = vpop.f32.mrf.mxu0
      %1733 = vmatprep.mubr.f32.mxu0 0.0
      %1734 = vmatmul.mubr.f32.gmra.mxu0 %v1554
      %v1735 = vpop.f32.mrf.mxu0
      %v1736 = vadd.f32 0.0, %v1735
      %v1737 = vpop.f32.mrf.mxu0
      %1738 = vmatprep.mubr.f32.mxu0 0.0
      %1739 = vmatmul.mubr.f32.gmra.mxu0 %v1557
      %v1740 = vpop.f32.mrf.mxu0
      %v1741 = vadd.f32 0.0, %v1740
      %v1742 = vpop.f32.mrf.mxu0
      %1743 = vmatprep.mubr.f32.mxu0 0.0
      %1744 = vmatmul.mubr.f32.gmra.mxu0 %v1560
      %v1745 = vpop.f32.mrf.mxu0
      %v1746 = vadd.f32 0.0, %v1745
      %v1747 = vpop.f32.mrf.mxu0
      %1748 = vmatprep.mubr.f32.mxu0 0.0
      %1749 = vmatmul.mubr.f32.gmra.mxu0 %v1563
      %v1750 = vpop.f32.mrf.mxu0
      %v1751 = vadd.f32 0.0, %v1750
      %v1752 = vpop.f32.mrf.mxu0
      %1753 = vmatprep.mubr.f32.mxu0 0.0
      %1754 = vmatmul.mubr.f32.gmra.mxu0 %v1566
      %v1755 = vpop.f32.mrf.mxu0
      %v1756 = vadd.f32 0.0, %v1755
      %v1757 = vpop.f32.mrf.mxu0
      %1758 = vmatprep.mubr.f32.mxu0 0.0
      %1759 = vmatmul.mubr.f32.gmra.mxu0 %v1569
      %v1760 = vpop.f32.mrf.mxu0
      %v1761 = vadd.f32 0.0, %v1760
      %v1762 = vpop.f32.mrf.mxu0
      %1763 = vmatprep.mubr.f32.mxu0 0.0
      %1764 = vmatmul.mubr.f32.gmra.mxu0 %v1572
      %v1765 = vpop.f32.mrf.mxu0
      %v1766 = vadd.f32 0.0, %v1765
      %v1767 = vpop.f32.mrf.mxu0
      %1768 = vmatprep.mubr.f32.mxu0 0.0
      %1769 = vmatmul.mubr.f32.gmra.mxu0 %v1575
      %v1770 = vpop.f32.mrf.mxu0
      %v1771 = vadd.f32 0.0, %v1770
      %v1772 = vpop.f32.mrf.mxu0
      %1773 = vmatprep.mubr.f32.mxu0 0.0
      %1774 = vmatmul.mubr.f32.gmra.mxu0 %v1578
      %v1775 = vpop.f32.mrf.mxu0
      %v1776 = vadd.f32 0.0, %v1775
      %v1777 = vpop.f32.mrf.mxu0
      %1778 = vmatprep.mubr.f32.mxu0 0.0
      %1779 = vmatmul.mubr.f32.gmra.mxu0 %v1581
      %v1780 = vpop.f32.mrf.mxu0
      %v1781 = vadd.f32 0.0, %v1780
      %v1782 = vpop.f32.mrf.mxu0
      %1783 = vmatprep.mubr.f32.mxu0 0.0
      %1784 = vmatmul.mubr.f32.gmra.mxu0 %v1584
      %v1785 = vpop.f32.mrf.mxu0
      %v1786 = vadd.f32 0.0, %v1785
      %v1787 = vpop.f32.mrf.mxu0
      %1788 = vmatprep.mubr.f32.mxu0 0.0
      %1789 = vmatmul.mubr.f32.gmra.mxu0 %v1587
      %v1790 = vpop.f32.mrf.mxu0
      %v1791 = vadd.f32 0.0, %v1790
      %v1792 = vpop.f32.mrf.mxu0
      %1793 = vmatprep.mubr.f32.mxu0 0.0
      %1794 = vmatmul.mubr.f32.gmra.mxu0 %v1590
      %v1795 = vpop.f32.mrf.mxu0
      %v1796 = vadd.f32 0.0, %v1795
      %v1797 = vpop.f32.mrf.mxu0
      %1798 = vmatprep.mubr.f32.mxu0 0.0
      %1799 = vmatmul.mubr.f32.gmra.mxu0 %v1593
      %v1800 = vpop.f32.mrf.mxu0
      %v1801 = vadd.f32 0.0, %v1800
      %v1802 = vpop.f32.mrf.mxu0
      %1803 = vmatprep.mubr.f32.mxu0 0.0
      %1804 = vmatmul.mubr.f32.gmra.mxu0 %v1596
      %v1805 = vpop.f32.mrf.mxu0
      %v1806 = vadd.f32 0.0, %v1805
      %v1807 = vpop.f32.mrf.mxu0
      %1808 = vmatprep.mubr.f32.mxu0 0.0
      %1809 = vmatmul.mubr.f32.gmra.mxu0 %v1599
      %v1810 = vpop.f32.mrf.mxu0
      %v1811 = vadd.f32 0.0, %v1810
      %v1812 = vpop.f32.mrf.mxu0
      %1813 = vmatprep.mubr.f32.mxu0 0.0
      %1814 = vmatmul.mubr.f32.gmra.mxu0 %v1602
      %v1815 = vpop.f32.mrf.mxu0
      %v1816 = vadd.f32 0.0, %v1815
      %v1817 = vpop.f32.mrf.mxu0
      %1818 = vmatprep.mubr.f32.mxu0 0.0
      %1819 = vmatmul.mubr.f32.gmra.mxu0 %v1605
      %v1820 = vpop.f32.mrf.mxu0
      %v1821 = vadd.f32 0.0, %v1820
      %v1822 = vpop.f32.mrf.mxu0
      %1823 = vmatprep.mubr.f32.mxu0 0.0
      %1824 = vmatmul.mubr.f32.gmra.mxu0 %v1608
      %v1825 = vpop.f32.mrf.mxu0
      %v1826 = vadd.f32 0.0, %v1825
      %v1827 = vpop.f32.mrf.mxu0
      %1828 = vmatprep.mubr.f32.mxu0 0.0
      %1829 = vmatmul.mubr.f32.gmra.mxu0 %v1611
      %v1830 = vpop.f32.mrf.mxu0
      %v1831 = vadd.f32 0.0, %v1830
      %v1832 = vpop.f32.mrf.mxu0
      %1833 = vmatprep.mubr.f32.mxu0 0.0
      %1834 = vmatmul.mubr.f32.gmra.mxu0 %v1614
      %v1835 = vpop.f32.mrf.mxu0
      %v1836 = vadd.f32 0.0, %v1835
      %v1837 = vpop.f32.mrf.mxu0
      %1838 = vmatprep.mubr.f32.mxu0 0.0
      %1839 = vmatmul.mubr.f32.gmra.mxu0 %v1617
      %v1840 = vpop.f32.mrf.mxu0
      %v1841 = vadd.f32 0.0, %v1840
      %v1842 = vpop.f32.mrf.mxu0
      %1843 = vmatprep.mubr.f32.mxu0 0.0
      %1844 = vmatmul.mubr.f32.gmra.mxu0 %v1620
      %v1845 = vpop.f32.mrf.mxu0
      %v1846 = vadd.f32 0.0, %v1845
      %v1847 = vpop.f32.mrf.mxu0
      %1848 = vmatprep.mubr.f32.mxu0 0.0
      %1849 = vmatmul.mubr.f32.gmra.mxu0 %v1623
      %v1850 = vpop.f32.mrf.mxu0
      %v1851 = vadd.f32 0.0, %v1850
      %v1852 = vpop.f32.mrf.mxu0
      %1853 = vmatprep.mubr.f32.mxu0 0.0
      %1854 = vmatmul.mubr.f32.gmra.mxu0 %v1626
      %v1855 = vpop.f32.mrf.mxu0
      %v1856 = vadd.f32 0.0, %v1855
      %v1857 = vpop.f32.mrf.mxu0
      %1858 = vmatprep.mubr.f32.mxu0 0.0
      %1859 = vmatmul.mubr.f32.gmra.mxu0 %v1629
      %v1860 = vpop.f32.mrf.mxu0
      %v1861 = vadd.f32 0.0, %v1860
      %v1862 = vpop.f32.mrf.mxu0
      %1863 = vmatprep.mubr.f32.mxu0 0.0
      %1864 = vmatmul.mubr.f32.gmra.mxu0 %v1632
      %v1865 = vpop.f32.mrf.mxu0
      %v1866 = vadd.f32 0.0, %v1865
      %v1867 = vpop.f32.mrf.mxu0
      %1868 = vmatprep.mubr.f32.mxu0 0.0
      %1869 = vmatmul.mubr.f32.gmra.mxu0 %v1635
      %v1870 = vpop.f32.mrf.mxu0
      %v1871 = vadd.f32 0.0, %v1870
      %v1872 = vpop.f32.mrf.mxu0
      %1873 = vmatprep.mubr.f32.mxu0 0.0
      %1874 = vmatmul.mubr.f32.gmra.mxu0 %v1638
      %v1875 = vpop.f32.mrf.mxu0
      %v1876 = vadd.f32 0.0, %v1875
      %v1877 = vpop.f32.mrf.mxu0
      %1878 = vmatprep.mubr.f32.mxu0 0.0
      %1879 = vmatmul.mubr.f32.gmra.mxu0 %v1641
      %v1880 = vpop.f32.mrf.mxu0
      %v1881 = vadd.f32 0.0, %v1880
      %v1882 = vpop.f32.mrf.mxu0
      %1883 = vmatprep.mubr.f32.mxu0 0.0
      %1884 = vmatmul.mubr.f32.gmra.mxu0 %v1644
      %v1885 = vpop.f32.mrf.mxu0
      %v1886 = vadd.f32 0.0, %v1885
      %v1887 = vpop.f32.mrf.mxu0
      %1888 = vmatprep.mubr.f32.mxu0 0.0
      %1889 = vmatmul.mubr.f32.gmra.mxu0 %v1647
      %v1890 = vpop.f32.mrf.mxu0
      %v1891 = vadd.f32 0.0, %v1890
      %v1892 = vpop.f32.mrf.mxu0
      %1893 = vdwg.mxu0
      %v1894 = vadd.f32 %v1467, %v1716
      %v1895 = vadd.f32 %v1468, %v1721
      %v1896 = vadd.f32 %v1469, %v1726
      %v1897 = vadd.f32 %v1470, %v1731
      %v1898 = vadd.f32 %v1471, %v1736
      %v1899 = vadd.f32 %v1472, %v1741
      %v1900 = vadd.f32 %v1473, %v1746
      %v1901 = vadd.f32 %v1474, %v1751
      %v1902 = vadd.f32 %v1475, %v1756
      %v1903 = vadd.f32 %v1476, %v1761
      %v1904 = vadd.f32 %v1477, %v1766
      %v1905 = vadd.f32 %v1478, %v1771
      %v1906 = vadd.f32 %v1479, %v1776
      %v1907 = vadd.f32 %v1480, %v1781
      %v1908 = vadd.f32 %v1481, %v1786
      %v1909 = vadd.f32 %v1482, %v1791
      %v1910 = vadd.f32 %v1483, %v1796
      %v1911 = vadd.f32 %v1484, %v1801
      %v1912 = vadd.f32 %v1485, %v1806
      %v1913 = vadd.f32 %v1486, %v1811
      %v1914 = vadd.f32 %v1487, %v1816
      %v1915 = vadd.f32 %v1488, %v1821
      %v1916 = vadd.f32 %v1489, %v1826
      %v1917 = vadd.f32 %v1490, %v1831
      %v1918 = vadd.f32 %v1491, %v1836
      %v1919 = vadd.f32 %v1492, %v1841
      %v1920 = vadd.f32 %v1493, %v1846
      %v1921 = vadd.f32 %v1494, %v1851
      %v1922 = vadd.f32 %v1495, %v1856
      %v1923 = vadd.f32 %v1496, %v1861
      %v1924 = vadd.f32 %v1497, %v1866
      %v1925 = vadd.f32 %v1498, %v1871
      %v1926 = vadd.f32 %v1499, %v1876
      %v1927 = vadd.f32 %v1500, %v1881
      %v1928 = vadd.f32 %v1501, %v1886
      %v1929 = vadd.f32 %v1502, %v1891
      %v1930 = vld [vmem:[#allocation2 + $0x13] sm:$0xff]
      %v1931 = vld [vmem:[#allocation2 + $0x1b] sm:$0xff]
      %v1932 = vld [vmem:[#allocation2 + $0x23] sm:$0xff]
      %v1933 = vld [vmem:[#allocation2 + $0x2b] sm:$0xff]
      %v1934 = vld [vmem:[#allocation2 + $0x33] sm:$0xff]
      %v1935 = vld [vmem:[#allocation2 + $0x3b] sm:$0xff]
      %v1936 = vld [vmem:[#allocation2 + $0x43] sm:$0xff]
      %v1937 = vld [vmem:[#allocation2 + $0x4b] sm:$0xff]
      %v1938 = vld [vmem:[#allocation2 + $0x53] sm:$0xff]
      %v1939 = vld [vmem:[#allocation2 + $0x5b] sm:$0xff]
      %v1940 = vld [vmem:[#allocation2 + $0x63] sm:$0xff]
      %v1941 = vld [vmem:[#allocation2 + $0x6b] sm:$0xff]
      %v1942 = vld [vmem:[#allocation2 + $0x73] sm:$0xff]
      %v1943 = vld [vmem:[#allocation2 + $0x7b] sm:$0xff]
      %v1944 = vld [vmem:[#allocation2 + $0x83] sm:$0xff]
      %v1945 = vld [vmem:[#allocation2 + $0x8b] sm:$0xff]
      %v1946 = vld [vmem:[#allocation2 + $0x93] sm:$0xff]
      %v1947 = vld [vmem:[#allocation2 + $0x9b] sm:$0xff]
      %v1948 = vld [vmem:[#allocation2 + $0xa3] sm:$0xff]
      %v1949 = vld [vmem:[#allocation2 + $0xab] sm:$0xff]
      %v1950 = vld [vmem:[#allocation2 + $0xb3] sm:$0xff]
      %v1951 = vld [vmem:[#allocation2 + $0xbb] sm:$0xff]
      %v1952 = vld [vmem:[#allocation2 + $0xc3] sm:$0xff]
      %v1953 = vld [vmem:[#allocation2 + $0xcb] sm:$0xff]
      %v1954 = vld [vmem:[#allocation2 + $0xd3] sm:$0xff]
      %v1955 = vld [vmem:[#allocation2 + $0xdb] sm:$0xff]
      %v1956 = vld [vmem:[#allocation2 + $0xe3] sm:$0xff]
      %v1957 = vld [vmem:[#allocation2 + $0xeb] sm:$0xff]
      %v1958 = vld [vmem:[#allocation2 + $0xf3] sm:$0xff]
      %v1959 = vld [vmem:[#allocation2 + $0xfb] sm:$0xff]
      %v1960 = vld [vmem:[#allocation2 + $0x103] sm:$0xff]
      %v1961 = vld [vmem:[#allocation2 + $0x10b] sm:$0xff]
      %v1962 = vld [vmem:[#allocation2 + $0x113] sm:$0xff]
      %v1963 = vld [vmem:[#allocation2 + $0x11b] sm:$0xff]
      %v1964 = vld [vmem:[#allocation2 + $0x123] sm:$0xff]
      %v1965 = vld [vmem:[#allocation2 + $0x12b] sm:$0xff]
      %s1966 = scalar_lea.vmem %s1, 32
      %v1967 = vld [vmem:[%s1966] sm:$0xff]
      %v1969 = vsel %vm171, %v1930, 0
      %v1972 = vsel %vm171, %v1931, 0
      %v1975 = vsel %vm171, %v1932, 0
      %v1978 = vsel %vm171, %v1933, 0
      %v1981 = vsel %vm171, %v1934, 0
      %v1984 = vsel %vm171, %v1935, 0
      %v1987 = vsel %vm171, %v1936, 0
      %v1990 = vsel %vm171, %v1937, 0
      %v1993 = vsel %vm171, %v1938, 0
      %v1996 = vsel %vm171, %v1939, 0
      %v1999 = vsel %vm171, %v1940, 0
      %v2002 = vsel %vm171, %v1941, 0
      %v2005 = vsel %vm171, %v1942, 0
      %v2008 = vsel %vm171, %v1943, 0
      %v2011 = vsel %vm171, %v1944, 0
      %v2014 = vsel %vm171, %v1945, 0
      %v2017 = vsel %vm171, %v1946, 0
      %v2020 = vsel %vm171, %v1947, 0
      %v2023 = vsel %vm171, %v1948, 0
      %v2026 = vsel %vm171, %v1949, 0
      %v2029 = vsel %vm171, %v1950, 0
      %v2032 = vsel %vm171, %v1951, 0
      %v2035 = vsel %vm171, %v1952, 0
      %v2038 = vsel %vm171, %v1953, 0
      %v2041 = vsel %vm171, %v1954, 0
      %v2044 = vsel %vm171, %v1955, 0
      %v2047 = vsel %vm171, %v1956, 0
      %v2050 = vsel %vm171, %v1957, 0
      %v2053 = vsel %vm171, %v1958, 0
      %v2056 = vsel %vm171, %v1959, 0
      %v2059 = vsel %vm171, %v1960, 0
      %v2062 = vsel %vm171, %v1961, 0
      %v2065 = vsel %vm171, %v1962, 0
      %v2068 = vsel %vm171, %v1963, 0
      %v2071 = vsel %vm171, %v1964, 0
      %v2074 = vsel %vm171, %v1965, 0
      %2076 = vmatprep.subr.mxu0 0.0
      %2077 = vmatpush1.msra.mxu0 0.0
      %2078 = vmatprep.subr.mxu0 0.0
      %2079 = vmatpush1.msra.mxu0 0.0
      %2080 = vmatprep.subr.mxu0 0.0
      %2081 = vmatpush1.msra.mxu0 0.0
      %2082 = vmatprep.subr.mxu0 0.0
      %2083 = vmatpush1.msra.mxu0 0.0
      %2084 = vmatprep.subr.mxu0 0.0
      %2085 = vmatpush1.msra.mxu0 0.0
      %2086 = vmatprep.subr.mxu0 0.0
      %2087 = vmatpush1.msra.mxu0 0.0
      %2088 = vmatprep.subr.mxu0 0.0
      %2089 = vmatpush1.msra.mxu0 0.0
      %2090 = vmatprep.subr.mxu0 0.0
      %2091 = vmatpush1.msra.mxu0 0.0
      %2092 = vmatprep.subr.mxu0 0.0
      %2093 = vmatpush1.msra.mxu0 0.0
      %2094 = vmatprep.subr.mxu0 0.0
      %2095 = vmatpush1.msra.mxu0 0.0
      %2096 = vmatprep.subr.mxu0 0.0
      %2097 = vmatpush1.msra.mxu0 0.0
      %2098 = vmatprep.subr.mxu0 0.0
      %2099 = vmatpush1.msra.mxu0 0.0
      %2100 = vmatprep.subr.mxu0 0.0
      %2101 = vmatpush1.msra.mxu0 0.0
      %2102 = vmatprep.subr.mxu0 0.0
      %2103 = vmatpush1.msra.mxu0 0.0
      %2104 = vmatprep.subr.mxu0 0.0
      %2105 = vmatpush1.msra.mxu0 0.0
      %2106 = vmatprep.subr.mxu0 0.0
      %2107 = vmatpush1.msra.mxu0 %v1967
      %2108 = vmatprep.subr.mxu0 0.0
      %2109 = vmatpush2.msra.mxu0 0.0
      %2110 = vmatprep.subr.mxu0 0.0
      %2111 = vmatpush2.msra.mxu0 0.0
      %2112 = vmatprep.subr.mxu0 0.0
      %2113 = vmatpush2.msra.mxu0 0.0
      %2114 = vmatprep.subr.mxu0 0.0
      %2115 = vmatpush2.msra.mxu0 0.0
      %2116 = vmatprep.subr.mxu0 0.0
      %2117 = vmatpush2.msra.mxu0 0.0
      %2118 = vmatprep.subr.mxu0 0.0
      %2119 = vmatpush2.msra.mxu0 0.0
      %2120 = vmatprep.subr.mxu0 0.0
      %2121 = vmatpush2.msra.mxu0 0.0
      %2122 = vmatprep.subr.mxu0 0.0
      %2123 = vmatpush2.msra.mxu0 0.0
      %2124 = vmatprep.subr.mxu0 0.0
      %2125 = vmatpush2.msra.mxu0 0.0
      %2126 = vmatprep.subr.mxu0 0.0
      %2127 = vmatpush2.msra.mxu0 0.0
      %2128 = vmatprep.subr.mxu0 0.0
      %2129 = vmatpush2.msra.mxu0 0.0
      %2130 = vmatprep.subr.mxu0 0.0
      %2131 = vmatpush2.msra.mxu0 0.0
      %2132 = vmatprep.subr.mxu0 0.0
      %2133 = vmatpush2.msra.mxu0 0.0
      %2134 = vmatprep.subr.mxu0 0.0
      %2135 = vmatpush2.msra.mxu0 0.0
      %2136 = vmatprep.subr.mxu0 0.0
      %2137 = vmatpush2.msra.mxu0 0.0
      %2138 = vmatprep.subr.mxu0 0.0
      %2139 = vmatpush2.msra.mxu0 0.0
      %2140 = vmatprep.mubr.f32.mxu0 0.0
      %2141 = vmatmul.mubr.f32.gmra.mxu0 %v1969
      %v2142 = vpop.f32.mrf.mxu0
      %v2143 = vadd.f32 0.0, %v2142
      %v2144 = vpop.f32.mrf.mxu0
      %2145 = vmatprep.mubr.f32.mxu0 0.0
      %2146 = vmatmul.mubr.f32.gmra.mxu0 %v1972
      %v2147 = vpop.f32.mrf.mxu0
      %v2148 = vadd.f32 0.0, %v2147
      %v2149 = vpop.f32.mrf.mxu0
      %2150 = vmatprep.mubr.f32.mxu0 0.0
      %2151 = vmatmul.mubr.f32.gmra.mxu0 %v1975
      %v2152 = vpop.f32.mrf.mxu0
      %v2153 = vadd.f32 0.0, %v2152
      %v2154 = vpop.f32.mrf.mxu0
      %2155 = vmatprep.mubr.f32.mxu0 0.0
      %2156 = vmatmul.mubr.f32.gmra.mxu0 %v1978
      %v2157 = vpop.f32.mrf.mxu0
      %v2158 = vadd.f32 0.0, %v2157
      %v2159 = vpop.f32.mrf.mxu0
      %2160 = vmatprep.mubr.f32.mxu0 0.0
      %2161 = vmatmul.mubr.f32.gmra.mxu0 %v1981
      %v2162 = vpop.f32.mrf.mxu0
      %v2163 = vadd.f32 0.0, %v2162
      %v2164 = vpop.f32.mrf.mxu0
      %2165 = vmatprep.mubr.f32.mxu0 0.0
      %2166 = vmatmul.mubr.f32.gmra.mxu0 %v1984
      %v2167 = vpop.f32.mrf.mxu0
      %v2168 = vadd.f32 0.0, %v2167
      %v2169 = vpop.f32.mrf.mxu0
      %2170 = vmatprep.mubr.f32.mxu0 0.0
      %2171 = vmatmul.mubr.f32.gmra.mxu0 %v1987
      %v2172 = vpop.f32.mrf.mxu0
      %v2173 = vadd.f32 0.0, %v2172
      %v2174 = vpop.f32.mrf.mxu0
      %2175 = vmatprep.mubr.f32.mxu0 0.0
      %2176 = vmatmul.mubr.f32.gmra.mxu0 %v1990
      %v2177 = vpop.f32.mrf.mxu0
      %v2178 = vadd.f32 0.0, %v2177
      %v2179 = vpop.f32.mrf.mxu0
      %2180 = vmatprep.mubr.f32.mxu0 0.0
      %2181 = vmatmul.mubr.f32.gmra.mxu0 %v1993
      %v2182 = vpop.f32.mrf.mxu0
      %v2183 = vadd.f32 0.0, %v2182
      %v2184 = vpop.f32.mrf.mxu0
      %2185 = vmatprep.mubr.f32.mxu0 0.0
      %2186 = vmatmul.mubr.f32.gmra.mxu0 %v1996
      %v2187 = vpop.f32.mrf.mxu0
      %v2188 = vadd.f32 0.0, %v2187
      %v2189 = vpop.f32.mrf.mxu0
      %2190 = vmatprep.mubr.f32.mxu0 0.0
      %2191 = vmatmul.mubr.f32.gmra.mxu0 %v1999
      %v2192 = vpop.f32.mrf.mxu0
      %v2193 = vadd.f32 0.0, %v2192
      %v2194 = vpop.f32.mrf.mxu0
      %2195 = vmatprep.mubr.f32.mxu0 0.0
      %2196 = vmatmul.mubr.f32.gmra.mxu0 %v2002
      %v2197 = vpop.f32.mrf.mxu0
      %v2198 = vadd.f32 0.0, %v2197
      %v2199 = vpop.f32.mrf.mxu0
      %2200 = vmatprep.mubr.f32.mxu0 0.0
      %2201 = vmatmul.mubr.f32.gmra.mxu0 %v2005
      %v2202 = vpop.f32.mrf.mxu0
      %v2203 = vadd.f32 0.0, %v2202
      %v2204 = vpop.f32.mrf.mxu0
      %2205 = vmatprep.mubr.f32.mxu0 0.0
      %2206 = vmatmul.mubr.f32.gmra.mxu0 %v2008
      %v2207 = vpop.f32.mrf.mxu0
      %v2208 = vadd.f32 0.0, %v2207
      %v2209 = vpop.f32.mrf.mxu0
      %2210 = vmatprep.mubr.f32.mxu0 0.0
      %2211 = vmatmul.mubr.f32.gmra.mxu0 %v2011
      %v2212 = vpop.f32.mrf.mxu0
      %v2213 = vadd.f32 0.0, %v2212
      %v2214 = vpop.f32.mrf.mxu0
      %2215 = vmatprep.mubr.f32.mxu0 0.0
      %2216 = vmatmul.mubr.f32.gmra.mxu0 %v2014
      %v2217 = vpop.f32.mrf.mxu0
      %v2218 = vadd.f32 0.0, %v2217
      %v2219 = vpop.f32.mrf.mxu0
      %2220 = vmatprep.mubr.f32.mxu0 0.0
      %2221 = vmatmul.mubr.f32.gmra.mxu0 %v2017
      %v2222 = vpop.f32.mrf.mxu0
      %v2223 = vadd.f32 0.0, %v2222
      %v2224 = vpop.f32.mrf.mxu0
      %2225 = vmatprep.mubr.f32.mxu0 0.0
      %2226 = vmatmul.mubr.f32.gmra.mxu0 %v2020
      %v2227 = vpop.f32.mrf.mxu0
      %v2228 = vadd.f32 0.0, %v2227
      %v2229 = vpop.f32.mrf.mxu0
      %2230 = vmatprep.mubr.f32.mxu0 0.0
      %2231 = vmatmul.mubr.f32.gmra.mxu0 %v2023
      %v2232 = vpop.f32.mrf.mxu0
      %v2233 = vadd.f32 0.0, %v2232
      %v2234 = vpop.f32.mrf.mxu0
      %2235 = vmatprep.mubr.f32.mxu0 0.0
      %2236 = vmatmul.mubr.f32.gmra.mxu0 %v2026
      %v2237 = vpop.f32.mrf.mxu0
      %v2238 = vadd.f32 0.0, %v2237
      %v2239 = vpop.f32.mrf.mxu0
      %2240 = vmatprep.mubr.f32.mxu0 0.0
      %2241 = vmatmul.mubr.f32.gmra.mxu0 %v2029
      %v2242 = vpop.f32.mrf.mxu0
      %v2243 = vadd.f32 0.0, %v2242
      %v2244 = vpop.f32.mrf.mxu0
      %2245 = vmatprep.mubr.f32.mxu0 0.0
      %2246 = vmatmul.mubr.f32.gmra.mxu0 %v2032
      %v2247 = vpop.f32.mrf.mxu0
      %v2248 = vadd.f32 0.0, %v2247
      %v2249 = vpop.f32.mrf.mxu0
      %2250 = vmatprep.mubr.f32.mxu0 0.0
      %2251 = vmatmul.mubr.f32.gmra.mxu0 %v2035
      %v2252 = vpop.f32.mrf.mxu0
      %v2253 = vadd.f32 0.0, %v2252
      %v2254 = vpop.f32.mrf.mxu0
      %2255 = vmatprep.mubr.f32.mxu0 0.0
      %2256 = vmatmul.mubr.f32.gmra.mxu0 %v2038
      %v2257 = vpop.f32.mrf.mxu0
      %v2258 = vadd.f32 0.0, %v2257
      %v2259 = vpop.f32.mrf.mxu0
      %2260 = vmatprep.mubr.f32.mxu0 0.0
      %2261 = vmatmul.mubr.f32.gmra.mxu0 %v2041
      %v2262 = vpop.f32.mrf.mxu0
      %v2263 = vadd.f32 0.0, %v2262
      %v2264 = vpop.f32.mrf.mxu0
      %2265 = vmatprep.mubr.f32.mxu0 0.0
      %2266 = vmatmul.mubr.f32.gmra.mxu0 %v2044
      %v2267 = vpop.f32.mrf.mxu0
      %v2268 = vadd.f32 0.0, %v2267
      %v2269 = vpop.f32.mrf.mxu0
      %2270 = vmatprep.mubr.f32.mxu0 0.0
      %2271 = vmatmul.mubr.f32.gmra.mxu0 %v2047
      %v2272 = vpop.f32.mrf.mxu0
      %v2273 = vadd.f32 0.0, %v2272
      %v2274 = vpop.f32.mrf.mxu0
      %2275 = vmatprep.mubr.f32.mxu0 0.0
      %2276 = vmatmul.mubr.f32.gmra.mxu0 %v2050
      %v2277 = vpop.f32.mrf.mxu0
      %v2278 = vadd.f32 0.0, %v2277
      %v2279 = vpop.f32.mrf.mxu0
      %2280 = vmatprep.mubr.f32.mxu0 0.0
      %2281 = vmatmul.mubr.f32.gmra.mxu0 %v2053
      %v2282 = vpop.f32.mrf.mxu0
      %v2283 = vadd.f32 0.0, %v2282
      %v2284 = vpop.f32.mrf.mxu0
      %2285 = vmatprep.mubr.f32.mxu0 0.0
      %2286 = vmatmul.mubr.f32.gmra.mxu0 %v2056
      %v2287 = vpop.f32.mrf.mxu0
      %v2288 = vadd.f32 0.0, %v2287
      %v2289 = vpop.f32.mrf.mxu0
      %2290 = vmatprep.mubr.f32.mxu0 0.0
      %2291 = vmatmul.mubr.f32.gmra.mxu0 %v2059
      %v2292 = vpop.f32.mrf.mxu0
      %v2293 = vadd.f32 0.0, %v2292
      %v2294 = vpop.f32.mrf.mxu0
      %2295 = vmatprep.mubr.f32.mxu0 0.0
      %2296 = vmatmul.mubr.f32.gmra.mxu0 %v2062
      %v2297 = vpop.f32.mrf.mxu0
      %v2298 = vadd.f32 0.0, %v2297
      %v2299 = vpop.f32.mrf.mxu0
      %2300 = vmatprep.mubr.f32.mxu0 0.0
      %2301 = vmatmul.mubr.f32.gmra.mxu0 %v2065
      %v2302 = vpop.f32.mrf.mxu0
      %v2303 = vadd.f32 0.0, %v2302
      %v2304 = vpop.f32.mrf.mxu0
      %2305 = vmatprep.mubr.f32.mxu0 0.0
      %2306 = vmatmul.mubr.f32.gmra.mxu0 %v2068
      %v2307 = vpop.f32.mrf.mxu0
      %v2308 = vadd.f32 0.0, %v2307
      %v2309 = vpop.f32.mrf.mxu0
      %2310 = vmatprep.mubr.f32.mxu0 0.0
      %2311 = vmatmul.mubr.f32.gmra.mxu0 %v2071
      %v2312 = vpop.f32.mrf.mxu0
      %v2313 = vadd.f32 0.0, %v2312
      %v2314 = vpop.f32.mrf.mxu0
      %2315 = vmatprep.mubr.f32.mxu0 0.0
      %2316 = vmatmul.mubr.f32.gmra.mxu0 %v2074
      %v2317 = vpop.f32.mrf.mxu0
      %v2318 = vadd.f32 0.0, %v2317
      %v2319 = vpop.f32.mrf.mxu0
      %2320 = vdwg.mxu0
      %v2321 = vadd.f32 %v1894, %v2143
      %v2322 = vadd.f32 %v1895, %v2148
      %v2323 = vadd.f32 %v1896, %v2153
      %v2324 = vadd.f32 %v1897, %v2158
      %v2325 = vadd.f32 %v1898, %v2163
      %v2326 = vadd.f32 %v1899, %v2168
      %v2327 = vadd.f32 %v1900, %v2173
      %v2328 = vadd.f32 %v1901, %v2178
      %v2329 = vadd.f32 %v1902, %v2183
      %v2330 = vadd.f32 %v1903, %v2188
      %v2331 = vadd.f32 %v1904, %v2193
      %v2332 = vadd.f32 %v1905, %v2198
      %v2333 = vadd.f32 %v1906, %v2203
      %v2334 = vadd.f32 %v1907, %v2208
      %v2335 = vadd.f32 %v1908, %v2213
      %v2336 = vadd.f32 %v1909, %v2218
      %v2337 = vadd.f32 %v1910, %v2223
      %v2338 = vadd.f32 %v1911, %v2228
      %v2339 = vadd.f32 %v1912, %v2233
      %v2340 = vadd.f32 %v1913, %v2238
      %v2341 = vadd.f32 %v1914, %v2243
      %v2342 = vadd.f32 %v1915, %v2248
      %v2343 = vadd.f32 %v1916, %v2253
      %v2344 = vadd.f32 %v1917, %v2258
      %v2345 = vadd.f32 %v1918, %v2263
      %v2346 = vadd.f32 %v1919, %v2268
      %v2347 = vadd.f32 %v1920, %v2273
      %v2348 = vadd.f32 %v1921, %v2278
      %v2349 = vadd.f32 %v1922, %v2283
      %v2350 = vadd.f32 %v1923, %v2288
      %v2351 = vadd.f32 %v1924, %v2293
      %v2352 = vadd.f32 %v1925, %v2298
      %v2353 = vadd.f32 %v1926, %v2303
      %v2354 = vadd.f32 %v1927, %v2308
      %v2355 = vadd.f32 %v1928, %v2313
      %v2356 = vadd.f32 %v1929, %v2318
      %v2357 = vld [vmem:[#allocation2 + $0x14] sm:$0xff]
      %v2358 = vld [vmem:[#allocation2 + $0x1c] sm:$0xff]
      %v2359 = vld [vmem:[#allocation2 + $0x24] sm:$0xff]
      %v2360 = vld [vmem:[#allocation2 + $0x2c] sm:$0xff]
      %v2361 = vld [vmem:[#allocation2 + $0x34] sm:$0xff]
      %v2362 = vld [vmem:[#allocation2 + $0x3c] sm:$0xff]
      %v2363 = vld [vmem:[#allocation2 + $0x44] sm:$0xff]
      %v2364 = vld [vmem:[#allocation2 + $0x4c] sm:$0xff]
      %v2365 = vld [vmem:[#allocation2 + $0x54] sm:$0xff]
      %v2366 = vld [vmem:[#allocation2 + $0x5c] sm:$0xff]
      %v2367 = vld [vmem:[#allocation2 + $0x64] sm:$0xff]
      %v2368 = vld [vmem:[#allocation2 + $0x6c] sm:$0xff]
      %v2369 = vld [vmem:[#allocation2 + $0x74] sm:$0xff]
      %v2370 = vld [vmem:[#allocation2 + $0x7c] sm:$0xff]
      %v2371 = vld [vmem:[#allocation2 + $0x84] sm:$0xff]
      %v2372 = vld [vmem:[#allocation2 + $0x8c] sm:$0xff]
      %v2373 = vld [vmem:[#allocation2 + $0x94] sm:$0xff]
      %v2374 = vld [vmem:[#allocation2 + $0x9c] sm:$0xff]
      %v2375 = vld [vmem:[#allocation2 + $0xa4] sm:$0xff]
      %v2376 = vld [vmem:[#allocation2 + $0xac] sm:$0xff]
      %v2377 = vld [vmem:[#allocation2 + $0xb4] sm:$0xff]
      %v2378 = vld [vmem:[#allocation2 + $0xbc] sm:$0xff]
      %v2379 = vld [vmem:[#allocation2 + $0xc4] sm:$0xff]
      %v2380 = vld [vmem:[#allocation2 + $0xcc] sm:$0xff]
      %v2381 = vld [vmem:[#allocation2 + $0xd4] sm:$0xff]
      %v2382 = vld [vmem:[#allocation2 + $0xdc] sm:$0xff]
      %v2383 = vld [vmem:[#allocation2 + $0xe4] sm:$0xff]
      %v2384 = vld [vmem:[#allocation2 + $0xec] sm:$0xff]
      %v2385 = vld [vmem:[#allocation2 + $0xf4] sm:$0xff]
      %v2386 = vld [vmem:[#allocation2 + $0xfc] sm:$0xff]
      %v2387 = vld [vmem:[#allocation2 + $0x104] sm:$0xff]
      %v2388 = vld [vmem:[#allocation2 + $0x10c] sm:$0xff]
      %v2389 = vld [vmem:[#allocation2 + $0x114] sm:$0xff]
      %v2390 = vld [vmem:[#allocation2 + $0x11c] sm:$0xff]
      %v2391 = vld [vmem:[#allocation2 + $0x124] sm:$0xff]
      %v2392 = vld [vmem:[#allocation2 + $0x12c] sm:$0xff]
      %s2393 = scalar_lea.vmem %s1, 40
      %v2394 = vld [vmem:[%s2393] sm:$0xff]
      %v2396 = vsel %vm171, %v2357, 0
      %v2399 = vsel %vm171, %v2358, 0
      %v2402 = vsel %vm171, %v2359, 0
      %v2405 = vsel %vm171, %v2360, 0
      %v2408 = vsel %vm171, %v2361, 0
      %v2411 = vsel %vm171, %v2362, 0
      %v2414 = vsel %vm171, %v2363, 0
      %v2417 = vsel %vm171, %v2364, 0
      %v2420 = vsel %vm171, %v2365, 0
      %v2423 = vsel %vm171, %v2366, 0
      %v2426 = vsel %vm171, %v2367, 0
      %v2429 = vsel %vm171, %v2368, 0
      %v2432 = vsel %vm171, %v2369, 0
      %v2435 = vsel %vm171, %v2370, 0
      %v2438 = vsel %vm171, %v2371, 0
      %v2441 = vsel %vm171, %v2372, 0
      %v2444 = vsel %vm171, %v2373, 0
      %v2447 = vsel %vm171, %v2374, 0
      %v2450 = vsel %vm171, %v2375, 0
      %v2453 = vsel %vm171, %v2376, 0
      %v2456 = vsel %vm171, %v2377, 0
      %v2459 = vsel %vm171, %v2378, 0
      %v2462 = vsel %vm171, %v2379, 0
      %v2465 = vsel %vm171, %v2380, 0
      %v2468 = vsel %vm171, %v2381, 0
      %v2471 = vsel %vm171, %v2382, 0
      %v2474 = vsel %vm171, %v2383, 0
      %v2477 = vsel %vm171, %v2384, 0
      %v2480 = vsel %vm171, %v2385, 0
      %v2483 = vsel %vm171, %v2386, 0
      %v2486 = vsel %vm171, %v2387, 0
      %v2489 = vsel %vm171, %v2388, 0
      %v2492 = vsel %vm171, %v2389, 0
      %v2495 = vsel %vm171, %v2390, 0
      %v2498 = vsel %vm171, %v2391, 0
      %v2501 = vsel %vm171, %v2392, 0
      %2503 = vmatprep.subr.mxu0 0.0
      %2504 = vmatpush1.msra.mxu0 0.0
      %2505 = vmatprep.subr.mxu0 0.0
      %2506 = vmatpush1.msra.mxu0 0.0
      %2507 = vmatprep.subr.mxu0 0.0
      %2508 = vmatpush1.msra.mxu0 0.0
      %2509 = vmatprep.subr.mxu0 0.0
      %2510 = vmatpush1.msra.mxu0 0.0
      %2511 = vmatprep.subr.mxu0 0.0
      %2512 = vmatpush1.msra.mxu0 0.0
      %2513 = vmatprep.subr.mxu0 0.0
      %2514 = vmatpush1.msra.mxu0 0.0
      %2515 = vmatprep.subr.mxu0 0.0
      %2516 = vmatpush1.msra.mxu0 0.0
      %2517 = vmatprep.subr.mxu0 0.0
      %2518 = vmatpush1.msra.mxu0 0.0
      %2519 = vmatprep.subr.mxu0 0.0
      %2520 = vmatpush1.msra.mxu0 0.0
      %2521 = vmatprep.subr.mxu0 0.0
      %2522 = vmatpush1.msra.mxu0 0.0
      %2523 = vmatprep.subr.mxu0 0.0
      %2524 = vmatpush1.msra.mxu0 0.0
      %2525 = vmatprep.subr.mxu0 0.0
      %2526 = vmatpush1.msra.mxu0 0.0
      %2527 = vmatprep.subr.mxu0 0.0
      %2528 = vmatpush1.msra.mxu0 0.0
      %2529 = vmatprep.subr.mxu0 0.0
      %2530 = vmatpush1.msra.mxu0 0.0
      %2531 = vmatprep.subr.mxu0 0.0
      %2532 = vmatpush1.msra.mxu0 0.0
      %2533 = vmatprep.subr.mxu0 0.0
      %2534 = vmatpush1.msra.mxu0 %v2394
      %2535 = vmatprep.subr.mxu0 0.0
      %2536 = vmatpush2.msra.mxu0 0.0
      %2537 = vmatprep.subr.mxu0 0.0
      %2538 = vmatpush2.msra.mxu0 0.0
      %2539 = vmatprep.subr.mxu0 0.0
      %2540 = vmatpush2.msra.mxu0 0.0
      %2541 = vmatprep.subr.mxu0 0.0
      %2542 = vmatpush2.msra.mxu0 0.0
      %2543 = vmatprep.subr.mxu0 0.0
      %2544 = vmatpush2.msra.mxu0 0.0
      %2545 = vmatprep.subr.mxu0 0.0
      %2546 = vmatpush2.msra.mxu0 0.0
      %2547 = vmatprep.subr.mxu0 0.0
      %2548 = vmatpush2.msra.mxu0 0.0
      %2549 = vmatprep.subr.mxu0 0.0
      %2550 = vmatpush2.msra.mxu0 0.0
      %2551 = vmatprep.subr.mxu0 0.0
      %2552 = vmatpush2.msra.mxu0 0.0
      %2553 = vmatprep.subr.mxu0 0.0
      %2554 = vmatpush2.msra.mxu0 0.0
      %2555 = vmatprep.subr.mxu0 0.0
      %2556 = vmatpush2.msra.mxu0 0.0
      %2557 = vmatprep.subr.mxu0 0.0
      %2558 = vmatpush2.msra.mxu0 0.0
      %2559 = vmatprep.subr.mxu0 0.0
      %2560 = vmatpush2.msra.mxu0 0.0
      %2561 = vmatprep.subr.mxu0 0.0
      %2562 = vmatpush2.msra.mxu0 0.0
      %2563 = vmatprep.subr.mxu0 0.0
      %2564 = vmatpush2.msra.mxu0 0.0
      %2565 = vmatprep.subr.mxu0 0.0
      %2566 = vmatpush2.msra.mxu0 0.0
      %2567 = vmatprep.mubr.f32.mxu0 0.0
      %2568 = vmatmul.mubr.f32.gmra.mxu0 %v2396
      %v2569 = vpop.f32.mrf.mxu0
      %v2570 = vadd.f32 0.0, %v2569
      %v2571 = vpop.f32.mrf.mxu0
      %2572 = vmatprep.mubr.f32.mxu0 0.0
      %2573 = vmatmul.mubr.f32.gmra.mxu0 %v2399
      %v2574 = vpop.f32.mrf.mxu0
      %v2575 = vadd.f32 0.0, %v2574
      %v2576 = vpop.f32.mrf.mxu0
      %2577 = vmatprep.mubr.f32.mxu0 0.0
      %2578 = vmatmul.mubr.f32.gmra.mxu0 %v2402
      %v2579 = vpop.f32.mrf.mxu0
      %v2580 = vadd.f32 0.0, %v2579
      %v2581 = vpop.f32.mrf.mxu0
      %2582 = vmatprep.mubr.f32.mxu0 0.0
      %2583 = vmatmul.mubr.f32.gmra.mxu0 %v2405
      %v2584 = vpop.f32.mrf.mxu0
      %v2585 = vadd.f32 0.0, %v2584
      %v2586 = vpop.f32.mrf.mxu0
      %2587 = vmatprep.mubr.f32.mxu0 0.0
      %2588 = vmatmul.mubr.f32.gmra.mxu0 %v2408
      %v2589 = vpop.f32.mrf.mxu0
      %v2590 = vadd.f32 0.0, %v2589
      %v2591 = vpop.f32.mrf.mxu0
      %2592 = vmatprep.mubr.f32.mxu0 0.0
      %2593 = vmatmul.mubr.f32.gmra.mxu0 %v2411
      %v2594 = vpop.f32.mrf.mxu0
      %v2595 = vadd.f32 0.0, %v2594
      %v2596 = vpop.f32.mrf.mxu0
      %2597 = vmatprep.mubr.f32.mxu0 0.0
      %2598 = vmatmul.mubr.f32.gmra.mxu0 %v2414
      %v2599 = vpop.f32.mrf.mxu0
      %v2600 = vadd.f32 0.0, %v2599
      %v2601 = vpop.f32.mrf.mxu0
      %2602 = vmatprep.mubr.f32.mxu0 0.0
      %2603 = vmatmul.mubr.f32.gmra.mxu0 %v2417
      %v2604 = vpop.f32.mrf.mxu0
      %v2605 = vadd.f32 0.0, %v2604
      %v2606 = vpop.f32.mrf.mxu0
      %2607 = vmatprep.mubr.f32.mxu0 0.0
      %2608 = vmatmul.mubr.f32.gmra.mxu0 %v2420
      %v2609 = vpop.f32.mrf.mxu0
      %v2610 = vadd.f32 0.0, %v2609
      %v2611 = vpop.f32.mrf.mxu0
      %2612 = vmatprep.mubr.f32.mxu0 0.0
      %2613 = vmatmul.mubr.f32.gmra.mxu0 %v2423
      %v2614 = vpop.f32.mrf.mxu0
      %v2615 = vadd.f32 0.0, %v2614
      %v2616 = vpop.f32.mrf.mxu0
      %2617 = vmatprep.mubr.f32.mxu0 0.0
      %2618 = vmatmul.mubr.f32.gmra.mxu0 %v2426
      %v2619 = vpop.f32.mrf.mxu0
      %v2620 = vadd.f32 0.0, %v2619
      %v2621 = vpop.f32.mrf.mxu0
      %2622 = vmatprep.mubr.f32.mxu0 0.0
      %2623 = vmatmul.mubr.f32.gmra.mxu0 %v2429
      %v2624 = vpop.f32.mrf.mxu0
      %v2625 = vadd.f32 0.0, %v2624
      %v2626 = vpop.f32.mrf.mxu0
      %2627 = vmatprep.mubr.f32.mxu0 0.0
      %2628 = vmatmul.mubr.f32.gmra.mxu0 %v2432
      %v2629 = vpop.f32.mrf.mxu0
      %v2630 = vadd.f32 0.0, %v2629
      %v2631 = vpop.f32.mrf.mxu0
      %2632 = vmatprep.mubr.f32.mxu0 0.0
      %2633 = vmatmul.mubr.f32.gmra.mxu0 %v2435
      %v2634 = vpop.f32.mrf.mxu0
      %v2635 = vadd.f32 0.0, %v2634
      %v2636 = vpop.f32.mrf.mxu0
      %2637 = vmatprep.mubr.f32.mxu0 0.0
      %2638 = vmatmul.mubr.f32.gmra.mxu0 %v2438
      %v2639 = vpop.f32.mrf.mxu0
      %v2640 = vadd.f32 0.0, %v2639
      %v2641 = vpop.f32.mrf.mxu0
      %2642 = vmatprep.mubr.f32.mxu0 0.0
      %2643 = vmatmul.mubr.f32.gmra.mxu0 %v2441
      %v2644 = vpop.f32.mrf.mxu0
      %v2645 = vadd.f32 0.0, %v2644
      %v2646 = vpop.f32.mrf.mxu0
      %2647 = vmatprep.mubr.f32.mxu0 0.0
      %2648 = vmatmul.mubr.f32.gmra.mxu0 %v2444
      %v2649 = vpop.f32.mrf.mxu0
      %v2650 = vadd.f32 0.0, %v2649
      %v2651 = vpop.f32.mrf.mxu0
      %2652 = vmatprep.mubr.f32.mxu0 0.0
      %2653 = vmatmul.mubr.f32.gmra.mxu0 %v2447
      %v2654 = vpop.f32.mrf.mxu0
      %v2655 = vadd.f32 0.0, %v2654
      %v2656 = vpop.f32.mrf.mxu0
      %2657 = vmatprep.mubr.f32.mxu0 0.0
      %2658 = vmatmul.mubr.f32.gmra.mxu0 %v2450
      %v2659 = vpop.f32.mrf.mxu0
      %v2660 = vadd.f32 0.0, %v2659
      %v2661 = vpop.f32.mrf.mxu0
      %2662 = vmatprep.mubr.f32.mxu0 0.0
      %2663 = vmatmul.mubr.f32.gmra.mxu0 %v2453
      %v2664 = vpop.f32.mrf.mxu0
      %v2665 = vadd.f32 0.0, %v2664
      %v2666 = vpop.f32.mrf.mxu0
      %2667 = vmatprep.mubr.f32.mxu0 0.0
      %2668 = vmatmul.mubr.f32.gmra.mxu0 %v2456
      %v2669 = vpop.f32.mrf.mxu0
      %v2670 = vadd.f32 0.0, %v2669
      %v2671 = vpop.f32.mrf.mxu0
      %2672 = vmatprep.mubr.f32.mxu0 0.0
      %2673 = vmatmul.mubr.f32.gmra.mxu0 %v2459
      %v2674 = vpop.f32.mrf.mxu0
      %v2675 = vadd.f32 0.0, %v2674
      %v2676 = vpop.f32.mrf.mxu0
      %2677 = vmatprep.mubr.f32.mxu0 0.0
      %2678 = vmatmul.mubr.f32.gmra.mxu0 %v2462
      %v2679 = vpop.f32.mrf.mxu0
      %v2680 = vadd.f32 0.0, %v2679
      %v2681 = vpop.f32.mrf.mxu0
      %2682 = vmatprep.mubr.f32.mxu0 0.0
      %2683 = vmatmul.mubr.f32.gmra.mxu0 %v2465
      %v2684 = vpop.f32.mrf.mxu0
      %v2685 = vadd.f32 0.0, %v2684
      %v2686 = vpop.f32.mrf.mxu0
      %2687 = vmatprep.mubr.f32.mxu0 0.0
      %2688 = vmatmul.mubr.f32.gmra.mxu0 %v2468
      %v2689 = vpop.f32.mrf.mxu0
      %v2690 = vadd.f32 0.0, %v2689
      %v2691 = vpop.f32.mrf.mxu0
      %2692 = vmatprep.mubr.f32.mxu0 0.0
      %2693 = vmatmul.mubr.f32.gmra.mxu0 %v2471
      %v2694 = vpop.f32.mrf.mxu0
      %v2695 = vadd.f32 0.0, %v2694
      %v2696 = vpop.f32.mrf.mxu0
      %2697 = vmatprep.mubr.f32.mxu0 0.0
      %2698 = vmatmul.mubr.f32.gmra.mxu0 %v2474
      %v2699 = vpop.f32.mrf.mxu0
      %v2700 = vadd.f32 0.0, %v2699
      %v2701 = vpop.f32.mrf.mxu0
      %2702 = vmatprep.mubr.f32.mxu0 0.0
      %2703 = vmatmul.mubr.f32.gmra.mxu0 %v2477
      %v2704 = vpop.f32.mrf.mxu0
      %v2705 = vadd.f32 0.0, %v2704
      %v2706 = vpop.f32.mrf.mxu0
      %2707 = vmatprep.mubr.f32.mxu0 0.0
      %2708 = vmatmul.mubr.f32.gmra.mxu0 %v2480
      %v2709 = vpop.f32.mrf.mxu0
      %v2710 = vadd.f32 0.0, %v2709
      %v2711 = vpop.f32.mrf.mxu0
      %2712 = vmatprep.mubr.f32.mxu0 0.0
      %2713 = vmatmul.mubr.f32.gmra.mxu0 %v2483
      %v2714 = vpop.f32.mrf.mxu0
      %v2715 = vadd.f32 0.0, %v2714
      %v2716 = vpop.f32.mrf.mxu0
      %2717 = vmatprep.mubr.f32.mxu0 0.0
      %2718 = vmatmul.mubr.f32.gmra.mxu0 %v2486
      %v2719 = vpop.f32.mrf.mxu0
      %v2720 = vadd.f32 0.0, %v2719
      %v2721 = vpop.f32.mrf.mxu0
      %2722 = vmatprep.mubr.f32.mxu0 0.0
      %2723 = vmatmul.mubr.f32.gmra.mxu0 %v2489
      %v2724 = vpop.f32.mrf.mxu0
      %v2725 = vadd.f32 0.0, %v2724
      %v2726 = vpop.f32.mrf.mxu0
      %2727 = vmatprep.mubr.f32.mxu0 0.0
      %2728 = vmatmul.mubr.f32.gmra.mxu0 %v2492
      %v2729 = vpop.f32.mrf.mxu0
      %v2730 = vadd.f32 0.0, %v2729
      %v2731 = vpop.f32.mrf.mxu0
      %2732 = vmatprep.mubr.f32.mxu0 0.0
      %2733 = vmatmul.mubr.f32.gmra.mxu0 %v2495
      %v2734 = vpop.f32.mrf.mxu0
      %v2735 = vadd.f32 0.0, %v2734
      %v2736 = vpop.f32.mrf.mxu0
      %2737 = vmatprep.mubr.f32.mxu0 0.0
      %2738 = vmatmul.mubr.f32.gmra.mxu0 %v2498
      %v2739 = vpop.f32.mrf.mxu0
      %v2740 = vadd.f32 0.0, %v2739
      %v2741 = vpop.f32.mrf.mxu0
      %2742 = vmatprep.mubr.f32.mxu0 0.0
      %2743 = vmatmul.mubr.f32.gmra.mxu0 %v2501
      %v2744 = vpop.f32.mrf.mxu0
      %v2745 = vadd.f32 0.0, %v2744
      %v2746 = vpop.f32.mrf.mxu0
      %2747 = vdwg.mxu0
      %v2748 = vadd.f32 %v2321, %v2570
      %v2749 = vadd.f32 %v2322, %v2575
      %v2750 = vadd.f32 %v2323, %v2580
      %v2751 = vadd.f32 %v2324, %v2585
      %v2752 = vadd.f32 %v2325, %v2590
      %v2753 = vadd.f32 %v2326, %v2595
      %v2754 = vadd.f32 %v2327, %v2600
      %v2755 = vadd.f32 %v2328, %v2605
      %v2756 = vadd.f32 %v2329, %v2610
      %v2757 = vadd.f32 %v2330, %v2615
      %v2758 = vadd.f32 %v2331, %v2620
      %v2759 = vadd.f32 %v2332, %v2625
      %v2760 = vadd.f32 %v2333, %v2630
      %v2761 = vadd.f32 %v2334, %v2635
      %v2762 = vadd.f32 %v2335, %v2640
      %v2763 = vadd.f32 %v2336, %v2645
      %v2764 = vadd.f32 %v2337, %v2650
      %v2765 = vadd.f32 %v2338, %v2655
      %v2766 = vadd.f32 %v2339, %v2660
      %v2767 = vadd.f32 %v2340, %v2665
      %v2768 = vadd.f32 %v2341, %v2670
      %v2769 = vadd.f32 %v2342, %v2675
      %v2770 = vadd.f32 %v2343, %v2680
      %v2771 = vadd.f32 %v2344, %v2685
      %v2772 = vadd.f32 %v2345, %v2690
      %v2773 = vadd.f32 %v2346, %v2695
      %v2774 = vadd.f32 %v2347, %v2700
      %v2775 = vadd.f32 %v2348, %v2705
      %v2776 = vadd.f32 %v2349, %v2710
      %v2777 = vadd.f32 %v2350, %v2715
      %v2778 = vadd.f32 %v2351, %v2720
      %v2779 = vadd.f32 %v2352, %v2725
      %v2780 = vadd.f32 %v2353, %v2730
      %v2781 = vadd.f32 %v2354, %v2735
      %v2782 = vadd.f32 %v2355, %v2740
      %v2783 = vadd.f32 %v2356, %v2745
      %v2784 = vld [vmem:[#allocation2 + $0x24] sm:$0xff]
      %v2785 = vld [vmem:[#allocation2 + $0x2c] sm:$0xff]
      %v2786 = vld [vmem:[#allocation2 + $0x34] sm:$0xff]
      %v2787 = vld [vmem:[#allocation2 + $0x3c] sm:$0xff]
      %v2788 = vld [vmem:[#allocation2 + $0x44] sm:$0xff]
      %v2789 = vld [vmem:[#allocation2 + $0x4c] sm:$0xff]
      %v2790 = vld [vmem:[#allocation2 + $0x54] sm:$0xff]
      %v2791 = vld [vmem:[#allocation2 + $0x5c] sm:$0xff]
      %v2792 = vld [vmem:[#allocation2 + $0x64] sm:$0xff]
      %v2793 = vld [vmem:[#allocation2 + $0x6c] sm:$0xff]
      %v2794 = vld [vmem:[#allocation2 + $0x74] sm:$0xff]
      %v2795 = vld [vmem:[#allocation2 + $0x7c] sm:$0xff]
      %v2796 = vld [vmem:[#allocation2 + $0x84] sm:$0xff]
      %v2797 = vld [vmem:[#allocation2 + $0x8c] sm:$0xff]
      %v2798 = vld [vmem:[#allocation2 + $0x94] sm:$0xff]
      %v2799 = vld [vmem:[#allocation2 + $0x9c] sm:$0xff]
      %v2800 = vld [vmem:[#allocation2 + $0xa4] sm:$0xff]
      %v2801 = vld [vmem:[#allocation2 + $0xac] sm:$0xff]
      %v2802 = vld [vmem:[#allocation2 + $0xb4] sm:$0xff]
      %v2803 = vld [vmem:[#allocation2 + $0xbc] sm:$0xff]
      %v2804 = vld [vmem:[#allocation2 + $0xc4] sm:$0xff]
      %v2805 = vld [vmem:[#allocation2 + $0xcc] sm:$0xff]
      %v2806 = vld [vmem:[#allocation2 + $0xd4] sm:$0xff]
      %v2807 = vld [vmem:[#allocation2 + $0xdc] sm:$0xff]
      %v2808 = vld [vmem:[#allocation2 + $0xe4] sm:$0xff]
      %v2809 = vld [vmem:[#allocation2 + $0xec] sm:$0xff]
      %v2810 = vld [vmem:[#allocation2 + $0xf4] sm:$0xff]
      %v2811 = vld [vmem:[#allocation2 + $0xfc] sm:$0xff]
      %v2812 = vld [vmem:[#allocation2 + $0x104] sm:$0xff]
      %v2813 = vld [vmem:[#allocation2 + $0x10c] sm:$0xff]
      %v2814 = vld [vmem:[#allocation2 + $0x114] sm:$0xff]
      %v2815 = vld [vmem:[#allocation2 + $0x11c] sm:$0xff]
      %v2816 = vld [vmem:[#allocation2 + $0x124] sm:$0xff]
      %v2817 = vld [vmem:[#allocation2 + $0x12c] sm:$0xff]
      %v2818 = vld [vmem:[#allocation2 + $0x134] sm:$0xff]
      %v2819 = vld [vmem:[#allocation2 + $0x13c] sm:$0xff]
      %s2820 = scalar_lea.vmem %s1, 48
      %v2821 = vld [vmem:[%s2820] sm:$0xff]
      %v2823 = vsel %vm171, %v2784, 0
      %v2826 = vsel %vm171, %v2785, 0
      %v2829 = vsel %vm171, %v2786, 0
      %v2832 = vsel %vm171, %v2787, 0
      %v2835 = vsel %vm171, %v2788, 0
      %v2838 = vsel %vm171, %v2789, 0
      %v2841 = vsel %vm171, %v2790, 0
      %v2844 = vsel %vm171, %v2791, 0
      %v2847 = vsel %vm171, %v2792, 0
      %v2850 = vsel %vm171, %v2793, 0
      %v2853 = vsel %vm171, %v2794, 0
      %v2856 = vsel %vm171, %v2795, 0
      %v2859 = vsel %vm171, %v2796, 0
      %v2862 = vsel %vm171, %v2797, 0
      %v2865 = vsel %vm171, %v2798, 0
      %v2868 = vsel %vm171, %v2799, 0
      %v2871 = vsel %vm171, %v2800, 0
      %v2874 = vsel %vm171, %v2801, 0
      %v2877 = vsel %vm171, %v2802, 0
      %v2880 = vsel %vm171, %v2803, 0
      %v2883 = vsel %vm171, %v2804, 0
      %v2886 = vsel %vm171, %v2805, 0
      %v2889 = vsel %vm171, %v2806, 0
      %v2892 = vsel %vm171, %v2807, 0
      %v2895 = vsel %vm171, %v2808, 0
      %v2898 = vsel %vm171, %v2809, 0
      %v2901 = vsel %vm171, %v2810, 0
      %v2904 = vsel %vm171, %v2811, 0
      %v2907 = vsel %vm171, %v2812, 0
      %v2910 = vsel %vm171, %v2813, 0
      %v2913 = vsel %vm171, %v2814, 0
      %v2916 = vsel %vm171, %v2815, 0
      %v2919 = vsel %vm171, %v2816, 0
      %v2922 = vsel %vm171, %v2817, 0
      %v2925 = vsel %vm171, %v2818, 0
      %v2928 = vsel %vm171, %v2819, 0
      %2930 = vmatprep.subr.mxu0 0.0
      %2931 = vmatpush1.msra.mxu0 0.0
      %2932 = vmatprep.subr.mxu0 0.0
      %2933 = vmatpush1.msra.mxu0 0.0
      %2934 = vmatprep.subr.mxu0 0.0
      %2935 = vmatpush1.msra.mxu0 0.0
      %2936 = vmatprep.subr.mxu0 0.0
      %2937 = vmatpush1.msra.mxu0 0.0
      %2938 = vmatprep.subr.mxu0 0.0
      %2939 = vmatpush1.msra.mxu0 0.0
      %2940 = vmatprep.subr.mxu0 0.0
      %2941 = vmatpush1.msra.mxu0 0.0
      %2942 = vmatprep.subr.mxu0 0.0
      %2943 = vmatpush1.msra.mxu0 0.0
      %2944 = vmatprep.subr.mxu0 0.0
      %2945 = vmatpush1.msra.mxu0 0.0
      %2946 = vmatprep.subr.mxu0 0.0
      %2947 = vmatpush1.msra.mxu0 0.0
      %2948 = vmatprep.subr.mxu0 0.0
      %2949 = vmatpush1.msra.mxu0 0.0
      %2950 = vmatprep.subr.mxu0 0.0
      %2951 = vmatpush1.msra.mxu0 0.0
      %2952 = vmatprep.subr.mxu0 0.0
      %2953 = vmatpush1.msra.mxu0 0.0
      %2954 = vmatprep.subr.mxu0 0.0
      %2955 = vmatpush1.msra.mxu0 0.0
      %2956 = vmatprep.subr.mxu0 0.0
      %2957 = vmatpush1.msra.mxu0 0.0
      %2958 = vmatprep.subr.mxu0 0.0
      %2959 = vmatpush1.msra.mxu0 0.0
      %2960 = vmatprep.subr.mxu0 0.0
      %2961 = vmatpush1.msra.mxu0 %v2821
      %2962 = vmatprep.subr.mxu0 0.0
      %2963 = vmatpush2.msra.mxu0 0.0
      %2964 = vmatprep.subr.mxu0 0.0
      %2965 = vmatpush2.msra.mxu0 0.0
      %2966 = vmatprep.subr.mxu0 0.0
      %2967 = vmatpush2.msra.mxu0 0.0
      %2968 = vmatprep.subr.mxu0 0.0
      %2969 = vmatpush2.msra.mxu0 0.0
      %2970 = vmatprep.subr.mxu0 0.0
      %2971 = vmatpush2.msra.mxu0 0.0
      %2972 = vmatprep.subr.mxu0 0.0
      %2973 = vmatpush2.msra.mxu0 0.0
      %2974 = vmatprep.subr.mxu0 0.0
      %2975 = vmatpush2.msra.mxu0 0.0
      %2976 = vmatprep.subr.mxu0 0.0
      %2977 = vmatpush2.msra.mxu0 0.0
      %2978 = vmatprep.subr.mxu0 0.0
      %2979 = vmatpush2.msra.mxu0 0.0
      %2980 = vmatprep.subr.mxu0 0.0
      %2981 = vmatpush2.msra.mxu0 0.0
      %2982 = vmatprep.subr.mxu0 0.0
      %2983 = vmatpush2.msra.mxu0 0.0
      %2984 = vmatprep.subr.mxu0 0.0
      %2985 = vmatpush2.msra.mxu0 0.0
      %2986 = vmatprep.subr.mxu0 0.0
      %2987 = vmatpush2.msra.mxu0 0.0
      %2988 = vmatprep.subr.mxu0 0.0
      %2989 = vmatpush2.msra.mxu0 0.0
      %2990 = vmatprep.subr.mxu0 0.0
      %2991 = vmatpush2.msra.mxu0 0.0
      %2992 = vmatprep.subr.mxu0 0.0
      %2993 = vmatpush2.msra.mxu0 0.0
      %2994 = vmatprep.mubr.f32.mxu0 0.0
      %2995 = vmatmul.mubr.f32.gmra.mxu0 %v2823
      %v2996 = vpop.f32.mrf.mxu0
      %v2997 = vadd.f32 0.0, %v2996
      %v2998 = vpop.f32.mrf.mxu0
      %2999 = vmatprep.mubr.f32.mxu0 0.0
      %3000 = vmatmul.mubr.f32.gmra.mxu0 %v2826
      %v3001 = vpop.f32.mrf.mxu0
      %v3002 = vadd.f32 0.0, %v3001
      %v3003 = vpop.f32.mrf.mxu0
      %3004 = vmatprep.mubr.f32.mxu0 0.0
      %3005 = vmatmul.mubr.f32.gmra.mxu0 %v2829
      %v3006 = vpop.f32.mrf.mxu0
      %v3007 = vadd.f32 0.0, %v3006
      %v3008 = vpop.f32.mrf.mxu0
      %3009 = vmatprep.mubr.f32.mxu0 0.0
      %3010 = vmatmul.mubr.f32.gmra.mxu0 %v2832
      %v3011 = vpop.f32.mrf.mxu0
      %v3012 = vadd.f32 0.0, %v3011
      %v3013 = vpop.f32.mrf.mxu0
      %3014 = vmatprep.mubr.f32.mxu0 0.0
      %3015 = vmatmul.mubr.f32.gmra.mxu0 %v2835
      %v3016 = vpop.f32.mrf.mxu0
      %v3017 = vadd.f32 0.0, %v3016
      %v3018 = vpop.f32.mrf.mxu0
      %3019 = vmatprep.mubr.f32.mxu0 0.0
      %3020 = vmatmul.mubr.f32.gmra.mxu0 %v2838
      %v3021 = vpop.f32.mrf.mxu0
      %v3022 = vadd.f32 0.0, %v3021
      %v3023 = vpop.f32.mrf.mxu0
      %3024 = vmatprep.mubr.f32.mxu0 0.0
      %3025 = vmatmul.mubr.f32.gmra.mxu0 %v2841
      %v3026 = vpop.f32.mrf.mxu0
      %v3027 = vadd.f32 0.0, %v3026
      %v3028 = vpop.f32.mrf.mxu0
      %3029 = vmatprep.mubr.f32.mxu0 0.0
      %3030 = vmatmul.mubr.f32.gmra.mxu0 %v2844
      %v3031 = vpop.f32.mrf.mxu0
      %v3032 = vadd.f32 0.0, %v3031
      %v3033 = vpop.f32.mrf.mxu0
      %3034 = vmatprep.mubr.f32.mxu0 0.0
      %3035 = vmatmul.mubr.f32.gmra.mxu0 %v2847
      %v3036 = vpop.f32.mrf.mxu0
      %v3037 = vadd.f32 0.0, %v3036
      %v3038 = vpop.f32.mrf.mxu0
      %3039 = vmatprep.mubr.f32.mxu0 0.0
      %3040 = vmatmul.mubr.f32.gmra.mxu0 %v2850
      %v3041 = vpop.f32.mrf.mxu0
      %v3042 = vadd.f32 0.0, %v3041
      %v3043 = vpop.f32.mrf.mxu0
      %3044 = vmatprep.mubr.f32.mxu0 0.0
      %3045 = vmatmul.mubr.f32.gmra.mxu0 %v2853
      %v3046 = vpop.f32.mrf.mxu0
      %v3047 = vadd.f32 0.0, %v3046
      %v3048 = vpop.f32.mrf.mxu0
      %3049 = vmatprep.mubr.f32.mxu0 0.0
      %3050 = vmatmul.mubr.f32.gmra.mxu0 %v2856
      %v3051 = vpop.f32.mrf.mxu0
      %v3052 = vadd.f32 0.0, %v3051
      %v3053 = vpop.f32.mrf.mxu0
      %3054 = vmatprep.mubr.f32.mxu0 0.0
      %3055 = vmatmul.mubr.f32.gmra.mxu0 %v2859
      %v3056 = vpop.f32.mrf.mxu0
      %v3057 = vadd.f32 0.0, %v3056
      %v3058 = vpop.f32.mrf.mxu0
      %3059 = vmatprep.mubr.f32.mxu0 0.0
      %3060 = vmatmul.mubr.f32.gmra.mxu0 %v2862
      %v3061 = vpop.f32.mrf.mxu0
      %v3062 = vadd.f32 0.0, %v3061
      %v3063 = vpop.f32.mrf.mxu0
      %3064 = vmatprep.mubr.f32.mxu0 0.0
      %3065 = vmatmul.mubr.f32.gmra.mxu0 %v2865
      %v3066 = vpop.f32.mrf.mxu0
      %v3067 = vadd.f32 0.0, %v3066
      %v3068 = vpop.f32.mrf.mxu0
      %3069 = vmatprep.mubr.f32.mxu0 0.0
      %3070 = vmatmul.mubr.f32.gmra.mxu0 %v2868
      %v3071 = vpop.f32.mrf.mxu0
      %v3072 = vadd.f32 0.0, %v3071
      %v3073 = vpop.f32.mrf.mxu0
      %3074 = vmatprep.mubr.f32.mxu0 0.0
      %3075 = vmatmul.mubr.f32.gmra.mxu0 %v2871
      %v3076 = vpop.f32.mrf.mxu0
      %v3077 = vadd.f32 0.0, %v3076
      %v3078 = vpop.f32.mrf.mxu0
      %3079 = vmatprep.mubr.f32.mxu0 0.0
      %3080 = vmatmul.mubr.f32.gmra.mxu0 %v2874
      %v3081 = vpop.f32.mrf.mxu0
      %v3082 = vadd.f32 0.0, %v3081
      %v3083 = vpop.f32.mrf.mxu0
      %3084 = vmatprep.mubr.f32.mxu0 0.0
      %3085 = vmatmul.mubr.f32.gmra.mxu0 %v2877
      %v3086 = vpop.f32.mrf.mxu0
      %v3087 = vadd.f32 0.0, %v3086
      %v3088 = vpop.f32.mrf.mxu0
      %3089 = vmatprep.mubr.f32.mxu0 0.0
      %3090 = vmatmul.mubr.f32.gmra.mxu0 %v2880
      %v3091 = vpop.f32.mrf.mxu0
      %v3092 = vadd.f32 0.0, %v3091
      %v3093 = vpop.f32.mrf.mxu0
      %3094 = vmatprep.mubr.f32.mxu0 0.0
      %3095 = vmatmul.mubr.f32.gmra.mxu0 %v2883
      %v3096 = vpop.f32.mrf.mxu0
      %v3097 = vadd.f32 0.0, %v3096
      %v3098 = vpop.f32.mrf.mxu0
      %3099 = vmatprep.mubr.f32.mxu0 0.0
      %3100 = vmatmul.mubr.f32.gmra.mxu0 %v2886
      %v3101 = vpop.f32.mrf.mxu0
      %v3102 = vadd.f32 0.0, %v3101
      %v3103 = vpop.f32.mrf.mxu0
      %3104 = vmatprep.mubr.f32.mxu0 0.0
      %3105 = vmatmul.mubr.f32.gmra.mxu0 %v2889
      %v3106 = vpop.f32.mrf.mxu0
      %v3107 = vadd.f32 0.0, %v3106
      %v3108 = vpop.f32.mrf.mxu0
      %3109 = vmatprep.mubr.f32.mxu0 0.0
      %3110 = vmatmul.mubr.f32.gmra.mxu0 %v2892
      %v3111 = vpop.f32.mrf.mxu0
      %v3112 = vadd.f32 0.0, %v3111
      %v3113 = vpop.f32.mrf.mxu0
      %3114 = vmatprep.mubr.f32.mxu0 0.0
      %3115 = vmatmul.mubr.f32.gmra.mxu0 %v2895
      %v3116 = vpop.f32.mrf.mxu0
      %v3117 = vadd.f32 0.0, %v3116
      %v3118 = vpop.f32.mrf.mxu0
      %3119 = vmatprep.mubr.f32.mxu0 0.0
      %3120 = vmatmul.mubr.f32.gmra.mxu0 %v2898
      %v3121 = vpop.f32.mrf.mxu0
      %v3122 = vadd.f32 0.0, %v3121
      %v3123 = vpop.f32.mrf.mxu0
      %3124 = vmatprep.mubr.f32.mxu0 0.0
      %3125 = vmatmul.mubr.f32.gmra.mxu0 %v2901
      %v3126 = vpop.f32.mrf.mxu0
      %v3127 = vadd.f32 0.0, %v3126
      %v3128 = vpop.f32.mrf.mxu0
      %3129 = vmatprep.mubr.f32.mxu0 0.0
      %3130 = vmatmul.mubr.f32.gmra.mxu0 %v2904
      %v3131 = vpop.f32.mrf.mxu0
      %v3132 = vadd.f32 0.0, %v3131
      %v3133 = vpop.f32.mrf.mxu0
      %3134 = vmatprep.mubr.f32.mxu0 0.0
      %3135 = vmatmul.mubr.f32.gmra.mxu0 %v2907
      %v3136 = vpop.f32.mrf.mxu0
      %v3137 = vadd.f32 0.0, %v3136
      %v3138 = vpop.f32.mrf.mxu0
      %3139 = vmatprep.mubr.f32.mxu0 0.0
      %3140 = vmatmul.mubr.f32.gmra.mxu0 %v2910
      %v3141 = vpop.f32.mrf.mxu0
      %v3142 = vadd.f32 0.0, %v3141
      %v3143 = vpop.f32.mrf.mxu0
      %3144 = vmatprep.mubr.f32.mxu0 0.0
      %3145 = vmatmul.mubr.f32.gmra.mxu0 %v2913
      %v3146 = vpop.f32.mrf.mxu0
      %v3147 = vadd.f32 0.0, %v3146
      %v3148 = vpop.f32.mrf.mxu0
      %3149 = vmatprep.mubr.f32.mxu0 0.0
      %3150 = vmatmul.mubr.f32.gmra.mxu0 %v2916
      %v3151 = vpop.f32.mrf.mxu0
      %v3152 = vadd.f32 0.0, %v3151
      %v3153 = vpop.f32.mrf.mxu0
      %3154 = vmatprep.mubr.f32.mxu0 0.0
      %3155 = vmatmul.mubr.f32.gmra.mxu0 %v2919
      %v3156 = vpop.f32.mrf.mxu0
      %v3157 = vadd.f32 0.0, %v3156
      %v3158 = vpop.f32.mrf.mxu0
      %3159 = vmatprep.mubr.f32.mxu0 0.0
      %3160 = vmatmul.mubr.f32.gmra.mxu0 %v2922
      %v3161 = vpop.f32.mrf.mxu0
      %v3162 = vadd.f32 0.0, %v3161
      %v3163 = vpop.f32.mrf.mxu0
      %3164 = vmatprep.mubr.f32.mxu0 0.0
      %3165 = vmatmul.mubr.f32.gmra.mxu0 %v2925
      %v3166 = vpop.f32.mrf.mxu0
      %v3167 = vadd.f32 0.0, %v3166
      %v3168 = vpop.f32.mrf.mxu0
      %3169 = vmatprep.mubr.f32.mxu0 0.0
      %3170 = vmatmul.mubr.f32.gmra.mxu0 %v2928
      %v3171 = vpop.f32.mrf.mxu0
      %v3172 = vadd.f32 0.0, %v3171
      %v3173 = vpop.f32.mrf.mxu0
      %3174 = vdwg.mxu0
      %v3175 = vadd.f32 %v2748, %v2997
      %v3176 = vadd.f32 %v2749, %v3002
      %v3177 = vadd.f32 %v2750, %v3007
      %v3178 = vadd.f32 %v2751, %v3012
      %v3179 = vadd.f32 %v2752, %v3017
      %v3180 = vadd.f32 %v2753, %v3022
      %v3181 = vadd.f32 %v2754, %v3027
      %v3182 = vadd.f32 %v2755, %v3032
      %v3183 = vadd.f32 %v2756, %v3037
      %v3184 = vadd.f32 %v2757, %v3042
      %v3185 = vadd.f32 %v2758, %v3047
      %v3186 = vadd.f32 %v2759, %v3052
      %v3187 = vadd.f32 %v2760, %v3057
      %v3188 = vadd.f32 %v2761, %v3062
      %v3189 = vadd.f32 %v2762, %v3067
      %v3190 = vadd.f32 %v2763, %v3072
      %v3191 = vadd.f32 %v2764, %v3077
      %v3192 = vadd.f32 %v2765, %v3082
      %v3193 = vadd.f32 %v2766, %v3087
      %v3194 = vadd.f32 %v2767, %v3092
      %v3195 = vadd.f32 %v2768, %v3097
      %v3196 = vadd.f32 %v2769, %v3102
      %v3197 = vadd.f32 %v2770, %v3107
      %v3198 = vadd.f32 %v2771, %v3112
      %v3199 = vadd.f32 %v2772, %v3117
      %v3200 = vadd.f32 %v2773, %v3122
      %v3201 = vadd.f32 %v2774, %v3127
      %v3202 = vadd.f32 %v2775, %v3132
      %v3203 = vadd.f32 %v2776, %v3137
      %v3204 = vadd.f32 %v2777, %v3142
      %v3205 = vadd.f32 %v2778, %v3147
      %v3206 = vadd.f32 %v2779, %v3152
      %v3207 = vadd.f32 %v2780, %v3157
      %v3208 = vadd.f32 %v2781, %v3162
      %v3209 = vadd.f32 %v2782, %v3167
      %v3210 = vadd.f32 %v2783, %v3172
      %v3211 = vld [vmem:[#allocation2 + $0x25] sm:$0xff]
      %v3212 = vld [vmem:[#allocation2 + $0x2d] sm:$0xff]
      %v3213 = vld [vmem:[#allocation2 + $0x35] sm:$0xff]
      %v3214 = vld [vmem:[#allocation2 + $0x3d] sm:$0xff]
      %v3215 = vld [vmem:[#allocation2 + $0x45] sm:$0xff]
      %v3216 = vld [vmem:[#allocation2 + $0x4d] sm:$0xff]
      %v3217 = vld [vmem:[#allocation2 + $0x55] sm:$0xff]
      %v3218 = vld [vmem:[#allocation2 + $0x5d] sm:$0xff]
      %v3219 = vld [vmem:[#allocation2 + $0x65] sm:$0xff]
      %v3220 = vld [vmem:[#allocation2 + $0x6d] sm:$0xff]
      %v3221 = vld [vmem:[#allocation2 + $0x75] sm:$0xff]
      %v3222 = vld [vmem:[#allocation2 + $0x7d] sm:$0xff]
      %v3223 = vld [vmem:[#allocation2 + $0x85] sm:$0xff]
      %v3224 = vld [vmem:[#allocation2 + $0x8d] sm:$0xff]
      %v3225 = vld [vmem:[#allocation2 + $0x95] sm:$0xff]
      %v3226 = vld [vmem:[#allocation2 + $0x9d] sm:$0xff]
      %v3227 = vld [vmem:[#allocation2 + $0xa5] sm:$0xff]
      %v3228 = vld [vmem:[#allocation2 + $0xad] sm:$0xff]
      %v3229 = vld [vmem:[#allocation2 + $0xb5] sm:$0xff]
      %v3230 = vld [vmem:[#allocation2 + $0xbd] sm:$0xff]
      %v3231 = vld [vmem:[#allocation2 + $0xc5] sm:$0xff]
      %v3232 = vld [vmem:[#allocation2 + $0xcd] sm:$0xff]
      %v3233 = vld [vmem:[#allocation2 + $0xd5] sm:$0xff]
      %v3234 = vld [vmem:[#allocation2 + $0xdd] sm:$0xff]
      %v3235 = vld [vmem:[#allocation2 + $0xe5] sm:$0xff]
      %v3236 = vld [vmem:[#allocation2 + $0xed] sm:$0xff]
      %v3237 = vld [vmem:[#allocation2 + $0xf5] sm:$0xff]
      %v3238 = vld [vmem:[#allocation2 + $0xfd] sm:$0xff]
      %v3239 = vld [vmem:[#allocation2 + $0x105] sm:$0xff]
      %v3240 = vld [vmem:[#allocation2 + $0x10d] sm:$0xff]
      %v3241 = vld [vmem:[#allocation2 + $0x115] sm:$0xff]
      %v3242 = vld [vmem:[#allocation2 + $0x11d] sm:$0xff]
      %v3243 = vld [vmem:[#allocation2 + $0x125] sm:$0xff]
      %v3244 = vld [vmem:[#allocation2 + $0x12d] sm:$0xff]
      %v3245 = vld [vmem:[#allocation2 + $0x135] sm:$0xff]
      %v3246 = vld [vmem:[#allocation2 + $0x13d] sm:$0xff]
      %s3247 = scalar_lea.vmem %s1, 56
      %v3248 = vld [vmem:[%s3247] sm:$0xff]
      %v3250 = vsel %vm171, %v3211, 0
      %v3253 = vsel %vm171, %v3212, 0
      %v3256 = vsel %vm171, %v3213, 0
      %v3259 = vsel %vm171, %v3214, 0
      %v3262 = vsel %vm171, %v3215, 0
      %v3265 = vsel %vm171, %v3216, 0
      %v3268 = vsel %vm171, %v3217, 0
      %v3271 = vsel %vm171, %v3218, 0
      %v3274 = vsel %vm171, %v3219, 0
      %v3277 = vsel %vm171, %v3220, 0
      %v3280 = vsel %vm171, %v3221, 0
      %v3283 = vsel %vm171, %v3222, 0
      %v3286 = vsel %vm171, %v3223, 0
      %v3289 = vsel %vm171, %v3224, 0
      %v3292 = vsel %vm171, %v3225, 0
      %v3295 = vsel %vm171, %v3226, 0
      %v3298 = vsel %vm171, %v3227, 0
      %v3301 = vsel %vm171, %v3228, 0
      %v3304 = vsel %vm171, %v3229, 0
      %v3307 = vsel %vm171, %v3230, 0
      %v3310 = vsel %vm171, %v3231, 0
      %v3313 = vsel %vm171, %v3232, 0
      %v3316 = vsel %vm171, %v3233, 0
      %v3319 = vsel %vm171, %v3234, 0
      %v3322 = vsel %vm171, %v3235, 0
      %v3325 = vsel %vm171, %v3236, 0
      %v3328 = vsel %vm171, %v3237, 0
      %v3331 = vsel %vm171, %v3238, 0
      %v3334 = vsel %vm171, %v3239, 0
      %v3337 = vsel %vm171, %v3240, 0
      %v3340 = vsel %vm171, %v3241, 0
      %v3343 = vsel %vm171, %v3242, 0
      %v3346 = vsel %vm171, %v3243, 0
      %v3349 = vsel %vm171, %v3244, 0
      %v3352 = vsel %vm171, %v3245, 0
      %v3355 = vsel %vm171, %v3246, 0
      %3357 = vmatprep.subr.mxu0 0.0
      %3358 = vmatpush1.msra.mxu0 0.0
      %3359 = vmatprep.subr.mxu0 0.0
      %3360 = vmatpush1.msra.mxu0 0.0
      %3361 = vmatprep.subr.mxu0 0.0
      %3362 = vmatpush1.msra.mxu0 0.0
      %3363 = vmatprep.subr.mxu0 0.0
      %3364 = vmatpush1.msra.mxu0 0.0
      %3365 = vmatprep.subr.mxu0 0.0
      %3366 = vmatpush1.msra.mxu0 0.0
      %3367 = vmatprep.subr.mxu0 0.0
      %3368 = vmatpush1.msra.mxu0 0.0
      %3369 = vmatprep.subr.mxu0 0.0
      %3370 = vmatpush1.msra.mxu0 0.0
      %3371 = vmatprep.subr.mxu0 0.0
      %3372 = vmatpush1.msra.mxu0 0.0
      %3373 = vmatprep.subr.mxu0 0.0
      %3374 = vmatpush1.msra.mxu0 0.0
      %3375 = vmatprep.subr.mxu0 0.0
      %3376 = vmatpush1.msra.mxu0 0.0
      %3377 = vmatprep.subr.mxu0 0.0
      %3378 = vmatpush1.msra.mxu0 0.0
      %3379 = vmatprep.subr.mxu0 0.0
      %3380 = vmatpush1.msra.mxu0 0.0
      %3381 = vmatprep.subr.mxu0 0.0
      %3382 = vmatpush1.msra.mxu0 0.0
      %3383 = vmatprep.subr.mxu0 0.0
      %3384 = vmatpush1.msra.mxu0 0.0
      %3385 = vmatprep.subr.mxu0 0.0
      %3386 = vmatpush1.msra.mxu0 0.0
      %3387 = vmatprep.subr.mxu0 0.0
      %3388 = vmatpush1.msra.mxu0 %v3248
      %3389 = vmatprep.subr.mxu0 0.0
      %3390 = vmatpush2.msra.mxu0 0.0
      %3391 = vmatprep.subr.mxu0 0.0
      %3392 = vmatpush2.msra.mxu0 0.0
      %3393 = vmatprep.subr.mxu0 0.0
      %3394 = vmatpush2.msra.mxu0 0.0
      %3395 = vmatprep.subr.mxu0 0.0
      %3396 = vmatpush2.msra.mxu0 0.0
      %3397 = vmatprep.subr.mxu0 0.0
      %3398 = vmatpush2.msra.mxu0 0.0
      %3399 = vmatprep.subr.mxu0 0.0
      %3400 = vmatpush2.msra.mxu0 0.0
      %3401 = vmatprep.subr.mxu0 0.0
      %3402 = vmatpush2.msra.mxu0 0.0
      %3403 = vmatprep.subr.mxu0 0.0
      %3404 = vmatpush2.msra.mxu0 0.0
      %3405 = vmatprep.subr.mxu0 0.0
      %3406 = vmatpush2.msra.mxu0 0.0
      %3407 = vmatprep.subr.mxu0 0.0
      %3408 = vmatpush2.msra.mxu0 0.0
      %3409 = vmatprep.subr.mxu0 0.0
      %3410 = vmatpush2.msra.mxu0 0.0
      %3411 = vmatprep.subr.mxu0 0.0
      %3412 = vmatpush2.msra.mxu0 0.0
      %3413 = vmatprep.subr.mxu0 0.0
      %3414 = vmatpush2.msra.mxu0 0.0
      %3415 = vmatprep.subr.mxu0 0.0
      %3416 = vmatpush2.msra.mxu0 0.0
      %3417 = vmatprep.subr.mxu0 0.0
      %3418 = vmatpush2.msra.mxu0 0.0
      %3419 = vmatprep.subr.mxu0 0.0
      %3420 = vmatpush2.msra.mxu0 0.0
      %3421 = vmatprep.mubr.f32.mxu0 0.0
      %3422 = vmatmul.mubr.f32.gmra.mxu0 %v3250
      %v3423 = vpop.f32.mrf.mxu0
      %v3424 = vadd.f32 0.0, %v3423
      %v3425 = vpop.f32.mrf.mxu0
      %3426 = vmatprep.mubr.f32.mxu0 0.0
      %3427 = vmatmul.mubr.f32.gmra.mxu0 %v3253
      %v3428 = vpop.f32.mrf.mxu0
      %v3429 = vadd.f32 0.0, %v3428
      %v3430 = vpop.f32.mrf.mxu0
      %3431 = vmatprep.mubr.f32.mxu0 0.0
      %3432 = vmatmul.mubr.f32.gmra.mxu0 %v3256
      %v3433 = vpop.f32.mrf.mxu0
      %v3434 = vadd.f32 0.0, %v3433
      %v3435 = vpop.f32.mrf.mxu0
      %3436 = vmatprep.mubr.f32.mxu0 0.0
      %3437 = vmatmul.mubr.f32.gmra.mxu0 %v3259
      %v3438 = vpop.f32.mrf.mxu0
      %v3439 = vadd.f32 0.0, %v3438
      %v3440 = vpop.f32.mrf.mxu0
      %3441 = vmatprep.mubr.f32.mxu0 0.0
      %3442 = vmatmul.mubr.f32.gmra.mxu0 %v3262
      %v3443 = vpop.f32.mrf.mxu0
      %v3444 = vadd.f32 0.0, %v3443
      %v3445 = vpop.f32.mrf.mxu0
      %3446 = vmatprep.mubr.f32.mxu0 0.0
      %3447 = vmatmul.mubr.f32.gmra.mxu0 %v3265
      %v3448 = vpop.f32.mrf.mxu0
      %v3449 = vadd.f32 0.0, %v3448
      %v3450 = vpop.f32.mrf.mxu0
      %3451 = vmatprep.mubr.f32.mxu0 0.0
      %3452 = vmatmul.mubr.f32.gmra.mxu0 %v3268
      %v3453 = vpop.f32.mrf.mxu0
      %v3454 = vadd.f32 0.0, %v3453
      %v3455 = vpop.f32.mrf.mxu0
      %3456 = vmatprep.mubr.f32.mxu0 0.0
      %3457 = vmatmul.mubr.f32.gmra.mxu0 %v3271
      %v3458 = vpop.f32.mrf.mxu0
      %v3459 = vadd.f32 0.0, %v3458
      %v3460 = vpop.f32.mrf.mxu0
      %3461 = vmatprep.mubr.f32.mxu0 0.0
      %3462 = vmatmul.mubr.f32.gmra.mxu0 %v3274
      %v3463 = vpop.f32.mrf.mxu0
      %v3464 = vadd.f32 0.0, %v3463
      %v3465 = vpop.f32.mrf.mxu0
      %3466 = vmatprep.mubr.f32.mxu0 0.0
      %3467 = vmatmul.mubr.f32.gmra.mxu0 %v3277
      %v3468 = vpop.f32.mrf.mxu0
      %v3469 = vadd.f32 0.0, %v3468
      %v3470 = vpop.f32.mrf.mxu0
      %3471 = vmatprep.mubr.f32.mxu0 0.0
      %3472 = vmatmul.mubr.f32.gmra.mxu0 %v3280
      %v3473 = vpop.f32.mrf.mxu0
      %v3474 = vadd.f32 0.0, %v3473
      %v3475 = vpop.f32.mrf.mxu0
      %3476 = vmatprep.mubr.f32.mxu0 0.0
      %3477 = vmatmul.mubr.f32.gmra.mxu0 %v3283
      %v3478 = vpop.f32.mrf.mxu0
      %v3479 = vadd.f32 0.0, %v3478
      %v3480 = vpop.f32.mrf.mxu0
      %3481 = vmatprep.mubr.f32.mxu0 0.0
      %3482 = vmatmul.mubr.f32.gmra.mxu0 %v3286
      %v3483 = vpop.f32.mrf.mxu0
      %v3484 = vadd.f32 0.0, %v3483
      %v3485 = vpop.f32.mrf.mxu0
      %3486 = vmatprep.mubr.f32.mxu0 0.0
      %3487 = vmatmul.mubr.f32.gmra.mxu0 %v3289
      %v3488 = vpop.f32.mrf.mxu0
      %v3489 = vadd.f32 0.0, %v3488
      %v3490 = vpop.f32.mrf.mxu0
      %3491 = vmatprep.mubr.f32.mxu0 0.0
      %3492 = vmatmul.mubr.f32.gmra.mxu0 %v3292
      %v3493 = vpop.f32.mrf.mxu0
      %v3494 = vadd.f32 0.0, %v3493
      %v3495 = vpop.f32.mrf.mxu0
      %3496 = vmatprep.mubr.f32.mxu0 0.0
      %3497 = vmatmul.mubr.f32.gmra.mxu0 %v3295
      %v3498 = vpop.f32.mrf.mxu0
      %v3499 = vadd.f32 0.0, %v3498
      %v3500 = vpop.f32.mrf.mxu0
      %3501 = vmatprep.mubr.f32.mxu0 0.0
      %3502 = vmatmul.mubr.f32.gmra.mxu0 %v3298
      %v3503 = vpop.f32.mrf.mxu0
      %v3504 = vadd.f32 0.0, %v3503
      %v3505 = vpop.f32.mrf.mxu0
      %3506 = vmatprep.mubr.f32.mxu0 0.0
      %3507 = vmatmul.mubr.f32.gmra.mxu0 %v3301
      %v3508 = vpop.f32.mrf.mxu0
      %v3509 = vadd.f32 0.0, %v3508
      %v3510 = vpop.f32.mrf.mxu0
      %3511 = vmatprep.mubr.f32.mxu0 0.0
      %3512 = vmatmul.mubr.f32.gmra.mxu0 %v3304
      %v3513 = vpop.f32.mrf.mxu0
      %v3514 = vadd.f32 0.0, %v3513
      %v3515 = vpop.f32.mrf.mxu0
      %3516 = vmatprep.mubr.f32.mxu0 0.0
      %3517 = vmatmul.mubr.f32.gmra.mxu0 %v3307
      %v3518 = vpop.f32.mrf.mxu0
      %v3519 = vadd.f32 0.0, %v3518
      %v3520 = vpop.f32.mrf.mxu0
      %3521 = vmatprep.mubr.f32.mxu0 0.0
      %3522 = vmatmul.mubr.f32.gmra.mxu0 %v3310
      %v3523 = vpop.f32.mrf.mxu0
      %v3524 = vadd.f32 0.0, %v3523
      %v3525 = vpop.f32.mrf.mxu0
      %3526 = vmatprep.mubr.f32.mxu0 0.0
      %3527 = vmatmul.mubr.f32.gmra.mxu0 %v3313
      %v3528 = vpop.f32.mrf.mxu0
      %v3529 = vadd.f32 0.0, %v3528
      %v3530 = vpop.f32.mrf.mxu0
      %3531 = vmatprep.mubr.f32.mxu0 0.0
      %3532 = vmatmul.mubr.f32.gmra.mxu0 %v3316
      %v3533 = vpop.f32.mrf.mxu0
      %v3534 = vadd.f32 0.0, %v3533
      %v3535 = vpop.f32.mrf.mxu0
      %3536 = vmatprep.mubr.f32.mxu0 0.0
      %3537 = vmatmul.mubr.f32.gmra.mxu0 %v3319
      %v3538 = vpop.f32.mrf.mxu0
      %v3539 = vadd.f32 0.0, %v3538
      %v3540 = vpop.f32.mrf.mxu0
      %3541 = vmatprep.mubr.f32.mxu0 0.0
      %3542 = vmatmul.mubr.f32.gmra.mxu0 %v3322
      %v3543 = vpop.f32.mrf.mxu0
      %v3544 = vadd.f32 0.0, %v3543
      %v3545 = vpop.f32.mrf.mxu0
      %3546 = vmatprep.mubr.f32.mxu0 0.0
      %3547 = vmatmul.mubr.f32.gmra.mxu0 %v3325
      %v3548 = vpop.f32.mrf.mxu0
      %v3549 = vadd.f32 0.0, %v3548
      %v3550 = vpop.f32.mrf.mxu0
      %3551 = vmatprep.mubr.f32.mxu0 0.0
      %3552 = vmatmul.mubr.f32.gmra.mxu0 %v3328
      %v3553 = vpop.f32.mrf.mxu0
      %v3554 = vadd.f32 0.0, %v3553
      %v3555 = vpop.f32.mrf.mxu0
      %3556 = vmatprep.mubr.f32.mxu0 0.0
      %3557 = vmatmul.mubr.f32.gmra.mxu0 %v3331
      %v3558 = vpop.f32.mrf.mxu0
      %v3559 = vadd.f32 0.0, %v3558
      %v3560 = vpop.f32.mrf.mxu0
      %3561 = vmatprep.mubr.f32.mxu0 0.0
      %3562 = vmatmul.mubr.f32.gmra.mxu0 %v3334
      %v3563 = vpop.f32.mrf.mxu0
      %v3564 = vadd.f32 0.0, %v3563
      %v3565 = vpop.f32.mrf.mxu0
      %3566 = vmatprep.mubr.f32.mxu0 0.0
      %3567 = vmatmul.mubr.f32.gmra.mxu0 %v3337
      %v3568 = vpop.f32.mrf.mxu0
      %v3569 = vadd.f32 0.0, %v3568
      %v3570 = vpop.f32.mrf.mxu0
      %3571 = vmatprep.mubr.f32.mxu0 0.0
      %3572 = vmatmul.mubr.f32.gmra.mxu0 %v3340
      %v3573 = vpop.f32.mrf.mxu0
      %v3574 = vadd.f32 0.0, %v3573
      %v3575 = vpop.f32.mrf.mxu0
      %3576 = vmatprep.mubr.f32.mxu0 0.0
      %3577 = vmatmul.mubr.f32.gmra.mxu0 %v3343
      %v3578 = vpop.f32.mrf.mxu0
      %v3579 = vadd.f32 0.0, %v3578
      %v3580 = vpop.f32.mrf.mxu0
      %3581 = vmatprep.mubr.f32.mxu0 0.0
      %3582 = vmatmul.mubr.f32.gmra.mxu0 %v3346
      %v3583 = vpop.f32.mrf.mxu0
      %v3584 = vadd.f32 0.0, %v3583
      %v3585 = vpop.f32.mrf.mxu0
      %3586 = vmatprep.mubr.f32.mxu0 0.0
      %3587 = vmatmul.mubr.f32.gmra.mxu0 %v3349
      %v3588 = vpop.f32.mrf.mxu0
      %v3589 = vadd.f32 0.0, %v3588
      %v3590 = vpop.f32.mrf.mxu0
      %3591 = vmatprep.mubr.f32.mxu0 0.0
      %3592 = vmatmul.mubr.f32.gmra.mxu0 %v3352
      %v3593 = vpop.f32.mrf.mxu0
      %v3594 = vadd.f32 0.0, %v3593
      %v3595 = vpop.f32.mrf.mxu0
      %3596 = vmatprep.mubr.f32.mxu0 0.0
      %3597 = vmatmul.mubr.f32.gmra.mxu0 %v3355
      %v3598 = vpop.f32.mrf.mxu0
      %v3599 = vadd.f32 0.0, %v3598
      %v3600 = vpop.f32.mrf.mxu0
      %3601 = vdwg.mxu0
      %v3602 = vadd.f32 %v3175, %v3424
      %v3603 = vadd.f32 %v3176, %v3429
      %v3604 = vadd.f32 %v3177, %v3434
      %v3605 = vadd.f32 %v3178, %v3439
      %v3606 = vadd.f32 %v3179, %v3444
      %v3607 = vadd.f32 %v3180, %v3449
      %v3608 = vadd.f32 %v3181, %v3454
      %v3609 = vadd.f32 %v3182, %v3459
      %v3610 = vadd.f32 %v3183, %v3464
      %v3611 = vadd.f32 %v3184, %v3469
      %v3612 = vadd.f32 %v3185, %v3474
      %v3613 = vadd.f32 %v3186, %v3479
      %v3614 = vadd.f32 %v3187, %v3484
      %v3615 = vadd.f32 %v3188, %v3489
      %v3616 = vadd.f32 %v3189, %v3494
      %v3617 = vadd.f32 %v3190, %v3499
      %v3618 = vadd.f32 %v3191, %v3504
      %v3619 = vadd.f32 %v3192, %v3509
      %v3620 = vadd.f32 %v3193, %v3514
      %v3621 = vadd.f32 %v3194, %v3519
      %v3622 = vadd.f32 %v3195, %v3524
      %v3623 = vadd.f32 %v3196, %v3529
      %v3624 = vadd.f32 %v3197, %v3534
      %v3625 = vadd.f32 %v3198, %v3539
      %v3626 = vadd.f32 %v3199, %v3544
      %v3627 = vadd.f32 %v3200, %v3549
      %v3628 = vadd.f32 %v3201, %v3554
      %v3629 = vadd.f32 %v3202, %v3559
      %v3630 = vadd.f32 %v3203, %v3564
      %v3631 = vadd.f32 %v3204, %v3569
      %v3632 = vadd.f32 %v3205, %v3574
      %v3633 = vadd.f32 %v3206, %v3579
      %v3634 = vadd.f32 %v3207, %v3584
      %v3635 = vadd.f32 %v3208, %v3589
      %v3636 = vadd.f32 %v3209, %v3594
      %v3637 = vadd.f32 %v3210, %v3599
      %v3638 = vld [vmem:[#allocation2 + $0x26] sm:$0xff]
      %v3639 = vld [vmem:[#allocation2 + $0x2e] sm:$0xff]
      %v3640 = vld [vmem:[#allocation2 + $0x36] sm:$0xff]
      %v3641 = vld [vmem:[#allocation2 + $0x3e] sm:$0xff]
      %v3642 = vld [vmem:[#allocation2 + $0x46] sm:$0xff]
      %v3643 = vld [vmem:[#allocation2 + $0x4e] sm:$0xff]
      %v3644 = vld [vmem:[#allocation2 + $0x56] sm:$0xff]
      %v3645 = vld [vmem:[#allocation2 + $0x5e] sm:$0xff]
      %v3646 = vld [vmem:[#allocation2 + $0x66] sm:$0xff]
      %v3647 = vld [vmem:[#allocation2 + $0x6e] sm:$0xff]
      %v3648 = vld [vmem:[#allocation2 + $0x76] sm:$0xff]
      %v3649 = vld [vmem:[#allocation2 + $0x7e] sm:$0xff]
      %v3650 = vld [vmem:[#allocation2 + $0x86] sm:$0xff]
      %v3651 = vld [vmem:[#allocation2 + $0x8e] sm:$0xff]
      %v3652 = vld [vmem:[#allocation2 + $0x96] sm:$0xff]
      %v3653 = vld [vmem:[#allocation2 + $0x9e] sm:$0xff]
      %v3654 = vld [vmem:[#allocation2 + $0xa6] sm:$0xff]
      %v3655 = vld [vmem:[#allocation2 + $0xae] sm:$0xff]
      %v3656 = vld [vmem:[#allocation2 + $0xb6] sm:$0xff]
      %v3657 = vld [vmem:[#allocation2 + $0xbe] sm:$0xff]
      %v3658 = vld [vmem:[#allocation2 + $0xc6] sm:$0xff]
      %v3659 = vld [vmem:[#allocation2 + $0xce] sm:$0xff]
      %v3660 = vld [vmem:[#allocation2 + $0xd6] sm:$0xff]
      %v3661 = vld [vmem:[#allocation2 + $0xde] sm:$0xff]
      %v3662 = vld [vmem:[#allocation2 + $0xe6] sm:$0xff]
      %v3663 = vld [vmem:[#allocation2 + $0xee] sm:$0xff]
      %v3664 = vld [vmem:[#allocation2 + $0xf6] sm:$0xff]
      %v3665 = vld [vmem:[#allocation2 + $0xfe] sm:$0xff]
      %v3666 = vld [vmem:[#allocation2 + $0x106] sm:$0xff]
      %v3667 = vld [vmem:[#allocation2 + $0x10e] sm:$0xff]
      %v3668 = vld [vmem:[#allocation2 + $0x116] sm:$0xff]
      %v3669 = vld [vmem:[#allocation2 + $0x11e] sm:$0xff]
      %v3670 = vld [vmem:[#allocation2 + $0x126] sm:$0xff]
      %v3671 = vld [vmem:[#allocation2 + $0x12e] sm:$0xff]
      %v3672 = vld [vmem:[#allocation2 + $0x136] sm:$0xff]
      %v3673 = vld [vmem:[#allocation2 + $0x13e] sm:$0xff]
      %s3674 = scalar_lea.vmem %s1, 64
      %v3675 = vld [vmem:[%s3674] sm:$0xff]
      %v3677 = vsel %vm171, %v3638, 0
      %v3680 = vsel %vm171, %v3639, 0
      %v3683 = vsel %vm171, %v3640, 0
      %v3686 = vsel %vm171, %v3641, 0
      %v3689 = vsel %vm171, %v3642, 0
      %v3692 = vsel %vm171, %v3643, 0
      %v3695 = vsel %vm171, %v3644, 0
      %v3698 = vsel %vm171, %v3645, 0
      %v3701 = vsel %vm171, %v3646, 0
      %v3704 = vsel %vm171, %v3647, 0
      %v3707 = vsel %vm171, %v3648, 0
      %v3710 = vsel %vm171, %v3649, 0
      %v3713 = vsel %vm171, %v3650, 0
      %v3716 = vsel %vm171, %v3651, 0
      %v3719 = vsel %vm171, %v3652, 0
      %v3722 = vsel %vm171, %v3653, 0
      %v3725 = vsel %vm171, %v3654, 0
      %v3728 = vsel %vm171, %v3655, 0
      %v3731 = vsel %vm171, %v3656, 0
      %v3734 = vsel %vm171, %v3657, 0
      %v3737 = vsel %vm171, %v3658, 0
      %v3740 = vsel %vm171, %v3659, 0
      %v3743 = vsel %vm171, %v3660, 0
      %v3746 = vsel %vm171, %v3661, 0
      %v3749 = vsel %vm171, %v3662, 0
      %v3752 = vsel %vm171, %v3663, 0
      %v3755 = vsel %vm171, %v3664, 0
      %v3758 = vsel %vm171, %v3665, 0
      %v3761 = vsel %vm171, %v3666, 0
      %v3764 = vsel %vm171, %v3667, 0
      %v3767 = vsel %vm171, %v3668, 0
      %v3770 = vsel %vm171, %v3669, 0
      %v3773 = vsel %vm171, %v3670, 0
      %v3776 = vsel %vm171, %v3671, 0
      %v3779 = vsel %vm171, %v3672, 0
      %v3782 = vsel %vm171, %v3673, 0
      %3784 = vmatprep.subr.mxu0 0.0
      %3785 = vmatpush1.msra.mxu0 0.0
      %3786 = vmatprep.subr.mxu0 0.0
      %3787 = vmatpush1.msra.mxu0 0.0
      %3788 = vmatprep.subr.mxu0 0.0
      %3789 = vmatpush1.msra.mxu0 0.0
      %3790 = vmatprep.subr.mxu0 0.0
      %3791 = vmatpush1.msra.mxu0 0.0
      %3792 = vmatprep.subr.mxu0 0.0
      %3793 = vmatpush1.msra.mxu0 0.0
      %3794 = vmatprep.subr.mxu0 0.0
      %3795 = vmatpush1.msra.mxu0 0.0
      %3796 = vmatprep.subr.mxu0 0.0
      %3797 = vmatpush1.msra.mxu0 0.0
      %3798 = vmatprep.subr.mxu0 0.0
      %3799 = vmatpush1.msra.mxu0 0.0
      %3800 = vmatprep.subr.mxu0 0.0
      %3801 = vmatpush1.msra.mxu0 0.0
      %3802 = vmatprep.subr.mxu0 0.0
      %3803 = vmatpush1.msra.mxu0 0.0
      %3804 = vmatprep.subr.mxu0 0.0
      %3805 = vmatpush1.msra.mxu0 0.0
      %3806 = vmatprep.subr.mxu0 0.0
      %3807 = vmatpush1.msra.mxu0 0.0
      %3808 = vmatprep.subr.mxu0 0.0
      %3809 = vmatpush1.msra.mxu0 0.0
      %3810 = vmatprep.subr.mxu0 0.0
      %3811 = vmatpush1.msra.mxu0 0.0
      %3812 = vmatprep.subr.mxu0 0.0
      %3813 = vmatpush1.msra.mxu0 0.0
      %3814 = vmatprep.subr.mxu0 0.0
      %3815 = vmatpush1.msra.mxu0 %v3675
      %3816 = vmatprep.subr.mxu0 0.0
      %3817 = vmatpush2.msra.mxu0 0.0
      %3818 = vmatprep.subr.mxu0 0.0
      %3819 = vmatpush2.msra.mxu0 0.0
      %3820 = vmatprep.subr.mxu0 0.0
      %3821 = vmatpush2.msra.mxu0 0.0
      %3822 = vmatprep.subr.mxu0 0.0
      %3823 = vmatpush2.msra.mxu0 0.0
      %3824 = vmatprep.subr.mxu0 0.0
      %3825 = vmatpush2.msra.mxu0 0.0
      %3826 = vmatprep.subr.mxu0 0.0
      %3827 = vmatpush2.msra.mxu0 0.0
      %3828 = vmatprep.subr.mxu0 0.0
      %3829 = vmatpush2.msra.mxu0 0.0
      %3830 = vmatprep.subr.mxu0 0.0
      %3831 = vmatpush2.msra.mxu0 0.0
      %3832 = vmatprep.subr.mxu0 0.0
      %3833 = vmatpush2.msra.mxu0 0.0
      %3834 = vmatprep.subr.mxu0 0.0
      %3835 = vmatpush2.msra.mxu0 0.0
      %3836 = vmatprep.subr.mxu0 0.0
      %3837 = vmatpush2.msra.mxu0 0.0
      %3838 = vmatprep.subr.mxu0 0.0
      %3839 = vmatpush2.msra.mxu0 0.0
      %3840 = vmatprep.subr.mxu0 0.0
      %3841 = vmatpush2.msra.mxu0 0.0
      %3842 = vmatprep.subr.mxu0 0.0
      %3843 = vmatpush2.msra.mxu0 0.0
      %3844 = vmatprep.subr.mxu0 0.0
      %3845 = vmatpush2.msra.mxu0 0.0
      %3846 = vmatprep.subr.mxu0 0.0
      %3847 = vmatpush2.msra.mxu0 0.0
      %3848 = vmatprep.mubr.f32.mxu0 0.0
      %3849 = vmatmul.mubr.f32.gmra.mxu0 %v3677
      %v3850 = vpop.f32.mrf.mxu0
      %v3851 = vadd.f32 0.0, %v3850
      %v3852 = vpop.f32.mrf.mxu0
      %3853 = vmatprep.mubr.f32.mxu0 0.0
      %3854 = vmatmul.mubr.f32.gmra.mxu0 %v3680
      %v3855 = vpop.f32.mrf.mxu0
      %v3856 = vadd.f32 0.0, %v3855
      %v3857 = vpop.f32.mrf.mxu0
      %3858 = vmatprep.mubr.f32.mxu0 0.0
      %3859 = vmatmul.mubr.f32.gmra.mxu0 %v3683
      %v3860 = vpop.f32.mrf.mxu0
      %v3861 = vadd.f32 0.0, %v3860
      %v3862 = vpop.f32.mrf.mxu0
      %3863 = vmatprep.mubr.f32.mxu0 0.0
      %3864 = vmatmul.mubr.f32.gmra.mxu0 %v3686
      %v3865 = vpop.f32.mrf.mxu0
      %v3866 = vadd.f32 0.0, %v3865
      %v3867 = vpop.f32.mrf.mxu0
      %3868 = vmatprep.mubr.f32.mxu0 0.0
      %3869 = vmatmul.mubr.f32.gmra.mxu0 %v3689
      %v3870 = vpop.f32.mrf.mxu0
      %v3871 = vadd.f32 0.0, %v3870
      %v3872 = vpop.f32.mrf.mxu0
      %3873 = vmatprep.mubr.f32.mxu0 0.0
      %3874 = vmatmul.mubr.f32.gmra.mxu0 %v3692
      %v3875 = vpop.f32.mrf.mxu0
      %v3876 = vadd.f32 0.0, %v3875
      %v3877 = vpop.f32.mrf.mxu0
      %3878 = vmatprep.mubr.f32.mxu0 0.0
      %3879 = vmatmul.mubr.f32.gmra.mxu0 %v3695
      %v3880 = vpop.f32.mrf.mxu0
      %v3881 = vadd.f32 0.0, %v3880
      %v3882 = vpop.f32.mrf.mxu0
      %3883 = vmatprep.mubr.f32.mxu0 0.0
      %3884 = vmatmul.mubr.f32.gmra.mxu0 %v3698
      %v3885 = vpop.f32.mrf.mxu0
      %v3886 = vadd.f32 0.0, %v3885
      %v3887 = vpop.f32.mrf.mxu0
      %3888 = vmatprep.mubr.f32.mxu0 0.0
      %3889 = vmatmul.mubr.f32.gmra.mxu0 %v3701
      %v3890 = vpop.f32.mrf.mxu0
      %v3891 = vadd.f32 0.0, %v3890
      %v3892 = vpop.f32.mrf.mxu0
      %3893 = vmatprep.mubr.f32.mxu0 0.0
      %3894 = vmatmul.mubr.f32.gmra.mxu0 %v3704
      %v3895 = vpop.f32.mrf.mxu0
      %v3896 = vadd.f32 0.0, %v3895
      %v3897 = vpop.f32.mrf.mxu0
      %3898 = vmatprep.mubr.f32.mxu0 0.0
      %3899 = vmatmul.mubr.f32.gmra.mxu0 %v3707
      %v3900 = vpop.f32.mrf.mxu0
      %v3901 = vadd.f32 0.0, %v3900
      %v3902 = vpop.f32.mrf.mxu0
      %3903 = vmatprep.mubr.f32.mxu0 0.0
      %3904 = vmatmul.mubr.f32.gmra.mxu0 %v3710
      %v3905 = vpop.f32.mrf.mxu0
      %v3906 = vadd.f32 0.0, %v3905
      %v3907 = vpop.f32.mrf.mxu0
      %3908 = vmatprep.mubr.f32.mxu0 0.0
      %3909 = vmatmul.mubr.f32.gmra.mxu0 %v3713
      %v3910 = vpop.f32.mrf.mxu0
      %v3911 = vadd.f32 0.0, %v3910
      %v3912 = vpop.f32.mrf.mxu0
      %3913 = vmatprep.mubr.f32.mxu0 0.0
      %3914 = vmatmul.mubr.f32.gmra.mxu0 %v3716
      %v3915 = vpop.f32.mrf.mxu0
      %v3916 = vadd.f32 0.0, %v3915
      %v3917 = vpop.f32.mrf.mxu0
      %3918 = vmatprep.mubr.f32.mxu0 0.0
      %3919 = vmatmul.mubr.f32.gmra.mxu0 %v3719
      %v3920 = vpop.f32.mrf.mxu0
      %v3921 = vadd.f32 0.0, %v3920
      %v3922 = vpop.f32.mrf.mxu0
      %3923 = vmatprep.mubr.f32.mxu0 0.0
      %3924 = vmatmul.mubr.f32.gmra.mxu0 %v3722
      %v3925 = vpop.f32.mrf.mxu0
      %v3926 = vadd.f32 0.0, %v3925
      %v3927 = vpop.f32.mrf.mxu0
      %3928 = vmatprep.mubr.f32.mxu0 0.0
      %3929 = vmatmul.mubr.f32.gmra.mxu0 %v3725
      %v3930 = vpop.f32.mrf.mxu0
      %v3931 = vadd.f32 0.0, %v3930
      %v3932 = vpop.f32.mrf.mxu0
      %3933 = vmatprep.mubr.f32.mxu0 0.0
      %3934 = vmatmul.mubr.f32.gmra.mxu0 %v3728
      %v3935 = vpop.f32.mrf.mxu0
      %v3936 = vadd.f32 0.0, %v3935
      %v3937 = vpop.f32.mrf.mxu0
      %3938 = vmatprep.mubr.f32.mxu0 0.0
      %3939 = vmatmul.mubr.f32.gmra.mxu0 %v3731
      %v3940 = vpop.f32.mrf.mxu0
      %v3941 = vadd.f32 0.0, %v3940
      %v3942 = vpop.f32.mrf.mxu0
      %3943 = vmatprep.mubr.f32.mxu0 0.0
      %3944 = vmatmul.mubr.f32.gmra.mxu0 %v3734
      %v3945 = vpop.f32.mrf.mxu0
      %v3946 = vadd.f32 0.0, %v3945
      %v3947 = vpop.f32.mrf.mxu0
      %3948 = vmatprep.mubr.f32.mxu0 0.0
      %3949 = vmatmul.mubr.f32.gmra.mxu0 %v3737
      %v3950 = vpop.f32.mrf.mxu0
      %v3951 = vadd.f32 0.0, %v3950
      %v3952 = vpop.f32.mrf.mxu0
      %3953 = vmatprep.mubr.f32.mxu0 0.0
      %3954 = vmatmul.mubr.f32.gmra.mxu0 %v3740
      %v3955 = vpop.f32.mrf.mxu0
      %v3956 = vadd.f32 0.0, %v3955
      %v3957 = vpop.f32.mrf.mxu0
      %3958 = vmatprep.mubr.f32.mxu0 0.0
      %3959 = vmatmul.mubr.f32.gmra.mxu0 %v3743
      %v3960 = vpop.f32.mrf.mxu0
      %v3961 = vadd.f32 0.0, %v3960
      %v3962 = vpop.f32.mrf.mxu0
      %3963 = vmatprep.mubr.f32.mxu0 0.0
      %3964 = vmatmul.mubr.f32.gmra.mxu0 %v3746
      %v3965 = vpop.f32.mrf.mxu0
      %v3966 = vadd.f32 0.0, %v3965
      %v3967 = vpop.f32.mrf.mxu0
      %3968 = vmatprep.mubr.f32.mxu0 0.0
      %3969 = vmatmul.mubr.f32.gmra.mxu0 %v3749
      %v3970 = vpop.f32.mrf.mxu0
      %v3971 = vadd.f32 0.0, %v3970
      %v3972 = vpop.f32.mrf.mxu0
      %3973 = vmatprep.mubr.f32.mxu0 0.0
      %3974 = vmatmul.mubr.f32.gmra.mxu0 %v3752
      %v3975 = vpop.f32.mrf.mxu0
      %v3976 = vadd.f32 0.0, %v3975
      %v3977 = vpop.f32.mrf.mxu0
      %3978 = vmatprep.mubr.f32.mxu0 0.0
      %3979 = vmatmul.mubr.f32.gmra.mxu0 %v3755
      %v3980 = vpop.f32.mrf.mxu0
      %v3981 = vadd.f32 0.0, %v3980
      %v3982 = vpop.f32.mrf.mxu0
      %3983 = vmatprep.mubr.f32.mxu0 0.0
      %3984 = vmatmul.mubr.f32.gmra.mxu0 %v3758
      %v3985 = vpop.f32.mrf.mxu0
      %v3986 = vadd.f32 0.0, %v3985
      %v3987 = vpop.f32.mrf.mxu0
      %3988 = vmatprep.mubr.f32.mxu0 0.0
      %3989 = vmatmul.mubr.f32.gmra.mxu0 %v3761
      %v3990 = vpop.f32.mrf.mxu0
      %v3991 = vadd.f32 0.0, %v3990
      %v3992 = vpop.f32.mrf.mxu0
      %3993 = vmatprep.mubr.f32.mxu0 0.0
      %3994 = vmatmul.mubr.f32.gmra.mxu0 %v3764
      %v3995 = vpop.f32.mrf.mxu0
      %v3996 = vadd.f32 0.0, %v3995
      %v3997 = vpop.f32.mrf.mxu0
      %3998 = vmatprep.mubr.f32.mxu0 0.0
      %3999 = vmatmul.mubr.f32.gmra.mxu0 %v3767
      %v4000 = vpop.f32.mrf.mxu0
      %v4001 = vadd.f32 0.0, %v4000
      %v4002 = vpop.f32.mrf.mxu0
      %4003 = vmatprep.mubr.f32.mxu0 0.0
      %4004 = vmatmul.mubr.f32.gmra.mxu0 %v3770
      %v4005 = vpop.f32.mrf.mxu0
      %v4006 = vadd.f32 0.0, %v4005
      %v4007 = vpop.f32.mrf.mxu0
      %4008 = vmatprep.mubr.f32.mxu0 0.0
      %4009 = vmatmul.mubr.f32.gmra.mxu0 %v3773
      %v4010 = vpop.f32.mrf.mxu0
      %v4011 = vadd.f32 0.0, %v4010
      %v4012 = vpop.f32.mrf.mxu0
      %4013 = vmatprep.mubr.f32.mxu0 0.0
      %4014 = vmatmul.mubr.f32.gmra.mxu0 %v3776
      %v4015 = vpop.f32.mrf.mxu0
      %v4016 = vadd.f32 0.0, %v4015
      %v4017 = vpop.f32.mrf.mxu0
      %4018 = vmatprep.mubr.f32.mxu0 0.0
      %4019 = vmatmul.mubr.f32.gmra.mxu0 %v3779
      %v4020 = vpop.f32.mrf.mxu0
      %v4021 = vadd.f32 0.0, %v4020
      %v4022 = vpop.f32.mrf.mxu0
      %4023 = vmatprep.mubr.f32.mxu0 0.0
      %4024 = vmatmul.mubr.f32.gmra.mxu0 %v3782
      %v4025 = vpop.f32.mrf.mxu0
      %v4026 = vadd.f32 0.0, %v4025
      %v4027 = vpop.f32.mrf.mxu0
      %4028 = vdwg.mxu0
      %v4029 = vadd.f32 %v3602, %v3851
      %v4030 = vadd.f32 %v3603, %v3856
      %v4031 = vadd.f32 %v3604, %v3861
      %v4032 = vadd.f32 %v3605, %v3866
      %v4033 = vadd.f32 %v3606, %v3871
      %v4034 = vadd.f32 %v3607, %v3876
      %v4035 = vadd.f32 %v3608, %v3881
      %v4036 = vadd.f32 %v3609, %v3886
      %v4037 = vadd.f32 %v3610, %v3891
      %v4038 = vadd.f32 %v3611, %v3896
      %v4039 = vadd.f32 %v3612, %v3901
      %v4040 = vadd.f32 %v3613, %v3906
      %v4041 = vadd.f32 %v3614, %v3911
      %v4042 = vadd.f32 %v3615, %v3916
      %v4043 = vadd.f32 %v3616, %v3921
      %v4044 = vadd.f32 %v3617, %v3926
      %v4045 = vadd.f32 %v3618, %v3931
      %v4046 = vadd.f32 %v3619, %v3936
      %v4047 = vadd.f32 %v3620, %v3941
      %v4048 = vadd.f32 %v3621, %v3946
      %v4049 = vadd.f32 %v3622, %v3951
      %v4050 = vadd.f32 %v3623, %v3956
      %v4051 = vadd.f32 %v3624, %v3961
      %v4052 = vadd.f32 %v3625, %v3966
      %v4053 = vadd.f32 %v3626, %v3971
      %v4054 = vadd.f32 %v3627, %v3976
      %v4055 = vadd.f32 %v3628, %v3981
      %v4056 = vadd.f32 %v3629, %v3986
      %v4057 = vadd.f32 %v3630, %v3991
      %v4058 = vadd.f32 %v3631, %v3996
      %v4059 = vadd.f32 %v3632, %v4001
      %v4060 = vadd.f32 %v3633, %v4006
      %v4061 = vadd.f32 %v3634, %v4011
      %v4062 = vadd.f32 %v3635, %v4016
      %v4063 = vadd.f32 %v3636, %v4021
      %v4064 = vadd.f32 %v3637, %v4026
      %v4065 = vmul.f32 %v4029, %v4029
      %v4066 = vmul.f32 %v4030, %v4030
      %v4067 = vmul.f32 %v4031, %v4031
      %v4068 = vmul.f32 %v4032, %v4032
      %v4069 = vmul.f32 %v4033, %v4033
      %v4070 = vmul.f32 %v4034, %v4034
      %v4071 = vmul.f32 %v4035, %v4035
      %v4072 = vmul.f32 %v4036, %v4036
      %v4073 = vmul.f32 %v4037, %v4037
      %v4074 = vmul.f32 %v4038, %v4038
      %v4075 = vmul.f32 %v4039, %v4039
      %v4076 = vmul.f32 %v4040, %v4040
      %v4077 = vmul.f32 %v4041, %v4041
      %v4078 = vmul.f32 %v4042, %v4042
      %v4079 = vmul.f32 %v4043, %v4043
      %v4080 = vmul.f32 %v4044, %v4044
      %v4081 = vmul.f32 %v4045, %v4045
      %v4082 = vmul.f32 %v4046, %v4046
      %v4083 = vmul.f32 %v4047, %v4047
      %v4084 = vmul.f32 %v4048, %v4048
      %v4085 = vmul.f32 %v4049, %v4049
      %v4086 = vmul.f32 %v4050, %v4050
      %v4087 = vmul.f32 %v4051, %v4051
      %v4088 = vmul.f32 %v4052, %v4052
      %v4089 = vmul.f32 %v4053, %v4053
      %v4090 = vmul.f32 %v4054, %v4054
      %v4091 = vmul.f32 %v4055, %v4055
      %v4092 = vmul.f32 %v4056, %v4056
      %v4093 = vmul.f32 %v4057, %v4057
      %v4094 = vmul.f32 %v4058, %v4058
      %v4095 = vmul.f32 %v4059, %v4059
      %v4096 = vmul.f32 %v4060, %v4060
      %v4097 = vmul.f32 %v4061, %v4061
      %v4098 = vmul.f32 %v4062, %v4062
      %v4099 = vmul.f32 %v4063, %v4063
      %v4100 = vmul.f32 %v4064, %v4064
      %v4101 = vadd.f32 %v4065, 1.0
      %v4102 = vadd.f32 %v4066, 1.0
      %v4103 = vadd.f32 %v4067, 1.0
      %v4104 = vadd.f32 %v4068, 1.0
      %v4105 = vadd.f32 %v4069, 1.0
      %v4106 = vadd.f32 %v4070, 1.0
      %v4107 = vadd.f32 %v4071, 1.0
      %v4108 = vadd.f32 %v4072, 1.0
      %v4109 = vadd.f32 %v4073, 1.0
      %v4110 = vadd.f32 %v4074, 1.0
      %v4111 = vadd.f32 %v4075, 1.0
      %v4112 = vadd.f32 %v4076, 1.0
      %v4113 = vadd.f32 %v4077, 1.0
      %v4114 = vadd.f32 %v4078, 1.0
      %v4115 = vadd.f32 %v4079, 1.0
      %v4116 = vadd.f32 %v4080, 1.0
      %v4117 = vadd.f32 %v4081, 1.0
      %v4118 = vadd.f32 %v4082, 1.0
      %v4119 = vadd.f32 %v4083, 1.0
      %v4120 = vadd.f32 %v4084, 1.0
      %v4121 = vadd.f32 %v4085, 1.0
      %v4122 = vadd.f32 %v4086, 1.0
      %v4123 = vadd.f32 %v4087, 1.0
      %v4124 = vadd.f32 %v4088, 1.0
      %v4125 = vadd.f32 %v4089, 1.0
      %v4126 = vadd.f32 %v4090, 1.0
      %v4127 = vadd.f32 %v4091, 1.0
      %v4128 = vadd.f32 %v4092, 1.0
      %v4129 = vadd.f32 %v4093, 1.0
      %v4130 = vadd.f32 %v4094, 1.0
      %v4131 = vadd.f32 %v4095, 1.0
      %v4132 = vadd.f32 %v4096, 1.0
      %v4133 = vadd.f32 %v4097, 1.0
      %v4134 = vadd.f32 %v4098, 1.0
      %v4135 = vadd.f32 %v4099, 1.0
      %v4136 = vadd.f32 %v4100, 1.0
      %v4137 = vlog2.pop %v4101
      %v4138 = vmul.f32 %v4137, 0.6931472
      %v4139 = vlog2.pop %v4102
      %v4140 = vmul.f32 %v4139, 0.6931472
      %v4141 = vlog2.pop %v4103
      %v4142 = vmul.f32 %v4141, 0.6931472
      %v4143 = vlog2.pop %v4104
      %v4144 = vmul.f32 %v4143, 0.6931472
      %v4145 = vlog2.pop %v4105
      %v4146 = vmul.f32 %v4145, 0.6931472
      %v4147 = vlog2.pop %v4106
      %v4148 = vmul.f32 %v4147, 0.6931472
      %v4149 = vlog2.pop %v4107
      %v4150 = vmul.f32 %v4149, 0.6931472
      %v4151 = vlog2.pop %v4108
      %v4152 = vmul.f32 %v4151, 0.6931472
      %v4153 = vlog2.pop %v4109
      %v4154 = vmul.f32 %v4153, 0.6931472
      %v4155 = vlog2.pop %v4110
      %v4156 = vmul.f32 %v4155, 0.6931472
      %v4157 = vlog2.pop %v4111
      %v4158 = vmul.f32 %v4157, 0.6931472
      %v4159 = vlog2.pop %v4112
      %v4160 = vmul.f32 %v4159, 0.6931472
      %v4161 = vlog2.pop %v4113
      %v4162 = vmul.f32 %v4161, 0.6931472
      %v4163 = vlog2.pop %v4114
      %v4164 = vmul.f32 %v4163, 0.6931472
      %v4165 = vlog2.pop %v4115
      %v4166 = vmul.f32 %v4165, 0.6931472
      %v4167 = vlog2.pop %v4116
      %v4168 = vmul.f32 %v4167, 0.6931472
      %v4169 = vlog2.pop %v4117
      %v4170 = vmul.f32 %v4169, 0.6931472
      %v4171 = vlog2.pop %v4118
      %v4172 = vmul.f32 %v4171, 0.6931472
      %v4173 = vlog2.pop %v4119
      %v4174 = vmul.f32 %v4173, 0.6931472
      %v4175 = vlog2.pop %v4120
      %v4176 = vmul.f32 %v4175, 0.6931472
      %v4177 = vlog2.pop %v4121
      %v4178 = vmul.f32 %v4177, 0.6931472
      %v4179 = vlog2.pop %v4122
      %v4180 = vmul.f32 %v4179, 0.6931472
      %v4181 = vlog2.pop %v4123
      %v4182 = vmul.f32 %v4181, 0.6931472
      %v4183 = vlog2.pop %v4124
      %v4184 = vmul.f32 %v4183, 0.6931472
      %v4185 = vlog2.pop %v4125
      %v4186 = vmul.f32 %v4185, 0.6931472
      %v4187 = vlog2.pop %v4126
      %v4188 = vmul.f32 %v4187, 0.6931472
      %v4189 = vlog2.pop %v4127
      %v4190 = vmul.f32 %v4189, 0.6931472
      %v4191 = vlog2.pop %v4128
      %v4192 = vmul.f32 %v4191, 0.6931472
      %v4193 = vlog2.pop %v4129
      %v4194 = vmul.f32 %v4193, 0.6931472
      %v4195 = vlog2.pop %v4130
      %v4196 = vmul.f32 %v4195, 0.6931472
      %v4197 = vlog2.pop %v4131
      %v4198 = vmul.f32 %v4197, 0.6931472
      %v4199 = vlog2.pop %v4132
      %v4200 = vmul.f32 %v4199, 0.6931472
      %v4201 = vlog2.pop %v4133
      %v4202 = vmul.f32 %v4201, 0.6931472
      %v4203 = vlog2.pop %v4134
      %v4204 = vmul.f32 %v4203, 0.6931472
      %v4205 = vlog2.pop %v4135
      %v4206 = vmul.f32 %v4205, 0.6931472
      %v4207 = vlog2.pop %v4136
      %v4208 = vmul.f32 %v4207, 0.6931472
      %v4209 = vmul.f32 %v4138, 0.5
      %v4210 = vmul.f32 %v4140, 0.5
      %v4211 = vmul.f32 %v4142, 0.5
      %v4212 = vmul.f32 %v4144, 0.5
      %v4213 = vmul.f32 %v4146, 0.5
      %v4214 = vmul.f32 %v4148, 0.5
      %v4215 = vmul.f32 %v4150, 0.5
      %v4216 = vmul.f32 %v4152, 0.5
      %v4217 = vmul.f32 %v4154, 0.5
      %v4218 = vmul.f32 %v4156, 0.5
      %v4219 = vmul.f32 %v4158, 0.5
      %v4220 = vmul.f32 %v4160, 0.5
      %v4221 = vmul.f32 %v4162, 0.5
      %v4222 = vmul.f32 %v4164, 0.5
      %v4223 = vmul.f32 %v4166, 0.5
      %v4224 = vmul.f32 %v4168, 0.5
      %v4225 = vmul.f32 %v4170, 0.5
      %v4226 = vmul.f32 %v4172, 0.5
      %v4227 = vmul.f32 %v4174, 0.5
      %v4228 = vmul.f32 %v4176, 0.5
      %v4229 = vmul.f32 %v4178, 0.5
      %v4230 = vmul.f32 %v4180, 0.5
      %v4231 = vmul.f32 %v4182, 0.5
      %v4232 = vmul.f32 %v4184, 0.5
      %v4233 = vmul.f32 %v4186, 0.5
      %v4234 = vmul.f32 %v4188, 0.5
      %v4235 = vmul.f32 %v4190, 0.5
      %v4236 = vmul.f32 %v4192, 0.5
      %v4237 = vmul.f32 %v4194, 0.5
      %v4238 = vmul.f32 %v4196, 0.5
      %v4239 = vmul.f32 %v4198, 0.5
      %v4240 = vmul.f32 %v4200, 0.5
      %v4241 = vmul.f32 %v4202, 0.5
      %v4242 = vmul.f32 %v4204, 0.5
      %v4243 = vmul.f32 %v4206, 0.5
      %v4244 = vmul.f32 %v4208, 0.5
      %v4245 = vlaneseq
      %v4246 = vshrl.u32 %v4245, 7
      %v4247 = vadd.s32 %v4246, 8
      %v4248 = vadd.s32 %v4246, 16
      %v4249 = vadd.s32 %v4246, 24
      %v4250 = vadd.s32 %v4246, 32
      %v4251 = vadd.s32 %v4246, 40
      %v4252 = vadd.s32 %v4246, 48
      %v4253 = vadd.s32 %v4246, 56
      %v4254 = vadd.s32 %v4246, 64
      %v4255 = vadd.s32 %v4246, 72
      %v4256 = vadd.s32 %v4246, 80
      %v4257 = vadd.s32 %v4246, 88
      %v4258 = vadd.s32 %v4246, 96
      %v4259 = vadd.s32 %v4246, 104
      %v4260 = vadd.s32 %v4246, 112
      %v4261 = vadd.s32 %v4246, 120
      %v4262 = vadd.s32 %v4246, 128
      %v4263 = vadd.s32 %v4246, 136
      %v4264 = vadd.s32 %v4246, 144
      %v4265 = vadd.s32 %v4246, 152
      %v4266 = vadd.s32 %v4246, 160
      %v4267 = vadd.s32 %v4246, 168
      %v4268 = vadd.s32 %v4246, 176
      %v4269 = vadd.s32 %v4246, 184
      %v4270 = vadd.s32 %v4246, 192
      %v4271 = vadd.s32 %v4246, 200
      %v4272 = vadd.s32 %v4246, 208
      %v4273 = vadd.s32 %v4246, 216
      %v4274 = vadd.s32 %v4246, 224
      %v4275 = vadd.s32 %v4246, 232
      %v4276 = vadd.s32 %v4246, 240
      %v4277 = vadd.s32 %v4246, 248
      %v4278 = vadd.s32 %v4246, 256
      %v4279 = vadd.s32 %v4246, 264
      %v4280 = vadd.s32 %v4246, 272
      %v4281 = vadd.s32 %v4246, 280
      %vm4282 = vcmp.lt.s32.totalorder %v4246, 0
      %v4283 = vsub.s32 0, %v4246
      %v4284 = vsel %vm4282, %v4283, %v4246
      %v4285 = vmul.u32.u64.compose %v4284, 3817748708
      %v4286 = vextract.low.u32 %v4285
      %v4287 = vextract.high.u32 %v4285
      %v4288 = vshrl.u32 %v4287, 4
      %v4289 = vmul.u32 %v4288, 18
      %v4290 = vsub.s32 %v4284, %v4289
      %v4291 = vsub.s32 0, %v4290
      %v4292 = vsel %vm4282, %v4291, %v4290
      %vm4293 = vcmp.lt.s32.totalorder %v4247, 0
      %v4294 = vsub.s32 0, %v4247
      %v4295 = vsel %vm4293, %v4294, %v4247
      %v4296 = vmul.u32.u64.compose %v4295, 3817748708
      %v4297 = vextract.low.u32 %v4296
      %v4298 = vextract.high.u32 %v4296
      %v4299 = vshrl.u32 %v4298, 4
      %v4300 = vmul.u32 %v4299, 18
      %v4301 = vsub.s32 %v4295, %v4300
      %v4302 = vsub.s32 0, %v4301
      %v4303 = vsel %vm4293, %v4302, %v4301
      %vm4304 = vcmp.lt.s32.totalorder %v4248, 0
      %v4305 = vsub.s32 0, %v4248
      %v4306 = vsel %vm4304, %v4305, %v4248
      %v4307 = vmul.u32.u64.compose %v4306, 3817748708
      %v4308 = vextract.low.u32 %v4307
      %v4309 = vextract.high.u32 %v4307
      %v4310 = vshrl.u32 %v4309, 4
      %v4311 = vmul.u32 %v4310, 18
      %v4312 = vsub.s32 %v4306, %v4311
      %v4313 = vsub.s32 0, %v4312
      %v4314 = vsel %vm4304, %v4313, %v4312
      %vm4315 = vcmp.lt.s32.totalorder %v4249, 0
      %v4316 = vsub.s32 0, %v4249
      %v4317 = vsel %vm4315, %v4316, %v4249
      %v4318 = vmul.u32.u64.compose %v4317, 3817748708
      %v4319 = vextract.low.u32 %v4318
      %v4320 = vextract.high.u32 %v4318
      %v4321 = vshrl.u32 %v4320, 4
      %v4322 = vmul.u32 %v4321, 18
      %v4323 = vsub.s32 %v4317, %v4322
      %v4324 = vsub.s32 0, %v4323
      %v4325 = vsel %vm4315, %v4324, %v4323
      %vm4326 = vcmp.lt.s32.totalorder %v4250, 0
      %v4327 = vsub.s32 0, %v4250
      %v4328 = vsel %vm4326, %v4327, %v4250
      %v4329 = vmul.u32.u64.compose %v4328, 3817748708
      %v4330 = vextract.low.u32 %v4329
      %v4331 = vextract.high.u32 %v4329
      %v4332 = vshrl.u32 %v4331, 4
      %v4333 = vmul.u32 %v4332, 18
      %v4334 = vsub.s32 %v4328, %v4333
      %v4335 = vsub.s32 0, %v4334
      %v4336 = vsel %vm4326, %v4335, %v4334
      %vm4337 = vcmp.lt.s32.totalorder %v4251, 0
      %v4338 = vsub.s32 0, %v4251
      %v4339 = vsel %vm4337, %v4338, %v4251
      %v4340 = vmul.u32.u64.compose %v4339, 3817748708
      %v4341 = vextract.low.u32 %v4340
      %v4342 = vextract.high.u32 %v4340
      %v4343 = vshrl.u32 %v4342, 4
      %v4344 = vmul.u32 %v4343, 18
      %v4345 = vsub.s32 %v4339, %v4344
      %v4346 = vsub.s32 0, %v4345
      %v4347 = vsel %vm4337, %v4346, %v4345
      %vm4348 = vcmp.lt.s32.totalorder %v4252, 0
      %v4349 = vsub.s32 0, %v4252
      %v4350 = vsel %vm4348, %v4349, %v4252
      %v4351 = vmul.u32.u64.compose %v4350, 3817748708
      %v4352 = vextract.low.u32 %v4351
      %v4353 = vextract.high.u32 %v4351
      %v4354 = vshrl.u32 %v4353, 4
      %v4355 = vmul.u32 %v4354, 18
      %v4356 = vsub.s32 %v4350, %v4355
      %v4357 = vsub.s32 0, %v4356
      %v4358 = vsel %vm4348, %v4357, %v4356
      %vm4359 = vcmp.lt.s32.totalorder %v4253, 0
      %v4360 = vsub.s32 0, %v4253
      %v4361 = vsel %vm4359, %v4360, %v4253
      %v4362 = vmul.u32.u64.compose %v4361, 3817748708
      %v4363 = vextract.low.u32 %v4362
      %v4364 = vextract.high.u32 %v4362
      %v4365 = vshrl.u32 %v4364, 4
      %v4366 = vmul.u32 %v4365, 18
      %v4367 = vsub.s32 %v4361, %v4366
      %v4368 = vsub.s32 0, %v4367
      %v4369 = vsel %vm4359, %v4368, %v4367
      %vm4370 = vcmp.lt.s32.totalorder %v4254, 0
      %v4371 = vsub.s32 0, %v4254
      %v4372 = vsel %vm4370, %v4371, %v4254
      %v4373 = vmul.u32.u64.compose %v4372, 3817748708
      %v4374 = vextract.low.u32 %v4373
      %v4375 = vextract.high.u32 %v4373
      %v4376 = vshrl.u32 %v4375, 4
      %v4377 = vmul.u32 %v4376, 18
      %v4378 = vsub.s32 %v4372, %v4377
      %v4379 = vsub.s32 0, %v4378
      %v4380 = vsel %vm4370, %v4379, %v4378
      %vm4381 = vcmp.lt.s32.totalorder %v4255, 0
      %v4382 = vsub.s32 0, %v4255
      %v4383 = vsel %vm4381, %v4382, %v4255
      %v4384 = vmul.u32.u64.compose %v4383, 3817748708
      %v4385 = vextract.low.u32 %v4384
      %v4386 = vextract.high.u32 %v4384
      %v4387 = vshrl.u32 %v4386, 4
      %v4388 = vmul.u32 %v4387, 18
      %v4389 = vsub.s32 %v4383, %v4388
      %v4390 = vsub.s32 0, %v4389
      %v4391 = vsel %vm4381, %v4390, %v4389
      %vm4392 = vcmp.lt.s32.totalorder %v4256, 0
      %v4393 = vsub.s32 0, %v4256
      %v4394 = vsel %vm4392, %v4393, %v4256
      %v4395 = vmul.u32.u64.compose %v4394, 3817748708
      %v4396 = vextract.low.u32 %v4395
      %v4397 = vextract.high.u32 %v4395
      %v4398 = vshrl.u32 %v4397, 4
      %v4399 = vmul.u32 %v4398, 18
      %v4400 = vsub.s32 %v4394, %v4399
      %v4401 = vsub.s32 0, %v4400
      %v4402 = vsel %vm4392, %v4401, %v4400
      %vm4403 = vcmp.lt.s32.totalorder %v4257, 0
      %v4404 = vsub.s32 0, %v4257
      %v4405 = vsel %vm4403, %v4404, %v4257
      %v4406 = vmul.u32.u64.compose %v4405, 3817748708
      %v4407 = vextract.low.u32 %v4406
      %v4408 = vextract.high.u32 %v4406
      %v4409 = vshrl.u32 %v4408, 4
      %v4410 = vmul.u32 %v4409, 18
      %v4411 = vsub.s32 %v4405, %v4410
      %v4412 = vsub.s32 0, %v4411
      %v4413 = vsel %vm4403, %v4412, %v4411
      %vm4414 = vcmp.lt.s32.totalorder %v4258, 0
      %v4415 = vsub.s32 0, %v4258
      %v4416 = vsel %vm4414, %v4415, %v4258
      %v4417 = vmul.u32.u64.compose %v4416, 3817748708
      %v4418 = vextract.low.u32 %v4417
      %v4419 = vextract.high.u32 %v4417
      %v4420 = vshrl.u32 %v4419, 4
      %v4421 = vmul.u32 %v4420, 18
      %v4422 = vsub.s32 %v4416, %v4421
      %v4423 = vsub.s32 0, %v4422
      %v4424 = vsel %vm4414, %v4423, %v4422
      %vm4425 = vcmp.lt.s32.totalorder %v4259, 0
      %v4426 = vsub.s32 0, %v4259
      %v4427 = vsel %vm4425, %v4426, %v4259
      %v4428 = vmul.u32.u64.compose %v4427, 3817748708
      %v4429 = vextract.low.u32 %v4428
      %v4430 = vextract.high.u32 %v4428
      %v4431 = vshrl.u32 %v4430, 4
      %v4432 = vmul.u32 %v4431, 18
      %v4433 = vsub.s32 %v4427, %v4432
      %v4434 = vsub.s32 0, %v4433
      %v4435 = vsel %vm4425, %v4434, %v4433
      %vm4436 = vcmp.lt.s32.totalorder %v4260, 0
      %v4437 = vsub.s32 0, %v4260
      %v4438 = vsel %vm4436, %v4437, %v4260
      %v4439 = vmul.u32.u64.compose %v4438, 3817748708
      %v4440 = vextract.low.u32 %v4439
      %v4441 = vextract.high.u32 %v4439
      %v4442 = vshrl.u32 %v4441, 4
      %v4443 = vmul.u32 %v4442, 18
      %v4444 = vsub.s32 %v4438, %v4443
      %v4445 = vsub.s32 0, %v4444
      %v4446 = vsel %vm4436, %v4445, %v4444
      %vm4447 = vcmp.lt.s32.totalorder %v4261, 0
      %v4448 = vsub.s32 0, %v4261
      %v4449 = vsel %vm4447, %v4448, %v4261
      %v4450 = vmul.u32.u64.compose %v4449, 3817748708
      %v4451 = vextract.low.u32 %v4450
      %v4452 = vextract.high.u32 %v4450
      %v4453 = vshrl.u32 %v4452, 4
      %v4454 = vmul.u32 %v4453, 18
      %v4455 = vsub.s32 %v4449, %v4454
      %v4456 = vsub.s32 0, %v4455
      %v4457 = vsel %vm4447, %v4456, %v4455
      %vm4458 = vcmp.lt.s32.totalorder %v4262, 0
      %v4459 = vsub.s32 0, %v4262
      %v4460 = vsel %vm4458, %v4459, %v4262
      %v4461 = vmul.u32.u64.compose %v4460, 3817748708
      %v4462 = vextract.low.u32 %v4461
      %v4463 = vextract.high.u32 %v4461
      %v4464 = vshrl.u32 %v4463, 4
      %v4465 = vmul.u32 %v4464, 18
      %v4466 = vsub.s32 %v4460, %v4465
      %v4467 = vsub.s32 0, %v4466
      %v4468 = vsel %vm4458, %v4467, %v4466
      %vm4469 = vcmp.lt.s32.totalorder %v4263, 0
      %v4470 = vsub.s32 0, %v4263
      %v4471 = vsel %vm4469, %v4470, %v4263
      %v4472 = vmul.u32.u64.compose %v4471, 3817748708
      %v4473 = vextract.low.u32 %v4472
      %v4474 = vextract.high.u32 %v4472
      %v4475 = vshrl.u32 %v4474, 4
      %v4476 = vmul.u32 %v4475, 18
      %v4477 = vsub.s32 %v4471, %v4476
      %v4478 = vsub.s32 0, %v4477
      %v4479 = vsel %vm4469, %v4478, %v4477
      %vm4480 = vcmp.lt.s32.totalorder %v4264, 0
      %v4481 = vsub.s32 0, %v4264
      %v4482 = vsel %vm4480, %v4481, %v4264
      %v4483 = vmul.u32.u64.compose %v4482, 3817748708
      %v4484 = vextract.low.u32 %v4483
      %v4485 = vextract.high.u32 %v4483
      %v4486 = vshrl.u32 %v4485, 4
      %v4487 = vmul.u32 %v4486, 18
      %v4488 = vsub.s32 %v4482, %v4487
      %v4489 = vsub.s32 0, %v4488
      %v4490 = vsel %vm4480, %v4489, %v4488
      %vm4491 = vcmp.lt.s32.totalorder %v4265, 0
      %v4492 = vsub.s32 0, %v4265
      %v4493 = vsel %vm4491, %v4492, %v4265
      %v4494 = vmul.u32.u64.compose %v4493, 3817748708
      %v4495 = vextract.low.u32 %v4494
      %v4496 = vextract.high.u32 %v4494
      %v4497 = vshrl.u32 %v4496, 4
      %v4498 = vmul.u32 %v4497, 18
      %v4499 = vsub.s32 %v4493, %v4498
      %v4500 = vsub.s32 0, %v4499
      %v4501 = vsel %vm4491, %v4500, %v4499
      %vm4502 = vcmp.lt.s32.totalorder %v4266, 0
      %v4503 = vsub.s32 0, %v4266
      %v4504 = vsel %vm4502, %v4503, %v4266
      %v4505 = vmul.u32.u64.compose %v4504, 3817748708
      %v4506 = vextract.low.u32 %v4505
      %v4507 = vextract.high.u32 %v4505
      %v4508 = vshrl.u32 %v4507, 4
      %v4509 = vmul.u32 %v4508, 18
      %v4510 = vsub.s32 %v4504, %v4509
      %v4511 = vsub.s32 0, %v4510
      %v4512 = vsel %vm4502, %v4511, %v4510
      %vm4513 = vcmp.lt.s32.totalorder %v4267, 0
      %v4514 = vsub.s32 0, %v4267
      %v4515 = vsel %vm4513, %v4514, %v4267
      %v4516 = vmul.u32.u64.compose %v4515, 3817748708
      %v4517 = vextract.low.u32 %v4516
      %v4518 = vextract.high.u32 %v4516
      %v4519 = vshrl.u32 %v4518, 4
      %v4520 = vmul.u32 %v4519, 18
      %v4521 = vsub.s32 %v4515, %v4520
      %v4522 = vsub.s32 0, %v4521
      %v4523 = vsel %vm4513, %v4522, %v4521
      %vm4524 = vcmp.lt.s32.totalorder %v4268, 0
      %v4525 = vsub.s32 0, %v4268
      %v4526 = vsel %vm4524, %v4525, %v4268
      %v4527 = vmul.u32.u64.compose %v4526, 3817748708
      %v4528 = vextract.low.u32 %v4527
      %v4529 = vextract.high.u32 %v4527
      %v4530 = vshrl.u32 %v4529, 4
      %v4531 = vmul.u32 %v4530, 18
      %v4532 = vsub.s32 %v4526, %v4531
      %v4533 = vsub.s32 0, %v4532
      %v4534 = vsel %vm4524, %v4533, %v4532
      %vm4535 = vcmp.lt.s32.totalorder %v4269, 0
      %v4536 = vsub.s32 0, %v4269
      %v4537 = vsel %vm4535, %v4536, %v4269
      %v4538 = vmul.u32.u64.compose %v4537, 3817748708
      %v4539 = vextract.low.u32 %v4538
      %v4540 = vextract.high.u32 %v4538
      %v4541 = vshrl.u32 %v4540, 4
      %v4542 = vmul.u32 %v4541, 18
      %v4543 = vsub.s32 %v4537, %v4542
      %v4544 = vsub.s32 0, %v4543
      %v4545 = vsel %vm4535, %v4544, %v4543
      %vm4546 = vcmp.lt.s32.totalorder %v4270, 0
      %v4547 = vsub.s32 0, %v4270
      %v4548 = vsel %vm4546, %v4547, %v4270
      %v4549 = vmul.u32.u64.compose %v4548, 3817748708
      %v4550 = vextract.low.u32 %v4549
      %v4551 = vextract.high.u32 %v4549
      %v4552 = vshrl.u32 %v4551, 4
      %v4553 = vmul.u32 %v4552, 18
      %v4554 = vsub.s32 %v4548, %v4553
      %v4555 = vsub.s32 0, %v4554
      %v4556 = vsel %vm4546, %v4555, %v4554
      %vm4557 = vcmp.lt.s32.totalorder %v4271, 0
      %v4558 = vsub.s32 0, %v4271
      %v4559 = vsel %vm4557, %v4558, %v4271
      %v4560 = vmul.u32.u64.compose %v4559, 3817748708
      %v4561 = vextract.low.u32 %v4560
      %v4562 = vextract.high.u32 %v4560
      %v4563 = vshrl.u32 %v4562, 4
      %v4564 = vmul.u32 %v4563, 18
      %v4565 = vsub.s32 %v4559, %v4564
      %v4566 = vsub.s32 0, %v4565
      %v4567 = vsel %vm4557, %v4566, %v4565
      %vm4568 = vcmp.lt.s32.totalorder %v4272, 0
      %v4569 = vsub.s32 0, %v4272
      %v4570 = vsel %vm4568, %v4569, %v4272
      %v4571 = vmul.u32.u64.compose %v4570, 3817748708
      %v4572 = vextract.low.u32 %v4571
      %v4573 = vextract.high.u32 %v4571
      %v4574 = vshrl.u32 %v4573, 4
      %v4575 = vmul.u32 %v4574, 18
      %v4576 = vsub.s32 %v4570, %v4575
      %v4577 = vsub.s32 0, %v4576
      %v4578 = vsel %vm4568, %v4577, %v4576
      %vm4579 = vcmp.lt.s32.totalorder %v4273, 0
      %v4580 = vsub.s32 0, %v4273
      %v4581 = vsel %vm4579, %v4580, %v4273
      %v4582 = vmul.u32.u64.compose %v4581, 3817748708
      %v4583 = vextract.low.u32 %v4582
      %v4584 = vextract.high.u32 %v4582
      %v4585 = vshrl.u32 %v4584, 4
      %v4586 = vmul.u32 %v4585, 18
      %v4587 = vsub.s32 %v4581, %v4586
      %v4588 = vsub.s32 0, %v4587
      %v4589 = vsel %vm4579, %v4588, %v4587
      %vm4590 = vcmp.lt.s32.totalorder %v4274, 0
      %v4591 = vsub.s32 0, %v4274
      %v4592 = vsel %vm4590, %v4591, %v4274
      %v4593 = vmul.u32.u64.compose %v4592, 3817748708
      %v4594 = vextract.low.u32 %v4593
      %v4595 = vextract.high.u32 %v4593
      %v4596 = vshrl.u32 %v4595, 4
      %v4597 = vmul.u32 %v4596, 18
      %v4598 = vsub.s32 %v4592, %v4597
      %v4599 = vsub.s32 0, %v4598
      %v4600 = vsel %vm4590, %v4599, %v4598
      %vm4601 = vcmp.lt.s32.totalorder %v4275, 0
      %v4602 = vsub.s32 0, %v4275
      %v4603 = vsel %vm4601, %v4602, %v4275
      %v4604 = vmul.u32.u64.compose %v4603, 3817748708
      %v4605 = vextract.low.u32 %v4604
      %v4606 = vextract.high.u32 %v4604
      %v4607 = vshrl.u32 %v4606, 4
      %v4608 = vmul.u32 %v4607, 18
      %v4609 = vsub.s32 %v4603, %v4608
      %v4610 = vsub.s32 0, %v4609
      %v4611 = vsel %vm4601, %v4610, %v4609
      %vm4612 = vcmp.lt.s32.totalorder %v4276, 0
      %v4613 = vsub.s32 0, %v4276
      %v4614 = vsel %vm4612, %v4613, %v4276
      %v4615 = vmul.u32.u64.compose %v4614, 3817748708
      %v4616 = vextract.low.u32 %v4615
      %v4617 = vextract.high.u32 %v4615
      %v4618 = vshrl.u32 %v4617, 4
      %v4619 = vmul.u32 %v4618, 18
      %v4620 = vsub.s32 %v4614, %v4619
      %v4621 = vsub.s32 0, %v4620
      %v4622 = vsel %vm4612, %v4621, %v4620
      %vm4623 = vcmp.lt.s32.totalorder %v4277, 0
      %v4624 = vsub.s32 0, %v4277
      %v4625 = vsel %vm4623, %v4624, %v4277
      %v4626 = vmul.u32.u64.compose %v4625, 3817748708
      %v4627 = vextract.low.u32 %v4626
      %v4628 = vextract.high.u32 %v4626
      %v4629 = vshrl.u32 %v4628, 4
      %v4630 = vmul.u32 %v4629, 18
      %v4631 = vsub.s32 %v4625, %v4630
      %v4632 = vsub.s32 0, %v4631
      %v4633 = vsel %vm4623, %v4632, %v4631
      %vm4634 = vcmp.lt.s32.totalorder %v4278, 0
      %v4635 = vsub.s32 0, %v4278
      %v4636 = vsel %vm4634, %v4635, %v4278
      %v4637 = vmul.u32.u64.compose %v4636, 3817748708
      %v4638 = vextract.low.u32 %v4637
      %v4639 = vextract.high.u32 %v4637
      %v4640 = vshrl.u32 %v4639, 4
      %v4641 = vmul.u32 %v4640, 18
      %v4642 = vsub.s32 %v4636, %v4641
      %v4643 = vsub.s32 0, %v4642
      %v4644 = vsel %vm4634, %v4643, %v4642
      %vm4645 = vcmp.lt.s32.totalorder %v4279, 0
      %v4646 = vsub.s32 0, %v4279
      %v4647 = vsel %vm4645, %v4646, %v4279
      %v4648 = vmul.u32.u64.compose %v4647, 3817748708
      %v4649 = vextract.low.u32 %v4648
      %v4650 = vextract.high.u32 %v4648
      %v4651 = vshrl.u32 %v4650, 4
      %v4652 = vmul.u32 %v4651, 18
      %v4653 = vsub.s32 %v4647, %v4652
      %v4654 = vsub.s32 0, %v4653
      %v4655 = vsel %vm4645, %v4654, %v4653
      %vm4656 = vcmp.lt.s32.totalorder %v4280, 0
      %v4657 = vsub.s32 0, %v4280
      %v4658 = vsel %vm4656, %v4657, %v4280
      %v4659 = vmul.u32.u64.compose %v4658, 3817748708
      %v4660 = vextract.low.u32 %v4659
      %v4661 = vextract.high.u32 %v4659
      %v4662 = vshrl.u32 %v4661, 4
      %v4663 = vmul.u32 %v4662, 18
      %v4664 = vsub.s32 %v4658, %v4663
      %v4665 = vsub.s32 0, %v4664
      %v4666 = vsel %vm4656, %v4665, %v4664
      %vm4667 = vcmp.lt.s32.totalorder %v4281, 0
      %v4668 = vsub.s32 0, %v4281
      %v4669 = vsel %vm4667, %v4668, %v4281
      %v4670 = vmul.u32.u64.compose %v4669, 3817748708
      %v4671 = vextract.low.u32 %v4670
      %v4672 = vextract.high.u32 %v4670
      %v4673 = vshrl.u32 %v4672, 4
      %v4674 = vmul.u32 %v4673, 18
      %v4675 = vsub.s32 %v4669, %v4674
      %v4676 = vsub.s32 0, %v4675
      %v4677 = vsel %vm4667, %v4676, %v4675
      %vm4678 = vcmp.ne.s32.totalorder %v4292, 0
      %vm4679 = vcmp.ne.s32.totalorder %v4303, 0
      %vm4680 = vcmp.ne.s32.totalorder %v4314, 0
      %vm4681 = vcmp.ne.s32.totalorder %v4325, 0
      %vm4682 = vcmp.ne.s32.totalorder %v4336, 0
      %vm4683 = vcmp.ne.s32.totalorder %v4347, 0
      %vm4684 = vcmp.ne.s32.totalorder %v4358, 0
      %vm4685 = vcmp.ne.s32.totalorder %v4369, 0
      %vm4686 = vcmp.ne.s32.totalorder %v4380, 0
      %vm4687 = vcmp.ne.s32.totalorder %v4391, 0
      %vm4688 = vcmp.ne.s32.totalorder %v4402, 0
      %vm4689 = vcmp.ne.s32.totalorder %v4413, 0
      %vm4690 = vcmp.ne.s32.totalorder %v4424, 0
      %vm4691 = vcmp.ne.s32.totalorder %v4435, 0
      %vm4692 = vcmp.ne.s32.totalorder %v4446, 0
      %vm4693 = vcmp.ne.s32.totalorder %v4457, 0
      %vm4694 = vcmp.ne.s32.totalorder %v4468, 0
      %vm4695 = vcmp.ne.s32.totalorder %v4479, 0
      %vm4696 = vcmp.ne.s32.totalorder %v4490, 0
      %vm4697 = vcmp.ne.s32.totalorder %v4501, 0
      %vm4698 = vcmp.ne.s32.totalorder %v4512, 0
      %vm4699 = vcmp.ne.s32.totalorder %v4523, 0
      %vm4700 = vcmp.ne.s32.totalorder %v4534, 0
      %vm4701 = vcmp.ne.s32.totalorder %v4545, 0
      %vm4702 = vcmp.ne.s32.totalorder %v4556, 0
      %vm4703 = vcmp.ne.s32.totalorder %v4567, 0
      %vm4704 = vcmp.ne.s32.totalorder %v4578, 0
      %vm4705 = vcmp.ne.s32.totalorder %v4589, 0
      %vm4706 = vcmp.ne.s32.totalorder %v4600, 0
      %vm4707 = vcmp.ne.s32.totalorder %v4611, 0
      %vm4708 = vcmp.ne.s32.totalorder %v4622, 0
      %vm4709 = vcmp.ne.s32.totalorder %v4633, 0
      %vm4710 = vcmp.ne.s32.totalorder %v4644, 0
      %vm4711 = vcmp.ne.s32.totalorder %v4655, 0
      %vm4712 = vcmp.ne.s32.totalorder %v4666, 0
      %vm4713 = vcmp.ne.s32.totalorder %v4677, 0
      %vm4714 = vcmp.lt.s32.totalorder %v4292, 0
      %vm4715 = vcmp.lt.s32.totalorder %v4303, 0
      %vm4716 = vcmp.lt.s32.totalorder %v4314, 0
      %vm4717 = vcmp.lt.s32.totalorder %v4325, 0
      %vm4718 = vcmp.lt.s32.totalorder %v4336, 0
      %vm4719 = vcmp.lt.s32.totalorder %v4347, 0
      %vm4720 = vcmp.lt.s32.totalorder %v4358, 0
      %vm4721 = vcmp.lt.s32.totalorder %v4369, 0
      %vm4722 = vcmp.lt.s32.totalorder %v4380, 0
      %vm4723 = vcmp.lt.s32.totalorder %v4391, 0
      %vm4724 = vcmp.lt.s32.totalorder %v4402, 0
      %vm4725 = vcmp.lt.s32.totalorder %v4413, 0
      %vm4726 = vcmp.lt.s32.totalorder %v4424, 0
      %vm4727 = vcmp.lt.s32.totalorder %v4435, 0
      %vm4728 = vcmp.lt.s32.totalorder %v4446, 0
      %vm4729 = vcmp.lt.s32.totalorder %v4457, 0
      %vm4730 = vcmp.lt.s32.totalorder %v4468, 0
      %vm4731 = vcmp.lt.s32.totalorder %v4479, 0
      %vm4732 = vcmp.lt.s32.totalorder %v4490, 0
      %vm4733 = vcmp.lt.s32.totalorder %v4501, 0
      %vm4734 = vcmp.lt.s32.totalorder %v4512, 0
      %vm4735 = vcmp.lt.s32.totalorder %v4523, 0
      %vm4736 = vcmp.lt.s32.totalorder %v4534, 0
      %vm4737 = vcmp.lt.s32.totalorder %v4545, 0
      %vm4738 = vcmp.lt.s32.totalorder %v4556, 0
      %vm4739 = vcmp.lt.s32.totalorder %v4567, 0
      %vm4740 = vcmp.lt.s32.totalorder %v4578, 0
      %vm4741 = vcmp.lt.s32.totalorder %v4589, 0
      %vm4742 = vcmp.lt.s32.totalorder %v4600, 0
      %vm4743 = vcmp.lt.s32.totalorder %v4611, 0
      %vm4744 = vcmp.lt.s32.totalorder %v4622, 0
      %vm4745 = vcmp.lt.s32.totalorder %v4633, 0
      %vm4746 = vcmp.lt.s32.totalorder %v4644, 0
      %vm4747 = vcmp.lt.s32.totalorder %v4655, 0
      %vm4748 = vcmp.lt.s32.totalorder %v4666, 0
      %vm4749 = vcmp.lt.s32.totalorder %v4677, 0
      %vm4750 = vmand %vm4714, %vm4678
      %vm4751 = vmand %vm4715, %vm4679
      %vm4752 = vmand %vm4716, %vm4680
      %vm4753 = vmand %vm4717, %vm4681
      %vm4754 = vmand %vm4718, %vm4682
      %vm4755 = vmand %vm4719, %vm4683
      %vm4756 = vmand %vm4720, %vm4684
      %vm4757 = vmand %vm4721, %vm4685
      %vm4758 = vmand %vm4722, %vm4686
      %vm4759 = vmand %vm4723, %vm4687
      %vm4760 = vmand %vm4724, %vm4688
      %vm4761 = vmand %vm4725, %vm4689
      %vm4762 = vmand %vm4726, %vm4690
      %vm4763 = vmand %vm4727, %vm4691
      %vm4764 = vmand %vm4728, %vm4692
      %vm4765 = vmand %vm4729, %vm4693
      %vm4766 = vmand %vm4730, %vm4694
      %vm4767 = vmand %vm4731, %vm4695
      %vm4768 = vmand %vm4732, %vm4696
      %vm4769 = vmand %vm4733, %vm4697
      %vm4770 = vmand %vm4734, %vm4698
      %vm4771 = vmand %vm4735, %vm4699
      %vm4772 = vmand %vm4736, %vm4700
      %vm4773 = vmand %vm4737, %vm4701
      %vm4774 = vmand %vm4738, %vm4702
      %vm4775 = vmand %vm4739, %vm4703
      %vm4776 = vmand %vm4740, %vm4704
      %vm4777 = vmand %vm4741, %vm4705
      %vm4778 = vmand %vm4742, %vm4706
      %vm4779 = vmand %vm4743, %vm4707
      %vm4780 = vmand %vm4744, %vm4708
      %vm4781 = vmand %vm4745, %vm4709
      %vm4782 = vmand %vm4746, %vm4710
      %vm4783 = vmand %vm4747, %vm4711
      %vm4784 = vmand %vm4748, %vm4712
      %vm4785 = vmand %vm4749, %vm4713
      %v4786 = vadd.s32 %v4292, 18
      %v4787 = vadd.s32 %v4303, 18
      %v4788 = vadd.s32 %v4314, 18
      %v4789 = vadd.s32 %v4325, 18
      %v4790 = vadd.s32 %v4336, 18
      %v4791 = vadd.s32 %v4347, 18
      %v4792 = vadd.s32 %v4358, 18
      %v4793 = vadd.s32 %v4369, 18
      %v4794 = vadd.s32 %v4380, 18
      %v4795 = vadd.s32 %v4391, 18
      %v4796 = vadd.s32 %v4402, 18
      %v4797 = vadd.s32 %v4413, 18
      %v4798 = vadd.s32 %v4424, 18
      %v4799 = vadd.s32 %v4435, 18
      %v4800 = vadd.s32 %v4446, 18
      %v4801 = vadd.s32 %v4457, 18
      %v4802 = vadd.s32 %v4468, 18
      %v4803 = vadd.s32 %v4479, 18
      %v4804 = vadd.s32 %v4490, 18
      %v4805 = vadd.s32 %v4501, 18
      %v4806 = vadd.s32 %v4512, 18
      %v4807 = vadd.s32 %v4523, 18
      %v4808 = vadd.s32 %v4534, 18
      %v4809 = vadd.s32 %v4545, 18
      %v4810 = vadd.s32 %v4556, 18
      %v4811 = vadd.s32 %v4567, 18
      %v4812 = vadd.s32 %v4578, 18
      %v4813 = vadd.s32 %v4589, 18
      %v4814 = vadd.s32 %v4600, 18
      %v4815 = vadd.s32 %v4611, 18
      %v4816 = vadd.s32 %v4622, 18
      %v4817 = vadd.s32 %v4633, 18
      %v4818 = vadd.s32 %v4644, 18
      %v4819 = vadd.s32 %v4655, 18
      %v4820 = vadd.s32 %v4666, 18
      %v4821 = vadd.s32 %v4677, 18
      %v4822 = vsel %vm4750, %v4786, %v4292
      %v4823 = vsel %vm4751, %v4787, %v4303
      %v4824 = vsel %vm4752, %v4788, %v4314
      %v4825 = vsel %vm4753, %v4789, %v4325
      %v4826 = vsel %vm4754, %v4790, %v4336
      %v4827 = vsel %vm4755, %v4791, %v4347
      %v4828 = vsel %vm4756, %v4792, %v4358
      %v4829 = vsel %vm4757, %v4793, %v4369
      %v4830 = vsel %vm4758, %v4794, %v4380
      %v4831 = vsel %vm4759, %v4795, %v4391
      %v4832 = vsel %vm4760, %v4796, %v4402
      %v4833 = vsel %vm4761, %v4797, %v4413
      %v4834 = vsel %vm4762, %v4798, %v4424
      %v4835 = vsel %vm4763, %v4799, %v4435
      %v4836 = vsel %vm4764, %v4800, %v4446
      %v4837 = vsel %vm4765, %v4801, %v4457
      %v4838 = vsel %vm4766, %v4802, %v4468
      %v4839 = vsel %vm4767, %v4803, %v4479
      %v4840 = vsel %vm4768, %v4804, %v4490
      %v4841 = vsel %vm4769, %v4805, %v4501
      %v4842 = vsel %vm4770, %v4806, %v4512
      %v4843 = vsel %vm4771, %v4807, %v4523
      %v4844 = vsel %vm4772, %v4808, %v4534
      %v4845 = vsel %vm4773, %v4809, %v4545
      %v4846 = vsel %vm4774, %v4810, %v4556
      %v4847 = vsel %vm4775, %v4811, %v4567
      %v4848 = vsel %vm4776, %v4812, %v4578
      %v4849 = vsel %vm4777, %v4813, %v4589
      %v4850 = vsel %vm4778, %v4814, %v4600
      %v4851 = vsel %vm4779, %v4815, %v4611
      %v4852 = vsel %vm4780, %v4816, %v4622
      %v4853 = vsel %vm4781, %v4817, %v4633
      %v4854 = vsel %vm4782, %v4818, %v4644
      %v4855 = vsel %vm4783, %v4819, %v4655
      %v4856 = vsel %vm4784, %v4820, %v4666
      %v4857 = vsel %vm4785, %v4821, %v4677
      %vm4858 = vcmp.lt.s32.totalorder %v4822, 16
      %vm4859 = vcmp.lt.s32.totalorder %v4823, 16
      %vm4860 = vcmp.lt.s32.totalorder %v4824, 16
      %vm4861 = vcmp.lt.s32.totalorder %v4825, 16
      %vm4862 = vcmp.lt.s32.totalorder %v4826, 16
      %vm4863 = vcmp.lt.s32.totalorder %v4827, 16
      %vm4864 = vcmp.lt.s32.totalorder %v4828, 16
      %vm4865 = vcmp.lt.s32.totalorder %v4829, 16
      %vm4866 = vcmp.lt.s32.totalorder %v4830, 16
      %vm4867 = vcmp.lt.s32.totalorder %v4831, 16
      %vm4868 = vcmp.lt.s32.totalorder %v4832, 16
      %vm4869 = vcmp.lt.s32.totalorder %v4833, 16
      %vm4870 = vcmp.lt.s32.totalorder %v4834, 16
      %vm4871 = vcmp.lt.s32.totalorder %v4835, 16
      %vm4872 = vcmp.lt.s32.totalorder %v4836, 16
      %vm4873 = vcmp.lt.s32.totalorder %v4837, 16
      %vm4874 = vcmp.lt.s32.totalorder %v4838, 16
      %vm4875 = vcmp.lt.s32.totalorder %v4839, 16
      %vm4876 = vcmp.lt.s32.totalorder %v4840, 16
      %vm4877 = vcmp.lt.s32.totalorder %v4841, 16
      %vm4878 = vcmp.lt.s32.totalorder %v4842, 16
      %vm4879 = vcmp.lt.s32.totalorder %v4843, 16
      %vm4880 = vcmp.lt.s32.totalorder %v4844, 16
      %vm4881 = vcmp.lt.s32.totalorder %v4845, 16
      %vm4882 = vcmp.lt.s32.totalorder %v4846, 16
      %vm4883 = vcmp.lt.s32.totalorder %v4847, 16
      %vm4884 = vcmp.lt.s32.totalorder %v4848, 16
      %vm4885 = vcmp.lt.s32.totalorder %v4849, 16
      %vm4886 = vcmp.lt.s32.totalorder %v4850, 16
      %vm4887 = vcmp.lt.s32.totalorder %v4851, 16
      %vm4888 = vcmp.lt.s32.totalorder %v4852, 16
      %vm4889 = vcmp.lt.s32.totalorder %v4853, 16
      %vm4890 = vcmp.lt.s32.totalorder %v4854, 16
      %vm4891 = vcmp.lt.s32.totalorder %v4855, 16
      %vm4892 = vcmp.lt.s32.totalorder %v4856, 16
      %vm4893 = vcmp.lt.s32.totalorder %v4857, 16
      %v4894 = vsel %vm4858, %v4209, 0.0
      %v4895 = vsel %vm4859, %v4210, 0.0
      %v4896 = vsel %vm4860, %v4211, 0.0
      %v4897 = vsel %vm4861, %v4212, 0.0
      %v4898 = vsel %vm4862, %v4213, 0.0
      %v4899 = vsel %vm4863, %v4214, 0.0
      %v4900 = vsel %vm4864, %v4215, 0.0
      %v4901 = vsel %vm4865, %v4216, 0.0
      %v4902 = vsel %vm4866, %v4217, 0.0
      %v4903 = vsel %vm4867, %v4218, 0.0
      %v4904 = vsel %vm4868, %v4219, 0.0
      %v4905 = vsel %vm4869, %v4220, 0.0
      %v4906 = vsel %vm4870, %v4221, 0.0
      %v4907 = vsel %vm4871, %v4222, 0.0
      %v4908 = vsel %vm4872, %v4223, 0.0
      %v4909 = vsel %vm4873, %v4224, 0.0
      %v4910 = vsel %vm4874, %v4225, 0.0
      %v4911 = vsel %vm4875, %v4226, 0.0
      %v4912 = vsel %vm4876, %v4227, 0.0
      %v4913 = vsel %vm4877, %v4228, 0.0
      %v4914 = vsel %vm4878, %v4229, 0.0
      %v4915 = vsel %vm4879, %v4230, 0.0
      %v4916 = vsel %vm4880, %v4231, 0.0
      %v4917 = vsel %vm4881, %v4232, 0.0
      %v4918 = vsel %vm4882, %v4233, 0.0
      %v4919 = vsel %vm4883, %v4234, 0.0
      %v4920 = vsel %vm4884, %v4235, 0.0
      %v4921 = vsel %vm4885, %v4236, 0.0
      %v4922 = vsel %vm4886, %v4237, 0.0
      %v4923 = vsel %vm4887, %v4238, 0.0
      %v4924 = vsel %vm4888, %v4239, 0.0
      %v4925 = vsel %vm4889, %v4240, 0.0
      %v4926 = vsel %vm4890, %v4241, 0.0
      %v4927 = vsel %vm4891, %v4242, 0.0
      %v4928 = vsel %vm4892, %v4243, 0.0
      %v4929 = vsel %vm4893, %v4244, 0.0
      %4930 = vst.msk [vmem:[#allocation3] sm:$0xff] %vm171, 0.0
      %4931 = vst.msk [vmem:[#allocation3 + $0x8] sm:$0xff] %vm171, 0.0
      %4932 = vst.msk [vmem:[#allocation3 + $0x10] sm:$0xff] %vm171, 0.0
      %4933 = vst.msk [vmem:[#allocation3 + $0x18] sm:$0xff] %vm171, 0.0
      %4934 = vst.msk [vmem:[#allocation3 + $0x20] sm:$0xff] %vm171, 0.0
      %4935 = vst.msk [vmem:[#allocation3 + $0x28] sm:$0xff] %vm171, 0.0
      %4936 = vst.msk [vmem:[#allocation3 + $0x30] sm:$0xff] %vm171, 0.0
      %4937 = vst.msk [vmem:[#allocation3 + $0x38] sm:$0xff] %vm171, 0.0
      %4938 = vst.msk [vmem:[#allocation3 + $0x40] sm:$0xff] %vm171, 0.0
      %4939 = vst.msk [vmem:[#allocation3 + $0x48] sm:$0xff] %vm171, 0.0
      %4940 = vst.msk [vmem:[#allocation3 + $0x50] sm:$0xff] %vm171, 0.0
      %4941 = vst.msk [vmem:[#allocation3 + $0x58] sm:$0xff] %vm171, 0.0
      %4942 = vst.msk [vmem:[#allocation3 + $0x60] sm:$0xff] %vm171, 0.0
      %4943 = vst.msk [vmem:[#allocation3 + $0x68] sm:$0xff] %vm171, 0.0
      %4944 = vst.msk [vmem:[#allocation3 + $0x70] sm:$0xff] %vm171, 0.0
      %4945 = vst.msk [vmem:[#allocation3 + $0x78] sm:$0xff] %vm171, 0.0
      %4946 = vst.msk [vmem:[#allocation3 + $0x80] sm:$0xff] %vm171, 0.0
      %4947 = vst.msk [vmem:[#allocation3 + $0x88] sm:$0xff] %vm171, 0.0
      %4948 = vst.msk [vmem:[#allocation3 + $0x90] sm:$0xff] %vm171, 0.0
      %4949 = vst.msk [vmem:[#allocation3 + $0x98] sm:$0xff] %vm171, 0.0
      %4950 = vst.msk [vmem:[#allocation3 + $0xa0] sm:$0xff] %vm171, 0.0
      %4951 = vst.msk [vmem:[#allocation3 + $0xa8] sm:$0xff] %vm171, 0.0
      %4952 = vst.msk [vmem:[#allocation3 + $0xb0] sm:$0xff] %vm171, 0.0
      %4953 = vst.msk [vmem:[#allocation3 + $0xb8] sm:$0xff] %vm171, 0.0
      %4954 = vst.msk [vmem:[#allocation3 + $0xc0] sm:$0xff] %vm171, 0.0
      %4955 = vst.msk [vmem:[#allocation3 + $0xc8] sm:$0xff] %vm171, 0.0
      %4956 = vst.msk [vmem:[#allocation3 + $0xd0] sm:$0xff] %vm171, 0.0
      %4957 = vst.msk [vmem:[#allocation3 + $0xd8] sm:$0xff] %vm171, 0.0
      %4958 = vst.msk [vmem:[#allocation3 + $0xe0] sm:$0xff] %vm171, 0.0
      %4959 = vst.msk [vmem:[#allocation3 + $0xe8] sm:$0xff] %vm171, 0.0
      %4960 = vst.msk [vmem:[#allocation3 + $0xf0] sm:$0xff] %vm171, 0.0
      %4961 = vst.msk [vmem:[#allocation3 + $0xf8] sm:$0xff] %vm171, 0.0
      %4962 = vst.msk [vmem:[#allocation3 + $0x100] sm:$0xff] %vm171, 0.0
      %4963 = vst.msk [vmem:[#allocation3 + $0x108] sm:$0xff] %vm171, 0.0
      %4964 = vst.msk [vmem:[#allocation3 + $0x110] sm:$0xff] %vm171, 0.0
      %4965 = vst.msk [vmem:[#allocation3 + $0x118] sm:$0xff] %vm171, 0.0
      %4966 = vst.msk [vmem:[#allocation3 + $0x120] sm:$0xff] %vm171, 0.0
      %4967 = vst.msk [vmem:[#allocation3 + $0x128] sm:$0xff] %vm171, 0.0
      %4968 = vst.msk [vmem:[#allocation3 + $0x130] sm:$0xff] %vm171, 0.0
      %4969 = vst.msk [vmem:[#allocation3 + $0x138] sm:$0xff] %vm171, 0.0
      %4970 = vst.msk [vmem:[#allocation3 + $0x140] sm:$0xff] %vm171, 0.0
      %4971 = vst.msk [vmem:[#allocation3 + $0x148] sm:$0xff] %vm171, 0.0
      %4972 = vst.msk [vmem:[#allocation3 + $0x150] sm:$0x3f] %vm214, 0.0
      %4973 = vst.msk [vmem:[#allocation3 + $0x13] sm:$0xff] %vm171, %v4894
      %4974 = vst.msk [vmem:[#allocation3 + $0x1b] sm:$0xff] %vm171, %v4895
      %4975 = vst.msk [vmem:[#allocation3 + $0x23] sm:$0xff] %vm171, %v4896
      %4976 = vst.msk [vmem:[#allocation3 + $0x2b] sm:$0xff] %vm171, %v4897
      %4977 = vst.msk [vmem:[#allocation3 + $0x33] sm:$0xff] %vm171, %v4898
      %4978 = vst.msk [vmem:[#allocation3 + $0x3b] sm:$0xff] %vm171, %v4899
      %4979 = vst.msk [vmem:[#allocation3 + $0x43] sm:$0xff] %vm171, %v4900
      %4980 = vst.msk [vmem:[#allocation3 + $0x4b] sm:$0xff] %vm171, %v4901
      %4981 = vst.msk [vmem:[#allocation3 + $0x53] sm:$0xff] %vm171, %v4902
      %4982 = vst.msk [vmem:[#allocation3 + $0x5b] sm:$0xff] %vm171, %v4903
      %4983 = vst.msk [vmem:[#allocation3 + $0x63] sm:$0xff] %vm171, %v4904
      %4984 = vst.msk [vmem:[#allocation3 + $0x6b] sm:$0xff] %vm171, %v4905
      %4985 = vst.msk [vmem:[#allocation3 + $0x73] sm:$0xff] %vm171, %v4906
      %4986 = vst.msk [vmem:[#allocation3 + $0x7b] sm:$0xff] %vm171, %v4907
      %4987 = vst.msk [vmem:[#allocation3 + $0x83] sm:$0xff] %vm171, %v4908
      %4988 = vst.msk [vmem:[#allocation3 + $0x8b] sm:$0xff] %vm171, %v4909
      %4989 = vst.msk [vmem:[#allocation3 + $0x93] sm:$0xff] %vm171, %v4910
      %4990 = vst.msk [vmem:[#allocation3 + $0x9b] sm:$0xff] %vm171, %v4911
      %4991 = vst.msk [vmem:[#allocation3 + $0xa3] sm:$0xff] %vm171, %v4912
      %4992 = vst.msk [vmem:[#allocation3 + $0xab] sm:$0xff] %vm171, %v4913
      %4993 = vst.msk [vmem:[#allocation3 + $0xb3] sm:$0xff] %vm171, %v4914
      %4994 = vst.msk [vmem:[#allocation3 + $0xbb] sm:$0xff] %vm171, %v4915
      %4995 = vst.msk [vmem:[#allocation3 + $0xc3] sm:$0xff] %vm171, %v4916
      %4996 = vst.msk [vmem:[#allocation3 + $0xcb] sm:$0xff] %vm171, %v4917
      %4997 = vst.msk [vmem:[#allocation3 + $0xd3] sm:$0xff] %vm171, %v4918
      %4998 = vst.msk [vmem:[#allocation3 + $0xdb] sm:$0xff] %vm171, %v4919
      %4999 = vst.msk [vmem:[#allocation3 + $0xe3] sm:$0xff] %vm171, %v4920
      %5000 = vst.msk [vmem:[#allocation3 + $0xeb] sm:$0xff] %vm171, %v4921
      %5001 = vst.msk [vmem:[#allocation3 + $0xf3] sm:$0xff] %vm171, %v4922
      %5002 = vst.msk [vmem:[#allocation3 + $0xfb] sm:$0xff] %vm171, %v4923
      %5003 = vst.msk [vmem:[#allocation3 + $0x103] sm:$0xff] %vm171, %v4924
      %5004 = vst.msk [vmem:[#allocation3 + $0x10b] sm:$0xff] %vm171, %v4925
      %5005 = vst.msk [vmem:[#allocation3 + $0x113] sm:$0xff] %vm171, %v4926
      %5006 = vst.msk [vmem:[#allocation3 + $0x11b] sm:$0xff] %vm171, %v4927
      %5007 = vst.msk [vmem:[#allocation3 + $0x123] sm:$0xff] %vm171, %v4928
      %5008 = vst.msk [vmem:[#allocation3 + $0x12b] sm:$0xff] %vm171, %v4929
      %v5009 = vld [vmem:[#allocation2 + $0x13] sm:$0xff]
      %v5010 = vld [vmem:[#allocation2 + $0x1b] sm:$0xff]
      %v5011 = vld [vmem:[#allocation2 + $0x23] sm:$0xff]
      %v5012 = vld [vmem:[#allocation2 + $0x2b] sm:$0xff]
      %v5013 = vld [vmem:[#allocation2 + $0x33] sm:$0xff]
      %v5014 = vld [vmem:[#allocation2 + $0x3b] sm:$0xff]
      %v5015 = vld [vmem:[#allocation2 + $0x43] sm:$0xff]
      %v5016 = vld [vmem:[#allocation2 + $0x4b] sm:$0xff]
      %v5017 = vld [vmem:[#allocation2 + $0x53] sm:$0xff]
      %v5018 = vld [vmem:[#allocation2 + $0x5b] sm:$0xff]
      %v5019 = vld [vmem:[#allocation2 + $0x63] sm:$0xff]
      %v5020 = vld [vmem:[#allocation2 + $0x6b] sm:$0xff]
      %v5021 = vld [vmem:[#allocation2 + $0x73] sm:$0xff]
      %v5022 = vld [vmem:[#allocation2 + $0x7b] sm:$0xff]
      %v5023 = vld [vmem:[#allocation2 + $0x83] sm:$0xff]
      %v5024 = vld [vmem:[#allocation2 + $0x8b] sm:$0xff]
      %v5025 = vld [vmem:[#allocation2 + $0x93] sm:$0xff]
      %v5026 = vld [vmem:[#allocation2 + $0x9b] sm:$0xff]
      %v5027 = vld [vmem:[#allocation2 + $0xa3] sm:$0xff]
      %v5028 = vld [vmem:[#allocation2 + $0xab] sm:$0xff]
      %v5029 = vld [vmem:[#allocation2 + $0xb3] sm:$0xff]
      %v5030 = vld [vmem:[#allocation2 + $0xbb] sm:$0xff]
      %v5031 = vld [vmem:[#allocation2 + $0xc3] sm:$0xff]
      %v5032 = vld [vmem:[#allocation2 + $0xcb] sm:$0xff]
      %v5033 = vld [vmem:[#allocation2 + $0xd3] sm:$0xff]
      %v5034 = vld [vmem:[#allocation2 + $0xdb] sm:$0xff]
      %v5035 = vld [vmem:[#allocation2 + $0xe3] sm:$0xff]
      %v5036 = vld [vmem:[#allocation2 + $0xeb] sm:$0xff]
      %v5037 = vld [vmem:[#allocation2 + $0xf3] sm:$0xff]
      %v5038 = vld [vmem:[#allocation2 + $0xfb] sm:$0xff]
      %v5039 = vld [vmem:[#allocation2 + $0x103] sm:$0xff]
      %v5040 = vld [vmem:[#allocation2 + $0x10b] sm:$0xff]
      %v5041 = vld [vmem:[#allocation2 + $0x113] sm:$0xff]
      %v5042 = vld [vmem:[#allocation2 + $0x11b] sm:$0xff]
      %v5043 = vld [vmem:[#allocation2 + $0x123] sm:$0xff]
      %v5044 = vld [vmem:[#allocation2 + $0x12b] sm:$0xff]
      %v5045 = vld [vmem:[#allocation3] sm:$0xff]
      %v5046 = vld [vmem:[#allocation3 + $0x8] sm:$0xff]
      %v5047 = vld [vmem:[#allocation3 + $0x10] sm:$0xff]
      %v5048 = vld [vmem:[#allocation3 + $0x18] sm:$0xff]
      %v5049 = vld [vmem:[#allocation3 + $0x20] sm:$0xff]
      %v5050 = vld [vmem:[#allocation3 + $0x28] sm:$0xff]
      %v5051 = vld [vmem:[#allocation3 + $0x30] sm:$0xff]
      %v5052 = vld [vmem:[#allocation3 + $0x38] sm:$0xff]
      %v5053 = vld [vmem:[#allocation3 + $0x40] sm:$0xff]
      %v5054 = vld [vmem:[#allocation3 + $0x48] sm:$0xff]
      %v5055 = vld [vmem:[#allocation3 + $0x50] sm:$0xff]
      %v5056 = vld [vmem:[#allocation3 + $0x58] sm:$0xff]
      %v5057 = vld [vmem:[#allocation3 + $0x60] sm:$0xff]
      %v5058 = vld [vmem:[#allocation3 + $0x68] sm:$0xff]
      %v5059 = vld [vmem:[#allocation3 + $0x70] sm:$0xff]
      %v5060 = vld [vmem:[#allocation3 + $0x78] sm:$0xff]
      %v5061 = vld [vmem:[#allocation3 + $0x80] sm:$0xff]
      %v5062 = vld [vmem:[#allocation3 + $0x88] sm:$0xff]
      %v5063 = vld [vmem:[#allocation3 + $0x90] sm:$0xff]
      %v5064 = vld [vmem:[#allocation3 + $0x98] sm:$0xff]
      %v5065 = vld [vmem:[#allocation3 + $0xa0] sm:$0xff]
      %v5066 = vld [vmem:[#allocation3 + $0xa8] sm:$0xff]
      %v5067 = vld [vmem:[#allocation3 + $0xb0] sm:$0xff]
      %v5068 = vld [vmem:[#allocation3 + $0xb8] sm:$0xff]
      %v5069 = vld [vmem:[#allocation3 + $0xc0] sm:$0xff]
      %v5070 = vld [vmem:[#allocation3 + $0xc8] sm:$0xff]
      %v5071 = vld [vmem:[#allocation3 + $0xd0] sm:$0xff]
      %v5072 = vld [vmem:[#allocation3 + $0xd8] sm:$0xff]
      %v5073 = vld [vmem:[#allocation3 + $0xe0] sm:$0xff]
      %v5074 = vld [vmem:[#allocation3 + $0xe8] sm:$0xff]
      %v5075 = vld [vmem:[#allocation3 + $0xf0] sm:$0xff]
      %v5076 = vld [vmem:[#allocation3 + $0xf8] sm:$0xff]
      %v5077 = vld [vmem:[#allocation3 + $0x100] sm:$0xff]
      %v5078 = vld [vmem:[#allocation3 + $0x108] sm:$0xff]
      %v5079 = vld [vmem:[#allocation3 + $0x110] sm:$0xff]
      %v5080 = vld [vmem:[#allocation3 + $0x118] sm:$0xff]
      %v5081 = vld [vmem:[%s2] sm:$0xff]
      %v5083 = vsel %vm171, %v5045, 0
      %v5086 = vsel %vm171, %v5046, 0
      %v5089 = vsel %vm171, %v5047, 0
      %v5092 = vsel %vm171, %v5048, 0
      %v5095 = vsel %vm171, %v5049, 0
      %v5098 = vsel %vm171, %v5050, 0
      %v5101 = vsel %vm171, %v5051, 0
      %v5104 = vsel %vm171, %v5052, 0
      %v5107 = vsel %vm171, %v5053, 0
      %v5110 = vsel %vm171, %v5054, 0
      %v5113 = vsel %vm171, %v5055, 0
      %v5116 = vsel %vm171, %v5056, 0
      %v5119 = vsel %vm171, %v5057, 0
      %v5122 = vsel %vm171, %v5058, 0
      %v5125 = vsel %vm171, %v5059, 0
      %v5128 = vsel %vm171, %v5060, 0
      %v5131 = vsel %vm171, %v5061, 0
      %v5134 = vsel %vm171, %v5062, 0
      %v5137 = vsel %vm171, %v5063, 0
      %v5140 = vsel %vm171, %v5064, 0
      %v5143 = vsel %vm171, %v5065, 0
      %v5146 = vsel %vm171, %v5066, 0
      %v5149 = vsel %vm171, %v5067, 0
      %v5152 = vsel %vm171, %v5068, 0
      %v5155 = vsel %vm171, %v5069, 0
      %v5158 = vsel %vm171, %v5070, 0
      %v5161 = vsel %vm171, %v5071, 0
      %v5164 = vsel %vm171, %v5072, 0
      %v5167 = vsel %vm171, %v5073, 0
      %v5170 = vsel %vm171, %v5074, 0
      %v5173 = vsel %vm171, %v5075, 0
      %v5176 = vsel %vm171, %v5076, 0
      %v5179 = vsel %vm171, %v5077, 0
      %v5182 = vsel %vm171, %v5078, 0
      %v5185 = vsel %vm171, %v5079, 0
      %v5188 = vsel %vm171, %v5080, 0
      %5190 = vmatprep.subr.mxu0 0.0
      %5191 = vmatpush1.msra.mxu0 0.0
      %5192 = vmatprep.subr.mxu0 0.0
      %5193 = vmatpush1.msra.mxu0 0.0
      %5194 = vmatprep.subr.mxu0 0.0
      %5195 = vmatpush1.msra.mxu0 0.0
      %5196 = vmatprep.subr.mxu0 0.0
      %5197 = vmatpush1.msra.mxu0 0.0
      %5198 = vmatprep.subr.mxu0 0.0
      %5199 = vmatpush1.msra.mxu0 0.0
      %5200 = vmatprep.subr.mxu0 0.0
      %5201 = vmatpush1.msra.mxu0 0.0
      %5202 = vmatprep.subr.mxu0 0.0
      %5203 = vmatpush1.msra.mxu0 0.0
      %5204 = vmatprep.subr.mxu0 0.0
      %5205 = vmatpush1.msra.mxu0 0.0
      %5206 = vmatprep.subr.mxu0 0.0
      %5207 = vmatpush1.msra.mxu0 0.0
      %5208 = vmatprep.subr.mxu0 0.0
      %5209 = vmatpush1.msra.mxu0 0.0
      %5210 = vmatprep.subr.mxu0 0.0
      %5211 = vmatpush1.msra.mxu0 0.0
      %5212 = vmatprep.subr.mxu0 0.0
      %5213 = vmatpush1.msra.mxu0 0.0
      %5214 = vmatprep.subr.mxu0 0.0
      %5215 = vmatpush1.msra.mxu0 0.0
      %5216 = vmatprep.subr.mxu0 0.0
      %5217 = vmatpush1.msra.mxu0 0.0
      %5218 = vmatprep.subr.mxu0 0.0
      %5219 = vmatpush1.msra.mxu0 0.0
      %5220 = vmatprep.subr.mxu0 0.0
      %5221 = vmatpush1.msra.mxu0 %v5081
      %5222 = vmatprep.subr.mxu0 0.0
      %5223 = vmatpush2.msra.mxu0 0.0
      %5224 = vmatprep.subr.mxu0 0.0
      %5225 = vmatpush2.msra.mxu0 0.0
      %5226 = vmatprep.subr.mxu0 0.0
      %5227 = vmatpush2.msra.mxu0 0.0
      %5228 = vmatprep.subr.mxu0 0.0
      %5229 = vmatpush2.msra.mxu0 0.0
      %5230 = vmatprep.subr.mxu0 0.0
      %5231 = vmatpush2.msra.mxu0 0.0
      %5232 = vmatprep.subr.mxu0 0.0
      %5233 = vmatpush2.msra.mxu0 0.0
      %5234 = vmatprep.subr.mxu0 0.0
      %5235 = vmatpush2.msra.mxu0 0.0
      %5236 = vmatprep.subr.mxu0 0.0
      %5237 = vmatpush2.msra.mxu0 0.0
      %5238 = vmatprep.subr.mxu0 0.0
      %5239 = vmatpush2.msra.mxu0 0.0
      %5240 = vmatprep.subr.mxu0 0.0
      %5241 = vmatpush2.msra.mxu0 0.0
      %5242 = vmatprep.subr.mxu0 0.0
      %5243 = vmatpush2.msra.mxu0 0.0
      %5244 = vmatprep.subr.mxu0 0.0
      %5245 = vmatpush2.msra.mxu0 0.0
      %5246 = vmatprep.subr.mxu0 0.0
      %5247 = vmatpush2.msra.mxu0 0.0
      %5248 = vmatprep.subr.mxu0 0.0
      %5249 = vmatpush2.msra.mxu0 0.0
      %5250 = vmatprep.subr.mxu0 0.0
      %5251 = vmatpush2.msra.mxu0 0.0
      %5252 = vmatprep.subr.mxu0 0.0
      %5253 = vmatpush2.msra.mxu0 0.0
      %5254 = vmatprep.mubr.f32.mxu0 0.0
      %5255 = vmatmul.mubr.f32.gmra.mxu0 %v5083
      %v5256 = vpop.f32.mrf.mxu0
      %v5257 = vadd.f32 0.0, %v5256
      %v5258 = vpop.f32.mrf.mxu0
      %5259 = vmatprep.mubr.f32.mxu0 0.0
      %5260 = vmatmul.mubr.f32.gmra.mxu0 %v5086
      %v5261 = vpop.f32.mrf.mxu0
      %v5262 = vadd.f32 0.0, %v5261
      %v5263 = vpop.f32.mrf.mxu0
      %5264 = vmatprep.mubr.f32.mxu0 0.0
      %5265 = vmatmul.mubr.f32.gmra.mxu0 %v5089
      %v5266 = vpop.f32.mrf.mxu0
      %v5267 = vadd.f32 0.0, %v5266
      %v5268 = vpop.f32.mrf.mxu0
      %5269 = vmatprep.mubr.f32.mxu0 0.0
      %5270 = vmatmul.mubr.f32.gmra.mxu0 %v5092
      %v5271 = vpop.f32.mrf.mxu0
      %v5272 = vadd.f32 0.0, %v5271
      %v5273 = vpop.f32.mrf.mxu0
      %5274 = vmatprep.mubr.f32.mxu0 0.0
      %5275 = vmatmul.mubr.f32.gmra.mxu0 %v5095
      %v5276 = vpop.f32.mrf.mxu0
      %v5277 = vadd.f32 0.0, %v5276
      %v5278 = vpop.f32.mrf.mxu0
      %5279 = vmatprep.mubr.f32.mxu0 0.0
      %5280 = vmatmul.mubr.f32.gmra.mxu0 %v5098
      %v5281 = vpop.f32.mrf.mxu0
      %v5282 = vadd.f32 0.0, %v5281
      %v5283 = vpop.f32.mrf.mxu0
      %5284 = vmatprep.mubr.f32.mxu0 0.0
      %5285 = vmatmul.mubr.f32.gmra.mxu0 %v5101
      %v5286 = vpop.f32.mrf.mxu0
      %v5287 = vadd.f32 0.0, %v5286
      %v5288 = vpop.f32.mrf.mxu0
      %5289 = vmatprep.mubr.f32.mxu0 0.0
      %5290 = vmatmul.mubr.f32.gmra.mxu0 %v5104
      %v5291 = vpop.f32.mrf.mxu0
      %v5292 = vadd.f32 0.0, %v5291
      %v5293 = vpop.f32.mrf.mxu0
      %5294 = vmatprep.mubr.f32.mxu0 0.0
      %5295 = vmatmul.mubr.f32.gmra.mxu0 %v5107
      %v5296 = vpop.f32.mrf.mxu0
      %v5297 = vadd.f32 0.0, %v5296
      %v5298 = vpop.f32.mrf.mxu0
      %5299 = vmatprep.mubr.f32.mxu0 0.0
      %5300 = vmatmul.mubr.f32.gmra.mxu0 %v5110
      %v5301 = vpop.f32.mrf.mxu0
      %v5302 = vadd.f32 0.0, %v5301
      %v5303 = vpop.f32.mrf.mxu0
      %5304 = vmatprep.mubr.f32.mxu0 0.0
      %5305 = vmatmul.mubr.f32.gmra.mxu0 %v5113
      %v5306 = vpop.f32.mrf.mxu0
      %v5307 = vadd.f32 0.0, %v5306
      %v5308 = vpop.f32.mrf.mxu0
      %5309 = vmatprep.mubr.f32.mxu0 0.0
      %5310 = vmatmul.mubr.f32.gmra.mxu0 %v5116
      %v5311 = vpop.f32.mrf.mxu0
      %v5312 = vadd.f32 0.0, %v5311
      %v5313 = vpop.f32.mrf.mxu0
      %5314 = vmatprep.mubr.f32.mxu0 0.0
      %5315 = vmatmul.mubr.f32.gmra.mxu0 %v5119
      %v5316 = vpop.f32.mrf.mxu0
      %v5317 = vadd.f32 0.0, %v5316
      %v5318 = vpop.f32.mrf.mxu0
      %5319 = vmatprep.mubr.f32.mxu0 0.0
      %5320 = vmatmul.mubr.f32.gmra.mxu0 %v5122
      %v5321 = vpop.f32.mrf.mxu0
      %v5322 = vadd.f32 0.0, %v5321
      %v5323 = vpop.f32.mrf.mxu0
      %5324 = vmatprep.mubr.f32.mxu0 0.0
      %5325 = vmatmul.mubr.f32.gmra.mxu0 %v5125
      %v5326 = vpop.f32.mrf.mxu0
      %v5327 = vadd.f32 0.0, %v5326
      %v5328 = vpop.f32.mrf.mxu0
      %5329 = vmatprep.mubr.f32.mxu0 0.0
      %5330 = vmatmul.mubr.f32.gmra.mxu0 %v5128
      %v5331 = vpop.f32.mrf.mxu0
      %v5332 = vadd.f32 0.0, %v5331
      %v5333 = vpop.f32.mrf.mxu0
      %5334 = vmatprep.mubr.f32.mxu0 0.0
      %5335 = vmatmul.mubr.f32.gmra.mxu0 %v5131
      %v5336 = vpop.f32.mrf.mxu0
      %v5337 = vadd.f32 0.0, %v5336
      %v5338 = vpop.f32.mrf.mxu0
      %5339 = vmatprep.mubr.f32.mxu0 0.0
      %5340 = vmatmul.mubr.f32.gmra.mxu0 %v5134
      %v5341 = vpop.f32.mrf.mxu0
      %v5342 = vadd.f32 0.0, %v5341
      %v5343 = vpop.f32.mrf.mxu0
      %5344 = vmatprep.mubr.f32.mxu0 0.0
      %5345 = vmatmul.mubr.f32.gmra.mxu0 %v5137
      %v5346 = vpop.f32.mrf.mxu0
      %v5347 = vadd.f32 0.0, %v5346
      %v5348 = vpop.f32.mrf.mxu0
      %5349 = vmatprep.mubr.f32.mxu0 0.0
      %5350 = vmatmul.mubr.f32.gmra.mxu0 %v5140
      %v5351 = vpop.f32.mrf.mxu0
      %v5352 = vadd.f32 0.0, %v5351
      %v5353 = vpop.f32.mrf.mxu0
      %5354 = vmatprep.mubr.f32.mxu0 0.0
      %5355 = vmatmul.mubr.f32.gmra.mxu0 %v5143
      %v5356 = vpop.f32.mrf.mxu0
      %v5357 = vadd.f32 0.0, %v5356
      %v5358 = vpop.f32.mrf.mxu0
      %5359 = vmatprep.mubr.f32.mxu0 0.0
      %5360 = vmatmul.mubr.f32.gmra.mxu0 %v5146
      %v5361 = vpop.f32.mrf.mxu0
      %v5362 = vadd.f32 0.0, %v5361
      %v5363 = vpop.f32.mrf.mxu0
      %5364 = vmatprep.mubr.f32.mxu0 0.0
      %5365 = vmatmul.mubr.f32.gmra.mxu0 %v5149
      %v5366 = vpop.f32.mrf.mxu0
      %v5367 = vadd.f32 0.0, %v5366
      %v5368 = vpop.f32.mrf.mxu0
      %5369 = vmatprep.mubr.f32.mxu0 0.0
      %5370 = vmatmul.mubr.f32.gmra.mxu0 %v5152
      %v5371 = vpop.f32.mrf.mxu0
      %v5372 = vadd.f32 0.0, %v5371
      %v5373 = vpop.f32.mrf.mxu0
      %5374 = vmatprep.mubr.f32.mxu0 0.0
      %5375 = vmatmul.mubr.f32.gmra.mxu0 %v5155
      %v5376 = vpop.f32.mrf.mxu0
      %v5377 = vadd.f32 0.0, %v5376
      %v5378 = vpop.f32.mrf.mxu0
      %5379 = vmatprep.mubr.f32.mxu0 0.0
      %5380 = vmatmul.mubr.f32.gmra.mxu0 %v5158
      %v5381 = vpop.f32.mrf.mxu0
      %v5382 = vadd.f32 0.0, %v5381
      %v5383 = vpop.f32.mrf.mxu0
      %5384 = vmatprep.mubr.f32.mxu0 0.0
      %5385 = vmatmul.mubr.f32.gmra.mxu0 %v5161
      %v5386 = vpop.f32.mrf.mxu0
      %v5387 = vadd.f32 0.0, %v5386
      %v5388 = vpop.f32.mrf.mxu0
      %5389 = vmatprep.mubr.f32.mxu0 0.0
      %5390 = vmatmul.mubr.f32.gmra.mxu0 %v5164
      %v5391 = vpop.f32.mrf.mxu0
      %v5392 = vadd.f32 0.0, %v5391
      %v5393 = vpop.f32.mrf.mxu0
      %5394 = vmatprep.mubr.f32.mxu0 0.0
      %5395 = vmatmul.mubr.f32.gmra.mxu0 %v5167
      %v5396 = vpop.f32.mrf.mxu0
      %v5397 = vadd.f32 0.0, %v5396
      %v5398 = vpop.f32.mrf.mxu0
      %5399 = vmatprep.mubr.f32.mxu0 0.0
      %5400 = vmatmul.mubr.f32.gmra.mxu0 %v5170
      %v5401 = vpop.f32.mrf.mxu0
      %v5402 = vadd.f32 0.0, %v5401
      %v5403 = vpop.f32.mrf.mxu0
      %5404 = vmatprep.mubr.f32.mxu0 0.0
      %5405 = vmatmul.mubr.f32.gmra.mxu0 %v5173
      %v5406 = vpop.f32.mrf.mxu0
      %v5407 = vadd.f32 0.0, %v5406
      %v5408 = vpop.f32.mrf.mxu0
      %5409 = vmatprep.mubr.f32.mxu0 0.0
      %5410 = vmatmul.mubr.f32.gmra.mxu0 %v5176
      %v5411 = vpop.f32.mrf.mxu0
      %v5412 = vadd.f32 0.0, %v5411
      %v5413 = vpop.f32.mrf.mxu0
      %5414 = vmatprep.mubr.f32.mxu0 0.0
      %5415 = vmatmul.mubr.f32.gmra.mxu0 %v5179
      %v5416 = vpop.f32.mrf.mxu0
      %v5417 = vadd.f32 0.0, %v5416
      %v5418 = vpop.f32.mrf.mxu0
      %5419 = vmatprep.mubr.f32.mxu0 0.0
      %5420 = vmatmul.mubr.f32.gmra.mxu0 %v5182
      %v5421 = vpop.f32.mrf.mxu0
      %v5422 = vadd.f32 0.0, %v5421
      %v5423 = vpop.f32.mrf.mxu0
      %5424 = vmatprep.mubr.f32.mxu0 0.0
      %5425 = vmatmul.mubr.f32.gmra.mxu0 %v5185
      %v5426 = vpop.f32.mrf.mxu0
      %v5427 = vadd.f32 0.0, %v5426
      %v5428 = vpop.f32.mrf.mxu0
      %5429 = vmatprep.mubr.f32.mxu0 0.0
      %5430 = vmatmul.mubr.f32.gmra.mxu0 %v5188
      %v5431 = vpop.f32.mrf.mxu0
      %v5432 = vadd.f32 0.0, %v5431
      %v5433 = vpop.f32.mrf.mxu0
      %5434 = vdwg.mxu0
      %v5435 = vadd.f32 %v5009, %v5257
      %v5436 = vadd.f32 %v5010, %v5262
      %v5437 = vadd.f32 %v5011, %v5267
      %v5438 = vadd.f32 %v5012, %v5272
      %v5439 = vadd.f32 %v5013, %v5277
      %v5440 = vadd.f32 %v5014, %v5282
      %v5441 = vadd.f32 %v5015, %v5287
      %v5442 = vadd.f32 %v5016, %v5292
      %v5443 = vadd.f32 %v5017, %v5297
      %v5444 = vadd.f32 %v5018, %v5302
      %v5445 = vadd.f32 %v5019, %v5307
      %v5446 = vadd.f32 %v5020, %v5312
      %v5447 = vadd.f32 %v5021, %v5317
      %v5448 = vadd.f32 %v5022, %v5322
      %v5449 = vadd.f32 %v5023, %v5327
      %v5450 = vadd.f32 %v5024, %v5332
      %v5451 = vadd.f32 %v5025, %v5337
      %v5452 = vadd.f32 %v5026, %v5342
      %v5453 = vadd.f32 %v5027, %v5347
      %v5454 = vadd.f32 %v5028, %v5352
      %v5455 = vadd.f32 %v5029, %v5357
      %v5456 = vadd.f32 %v5030, %v5362
      %v5457 = vadd.f32 %v5031, %v5367
      %v5458 = vadd.f32 %v5032, %v5372
      %v5459 = vadd.f32 %v5033, %v5377
      %v5460 = vadd.f32 %v5034, %v5382
      %v5461 = vadd.f32 %v5035, %v5387
      %v5462 = vadd.f32 %v5036, %v5392
      %v5463 = vadd.f32 %v5037, %v5397
      %v5464 = vadd.f32 %v5038, %v5402
      %v5465 = vadd.f32 %v5039, %v5407
      %v5466 = vadd.f32 %v5040, %v5412
      %v5467 = vadd.f32 %v5041, %v5417
      %v5468 = vadd.f32 %v5042, %v5422
      %v5469 = vadd.f32 %v5043, %v5427
      %v5470 = vadd.f32 %v5044, %v5432
      %v5471 = vld [vmem:[#allocation3 + $0x1] sm:$0xff]
      %v5472 = vld [vmem:[#allocation3 + $0x9] sm:$0xff]
      %v5473 = vld [vmem:[#allocation3 + $0x11] sm:$0xff]
      %v5474 = vld [vmem:[#allocation3 + $0x19] sm:$0xff]
      %v5475 = vld [vmem:[#allocation3 + $0x21] sm:$0xff]
      %v5476 = vld [vmem:[#allocation3 + $0x29] sm:$0xff]
      %v5477 = vld [vmem:[#allocation3 + $0x31] sm:$0xff]
      %v5478 = vld [vmem:[#allocation3 + $0x39] sm:$0xff]
      %v5479 = vld [vmem:[#allocation3 + $0x41] sm:$0xff]
      %v5480 = vld [vmem:[#allocation3 + $0x49] sm:$0xff]
      %v5481 = vld [vmem:[#allocation3 + $0x51] sm:$0xff]
      %v5482 = vld [vmem:[#allocation3 + $0x59] sm:$0xff]
      %v5483 = vld [vmem:[#allocation3 + $0x61] sm:$0xff]
      %v5484 = vld [vmem:[#allocation3 + $0x69] sm:$0xff]
      %v5485 = vld [vmem:[#allocation3 + $0x71] sm:$0xff]
      %v5486 = vld [vmem:[#allocation3 + $0x79] sm:$0xff]
      %v5487 = vld [vmem:[#allocation3 + $0x81] sm:$0xff]
      %v5488 = vld [vmem:[#allocation3 + $0x89] sm:$0xff]
      %v5489 = vld [vmem:[#allocation3 + $0x91] sm:$0xff]
      %v5490 = vld [vmem:[#allocation3 + $0x99] sm:$0xff]
      %v5491 = vld [vmem:[#allocation3 + $0xa1] sm:$0xff]
      %v5492 = vld [vmem:[#allocation3 + $0xa9] sm:$0xff]
      %v5493 = vld [vmem:[#allocation3 + $0xb1] sm:$0xff]
      %v5494 = vld [vmem:[#allocation3 + $0xb9] sm:$0xff]
      %v5495 = vld [vmem:[#allocation3 + $0xc1] sm:$0xff]
      %v5496 = vld [vmem:[#allocation3 + $0xc9] sm:$0xff]
      %v5497 = vld [vmem:[#allocation3 + $0xd1] sm:$0xff]
      %v5498 = vld [vmem:[#allocation3 + $0xd9] sm:$0xff]
      %v5499 = vld [vmem:[#allocation3 + $0xe1] sm:$0xff]
      %v5500 = vld [vmem:[#allocation3 + $0xe9] sm:$0xff]
      %v5501 = vld [vmem:[#allocation3 + $0xf1] sm:$0xff]
      %v5502 = vld [vmem:[#allocation3 + $0xf9] sm:$0xff]
      %v5503 = vld [vmem:[#allocation3 + $0x101] sm:$0xff]
      %v5504 = vld [vmem:[#allocation3 + $0x109] sm:$0xff]
      %v5505 = vld [vmem:[#allocation3 + $0x111] sm:$0xff]
      %v5506 = vld [vmem:[#allocation3 + $0x119] sm:$0xff]
      %s5507 = scalar_lea.vmem %s2, 8
      %v5508 = vld [vmem:[%s5507] sm:$0xff]
      %v5510 = vsel %vm171, %v5471, 0
      %v5513 = vsel %vm171, %v5472, 0
      %v5516 = vsel %vm171, %v5473, 0
      %v5519 = vsel %vm171, %v5474, 0
      %v5522 = vsel %vm171, %v5475, 0
      %v5525 = vsel %vm171, %v5476, 0
      %v5528 = vsel %vm171, %v5477, 0
      %v5531 = vsel %vm171, %v5478, 0
      %v5534 = vsel %vm171, %v5479, 0
      %v5537 = vsel %vm171, %v5480, 0
      %v5540 = vsel %vm171, %v5481, 0
      %v5543 = vsel %vm171, %v5482, 0
      %v5546 = vsel %vm171, %v5483, 0
      %v5549 = vsel %vm171, %v5484, 0
      %v5552 = vsel %vm171, %v5485, 0
      %v5555 = vsel %vm171, %v5486, 0
      %v5558 = vsel %vm171, %v5487, 0
      %v5561 = vsel %vm171, %v5488, 0
      %v5564 = vsel %vm171, %v5489, 0
      %v5567 = vsel %vm171, %v5490, 0
      %v5570 = vsel %vm171, %v5491, 0
      %v5573 = vsel %vm171, %v5492, 0
      %v5576 = vsel %vm171, %v5493, 0
      %v5579 = vsel %vm171, %v5494, 0
      %v5582 = vsel %vm171, %v5495, 0
      %v5585 = vsel %vm171, %v5496, 0
      %v5588 = vsel %vm171, %v5497, 0
      %v5591 = vsel %vm171, %v5498, 0
      %v5594 = vsel %vm171, %v5499, 0
      %v5597 = vsel %vm171, %v5500, 0
      %v5600 = vsel %vm171, %v5501, 0
      %v5603 = vsel %vm171, %v5502, 0
      %v5606 = vsel %vm171, %v5503, 0
      %v5609 = vsel %vm171, %v5504, 0
      %v5612 = vsel %vm171, %v5505, 0
      %v5615 = vsel %vm171, %v5506, 0
      %5617 = vmatprep.subr.mxu0 0.0
      %5618 = vmatpush1.msra.mxu0 0.0
      %5619 = vmatprep.subr.mxu0 0.0
      %5620 = vmatpush1.msra.mxu0 0.0
      %5621 = vmatprep.subr.mxu0 0.0
      %5622 = vmatpush1.msra.mxu0 0.0
      %5623 = vmatprep.subr.mxu0 0.0
      %5624 = vmatpush1.msra.mxu0 0.0
      %5625 = vmatprep.subr.mxu0 0.0
      %5626 = vmatpush1.msra.mxu0 0.0
      %5627 = vmatprep.subr.mxu0 0.0
      %5628 = vmatpush1.msra.mxu0 0.0
      %5629 = vmatprep.subr.mxu0 0.0
      %5630 = vmatpush1.msra.mxu0 0.0
      %5631 = vmatprep.subr.mxu0 0.0
      %5632 = vmatpush1.msra.mxu0 0.0
      %5633 = vmatprep.subr.mxu0 0.0
      %5634 = vmatpush1.msra.mxu0 0.0
      %5635 = vmatprep.subr.mxu0 0.0
      %5636 = vmatpush1.msra.mxu0 0.0
      %5637 = vmatprep.subr.mxu0 0.0
      %5638 = vmatpush1.msra.mxu0 0.0
      %5639 = vmatprep.subr.mxu0 0.0
      %5640 = vmatpush1.msra.mxu0 0.0
      %5641 = vmatprep.subr.mxu0 0.0
      %5642 = vmatpush1.msra.mxu0 0.0
      %5643 = vmatprep.subr.mxu0 0.0
      %5644 = vmatpush1.msra.mxu0 0.0
      %5645 = vmatprep.subr.mxu0 0.0
      %5646 = vmatpush1.msra.mxu0 0.0
      %5647 = vmatprep.subr.mxu0 0.0
      %5648 = vmatpush1.msra.mxu0 %v5508
      %5649 = vmatprep.subr.mxu0 0.0
      %5650 = vmatpush2.msra.mxu0 0.0
      %5651 = vmatprep.subr.mxu0 0.0
      %5652 = vmatpush2.msra.mxu0 0.0
      %5653 = vmatprep.subr.mxu0 0.0
      %5654 = vmatpush2.msra.mxu0 0.0
      %5655 = vmatprep.subr.mxu0 0.0
      %5656 = vmatpush2.msra.mxu0 0.0
      %5657 = vmatprep.subr.mxu0 0.0
      %5658 = vmatpush2.msra.mxu0 0.0
      %5659 = vmatprep.subr.mxu0 0.0
      %5660 = vmatpush2.msra.mxu0 0.0
      %5661 = vmatprep.subr.mxu0 0.0
      %5662 = vmatpush2.msra.mxu0 0.0
      %5663 = vmatprep.subr.mxu0 0.0
      %5664 = vmatpush2.msra.mxu0 0.0
      %5665 = vmatprep.subr.mxu0 0.0
      %5666 = vmatpush2.msra.mxu0 0.0
      %5667 = vmatprep.subr.mxu0 0.0
      %5668 = vmatpush2.msra.mxu0 0.0
      %5669 = vmatprep.subr.mxu0 0.0
      %5670 = vmatpush2.msra.mxu0 0.0
      %5671 = vmatprep.subr.mxu0 0.0
      %5672 = vmatpush2.msra.mxu0 0.0
      %5673 = vmatprep.subr.mxu0 0.0
      %5674 = vmatpush2.msra.mxu0 0.0
      %5675 = vmatprep.subr.mxu0 0.0
      %5676 = vmatpush2.msra.mxu0 0.0
      %5677 = vmatprep.subr.mxu0 0.0
      %5678 = vmatpush2.msra.mxu0 0.0
      %5679 = vmatprep.subr.mxu0 0.0
      %5680 = vmatpush2.msra.mxu0 0.0
      %5681 = vmatprep.mubr.f32.mxu0 0.0
      %5682 = vmatmul.mubr.f32.gmra.mxu0 %v5510
      %v5683 = vpop.f32.mrf.mxu0
      %v5684 = vadd.f32 0.0, %v5683
      %v5685 = vpop.f32.mrf.mxu0
      %5686 = vmatprep.mubr.f32.mxu0 0.0
      %5687 = vmatmul.mubr.f32.gmra.mxu0 %v5513
      %v5688 = vpop.f32.mrf.mxu0
      %v5689 = vadd.f32 0.0, %v5688
      %v5690 = vpop.f32.mrf.mxu0
      %5691 = vmatprep.mubr.f32.mxu0 0.0
      %5692 = vmatmul.mubr.f32.gmra.mxu0 %v5516
      %v5693 = vpop.f32.mrf.mxu0
      %v5694 = vadd.f32 0.0, %v5693
      %v5695 = vpop.f32.mrf.mxu0
      %5696 = vmatprep.mubr.f32.mxu0 0.0
      %5697 = vmatmul.mubr.f32.gmra.mxu0 %v5519
      %v5698 = vpop.f32.mrf.mxu0
      %v5699 = vadd.f32 0.0, %v5698
      %v5700 = vpop.f32.mrf.mxu0
      %5701 = vmatprep.mubr.f32.mxu0 0.0
      %5702 = vmatmul.mubr.f32.gmra.mxu0 %v5522
      %v5703 = vpop.f32.mrf.mxu0
      %v5704 = vadd.f32 0.0, %v5703
      %v5705 = vpop.f32.mrf.mxu0
      %5706 = vmatprep.mubr.f32.mxu0 0.0
      %5707 = vmatmul.mubr.f32.gmra.mxu0 %v5525
      %v5708 = vpop.f32.mrf.mxu0
      %v5709 = vadd.f32 0.0, %v5708
      %v5710 = vpop.f32.mrf.mxu0
      %5711 = vmatprep.mubr.f32.mxu0 0.0
      %5712 = vmatmul.mubr.f32.gmra.mxu0 %v5528
      %v5713 = vpop.f32.mrf.mxu0
      %v5714 = vadd.f32 0.0, %v5713
      %v5715 = vpop.f32.mrf.mxu0
      %5716 = vmatprep.mubr.f32.mxu0 0.0
      %5717 = vmatmul.mubr.f32.gmra.mxu0 %v5531
      %v5718 = vpop.f32.mrf.mxu0
      %v5719 = vadd.f32 0.0, %v5718
      %v5720 = vpop.f32.mrf.mxu0
      %5721 = vmatprep.mubr.f32.mxu0 0.0
      %5722 = vmatmul.mubr.f32.gmra.mxu0 %v5534
      %v5723 = vpop.f32.mrf.mxu0
      %v5724 = vadd.f32 0.0, %v5723
      %v5725 = vpop.f32.mrf.mxu0
      %5726 = vmatprep.mubr.f32.mxu0 0.0
      %5727 = vmatmul.mubr.f32.gmra.mxu0 %v5537
      %v5728 = vpop.f32.mrf.mxu0
      %v5729 = vadd.f32 0.0, %v5728
      %v5730 = vpop.f32.mrf.mxu0
      %5731 = vmatprep.mubr.f32.mxu0 0.0
      %5732 = vmatmul.mubr.f32.gmra.mxu0 %v5540
      %v5733 = vpop.f32.mrf.mxu0
      %v5734 = vadd.f32 0.0, %v5733
      %v5735 = vpop.f32.mrf.mxu0
      %5736 = vmatprep.mubr.f32.mxu0 0.0
      %5737 = vmatmul.mubr.f32.gmra.mxu0 %v5543
      %v5738 = vpop.f32.mrf.mxu0
      %v5739 = vadd.f32 0.0, %v5738
      %v5740 = vpop.f32.mrf.mxu0
      %5741 = vmatprep.mubr.f32.mxu0 0.0
      %5742 = vmatmul.mubr.f32.gmra.mxu0 %v5546
      %v5743 = vpop.f32.mrf.mxu0
      %v5744 = vadd.f32 0.0, %v5743
      %v5745 = vpop.f32.mrf.mxu0
      %5746 = vmatprep.mubr.f32.mxu0 0.0
      %5747 = vmatmul.mubr.f32.gmra.mxu0 %v5549
      %v5748 = vpop.f32.mrf.mxu0
      %v5749 = vadd.f32 0.0, %v5748
      %v5750 = vpop.f32.mrf.mxu0
      %5751 = vmatprep.mubr.f32.mxu0 0.0
      %5752 = vmatmul.mubr.f32.gmra.mxu0 %v5552
      %v5753 = vpop.f32.mrf.mxu0
      %v5754 = vadd.f32 0.0, %v5753
      %v5755 = vpop.f32.mrf.mxu0
      %5756 = vmatprep.mubr.f32.mxu0 0.0
      %5757 = vmatmul.mubr.f32.gmra.mxu0 %v5555
      %v5758 = vpop.f32.mrf.mxu0
      %v5759 = vadd.f32 0.0, %v5758
      %v5760 = vpop.f32.mrf.mxu0
      %5761 = vmatprep.mubr.f32.mxu0 0.0
      %5762 = vmatmul.mubr.f32.gmra.mxu0 %v5558
      %v5763 = vpop.f32.mrf.mxu0
      %v5764 = vadd.f32 0.0, %v5763
      %v5765 = vpop.f32.mrf.mxu0
      %5766 = vmatprep.mubr.f32.mxu0 0.0
      %5767 = vmatmul.mubr.f32.gmra.mxu0 %v5561
      %v5768 = vpop.f32.mrf.mxu0
      %v5769 = vadd.f32 0.0, %v5768
      %v5770 = vpop.f32.mrf.mxu0
      %5771 = vmatprep.mubr.f32.mxu0 0.0
      %5772 = vmatmul.mubr.f32.gmra.mxu0 %v5564
      %v5773 = vpop.f32.mrf.mxu0
      %v5774 = vadd.f32 0.0, %v5773
      %v5775 = vpop.f32.mrf.mxu0
      %5776 = vmatprep.mubr.f32.mxu0 0.0
      %5777 = vmatmul.mubr.f32.gmra.mxu0 %v5567
      %v5778 = vpop.f32.mrf.mxu0
      %v5779 = vadd.f32 0.0, %v5778
      %v5780 = vpop.f32.mrf.mxu0
      %5781 = vmatprep.mubr.f32.mxu0 0.0
      %5782 = vmatmul.mubr.f32.gmra.mxu0 %v5570
      %v5783 = vpop.f32.mrf.mxu0
      %v5784 = vadd.f32 0.0, %v5783
      %v5785 = vpop.f32.mrf.mxu0
      %5786 = vmatprep.mubr.f32.mxu0 0.0
      %5787 = vmatmul.mubr.f32.gmra.mxu0 %v5573
      %v5788 = vpop.f32.mrf.mxu0
      %v5789 = vadd.f32 0.0, %v5788
      %v5790 = vpop.f32.mrf.mxu0
      %5791 = vmatprep.mubr.f32.mxu0 0.0
      %5792 = vmatmul.mubr.f32.gmra.mxu0 %v5576
      %v5793 = vpop.f32.mrf.mxu0
      %v5794 = vadd.f32 0.0, %v5793
      %v5795 = vpop.f32.mrf.mxu0
      %5796 = vmatprep.mubr.f32.mxu0 0.0
      %5797 = vmatmul.mubr.f32.gmra.mxu0 %v5579
      %v5798 = vpop.f32.mrf.mxu0
      %v5799 = vadd.f32 0.0, %v5798
      %v5800 = vpop.f32.mrf.mxu0
      %5801 = vmatprep.mubr.f32.mxu0 0.0
      %5802 = vmatmul.mubr.f32.gmra.mxu0 %v5582
      %v5803 = vpop.f32.mrf.mxu0
      %v5804 = vadd.f32 0.0, %v5803
      %v5805 = vpop.f32.mrf.mxu0
      %5806 = vmatprep.mubr.f32.mxu0 0.0
      %5807 = vmatmul.mubr.f32.gmra.mxu0 %v5585
      %v5808 = vpop.f32.mrf.mxu0
      %v5809 = vadd.f32 0.0, %v5808
      %v5810 = vpop.f32.mrf.mxu0
      %5811 = vmatprep.mubr.f32.mxu0 0.0
      %5812 = vmatmul.mubr.f32.gmra.mxu0 %v5588
      %v5813 = vpop.f32.mrf.mxu0
      %v5814 = vadd.f32 0.0, %v5813
      %v5815 = vpop.f32.mrf.mxu0
      %5816 = vmatprep.mubr.f32.mxu0 0.0
      %5817 = vmatmul.mubr.f32.gmra.mxu0 %v5591
      %v5818 = vpop.f32.mrf.mxu0
      %v5819 = vadd.f32 0.0, %v5818
      %v5820 = vpop.f32.mrf.mxu0
      %5821 = vmatprep.mubr.f32.mxu0 0.0
      %5822 = vmatmul.mubr.f32.gmra.mxu0 %v5594
      %v5823 = vpop.f32.mrf.mxu0
      %v5824 = vadd.f32 0.0, %v5823
      %v5825 = vpop.f32.mrf.mxu0
      %5826 = vmatprep.mubr.f32.mxu0 0.0
      %5827 = vmatmul.mubr.f32.gmra.mxu0 %v5597
      %v5828 = vpop.f32.mrf.mxu0
      %v5829 = vadd.f32 0.0, %v5828
      %v5830 = vpop.f32.mrf.mxu0
      %5831 = vmatprep.mubr.f32.mxu0 0.0
      %5832 = vmatmul.mubr.f32.gmra.mxu0 %v5600
      %v5833 = vpop.f32.mrf.mxu0
      %v5834 = vadd.f32 0.0, %v5833
      %v5835 = vpop.f32.mrf.mxu0
      %5836 = vmatprep.mubr.f32.mxu0 0.0
      %5837 = vmatmul.mubr.f32.gmra.mxu0 %v5603
      %v5838 = vpop.f32.mrf.mxu0
      %v5839 = vadd.f32 0.0, %v5838
      %v5840 = vpop.f32.mrf.mxu0
      %5841 = vmatprep.mubr.f32.mxu0 0.0
      %5842 = vmatmul.mubr.f32.gmra.mxu0 %v5606
      %v5843 = vpop.f32.mrf.mxu0
      %v5844 = vadd.f32 0.0, %v5843
      %v5845 = vpop.f32.mrf.mxu0
      %5846 = vmatprep.mubr.f32.mxu0 0.0
      %5847 = vmatmul.mubr.f32.gmra.mxu0 %v5609
      %v5848 = vpop.f32.mrf.mxu0
      %v5849 = vadd.f32 0.0, %v5848
      %v5850 = vpop.f32.mrf.mxu0
      %5851 = vmatprep.mubr.f32.mxu0 0.0
      %5852 = vmatmul.mubr.f32.gmra.mxu0 %v5612
      %v5853 = vpop.f32.mrf.mxu0
      %v5854 = vadd.f32 0.0, %v5853
      %v5855 = vpop.f32.mrf.mxu0
      %5856 = vmatprep.mubr.f32.mxu0 0.0
      %5857 = vmatmul.mubr.f32.gmra.mxu0 %v5615
      %v5858 = vpop.f32.mrf.mxu0
      %v5859 = vadd.f32 0.0, %v5858
      %v5860 = vpop.f32.mrf.mxu0
      %5861 = vdwg.mxu0
      %v5862 = vadd.f32 %v5435, %v5684
      %v5863 = vadd.f32 %v5436, %v5689
      %v5864 = vadd.f32 %v5437, %v5694
      %v5865 = vadd.f32 %v5438, %v5699
      %v5866 = vadd.f32 %v5439, %v5704
      %v5867 = vadd.f32 %v5440, %v5709
      %v5868 = vadd.f32 %v5441, %v5714
      %v5869 = vadd.f32 %v5442, %v5719
      %v5870 = vadd.f32 %v5443, %v5724
      %v5871 = vadd.f32 %v5444, %v5729
      %v5872 = vadd.f32 %v5445, %v5734
      %v5873 = vadd.f32 %v5446, %v5739
      %v5874 = vadd.f32 %v5447, %v5744
      %v5875 = vadd.f32 %v5448, %v5749
      %v5876 = vadd.f32 %v5449, %v5754
      %v5877 = vadd.f32 %v5450, %v5759
      %v5878 = vadd.f32 %v5451, %v5764
      %v5879 = vadd.f32 %v5452, %v5769
      %v5880 = vadd.f32 %v5453, %v5774
      %v5881 = vadd.f32 %v5454, %v5779
      %v5882 = vadd.f32 %v5455, %v5784
      %v5883 = vadd.f32 %v5456, %v5789
      %v5884 = vadd.f32 %v5457, %v5794
      %v5885 = vadd.f32 %v5458, %v5799
      %v5886 = vadd.f32 %v5459, %v5804
      %v5887 = vadd.f32 %v5460, %v5809
      %v5888 = vadd.f32 %v5461, %v5814
      %v5889 = vadd.f32 %v5462, %v5819
      %v5890 = vadd.f32 %v5463, %v5824
      %v5891 = vadd.f32 %v5464, %v5829
      %v5892 = vadd.f32 %v5465, %v5834
      %v5893 = vadd.f32 %v5466, %v5839
      %v5894 = vadd.f32 %v5467, %v5844
      %v5895 = vadd.f32 %v5468, %v5849
      %v5896 = vadd.f32 %v5469, %v5854
      %v5897 = vadd.f32 %v5470, %v5859
      %v5898 = vld [vmem:[#allocation3 + $0x2] sm:$0xff]
      %v5899 = vld [vmem:[#allocation3 + $0xa] sm:$0xff]
      %v5900 = vld [vmem:[#allocation3 + $0x12] sm:$0xff]
      %v5901 = vld [vmem:[#allocation3 + $0x1a] sm:$0xff]
      %v5902 = vld [vmem:[#allocation3 + $0x22] sm:$0xff]
      %v5903 = vld [vmem:[#allocation3 + $0x2a] sm:$0xff]
      %v5904 = vld [vmem:[#allocation3 + $0x32] sm:$0xff]
      %v5905 = vld [vmem:[#allocation3 + $0x3a] sm:$0xff]
      %v5906 = vld [vmem:[#allocation3 + $0x42] sm:$0xff]
      %v5907 = vld [vmem:[#allocation3 + $0x4a] sm:$0xff]
      %v5908 = vld [vmem:[#allocation3 + $0x52] sm:$0xff]
      %v5909 = vld [vmem:[#allocation3 + $0x5a] sm:$0xff]
      %v5910 = vld [vmem:[#allocation3 + $0x62] sm:$0xff]
      %v5911 = vld [vmem:[#allocation3 + $0x6a] sm:$0xff]
      %v5912 = vld [vmem:[#allocation3 + $0x72] sm:$0xff]
      %v5913 = vld [vmem:[#allocation3 + $0x7a] sm:$0xff]
      %v5914 = vld [vmem:[#allocation3 + $0x82] sm:$0xff]
      %v5915 = vld [vmem:[#allocation3 + $0x8a] sm:$0xff]
      %v5916 = vld [vmem:[#allocation3 + $0x92] sm:$0xff]
      %v5917 = vld [vmem:[#allocation3 + $0x9a] sm:$0xff]
      %v5918 = vld [vmem:[#allocation3 + $0xa2] sm:$0xff]
      %v5919 = vld [vmem:[#allocation3 + $0xaa] sm:$0xff]
      %v5920 = vld [vmem:[#allocation3 + $0xb2] sm:$0xff]
      %v5921 = vld [vmem:[#allocation3 + $0xba] sm:$0xff]
      %v5922 = vld [vmem:[#allocation3 + $0xc2] sm:$0xff]
      %v5923 = vld [vmem:[#allocation3 + $0xca] sm:$0xff]
      %v5924 = vld [vmem:[#allocation3 + $0xd2] sm:$0xff]
      %v5925 = vld [vmem:[#allocation3 + $0xda] sm:$0xff]
      %v5926 = vld [vmem:[#allocation3 + $0xe2] sm:$0xff]
      %v5927 = vld [vmem:[#allocation3 + $0xea] sm:$0xff]
      %v5928 = vld [vmem:[#allocation3 + $0xf2] sm:$0xff]
      %v5929 = vld [vmem:[#allocation3 + $0xfa] sm:$0xff]
      %v5930 = vld [vmem:[#allocation3 + $0x102] sm:$0xff]
      %v5931 = vld [vmem:[#allocation3 + $0x10a] sm:$0xff]
      %v5932 = vld [vmem:[#allocation3 + $0x112] sm:$0xff]
      %v5933 = vld [vmem:[#allocation3 + $0x11a] sm:$0xff]
      %s5934 = scalar_lea.vmem %s2, 16
      %v5935 = vld [vmem:[%s5934] sm:$0xff]
      %v5937 = vsel %vm171, %v5898, 0
      %v5940 = vsel %vm171, %v5899, 0
      %v5943 = vsel %vm171, %v5900, 0
      %v5946 = vsel %vm171, %v5901, 0
      %v5949 = vsel %vm171, %v5902, 0
      %v5952 = vsel %vm171, %v5903, 0
      %v5955 = vsel %vm171, %v5904, 0
      %v5958 = vsel %vm171, %v5905, 0
      %v5961 = vsel %vm171, %v5906, 0
      %v5964 = vsel %vm171, %v5907, 0
      %v5967 = vsel %vm171, %v5908, 0
      %v5970 = vsel %vm171, %v5909, 0
      %v5973 = vsel %vm171, %v5910, 0
      %v5976 = vsel %vm171, %v5911, 0
      %v5979 = vsel %vm171, %v5912, 0
      %v5982 = vsel %vm171, %v5913, 0
      %v5985 = vsel %vm171, %v5914, 0
      %v5988 = vsel %vm171, %v5915, 0
      %v5991 = vsel %vm171, %v5916, 0
      %v5994 = vsel %vm171, %v5917, 0
      %v5997 = vsel %vm171, %v5918, 0
      %v6000 = vsel %vm171, %v5919, 0
      %v6003 = vsel %vm171, %v5920, 0
      %v6006 = vsel %vm171, %v5921, 0
      %v6009 = vsel %vm171, %v5922, 0
      %v6012 = vsel %vm171, %v5923, 0
      %v6015 = vsel %vm171, %v5924, 0
      %v6018 = vsel %vm171, %v5925, 0
      %v6021 = vsel %vm171, %v5926, 0
      %v6024 = vsel %vm171, %v5927, 0
      %v6027 = vsel %vm171, %v5928, 0
      %v6030 = vsel %vm171, %v5929, 0
      %v6033 = vsel %vm171, %v5930, 0
      %v6036 = vsel %vm171, %v5931, 0
      %v6039 = vsel %vm171, %v5932, 0
      %v6042 = vsel %vm171, %v5933, 0
      %6044 = vmatprep.subr.mxu0 0.0
      %6045 = vmatpush1.msra.mxu0 0.0
      %6046 = vmatprep.subr.mxu0 0.0
      %6047 = vmatpush1.msra.mxu0 0.0
      %6048 = vmatprep.subr.mxu0 0.0
      %6049 = vmatpush1.msra.mxu0 0.0
      %6050 = vmatprep.subr.mxu0 0.0
      %6051 = vmatpush1.msra.mxu0 0.0
      %6052 = vmatprep.subr.mxu0 0.0
      %6053 = vmatpush1.msra.mxu0 0.0
      %6054 = vmatprep.subr.mxu0 0.0
      %6055 = vmatpush1.msra.mxu0 0.0
      %6056 = vmatprep.subr.mxu0 0.0
      %6057 = vmatpush1.msra.mxu0 0.0
      %6058 = vmatprep.subr.mxu0 0.0
      %6059 = vmatpush1.msra.mxu0 0.0
      %6060 = vmatprep.subr.mxu0 0.0
      %6061 = vmatpush1.msra.mxu0 0.0
      %6062 = vmatprep.subr.mxu0 0.0
      %6063 = vmatpush1.msra.mxu0 0.0
      %6064 = vmatprep.subr.mxu0 0.0
      %6065 = vmatpush1.msra.mxu0 0.0
      %6066 = vmatprep.subr.mxu0 0.0
      %6067 = vmatpush1.msra.mxu0 0.0
      %6068 = vmatprep.subr.mxu0 0.0
      %6069 = vmatpush1.msra.mxu0 0.0
      %6070 = vmatprep.subr.mxu0 0.0
      %6071 = vmatpush1.msra.mxu0 0.0
      %6072 = vmatprep.subr.mxu0 0.0
      %6073 = vmatpush1.msra.mxu0 0.0
      %6074 = vmatprep.subr.mxu0 0.0
      %6075 = vmatpush1.msra.mxu0 %v5935
      %6076 = vmatprep.subr.mxu0 0.0
      %6077 = vmatpush2.msra.mxu0 0.0
      %6078 = vmatprep.subr.mxu0 0.0
      %6079 = vmatpush2.msra.mxu0 0.0
      %6080 = vmatprep.subr.mxu0 0.0
      %6081 = vmatpush2.msra.mxu0 0.0
      %6082 = vmatprep.subr.mxu0 0.0
      %6083 = vmatpush2.msra.mxu0 0.0
      %6084 = vmatprep.subr.mxu0 0.0
      %6085 = vmatpush2.msra.mxu0 0.0
      %6086 = vmatprep.subr.mxu0 0.0
      %6087 = vmatpush2.msra.mxu0 0.0
      %6088 = vmatprep.subr.mxu0 0.0
      %6089 = vmatpush2.msra.mxu0 0.0
      %6090 = vmatprep.subr.mxu0 0.0
      %6091 = vmatpush2.msra.mxu0 0.0
      %6092 = vmatprep.subr.mxu0 0.0
      %6093 = vmatpush2.msra.mxu0 0.0
      %6094 = vmatprep.subr.mxu0 0.0
      %6095 = vmatpush2.msra.mxu0 0.0
      %6096 = vmatprep.subr.mxu0 0.0
      %6097 = vmatpush2.msra.mxu0 0.0
      %6098 = vmatprep.subr.mxu0 0.0
      %6099 = vmatpush2.msra.mxu0 0.0
      %6100 = vmatprep.subr.mxu0 0.0
      %6101 = vmatpush2.msra.mxu0 0.0
      %6102 = vmatprep.subr.mxu0 0.0
      %6103 = vmatpush2.msra.mxu0 0.0
      %6104 = vmatprep.subr.mxu0 0.0
      %6105 = vmatpush2.msra.mxu0 0.0
      %6106 = vmatprep.subr.mxu0 0.0
      %6107 = vmatpush2.msra.mxu0 0.0
      %6108 = vmatprep.mubr.f32.mxu0 0.0
      %6109 = vmatmul.mubr.f32.gmra.mxu0 %v5937
      %v6110 = vpop.f32.mrf.mxu0
      %v6111 = vadd.f32 0.0, %v6110
      %v6112 = vpop.f32.mrf.mxu0
      %6113 = vmatprep.mubr.f32.mxu0 0.0
      %6114 = vmatmul.mubr.f32.gmra.mxu0 %v5940
      %v6115 = vpop.f32.mrf.mxu0
      %v6116 = vadd.f32 0.0, %v6115
      %v6117 = vpop.f32.mrf.mxu0
      %6118 = vmatprep.mubr.f32.mxu0 0.0
      %6119 = vmatmul.mubr.f32.gmra.mxu0 %v5943
      %v6120 = vpop.f32.mrf.mxu0
      %v6121 = vadd.f32 0.0, %v6120
      %v6122 = vpop.f32.mrf.mxu0
      %6123 = vmatprep.mubr.f32.mxu0 0.0
      %6124 = vmatmul.mubr.f32.gmra.mxu0 %v5946
      %v6125 = vpop.f32.mrf.mxu0
      %v6126 = vadd.f32 0.0, %v6125
      %v6127 = vpop.f32.mrf.mxu0
      %6128 = vmatprep.mubr.f32.mxu0 0.0
      %6129 = vmatmul.mubr.f32.gmra.mxu0 %v5949
      %v6130 = vpop.f32.mrf.mxu0
      %v6131 = vadd.f32 0.0, %v6130
      %v6132 = vpop.f32.mrf.mxu0
      %6133 = vmatprep.mubr.f32.mxu0 0.0
      %6134 = vmatmul.mubr.f32.gmra.mxu0 %v5952
      %v6135 = vpop.f32.mrf.mxu0
      %v6136 = vadd.f32 0.0, %v6135
      %v6137 = vpop.f32.mrf.mxu0
      %6138 = vmatprep.mubr.f32.mxu0 0.0
      %6139 = vmatmul.mubr.f32.gmra.mxu0 %v5955
      %v6140 = vpop.f32.mrf.mxu0
      %v6141 = vadd.f32 0.0, %v6140
      %v6142 = vpop.f32.mrf.mxu0
      %6143 = vmatprep.mubr.f32.mxu0 0.0
      %6144 = vmatmul.mubr.f32.gmra.mxu0 %v5958
      %v6145 = vpop.f32.mrf.mxu0
      %v6146 = vadd.f32 0.0, %v6145
      %v6147 = vpop.f32.mrf.mxu0
      %6148 = vmatprep.mubr.f32.mxu0 0.0
      %6149 = vmatmul.mubr.f32.gmra.mxu0 %v5961
      %v6150 = vpop.f32.mrf.mxu0
      %v6151 = vadd.f32 0.0, %v6150
      %v6152 = vpop.f32.mrf.mxu0
      %6153 = vmatprep.mubr.f32.mxu0 0.0
      %6154 = vmatmul.mubr.f32.gmra.mxu0 %v5964
      %v6155 = vpop.f32.mrf.mxu0
      %v6156 = vadd.f32 0.0, %v6155
      %v6157 = vpop.f32.mrf.mxu0
      %6158 = vmatprep.mubr.f32.mxu0 0.0
      %6159 = vmatmul.mubr.f32.gmra.mxu0 %v5967
      %v6160 = vpop.f32.mrf.mxu0
      %v6161 = vadd.f32 0.0, %v6160
      %v6162 = vpop.f32.mrf.mxu0
      %6163 = vmatprep.mubr.f32.mxu0 0.0
      %6164 = vmatmul.mubr.f32.gmra.mxu0 %v5970
      %v6165 = vpop.f32.mrf.mxu0
      %v6166 = vadd.f32 0.0, %v6165
      %v6167 = vpop.f32.mrf.mxu0
      %6168 = vmatprep.mubr.f32.mxu0 0.0
      %6169 = vmatmul.mubr.f32.gmra.mxu0 %v5973
      %v6170 = vpop.f32.mrf.mxu0
      %v6171 = vadd.f32 0.0, %v6170
      %v6172 = vpop.f32.mrf.mxu0
      %6173 = vmatprep.mubr.f32.mxu0 0.0
      %6174 = vmatmul.mubr.f32.gmra.mxu0 %v5976
      %v6175 = vpop.f32.mrf.mxu0
      %v6176 = vadd.f32 0.0, %v6175
      %v6177 = vpop.f32.mrf.mxu0
      %6178 = vmatprep.mubr.f32.mxu0 0.0
      %6179 = vmatmul.mubr.f32.gmra.mxu0 %v5979
      %v6180 = vpop.f32.mrf.mxu0
      %v6181 = vadd.f32 0.0, %v6180
      %v6182 = vpop.f32.mrf.mxu0
      %6183 = vmatprep.mubr.f32.mxu0 0.0
      %6184 = vmatmul.mubr.f32.gmra.mxu0 %v5982
      %v6185 = vpop.f32.mrf.mxu0
      %v6186 = vadd.f32 0.0, %v6185
      %v6187 = vpop.f32.mrf.mxu0
      %6188 = vmatprep.mubr.f32.mxu0 0.0
      %6189 = vmatmul.mubr.f32.gmra.mxu0 %v5985
      %v6190 = vpop.f32.mrf.mxu0
      %v6191 = vadd.f32 0.0, %v6190
      %v6192 = vpop.f32.mrf.mxu0
      %6193 = vmatprep.mubr.f32.mxu0 0.0
      %6194 = vmatmul.mubr.f32.gmra.mxu0 %v5988
      %v6195 = vpop.f32.mrf.mxu0
      %v6196 = vadd.f32 0.0, %v6195
      %v6197 = vpop.f32.mrf.mxu0
      %6198 = vmatprep.mubr.f32.mxu0 0.0
      %6199 = vmatmul.mubr.f32.gmra.mxu0 %v5991
      %v6200 = vpop.f32.mrf.mxu0
      %v6201 = vadd.f32 0.0, %v6200
      %v6202 = vpop.f32.mrf.mxu0
      %6203 = vmatprep.mubr.f32.mxu0 0.0
      %6204 = vmatmul.mubr.f32.gmra.mxu0 %v5994
      %v6205 = vpop.f32.mrf.mxu0
      %v6206 = vadd.f32 0.0, %v6205
      %v6207 = vpop.f32.mrf.mxu0
      %6208 = vmatprep.mubr.f32.mxu0 0.0
      %6209 = vmatmul.mubr.f32.gmra.mxu0 %v5997
      %v6210 = vpop.f32.mrf.mxu0
      %v6211 = vadd.f32 0.0, %v6210
      %v6212 = vpop.f32.mrf.mxu0
      %6213 = vmatprep.mubr.f32.mxu0 0.0
      %6214 = vmatmul.mubr.f32.gmra.mxu0 %v6000
      %v6215 = vpop.f32.mrf.mxu0
      %v6216 = vadd.f32 0.0, %v6215
      %v6217 = vpop.f32.mrf.mxu0
      %6218 = vmatprep.mubr.f32.mxu0 0.0
      %6219 = vmatmul.mubr.f32.gmra.mxu0 %v6003
      %v6220 = vpop.f32.mrf.mxu0
      %v6221 = vadd.f32 0.0, %v6220
      %v6222 = vpop.f32.mrf.mxu0
      %6223 = vmatprep.mubr.f32.mxu0 0.0
      %6224 = vmatmul.mubr.f32.gmra.mxu0 %v6006
      %v6225 = vpop.f32.mrf.mxu0
      %v6226 = vadd.f32 0.0, %v6225
      %v6227 = vpop.f32.mrf.mxu0
      %6228 = vmatprep.mubr.f32.mxu0 0.0
      %6229 = vmatmul.mubr.f32.gmra.mxu0 %v6009
      %v6230 = vpop.f32.mrf.mxu0
      %v6231 = vadd.f32 0.0, %v6230
      %v6232 = vpop.f32.mrf.mxu0
      %6233 = vmatprep.mubr.f32.mxu0 0.0
      %6234 = vmatmul.mubr.f32.gmra.mxu0 %v6012
      %v6235 = vpop.f32.mrf.mxu0
      %v6236 = vadd.f32 0.0, %v6235
      %v6237 = vpop.f32.mrf.mxu0
      %6238 = vmatprep.mubr.f32.mxu0 0.0
      %6239 = vmatmul.mubr.f32.gmra.mxu0 %v6015
      %v6240 = vpop.f32.mrf.mxu0
      %v6241 = vadd.f32 0.0, %v6240
      %v6242 = vpop.f32.mrf.mxu0
      %6243 = vmatprep.mubr.f32.mxu0 0.0
      %6244 = vmatmul.mubr.f32.gmra.mxu0 %v6018
      %v6245 = vpop.f32.mrf.mxu0
      %v6246 = vadd.f32 0.0, %v6245
      %v6247 = vpop.f32.mrf.mxu0
      %6248 = vmatprep.mubr.f32.mxu0 0.0
      %6249 = vmatmul.mubr.f32.gmra.mxu0 %v6021
      %v6250 = vpop.f32.mrf.mxu0
      %v6251 = vadd.f32 0.0, %v6250
      %v6252 = vpop.f32.mrf.mxu0
      %6253 = vmatprep.mubr.f32.mxu0 0.0
      %6254 = vmatmul.mubr.f32.gmra.mxu0 %v6024
      %v6255 = vpop.f32.mrf.mxu0
      %v6256 = vadd.f32 0.0, %v6255
      %v6257 = vpop.f32.mrf.mxu0
      %6258 = vmatprep.mubr.f32.mxu0 0.0
      %6259 = vmatmul.mubr.f32.gmra.mxu0 %v6027
      %v6260 = vpop.f32.mrf.mxu0
      %v6261 = vadd.f32 0.0, %v6260
      %v6262 = vpop.f32.mrf.mxu0
      %6263 = vmatprep.mubr.f32.mxu0 0.0
      %6264 = vmatmul.mubr.f32.gmra.mxu0 %v6030
      %v6265 = vpop.f32.mrf.mxu0
      %v6266 = vadd.f32 0.0, %v6265
      %v6267 = vpop.f32.mrf.mxu0
      %6268 = vmatprep.mubr.f32.mxu0 0.0
      %6269 = vmatmul.mubr.f32.gmra.mxu0 %v6033
      %v6270 = vpop.f32.mrf.mxu0
      %v6271 = vadd.f32 0.0, %v6270
      %v6272 = vpop.f32.mrf.mxu0
      %6273 = vmatprep.mubr.f32.mxu0 0.0
      %6274 = vmatmul.mubr.f32.gmra.mxu0 %v6036
      %v6275 = vpop.f32.mrf.mxu0
      %v6276 = vadd.f32 0.0, %v6275
      %v6277 = vpop.f32.mrf.mxu0
      %6278 = vmatprep.mubr.f32.mxu0 0.0
      %6279 = vmatmul.mubr.f32.gmra.mxu0 %v6039
      %v6280 = vpop.f32.mrf.mxu0
      %v6281 = vadd.f32 0.0, %v6280
      %v6282 = vpop.f32.mrf.mxu0
      %6283 = vmatprep.mubr.f32.mxu0 0.0
      %6284 = vmatmul.mubr.f32.gmra.mxu0 %v6042
      %v6285 = vpop.f32.mrf.mxu0
      %v6286 = vadd.f32 0.0, %v6285
      %v6287 = vpop.f32.mrf.mxu0
      %6288 = vdwg.mxu0
      %v6289 = vadd.f32 %v5862, %v6111
      %v6290 = vadd.f32 %v5863, %v6116
      %v6291 = vadd.f32 %v5864, %v6121
      %v6292 = vadd.f32 %v5865, %v6126
      %v6293 = vadd.f32 %v5866, %v6131
      %v6294 = vadd.f32 %v5867, %v6136
      %v6295 = vadd.f32 %v5868, %v6141
      %v6296 = vadd.f32 %v5869, %v6146
      %v6297 = vadd.f32 %v5870, %v6151
      %v6298 = vadd.f32 %v5871, %v6156
      %v6299 = vadd.f32 %v5872, %v6161
      %v6300 = vadd.f32 %v5873, %v6166
      %v6301 = vadd.f32 %v5874, %v6171
      %v6302 = vadd.f32 %v5875, %v6176
      %v6303 = vadd.f32 %v5876, %v6181
      %v6304 = vadd.f32 %v5877, %v6186
      %v6305 = vadd.f32 %v5878, %v6191
      %v6306 = vadd.f32 %v5879, %v6196
      %v6307 = vadd.f32 %v5880, %v6201
      %v6308 = vadd.f32 %v5881, %v6206
      %v6309 = vadd.f32 %v5882, %v6211
      %v6310 = vadd.f32 %v5883, %v6216
      %v6311 = vadd.f32 %v5884, %v6221
      %v6312 = vadd.f32 %v5885, %v6226
      %v6313 = vadd.f32 %v5886, %v6231
      %v6314 = vadd.f32 %v5887, %v6236
      %v6315 = vadd.f32 %v5888, %v6241
      %v6316 = vadd.f32 %v5889, %v6246
      %v6317 = vadd.f32 %v5890, %v6251
      %v6318 = vadd.f32 %v5891, %v6256
      %v6319 = vadd.f32 %v5892, %v6261
      %v6320 = vadd.f32 %v5893, %v6266
      %v6321 = vadd.f32 %v5894, %v6271
      %v6322 = vadd.f32 %v5895, %v6276
      %v6323 = vadd.f32 %v5896, %v6281
      %v6324 = vadd.f32 %v5897, %v6286
      %v6325 = vld [vmem:[#allocation3 + $0x12] sm:$0xff]
      %v6326 = vld [vmem:[#allocation3 + $0x1a] sm:$0xff]
      %v6327 = vld [vmem:[#allocation3 + $0x22] sm:$0xff]
      %v6328 = vld [vmem:[#allocation3 + $0x2a] sm:$0xff]
      %v6329 = vld [vmem:[#allocation3 + $0x32] sm:$0xff]
      %v6330 = vld [vmem:[#allocation3 + $0x3a] sm:$0xff]
      %v6331 = vld [vmem:[#allocation3 + $0x42] sm:$0xff]
      %v6332 = vld [vmem:[#allocation3 + $0x4a] sm:$0xff]
      %v6333 = vld [vmem:[#allocation3 + $0x52] sm:$0xff]
      %v6334 = vld [vmem:[#allocation3 + $0x5a] sm:$0xff]
      %v6335 = vld [vmem:[#allocation3 + $0x62] sm:$0xff]
      %v6336 = vld [vmem:[#allocation3 + $0x6a] sm:$0xff]
      %v6337 = vld [vmem:[#allocation3 + $0x72] sm:$0xff]
      %v6338 = vld [vmem:[#allocation3 + $0x7a] sm:$0xff]
      %v6339 = vld [vmem:[#allocation3 + $0x82] sm:$0xff]
      %v6340 = vld [vmem:[#allocation3 + $0x8a] sm:$0xff]
      %v6341 = vld [vmem:[#allocation3 + $0x92] sm:$0xff]
      %v6342 = vld [vmem:[#allocation3 + $0x9a] sm:$0xff]
      %v6343 = vld [vmem:[#allocation3 + $0xa2] sm:$0xff]
      %v6344 = vld [vmem:[#allocation3 + $0xaa] sm:$0xff]
      %v6345 = vld [vmem:[#allocation3 + $0xb2] sm:$0xff]
      %v6346 = vld [vmem:[#allocation3 + $0xba] sm:$0xff]
      %v6347 = vld [vmem:[#allocation3 + $0xc2] sm:$0xff]
      %v6348 = vld [vmem:[#allocation3 + $0xca] sm:$0xff]
      %v6349 = vld [vmem:[#allocation3 + $0xd2] sm:$0xff]
      %v6350 = vld [vmem:[#allocation3 + $0xda] sm:$0xff]
      %v6351 = vld [vmem:[#allocation3 + $0xe2] sm:$0xff]
      %v6352 = vld [vmem:[#allocation3 + $0xea] sm:$0xff]
      %v6353 = vld [vmem:[#allocation3 + $0xf2] sm:$0xff]
      %v6354 = vld [vmem:[#allocation3 + $0xfa] sm:$0xff]
      %v6355 = vld [vmem:[#allocation3 + $0x102] sm:$0xff]
      %v6356 = vld [vmem:[#allocation3 + $0x10a] sm:$0xff]
      %v6357 = vld [vmem:[#allocation3 + $0x112] sm:$0xff]
      %v6358 = vld [vmem:[#allocation3 + $0x11a] sm:$0xff]
      %v6359 = vld [vmem:[#allocation3 + $0x122] sm:$0xff]
      %v6360 = vld [vmem:[#allocation3 + $0x12a] sm:$0xff]
      %s6361 = scalar_lea.vmem %s2, 24
      %v6362 = vld [vmem:[%s6361] sm:$0xff]
      %v6364 = vsel %vm171, %v6325, 0
      %v6367 = vsel %vm171, %v6326, 0
      %v6370 = vsel %vm171, %v6327, 0
      %v6373 = vsel %vm171, %v6328, 0
      %v6376 = vsel %vm171, %v6329, 0
      %v6379 = vsel %vm171, %v6330, 0
      %v6382 = vsel %vm171, %v6331, 0
      %v6385 = vsel %vm171, %v6332, 0
      %v6388 = vsel %vm171, %v6333, 0
      %v6391 = vsel %vm171, %v6334, 0
      %v6394 = vsel %vm171, %v6335, 0
      %v6397 = vsel %vm171, %v6336, 0
      %v6400 = vsel %vm171, %v6337, 0
      %v6403 = vsel %vm171, %v6338, 0
      %v6406 = vsel %vm171, %v6339, 0
      %v6409 = vsel %vm171, %v6340, 0
      %v6412 = vsel %vm171, %v6341, 0
      %v6415 = vsel %vm171, %v6342, 0
      %v6418 = vsel %vm171, %v6343, 0
      %v6421 = vsel %vm171, %v6344, 0
      %v6424 = vsel %vm171, %v6345, 0
      %v6427 = vsel %vm171, %v6346, 0
      %v6430 = vsel %vm171, %v6347, 0
      %v6433 = vsel %vm171, %v6348, 0
      %v6436 = vsel %vm171, %v6349, 0
      %v6439 = vsel %vm171, %v6350, 0
      %v6442 = vsel %vm171, %v6351, 0
      %v6445 = vsel %vm171, %v6352, 0
      %v6448 = vsel %vm171, %v6353, 0
      %v6451 = vsel %vm171, %v6354, 0
      %v6454 = vsel %vm171, %v6355, 0
      %v6457 = vsel %vm171, %v6356, 0
      %v6460 = vsel %vm171, %v6357, 0
      %v6463 = vsel %vm171, %v6358, 0
      %v6466 = vsel %vm171, %v6359, 0
      %v6469 = vsel %vm171, %v6360, 0
      %6471 = vmatprep.subr.mxu0 0.0
      %6472 = vmatpush1.msra.mxu0 0.0
      %6473 = vmatprep.subr.mxu0 0.0
      %6474 = vmatpush1.msra.mxu0 0.0
      %6475 = vmatprep.subr.mxu0 0.0
      %6476 = vmatpush1.msra.mxu0 0.0
      %6477 = vmatprep.subr.mxu0 0.0
      %6478 = vmatpush1.msra.mxu0 0.0
      %6479 = vmatprep.subr.mxu0 0.0
      %6480 = vmatpush1.msra.mxu0 0.0
      %6481 = vmatprep.subr.mxu0 0.0
      %6482 = vmatpush1.msra.mxu0 0.0
      %6483 = vmatprep.subr.mxu0 0.0
      %6484 = vmatpush1.msra.mxu0 0.0
      %6485 = vmatprep.subr.mxu0 0.0
      %6486 = vmatpush1.msra.mxu0 0.0
      %6487 = vmatprep.subr.mxu0 0.0
      %6488 = vmatpush1.msra.mxu0 0.0
      %6489 = vmatprep.subr.mxu0 0.0
      %6490 = vmatpush1.msra.mxu0 0.0
      %6491 = vmatprep.subr.mxu0 0.0
      %6492 = vmatpush1.msra.mxu0 0.0
      %6493 = vmatprep.subr.mxu0 0.0
      %6494 = vmatpush1.msra.mxu0 0.0
      %6495 = vmatprep.subr.mxu0 0.0
      %6496 = vmatpush1.msra.mxu0 0.0
      %6497 = vmatprep.subr.mxu0 0.0
      %6498 = vmatpush1.msra.mxu0 0.0
      %6499 = vmatprep.subr.mxu0 0.0
      %6500 = vmatpush1.msra.mxu0 0.0
      %6501 = vmatprep.subr.mxu0 0.0
      %6502 = vmatpush1.msra.mxu0 %v6362
      %6503 = vmatprep.subr.mxu0 0.0
      %6504 = vmatpush2.msra.mxu0 0.0
      %6505 = vmatprep.subr.mxu0 0.0
      %6506 = vmatpush2.msra.mxu0 0.0
      %6507 = vmatprep.subr.mxu0 0.0
      %6508 = vmatpush2.msra.mxu0 0.0
      %6509 = vmatprep.subr.mxu0 0.0
      %6510 = vmatpush2.msra.mxu0 0.0
      %6511 = vmatprep.subr.mxu0 0.0
      %6512 = vmatpush2.msra.mxu0 0.0
      %6513 = vmatprep.subr.mxu0 0.0
      %6514 = vmatpush2.msra.mxu0 0.0
      %6515 = vmatprep.subr.mxu0 0.0
      %6516 = vmatpush2.msra.mxu0 0.0
      %6517 = vmatprep.subr.mxu0 0.0
      %6518 = vmatpush2.msra.mxu0 0.0
      %6519 = vmatprep.subr.mxu0 0.0
      %6520 = vmatpush2.msra.mxu0 0.0
      %6521 = vmatprep.subr.mxu0 0.0
      %6522 = vmatpush2.msra.mxu0 0.0
      %6523 = vmatprep.subr.mxu0 0.0
      %6524 = vmatpush2.msra.mxu0 0.0
      %6525 = vmatprep.subr.mxu0 0.0
      %6526 = vmatpush2.msra.mxu0 0.0
      %6527 = vmatprep.subr.mxu0 0.0
      %6528 = vmatpush2.msra.mxu0 0.0
      %6529 = vmatprep.subr.mxu0 0.0
      %6530 = vmatpush2.msra.mxu0 0.0
      %6531 = vmatprep.subr.mxu0 0.0
      %6532 = vmatpush2.msra.mxu0 0.0
      %6533 = vmatprep.subr.mxu0 0.0
      %6534 = vmatpush2.msra.mxu0 0.0
      %6535 = vmatprep.mubr.f32.mxu0 0.0
      %6536 = vmatmul.mubr.f32.gmra.mxu0 %v6364
      %v6537 = vpop.f32.mrf.mxu0
      %v6538 = vadd.f32 0.0, %v6537
      %v6539 = vpop.f32.mrf.mxu0
      %6540 = vmatprep.mubr.f32.mxu0 0.0
      %6541 = vmatmul.mubr.f32.gmra.mxu0 %v6367
      %v6542 = vpop.f32.mrf.mxu0
      %v6543 = vadd.f32 0.0, %v6542
      %v6544 = vpop.f32.mrf.mxu0
      %6545 = vmatprep.mubr.f32.mxu0 0.0
      %6546 = vmatmul.mubr.f32.gmra.mxu0 %v6370
      %v6547 = vpop.f32.mrf.mxu0
      %v6548 = vadd.f32 0.0, %v6547
      %v6549 = vpop.f32.mrf.mxu0
      %6550 = vmatprep.mubr.f32.mxu0 0.0
      %6551 = vmatmul.mubr.f32.gmra.mxu0 %v6373
      %v6552 = vpop.f32.mrf.mxu0
      %v6553 = vadd.f32 0.0, %v6552
      %v6554 = vpop.f32.mrf.mxu0
      %6555 = vmatprep.mubr.f32.mxu0 0.0
      %6556 = vmatmul.mubr.f32.gmra.mxu0 %v6376
      %v6557 = vpop.f32.mrf.mxu0
      %v6558 = vadd.f32 0.0, %v6557
      %v6559 = vpop.f32.mrf.mxu0
      %6560 = vmatprep.mubr.f32.mxu0 0.0
      %6561 = vmatmul.mubr.f32.gmra.mxu0 %v6379
      %v6562 = vpop.f32.mrf.mxu0
      %v6563 = vadd.f32 0.0, %v6562
      %v6564 = vpop.f32.mrf.mxu0
      %6565 = vmatprep.mubr.f32.mxu0 0.0
      %6566 = vmatmul.mubr.f32.gmra.mxu0 %v6382
      %v6567 = vpop.f32.mrf.mxu0
      %v6568 = vadd.f32 0.0, %v6567
      %v6569 = vpop.f32.mrf.mxu0
      %6570 = vmatprep.mubr.f32.mxu0 0.0
      %6571 = vmatmul.mubr.f32.gmra.mxu0 %v6385
      %v6572 = vpop.f32.mrf.mxu0
      %v6573 = vadd.f32 0.0, %v6572
      %v6574 = vpop.f32.mrf.mxu0
      %6575 = vmatprep.mubr.f32.mxu0 0.0
      %6576 = vmatmul.mubr.f32.gmra.mxu0 %v6388
      %v6577 = vpop.f32.mrf.mxu0
      %v6578 = vadd.f32 0.0, %v6577
      %v6579 = vpop.f32.mrf.mxu0
      %6580 = vmatprep.mubr.f32.mxu0 0.0
      %6581 = vmatmul.mubr.f32.gmra.mxu0 %v6391
      %v6582 = vpop.f32.mrf.mxu0
      %v6583 = vadd.f32 0.0, %v6582
      %v6584 = vpop.f32.mrf.mxu0
      %6585 = vmatprep.mubr.f32.mxu0 0.0
      %6586 = vmatmul.mubr.f32.gmra.mxu0 %v6394
      %v6587 = vpop.f32.mrf.mxu0
      %v6588 = vadd.f32 0.0, %v6587
      %v6589 = vpop.f32.mrf.mxu0
      %6590 = vmatprep.mubr.f32.mxu0 0.0
      %6591 = vmatmul.mubr.f32.gmra.mxu0 %v6397
      %v6592 = vpop.f32.mrf.mxu0
      %v6593 = vadd.f32 0.0, %v6592
      %v6594 = vpop.f32.mrf.mxu0
      %6595 = vmatprep.mubr.f32.mxu0 0.0
      %6596 = vmatmul.mubr.f32.gmra.mxu0 %v6400
      %v6597 = vpop.f32.mrf.mxu0
      %v6598 = vadd.f32 0.0, %v6597
      %v6599 = vpop.f32.mrf.mxu0
      %6600 = vmatprep.mubr.f32.mxu0 0.0
      %6601 = vmatmul.mubr.f32.gmra.mxu0 %v6403
      %v6602 = vpop.f32.mrf.mxu0
      %v6603 = vadd.f32 0.0, %v6602
      %v6604 = vpop.f32.mrf.mxu0
      %6605 = vmatprep.mubr.f32.mxu0 0.0
      %6606 = vmatmul.mubr.f32.gmra.mxu0 %v6406
      %v6607 = vpop.f32.mrf.mxu0
      %v6608 = vadd.f32 0.0, %v6607
      %v6609 = vpop.f32.mrf.mxu0
      %6610 = vmatprep.mubr.f32.mxu0 0.0
      %6611 = vmatmul.mubr.f32.gmra.mxu0 %v6409
      %v6612 = vpop.f32.mrf.mxu0
      %v6613 = vadd.f32 0.0, %v6612
      %v6614 = vpop.f32.mrf.mxu0
      %6615 = vmatprep.mubr.f32.mxu0 0.0
      %6616 = vmatmul.mubr.f32.gmra.mxu0 %v6412
      %v6617 = vpop.f32.mrf.mxu0
      %v6618 = vadd.f32 0.0, %v6617
      %v6619 = vpop.f32.mrf.mxu0
      %6620 = vmatprep.mubr.f32.mxu0 0.0
      %6621 = vmatmul.mubr.f32.gmra.mxu0 %v6415
      %v6622 = vpop.f32.mrf.mxu0
      %v6623 = vadd.f32 0.0, %v6622
      %v6624 = vpop.f32.mrf.mxu0
      %6625 = vmatprep.mubr.f32.mxu0 0.0
      %6626 = vmatmul.mubr.f32.gmra.mxu0 %v6418
      %v6627 = vpop.f32.mrf.mxu0
      %v6628 = vadd.f32 0.0, %v6627
      %v6629 = vpop.f32.mrf.mxu0
      %6630 = vmatprep.mubr.f32.mxu0 0.0
      %6631 = vmatmul.mubr.f32.gmra.mxu0 %v6421
      %v6632 = vpop.f32.mrf.mxu0
      %v6633 = vadd.f32 0.0, %v6632
      %v6634 = vpop.f32.mrf.mxu0
      %6635 = vmatprep.mubr.f32.mxu0 0.0
      %6636 = vmatmul.mubr.f32.gmra.mxu0 %v6424
      %v6637 = vpop.f32.mrf.mxu0
      %v6638 = vadd.f32 0.0, %v6637
      %v6639 = vpop.f32.mrf.mxu0
      %6640 = vmatprep.mubr.f32.mxu0 0.0
      %6641 = vmatmul.mubr.f32.gmra.mxu0 %v6427
      %v6642 = vpop.f32.mrf.mxu0
      %v6643 = vadd.f32 0.0, %v6642
      %v6644 = vpop.f32.mrf.mxu0
      %6645 = vmatprep.mubr.f32.mxu0 0.0
      %6646 = vmatmul.mubr.f32.gmra.mxu0 %v6430
      %v6647 = vpop.f32.mrf.mxu0
      %v6648 = vadd.f32 0.0, %v6647
      %v6649 = vpop.f32.mrf.mxu0
      %6650 = vmatprep.mubr.f32.mxu0 0.0
      %6651 = vmatmul.mubr.f32.gmra.mxu0 %v6433
      %v6652 = vpop.f32.mrf.mxu0
      %v6653 = vadd.f32 0.0, %v6652
      %v6654 = vpop.f32.mrf.mxu0
      %6655 = vmatprep.mubr.f32.mxu0 0.0
      %6656 = vmatmul.mubr.f32.gmra.mxu0 %v6436
      %v6657 = vpop.f32.mrf.mxu0
      %v6658 = vadd.f32 0.0, %v6657
      %v6659 = vpop.f32.mrf.mxu0
      %6660 = vmatprep.mubr.f32.mxu0 0.0
      %6661 = vmatmul.mubr.f32.gmra.mxu0 %v6439
      %v6662 = vpop.f32.mrf.mxu0
      %v6663 = vadd.f32 0.0, %v6662
      %v6664 = vpop.f32.mrf.mxu0
      %6665 = vmatprep.mubr.f32.mxu0 0.0
      %6666 = vmatmul.mubr.f32.gmra.mxu0 %v6442
      %v6667 = vpop.f32.mrf.mxu0
      %v6668 = vadd.f32 0.0, %v6667
      %v6669 = vpop.f32.mrf.mxu0
      %6670 = vmatprep.mubr.f32.mxu0 0.0
      %6671 = vmatmul.mubr.f32.gmra.mxu0 %v6445
      %v6672 = vpop.f32.mrf.mxu0
      %v6673 = vadd.f32 0.0, %v6672
      %v6674 = vpop.f32.mrf.mxu0
      %6675 = vmatprep.mubr.f32.mxu0 0.0
      %6676 = vmatmul.mubr.f32.gmra.mxu0 %v6448
      %v6677 = vpop.f32.mrf.mxu0
      %v6678 = vadd.f32 0.0, %v6677
      %v6679 = vpop.f32.mrf.mxu0
      %6680 = vmatprep.mubr.f32.mxu0 0.0
      %6681 = vmatmul.mubr.f32.gmra.mxu0 %v6451
      %v6682 = vpop.f32.mrf.mxu0
      %v6683 = vadd.f32 0.0, %v6682
      %v6684 = vpop.f32.mrf.mxu0
      %6685 = vmatprep.mubr.f32.mxu0 0.0
      %6686 = vmatmul.mubr.f32.gmra.mxu0 %v6454
      %v6687 = vpop.f32.mrf.mxu0
      %v6688 = vadd.f32 0.0, %v6687
      %v6689 = vpop.f32.mrf.mxu0
      %6690 = vmatprep.mubr.f32.mxu0 0.0
      %6691 = vmatmul.mubr.f32.gmra.mxu0 %v6457
      %v6692 = vpop.f32.mrf.mxu0
      %v6693 = vadd.f32 0.0, %v6692
      %v6694 = vpop.f32.mrf.mxu0
      %6695 = vmatprep.mubr.f32.mxu0 0.0
      %6696 = vmatmul.mubr.f32.gmra.mxu0 %v6460
      %v6697 = vpop.f32.mrf.mxu0
      %v6698 = vadd.f32 0.0, %v6697
      %v6699 = vpop.f32.mrf.mxu0
      %6700 = vmatprep.mubr.f32.mxu0 0.0
      %6701 = vmatmul.mubr.f32.gmra.mxu0 %v6463
      %v6702 = vpop.f32.mrf.mxu0
      %v6703 = vadd.f32 0.0, %v6702
      %v6704 = vpop.f32.mrf.mxu0
      %6705 = vmatprep.mubr.f32.mxu0 0.0
      %6706 = vmatmul.mubr.f32.gmra.mxu0 %v6466
      %v6707 = vpop.f32.mrf.mxu0
      %v6708 = vadd.f32 0.0, %v6707
      %v6709 = vpop.f32.mrf.mxu0
      %6710 = vmatprep.mubr.f32.mxu0 0.0
      %6711 = vmatmul.mubr.f32.gmra.mxu0 %v6469
      %v6712 = vpop.f32.mrf.mxu0
      %v6713 = vadd.f32 0.0, %v6712
      %v6714 = vpop.f32.mrf.mxu0
      %6715 = vdwg.mxu0
      %v6716 = vadd.f32 %v6289, %v6538
      %v6717 = vadd.f32 %v6290, %v6543
      %v6718 = vadd.f32 %v6291, %v6548
      %v6719 = vadd.f32 %v6292, %v6553
      %v6720 = vadd.f32 %v6293, %v6558
      %v6721 = vadd.f32 %v6294, %v6563
      %v6722 = vadd.f32 %v6295, %v6568
      %v6723 = vadd.f32 %v6296, %v6573
      %v6724 = vadd.f32 %v6297, %v6578
      %v6725 = vadd.f32 %v6298, %v6583
      %v6726 = vadd.f32 %v6299, %v6588
      %v6727 = vadd.f32 %v6300, %v6593
      %v6728 = vadd.f32 %v6301, %v6598
      %v6729 = vadd.f32 %v6302, %v6603
      %v6730 = vadd.f32 %v6303, %v6608
      %v6731 = vadd.f32 %v6304, %v6613
      %v6732 = vadd.f32 %v6305, %v6618
      %v6733 = vadd.f32 %v6306, %v6623
      %v6734 = vadd.f32 %v6307, %v6628
      %v6735 = vadd.f32 %v6308, %v6633
      %v6736 = vadd.f32 %v6309, %v6638
      %v6737 = vadd.f32 %v6310, %v6643
      %v6738 = vadd.f32 %v6311, %v6648
      %v6739 = vadd.f32 %v6312, %v6653
      %v6740 = vadd.f32 %v6313, %v6658
      %v6741 = vadd.f32 %v6314, %v6663
      %v6742 = vadd.f32 %v6315, %v6668
      %v6743 = vadd.f32 %v6316, %v6673
      %v6744 = vadd.f32 %v6317, %v6678
      %v6745 = vadd.f32 %v6318, %v6683
      %v6746 = vadd.f32 %v6319, %v6688
      %v6747 = vadd.f32 %v6320, %v6693
      %v6748 = vadd.f32 %v6321, %v6698
      %v6749 = vadd.f32 %v6322, %v6703
      %v6750 = vadd.f32 %v6323, %v6708
      %v6751 = vadd.f32 %v6324, %v6713
      %v6752 = vld [vmem:[#allocation3 + $0x13] sm:$0xff]
      %v6753 = vld [vmem:[#allocation3 + $0x1b] sm:$0xff]
      %v6754 = vld [vmem:[#allocation3 + $0x23] sm:$0xff]
      %v6755 = vld [vmem:[#allocation3 + $0x2b] sm:$0xff]
      %v6756 = vld [vmem:[#allocation3 + $0x33] sm:$0xff]
      %v6757 = vld [vmem:[#allocation3 + $0x3b] sm:$0xff]
      %v6758 = vld [vmem:[#allocation3 + $0x43] sm:$0xff]
      %v6759 = vld [vmem:[#allocation3 + $0x4b] sm:$0xff]
      %v6760 = vld [vmem:[#allocation3 + $0x53] sm:$0xff]
      %v6761 = vld [vmem:[#allocation3 + $0x5b] sm:$0xff]
      %v6762 = vld [vmem:[#allocation3 + $0x63] sm:$0xff]
      %v6763 = vld [vmem:[#allocation3 + $0x6b] sm:$0xff]
      %v6764 = vld [vmem:[#allocation3 + $0x73] sm:$0xff]
      %v6765 = vld [vmem:[#allocation3 + $0x7b] sm:$0xff]
      %v6766 = vld [vmem:[#allocation3 + $0x83] sm:$0xff]
      %v6767 = vld [vmem:[#allocation3 + $0x8b] sm:$0xff]
      %v6768 = vld [vmem:[#allocation3 + $0x93] sm:$0xff]
      %v6769 = vld [vmem:[#allocation3 + $0x9b] sm:$0xff]
      %v6770 = vld [vmem:[#allocation3 + $0xa3] sm:$0xff]
      %v6771 = vld [vmem:[#allocation3 + $0xab] sm:$0xff]
      %v6772 = vld [vmem:[#allocation3 + $0xb3] sm:$0xff]
      %v6773 = vld [vmem:[#allocation3 + $0xbb] sm:$0xff]
      %v6774 = vld [vmem:[#allocation3 + $0xc3] sm:$0xff]
      %v6775 = vld [vmem:[#allocation3 + $0xcb] sm:$0xff]
      %v6776 = vld [vmem:[#allocation3 + $0xd3] sm:$0xff]
      %v6777 = vld [vmem:[#allocation3 + $0xdb] sm:$0xff]
      %v6778 = vld [vmem:[#allocation3 + $0xe3] sm:$0xff]
      %v6779 = vld [vmem:[#allocation3 + $0xeb] sm:$0xff]
      %v6780 = vld [vmem:[#allocation3 + $0xf3] sm:$0xff]
      %v6781 = vld [vmem:[#allocation3 + $0xfb] sm:$0xff]
      %v6782 = vld [vmem:[#allocation3 + $0x103] sm:$0xff]
      %v6783 = vld [vmem:[#allocation3 + $0x10b] sm:$0xff]
      %v6784 = vld [vmem:[#allocation3 + $0x113] sm:$0xff]
      %v6785 = vld [vmem:[#allocation3 + $0x11b] sm:$0xff]
      %v6786 = vld [vmem:[#allocation3 + $0x123] sm:$0xff]
      %v6787 = vld [vmem:[#allocation3 + $0x12b] sm:$0xff]
      %s6788 = scalar_lea.vmem %s2, 32
      %v6789 = vld [vmem:[%s6788] sm:$0xff]
      %v6791 = vsel %vm171, %v6752, 0
      %v6794 = vsel %vm171, %v6753, 0
      %v6797 = vsel %vm171, %v6754, 0
      %v6800 = vsel %vm171, %v6755, 0
      %v6803 = vsel %vm171, %v6756, 0
      %v6806 = vsel %vm171, %v6757, 0
      %v6809 = vsel %vm171, %v6758, 0
      %v6812 = vsel %vm171, %v6759, 0
      %v6815 = vsel %vm171, %v6760, 0
      %v6818 = vsel %vm171, %v6761, 0
      %v6821 = vsel %vm171, %v6762, 0
      %v6824 = vsel %vm171, %v6763, 0
      %v6827 = vsel %vm171, %v6764, 0
      %v6830 = vsel %vm171, %v6765, 0
      %v6833 = vsel %vm171, %v6766, 0
      %v6836 = vsel %vm171, %v6767, 0
      %v6839 = vsel %vm171, %v6768, 0
      %v6842 = vsel %vm171, %v6769, 0
      %v6845 = vsel %vm171, %v6770, 0
      %v6848 = vsel %vm171, %v6771, 0
      %v6851 = vsel %vm171, %v6772, 0
      %v6854 = vsel %vm171, %v6773, 0
      %v6857 = vsel %vm171, %v6774, 0
      %v6860 = vsel %vm171, %v6775, 0
      %v6863 = vsel %vm171, %v6776, 0
      %v6866 = vsel %vm171, %v6777, 0
      %v6869 = vsel %vm171, %v6778, 0
      %v6872 = vsel %vm171, %v6779, 0
      %v6875 = vsel %vm171, %v6780, 0
      %v6878 = vsel %vm171, %v6781, 0
      %v6881 = vsel %vm171, %v6782, 0
      %v6884 = vsel %vm171, %v6783, 0
      %v6887 = vsel %vm171, %v6784, 0
      %v6890 = vsel %vm171, %v6785, 0
      %v6893 = vsel %vm171, %v6786, 0
      %v6896 = vsel %vm171, %v6787, 0
      %6898 = vmatprep.subr.mxu0 0.0
      %6899 = vmatpush1.msra.mxu0 0.0
      %6900 = vmatprep.subr.mxu0 0.0
      %6901 = vmatpush1.msra.mxu0 0.0
      %6902 = vmatprep.subr.mxu0 0.0
      %6903 = vmatpush1.msra.mxu0 0.0
      %6904 = vmatprep.subr.mxu0 0.0
      %6905 = vmatpush1.msra.mxu0 0.0
      %6906 = vmatprep.subr.mxu0 0.0
      %6907 = vmatpush1.msra.mxu0 0.0
      %6908 = vmatprep.subr.mxu0 0.0
      %6909 = vmatpush1.msra.mxu0 0.0
      %6910 = vmatprep.subr.mxu0 0.0
      %6911 = vmatpush1.msra.mxu0 0.0
      %6912 = vmatprep.subr.mxu0 0.0
      %6913 = vmatpush1.msra.mxu0 0.0
      %6914 = vmatprep.subr.mxu0 0.0
      %6915 = vmatpush1.msra.mxu0 0.0
      %6916 = vmatprep.subr.mxu0 0.0
      %6917 = vmatpush1.msra.mxu0 0.0
      %6918 = vmatprep.subr.mxu0 0.0
      %6919 = vmatpush1.msra.mxu0 0.0
      %6920 = vmatprep.subr.mxu0 0.0
      %6921 = vmatpush1.msra.mxu0 0.0
      %6922 = vmatprep.subr.mxu0 0.0
      %6923 = vmatpush1.msra.mxu0 0.0
      %6924 = vmatprep.subr.mxu0 0.0
      %6925 = vmatpush1.msra.mxu0 0.0
      %6926 = vmatprep.subr.mxu0 0.0
      %6927 = vmatpush1.msra.mxu0 0.0
      %6928 = vmatprep.subr.mxu0 0.0
      %6929 = vmatpush1.msra.mxu0 %v6789
      %6930 = vmatprep.subr.mxu0 0.0
      %6931 = vmatpush2.msra.mxu0 0.0
      %6932 = vmatprep.subr.mxu0 0.0
      %6933 = vmatpush2.msra.mxu0 0.0
      %6934 = vmatprep.subr.mxu0 0.0
      %6935 = vmatpush2.msra.mxu0 0.0
      %6936 = vmatprep.subr.mxu0 0.0
      %6937 = vmatpush2.msra.mxu0 0.0
      %6938 = vmatprep.subr.mxu0 0.0
      %6939 = vmatpush2.msra.mxu0 0.0
      %6940 = vmatprep.subr.mxu0 0.0
      %6941 = vmatpush2.msra.mxu0 0.0
      %6942 = vmatprep.subr.mxu0 0.0
      %6943 = vmatpush2.msra.mxu0 0.0
      %6944 = vmatprep.subr.mxu0 0.0
      %6945 = vmatpush2.msra.mxu0 0.0
      %6946 = vmatprep.subr.mxu0 0.0
      %6947 = vmatpush2.msra.mxu0 0.0
      %6948 = vmatprep.subr.mxu0 0.0
      %6949 = vmatpush2.msra.mxu0 0.0
      %6950 = vmatprep.subr.mxu0 0.0
      %6951 = vmatpush2.msra.mxu0 0.0
      %6952 = vmatprep.subr.mxu0 0.0
      %6953 = vmatpush2.msra.mxu0 0.0
      %6954 = vmatprep.subr.mxu0 0.0
      %6955 = vmatpush2.msra.mxu0 0.0
      %6956 = vmatprep.subr.mxu0 0.0
      %6957 = vmatpush2.msra.mxu0 0.0
      %6958 = vmatprep.subr.mxu0 0.0
      %6959 = vmatpush2.msra.mxu0 0.0
      %6960 = vmatprep.subr.mxu0 0.0
      %6961 = vmatpush2.msra.mxu0 0.0
      %6962 = vmatprep.mubr.f32.mxu0 0.0
      %6963 = vmatmul.mubr.f32.gmra.mxu0 %v6791
      %v6964 = vpop.f32.mrf.mxu0
      %v6965 = vadd.f32 0.0, %v6964
      %v6966 = vpop.f32.mrf.mxu0
      %6967 = vmatprep.mubr.f32.mxu0 0.0
      %6968 = vmatmul.mubr.f32.gmra.mxu0 %v6794
      %v6969 = vpop.f32.mrf.mxu0
      %v6970 = vadd.f32 0.0, %v6969
      %v6971 = vpop.f32.mrf.mxu0
      %6972 = vmatprep.mubr.f32.mxu0 0.0
      %6973 = vmatmul.mubr.f32.gmra.mxu0 %v6797
      %v6974 = vpop.f32.mrf.mxu0
      %v6975 = vadd.f32 0.0, %v6974
      %v6976 = vpop.f32.mrf.mxu0
      %6977 = vmatprep.mubr.f32.mxu0 0.0
      %6978 = vmatmul.mubr.f32.gmra.mxu0 %v6800
      %v6979 = vpop.f32.mrf.mxu0
      %v6980 = vadd.f32 0.0, %v6979
      %v6981 = vpop.f32.mrf.mxu0
      %6982 = vmatprep.mubr.f32.mxu0 0.0
      %6983 = vmatmul.mubr.f32.gmra.mxu0 %v6803
      %v6984 = vpop.f32.mrf.mxu0
      %v6985 = vadd.f32 0.0, %v6984
      %v6986 = vpop.f32.mrf.mxu0
      %6987 = vmatprep.mubr.f32.mxu0 0.0
      %6988 = vmatmul.mubr.f32.gmra.mxu0 %v6806
      %v6989 = vpop.f32.mrf.mxu0
      %v6990 = vadd.f32 0.0, %v6989
      %v6991 = vpop.f32.mrf.mxu0
      %6992 = vmatprep.mubr.f32.mxu0 0.0
      %6993 = vmatmul.mubr.f32.gmra.mxu0 %v6809
      %v6994 = vpop.f32.mrf.mxu0
      %v6995 = vadd.f32 0.0, %v6994
      %v6996 = vpop.f32.mrf.mxu0
      %6997 = vmatprep.mubr.f32.mxu0 0.0
      %6998 = vmatmul.mubr.f32.gmra.mxu0 %v6812
      %v6999 = vpop.f32.mrf.mxu0
      %v7000 = vadd.f32 0.0, %v6999
      %v7001 = vpop.f32.mrf.mxu0
      %7002 = vmatprep.mubr.f32.mxu0 0.0
      %7003 = vmatmul.mubr.f32.gmra.mxu0 %v6815
      %v7004 = vpop.f32.mrf.mxu0
      %v7005 = vadd.f32 0.0, %v7004
      %v7006 = vpop.f32.mrf.mxu0
      %7007 = vmatprep.mubr.f32.mxu0 0.0
      %7008 = vmatmul.mubr.f32.gmra.mxu0 %v6818
      %v7009 = vpop.f32.mrf.mxu0
      %v7010 = vadd.f32 0.0, %v7009
      %v7011 = vpop.f32.mrf.mxu0
      %7012 = vmatprep.mubr.f32.mxu0 0.0
      %7013 = vmatmul.mubr.f32.gmra.mxu0 %v6821
      %v7014 = vpop.f32.mrf.mxu0
      %v7015 = vadd.f32 0.0, %v7014
      %v7016 = vpop.f32.mrf.mxu0
      %7017 = vmatprep.mubr.f32.mxu0 0.0
      %7018 = vmatmul.mubr.f32.gmra.mxu0 %v6824
      %v7019 = vpop.f32.mrf.mxu0
      %v7020 = vadd.f32 0.0, %v7019
      %v7021 = vpop.f32.mrf.mxu0
      %7022 = vmatprep.mubr.f32.mxu0 0.0
      %7023 = vmatmul.mubr.f32.gmra.mxu0 %v6827
      %v7024 = vpop.f32.mrf.mxu0
      %v7025 = vadd.f32 0.0, %v7024
      %v7026 = vpop.f32.mrf.mxu0
      %7027 = vmatprep.mubr.f32.mxu0 0.0
      %7028 = vmatmul.mubr.f32.gmra.mxu0 %v6830
      %v7029 = vpop.f32.mrf.mxu0
      %v7030 = vadd.f32 0.0, %v7029
      %v7031 = vpop.f32.mrf.mxu0
      %7032 = vmatprep.mubr.f32.mxu0 0.0
      %7033 = vmatmul.mubr.f32.gmra.mxu0 %v6833
      %v7034 = vpop.f32.mrf.mxu0
      %v7035 = vadd.f32 0.0, %v7034
      %v7036 = vpop.f32.mrf.mxu0
      %7037 = vmatprep.mubr.f32.mxu0 0.0
      %7038 = vmatmul.mubr.f32.gmra.mxu0 %v6836
      %v7039 = vpop.f32.mrf.mxu0
      %v7040 = vadd.f32 0.0, %v7039
      %v7041 = vpop.f32.mrf.mxu0
      %7042 = vmatprep.mubr.f32.mxu0 0.0
      %7043 = vmatmul.mubr.f32.gmra.mxu0 %v6839
      %v7044 = vpop.f32.mrf.mxu0
      %v7045 = vadd.f32 0.0, %v7044
      %v7046 = vpop.f32.mrf.mxu0
      %7047 = vmatprep.mubr.f32.mxu0 0.0
      %7048 = vmatmul.mubr.f32.gmra.mxu0 %v6842
      %v7049 = vpop.f32.mrf.mxu0
      %v7050 = vadd.f32 0.0, %v7049
      %v7051 = vpop.f32.mrf.mxu0
      %7052 = vmatprep.mubr.f32.mxu0 0.0
      %7053 = vmatmul.mubr.f32.gmra.mxu0 %v6845
      %v7054 = vpop.f32.mrf.mxu0
      %v7055 = vadd.f32 0.0, %v7054
      %v7056 = vpop.f32.mrf.mxu0
      %7057 = vmatprep.mubr.f32.mxu0 0.0
      %7058 = vmatmul.mubr.f32.gmra.mxu0 %v6848
      %v7059 = vpop.f32.mrf.mxu0
      %v7060 = vadd.f32 0.0, %v7059
      %v7061 = vpop.f32.mrf.mxu0
      %7062 = vmatprep.mubr.f32.mxu0 0.0
      %7063 = vmatmul.mubr.f32.gmra.mxu0 %v6851
      %v7064 = vpop.f32.mrf.mxu0
      %v7065 = vadd.f32 0.0, %v7064
      %v7066 = vpop.f32.mrf.mxu0
      %7067 = vmatprep.mubr.f32.mxu0 0.0
      %7068 = vmatmul.mubr.f32.gmra.mxu0 %v6854
      %v7069 = vpop.f32.mrf.mxu0
      %v7070 = vadd.f32 0.0, %v7069
      %v7071 = vpop.f32.mrf.mxu0
      %7072 = vmatprep.mubr.f32.mxu0 0.0
      %7073 = vmatmul.mubr.f32.gmra.mxu0 %v6857
      %v7074 = vpop.f32.mrf.mxu0
      %v7075 = vadd.f32 0.0, %v7074
      %v7076 = vpop.f32.mrf.mxu0
      %7077 = vmatprep.mubr.f32.mxu0 0.0
      %7078 = vmatmul.mubr.f32.gmra.mxu0 %v6860
      %v7079 = vpop.f32.mrf.mxu0
      %v7080 = vadd.f32 0.0, %v7079
      %v7081 = vpop.f32.mrf.mxu0
      %7082 = vmatprep.mubr.f32.mxu0 0.0
      %7083 = vmatmul.mubr.f32.gmra.mxu0 %v6863
      %v7084 = vpop.f32.mrf.mxu0
      %v7085 = vadd.f32 0.0, %v7084
      %v7086 = vpop.f32.mrf.mxu0
      %7087 = vmatprep.mubr.f32.mxu0 0.0
      %7088 = vmatmul.mubr.f32.gmra.mxu0 %v6866
      %v7089 = vpop.f32.mrf.mxu0
      %v7090 = vadd.f32 0.0, %v7089
      %v7091 = vpop.f32.mrf.mxu0
      %7092 = vmatprep.mubr.f32.mxu0 0.0
      %7093 = vmatmul.mubr.f32.gmra.mxu0 %v6869
      %v7094 = vpop.f32.mrf.mxu0
      %v7095 = vadd.f32 0.0, %v7094
      %v7096 = vpop.f32.mrf.mxu0
      %7097 = vmatprep.mubr.f32.mxu0 0.0
      %7098 = vmatmul.mubr.f32.gmra.mxu0 %v6872
      %v7099 = vpop.f32.mrf.mxu0
      %v7100 = vadd.f32 0.0, %v7099
      %v7101 = vpop.f32.mrf.mxu0
      %7102 = vmatprep.mubr.f32.mxu0 0.0
      %7103 = vmatmul.mubr.f32.gmra.mxu0 %v6875
      %v7104 = vpop.f32.mrf.mxu0
      %v7105 = vadd.f32 0.0, %v7104
      %v7106 = vpop.f32.mrf.mxu0
      %7107 = vmatprep.mubr.f32.mxu0 0.0
      %7108 = vmatmul.mubr.f32.gmra.mxu0 %v6878
      %v7109 = vpop.f32.mrf.mxu0
      %v7110 = vadd.f32 0.0, %v7109
      %v7111 = vpop.f32.mrf.mxu0
      %7112 = vmatprep.mubr.f32.mxu0 0.0
      %7113 = vmatmul.mubr.f32.gmra.mxu0 %v6881
      %v7114 = vpop.f32.mrf.mxu0
      %v7115 = vadd.f32 0.0, %v7114
      %v7116 = vpop.f32.mrf.mxu0
      %7117 = vmatprep.mubr.f32.mxu0 0.0
      %7118 = vmatmul.mubr.f32.gmra.mxu0 %v6884
      %v7119 = vpop.f32.mrf.mxu0
      %v7120 = vadd.f32 0.0, %v7119
      %v7121 = vpop.f32.mrf.mxu0
      %7122 = vmatprep.mubr.f32.mxu0 0.0
      %7123 = vmatmul.mubr.f32.gmra.mxu0 %v6887
      %v7124 = vpop.f32.mrf.mxu0
      %v7125 = vadd.f32 0.0, %v7124
      %v7126 = vpop.f32.mrf.mxu0
      %7127 = vmatprep.mubr.f32.mxu0 0.0
      %7128 = vmatmul.mubr.f32.gmra.mxu0 %v6890
      %v7129 = vpop.f32.mrf.mxu0
      %v7130 = vadd.f32 0.0, %v7129
      %v7131 = vpop.f32.mrf.mxu0
      %7132 = vmatprep.mubr.f32.mxu0 0.0
      %7133 = vmatmul.mubr.f32.gmra.mxu0 %v6893
      %v7134 = vpop.f32.mrf.mxu0
      %v7135 = vadd.f32 0.0, %v7134
      %v7136 = vpop.f32.mrf.mxu0
      %7137 = vmatprep.mubr.f32.mxu0 0.0
      %7138 = vmatmul.mubr.f32.gmra.mxu0 %v6896
      %v7139 = vpop.f32.mrf.mxu0
      %v7140 = vadd.f32 0.0, %v7139
      %v7141 = vpop.f32.mrf.mxu0
      %7142 = vdwg.mxu0
      %v7143 = vadd.f32 %v6716, %v6965
      %v7144 = vadd.f32 %v6717, %v6970
      %v7145 = vadd.f32 %v6718, %v6975
      %v7146 = vadd.f32 %v6719, %v6980
      %v7147 = vadd.f32 %v6720, %v6985
      %v7148 = vadd.f32 %v6721, %v6990
      %v7149 = vadd.f32 %v6722, %v6995
      %v7150 = vadd.f32 %v6723, %v7000
      %v7151 = vadd.f32 %v6724, %v7005
      %v7152 = vadd.f32 %v6725, %v7010
      %v7153 = vadd.f32 %v6726, %v7015
      %v7154 = vadd.f32 %v6727, %v7020
      %v7155 = vadd.f32 %v6728, %v7025
      %v7156 = vadd.f32 %v6729, %v7030
      %v7157 = vadd.f32 %v6730, %v7035
      %v7158 = vadd.f32 %v6731, %v7040
      %v7159 = vadd.f32 %v6732, %v7045
      %v7160 = vadd.f32 %v6733, %v7050
      %v7161 = vadd.f32 %v6734, %v7055
      %v7162 = vadd.f32 %v6735, %v7060
      %v7163 = vadd.f32 %v6736, %v7065
      %v7164 = vadd.f32 %v6737, %v7070
      %v7165 = vadd.f32 %v6738, %v7075
      %v7166 = vadd.f32 %v6739, %v7080
      %v7167 = vadd.f32 %v6740, %v7085
      %v7168 = vadd.f32 %v6741, %v7090
      %v7169 = vadd.f32 %v6742, %v7095
      %v7170 = vadd.f32 %v6743, %v7100
      %v7171 = vadd.f32 %v6744, %v7105
      %v7172 = vadd.f32 %v6745, %v7110
      %v7173 = vadd.f32 %v6746, %v7115
      %v7174 = vadd.f32 %v6747, %v7120
      %v7175 = vadd.f32 %v6748, %v7125
      %v7176 = vadd.f32 %v6749, %v7130
      %v7177 = vadd.f32 %v6750, %v7135
      %v7178 = vadd.f32 %v6751, %v7140
      %v7179 = vld [vmem:[#allocation3 + $0x14] sm:$0xff]
      %v7180 = vld [vmem:[#allocation3 + $0x1c] sm:$0xff]
      %v7181 = vld [vmem:[#allocation3 + $0x24] sm:$0xff]
      %v7182 = vld [vmem:[#allocation3 + $0x2c] sm:$0xff]
      %v7183 = vld [vmem:[#allocation3 + $0x34] sm:$0xff]
      %v7184 = vld [vmem:[#allocation3 + $0x3c] sm:$0xff]
      %v7185 = vld [vmem:[#allocation3 + $0x44] sm:$0xff]
      %v7186 = vld [vmem:[#allocation3 + $0x4c] sm:$0xff]
      %v7187 = vld [vmem:[#allocation3 + $0x54] sm:$0xff]
      %v7188 = vld [vmem:[#allocation3 + $0x5c] sm:$0xff]
      %v7189 = vld [vmem:[#allocation3 + $0x64] sm:$0xff]
      %v7190 = vld [vmem:[#allocation3 + $0x6c] sm:$0xff]
      %v7191 = vld [vmem:[#allocation3 + $0x74] sm:$0xff]
      %v7192 = vld [vmem:[#allocation3 + $0x7c] sm:$0xff]
      %v7193 = vld [vmem:[#allocation3 + $0x84] sm:$0xff]
      %v7194 = vld [vmem:[#allocation3 + $0x8c] sm:$0xff]
      %v7195 = vld [vmem:[#allocation3 + $0x94] sm:$0xff]
      %v7196 = vld [vmem:[#allocation3 + $0x9c] sm:$0xff]
      %v7197 = vld [vmem:[#allocation3 + $0xa4] sm:$0xff]
      %v7198 = vld [vmem:[#allocation3 + $0xac] sm:$0xff]
      %v7199 = vld [vmem:[#allocation3 + $0xb4] sm:$0xff]
      %v7200 = vld [vmem:[#allocation3 + $0xbc] sm:$0xff]
      %v7201 = vld [vmem:[#allocation3 + $0xc4] sm:$0xff]
      %v7202 = vld [vmem:[#allocation3 + $0xcc] sm:$0xff]
      %v7203 = vld [vmem:[#allocation3 + $0xd4] sm:$0xff]
      %v7204 = vld [vmem:[#allocation3 + $0xdc] sm:$0xff]
      %v7205 = vld [vmem:[#allocation3 + $0xe4] sm:$0xff]
      %v7206 = vld [vmem:[#allocation3 + $0xec] sm:$0xff]
      %v7207 = vld [vmem:[#allocation3 + $0xf4] sm:$0xff]
      %v7208 = vld [vmem:[#allocation3 + $0xfc] sm:$0xff]
      %v7209 = vld [vmem:[#allocation3 + $0x104] sm:$0xff]
      %v7210 = vld [vmem:[#allocation3 + $0x10c] sm:$0xff]
      %v7211 = vld [vmem:[#allocation3 + $0x114] sm:$0xff]
      %v7212 = vld [vmem:[#allocation3 + $0x11c] sm:$0xff]
      %v7213 = vld [vmem:[#allocation3 + $0x124] sm:$0xff]
      %v7214 = vld [vmem:[#allocation3 + $0x12c] sm:$0xff]
      %s7215 = scalar_lea.vmem %s2, 40
      %v7216 = vld [vmem:[%s7215] sm:$0xff]
      %v7218 = vsel %vm171, %v7179, 0
      %v7221 = vsel %vm171, %v7180, 0
      %v7224 = vsel %vm171, %v7181, 0
      %v7227 = vsel %vm171, %v7182, 0
      %v7230 = vsel %vm171, %v7183, 0
      %v7233 = vsel %vm171, %v7184, 0
      %v7236 = vsel %vm171, %v7185, 0
      %v7239 = vsel %vm171, %v7186, 0
      %v7242 = vsel %vm171, %v7187, 0
      %v7245 = vsel %vm171, %v7188, 0
      %v7248 = vsel %vm171, %v7189, 0
      %v7251 = vsel %vm171, %v7190, 0
      %v7254 = vsel %vm171, %v7191, 0
      %v7257 = vsel %vm171, %v7192, 0
      %v7260 = vsel %vm171, %v7193, 0
      %v7263 = vsel %vm171, %v7194, 0
      %v7266 = vsel %vm171, %v7195, 0
      %v7269 = vsel %vm171, %v7196, 0
      %v7272 = vsel %vm171, %v7197, 0
      %v7275 = vsel %vm171, %v7198, 0
      %v7278 = vsel %vm171, %v7199, 0
      %v7281 = vsel %vm171, %v7200, 0
      %v7284 = vsel %vm171, %v7201, 0
      %v7287 = vsel %vm171, %v7202, 0
      %v7290 = vsel %vm171, %v7203, 0
      %v7293 = vsel %vm171, %v7204, 0
      %v7296 = vsel %vm171, %v7205, 0
      %v7299 = vsel %vm171, %v7206, 0
      %v7302 = vsel %vm171, %v7207, 0
      %v7305 = vsel %vm171, %v7208, 0
      %v7308 = vsel %vm171, %v7209, 0
      %v7311 = vsel %vm171, %v7210, 0
      %v7314 = vsel %vm171, %v7211, 0
      %v7317 = vsel %vm171, %v7212, 0
      %v7320 = vsel %vm171, %v7213, 0
      %v7323 = vsel %vm171, %v7214, 0
      %7325 = vmatprep.subr.mxu0 0.0
      %7326 = vmatpush1.msra.mxu0 0.0
      %7327 = vmatprep.subr.mxu0 0.0
      %7328 = vmatpush1.msra.mxu0 0.0
      %7329 = vmatprep.subr.mxu0 0.0
      %7330 = vmatpush1.msra.mxu0 0.0
      %7331 = vmatprep.subr.mxu0 0.0
      %7332 = vmatpush1.msra.mxu0 0.0
      %7333 = vmatprep.subr.mxu0 0.0
      %7334 = vmatpush1.msra.mxu0 0.0
      %7335 = vmatprep.subr.mxu0 0.0
      %7336 = vmatpush1.msra.mxu0 0.0
      %7337 = vmatprep.subr.mxu0 0.0
      %7338 = vmatpush1.msra.mxu0 0.0
      %7339 = vmatprep.subr.mxu0 0.0
      %7340 = vmatpush1.msra.mxu0 0.0
      %7341 = vmatprep.subr.mxu0 0.0
      %7342 = vmatpush1.msra.mxu0 0.0
      %7343 = vmatprep.subr.mxu0 0.0
      %7344 = vmatpush1.msra.mxu0 0.0
      %7345 = vmatprep.subr.mxu0 0.0
      %7346 = vmatpush1.msra.mxu0 0.0
      %7347 = vmatprep.subr.mxu0 0.0
      %7348 = vmatpush1.msra.mxu0 0.0
      %7349 = vmatprep.subr.mxu0 0.0
      %7350 = vmatpush1.msra.mxu0 0.0
      %7351 = vmatprep.subr.mxu0 0.0
      %7352 = vmatpush1.msra.mxu0 0.0
      %7353 = vmatprep.subr.mxu0 0.0
      %7354 = vmatpush1.msra.mxu0 0.0
      %7355 = vmatprep.subr.mxu0 0.0
      %7356 = vmatpush1.msra.mxu0 %v7216
      %7357 = vmatprep.subr.mxu0 0.0
      %7358 = vmatpush2.msra.mxu0 0.0
      %7359 = vmatprep.subr.mxu0 0.0
      %7360 = vmatpush2.msra.mxu0 0.0
      %7361 = vmatprep.subr.mxu0 0.0
      %7362 = vmatpush2.msra.mxu0 0.0
      %7363 = vmatprep.subr.mxu0 0.0
      %7364 = vmatpush2.msra.mxu0 0.0
      %7365 = vmatprep.subr.mxu0 0.0
      %7366 = vmatpush2.msra.mxu0 0.0
      %7367 = vmatprep.subr.mxu0 0.0
      %7368 = vmatpush2.msra.mxu0 0.0
      %7369 = vmatprep.subr.mxu0 0.0
      %7370 = vmatpush2.msra.mxu0 0.0
      %7371 = vmatprep.subr.mxu0 0.0
      %7372 = vmatpush2.msra.mxu0 0.0
      %7373 = vmatprep.subr.mxu0 0.0
      %7374 = vmatpush2.msra.mxu0 0.0
      %7375 = vmatprep.subr.mxu0 0.0
      %7376 = vmatpush2.msra.mxu0 0.0
      %7377 = vmatprep.subr.mxu0 0.0
      %7378 = vmatpush2.msra.mxu0 0.0
      %7379 = vmatprep.subr.mxu0 0.0
      %7380 = vmatpush2.msra.mxu0 0.0
      %7381 = vmatprep.subr.mxu0 0.0
      %7382 = vmatpush2.msra.mxu0 0.0
      %7383 = vmatprep.subr.mxu0 0.0
      %7384 = vmatpush2.msra.mxu0 0.0
      %7385 = vmatprep.subr.mxu0 0.0
      %7386 = vmatpush2.msra.mxu0 0.0
      %7387 = vmatprep.subr.mxu0 0.0
      %7388 = vmatpush2.msra.mxu0 0.0
      %7389 = vmatprep.mubr.f32.mxu0 0.0
      %7390 = vmatmul.mubr.f32.gmra.mxu0 %v7218
      %v7391 = vpop.f32.mrf.mxu0
      %v7392 = vadd.f32 0.0, %v7391
      %v7393 = vpop.f32.mrf.mxu0
      %7394 = vmatprep.mubr.f32.mxu0 0.0
      %7395 = vmatmul.mubr.f32.gmra.mxu0 %v7221
      %v7396 = vpop.f32.mrf.mxu0
      %v7397 = vadd.f32 0.0, %v7396
      %v7398 = vpop.f32.mrf.mxu0
      %7399 = vmatprep.mubr.f32.mxu0 0.0
      %7400 = vmatmul.mubr.f32.gmra.mxu0 %v7224
      %v7401 = vpop.f32.mrf.mxu0
      %v7402 = vadd.f32 0.0, %v7401
      %v7403 = vpop.f32.mrf.mxu0
      %7404 = vmatprep.mubr.f32.mxu0 0.0
      %7405 = vmatmul.mubr.f32.gmra.mxu0 %v7227
      %v7406 = vpop.f32.mrf.mxu0
      %v7407 = vadd.f32 0.0, %v7406
      %v7408 = vpop.f32.mrf.mxu0
      %7409 = vmatprep.mubr.f32.mxu0 0.0
      %7410 = vmatmul.mubr.f32.gmra.mxu0 %v7230
      %v7411 = vpop.f32.mrf.mxu0
      %v7412 = vadd.f32 0.0, %v7411
      %v7413 = vpop.f32.mrf.mxu0
      %7414 = vmatprep.mubr.f32.mxu0 0.0
      %7415 = vmatmul.mubr.f32.gmra.mxu0 %v7233
      %v7416 = vpop.f32.mrf.mxu0
      %v7417 = vadd.f32 0.0, %v7416
      %v7418 = vpop.f32.mrf.mxu0
      %7419 = vmatprep.mubr.f32.mxu0 0.0
      %7420 = vmatmul.mubr.f32.gmra.mxu0 %v7236
      %v7421 = vpop.f32.mrf.mxu0
      %v7422 = vadd.f32 0.0, %v7421
      %v7423 = vpop.f32.mrf.mxu0
      %7424 = vmatprep.mubr.f32.mxu0 0.0
      %7425 = vmatmul.mubr.f32.gmra.mxu0 %v7239
      %v7426 = vpop.f32.mrf.mxu0
      %v7427 = vadd.f32 0.0, %v7426
      %v7428 = vpop.f32.mrf.mxu0
      %7429 = vmatprep.mubr.f32.mxu0 0.0
      %7430 = vmatmul.mubr.f32.gmra.mxu0 %v7242
      %v7431 = vpop.f32.mrf.mxu0
      %v7432 = vadd.f32 0.0, %v7431
      %v7433 = vpop.f32.mrf.mxu0
      %7434 = vmatprep.mubr.f32.mxu0 0.0
      %7435 = vmatmul.mubr.f32.gmra.mxu0 %v7245
      %v7436 = vpop.f32.mrf.mxu0
      %v7437 = vadd.f32 0.0, %v7436
      %v7438 = vpop.f32.mrf.mxu0
      %7439 = vmatprep.mubr.f32.mxu0 0.0
      %7440 = vmatmul.mubr.f32.gmra.mxu0 %v7248
      %v7441 = vpop.f32.mrf.mxu0
      %v7442 = vadd.f32 0.0, %v7441
      %v7443 = vpop.f32.mrf.mxu0
      %7444 = vmatprep.mubr.f32.mxu0 0.0
      %7445 = vmatmul.mubr.f32.gmra.mxu0 %v7251
      %v7446 = vpop.f32.mrf.mxu0
      %v7447 = vadd.f32 0.0, %v7446
      %v7448 = vpop.f32.mrf.mxu0
      %7449 = vmatprep.mubr.f32.mxu0 0.0
      %7450 = vmatmul.mubr.f32.gmra.mxu0 %v7254
      %v7451 = vpop.f32.mrf.mxu0
      %v7452 = vadd.f32 0.0, %v7451
      %v7453 = vpop.f32.mrf.mxu0
      %7454 = vmatprep.mubr.f32.mxu0 0.0
      %7455 = vmatmul.mubr.f32.gmra.mxu0 %v7257
      %v7456 = vpop.f32.mrf.mxu0
      %v7457 = vadd.f32 0.0, %v7456
      %v7458 = vpop.f32.mrf.mxu0
      %7459 = vmatprep.mubr.f32.mxu0 0.0
      %7460 = vmatmul.mubr.f32.gmra.mxu0 %v7260
      %v7461 = vpop.f32.mrf.mxu0
      %v7462 = vadd.f32 0.0, %v7461
      %v7463 = vpop.f32.mrf.mxu0
      %7464 = vmatprep.mubr.f32.mxu0 0.0
      %7465 = vmatmul.mubr.f32.gmra.mxu0 %v7263
      %v7466 = vpop.f32.mrf.mxu0
      %v7467 = vadd.f32 0.0, %v7466
      %v7468 = vpop.f32.mrf.mxu0
      %7469 = vmatprep.mubr.f32.mxu0 0.0
      %7470 = vmatmul.mubr.f32.gmra.mxu0 %v7266
      %v7471 = vpop.f32.mrf.mxu0
      %v7472 = vadd.f32 0.0, %v7471
      %v7473 = vpop.f32.mrf.mxu0
      %7474 = vmatprep.mubr.f32.mxu0 0.0
      %7475 = vmatmul.mubr.f32.gmra.mxu0 %v7269
      %v7476 = vpop.f32.mrf.mxu0
      %v7477 = vadd.f32 0.0, %v7476
      %v7478 = vpop.f32.mrf.mxu0
      %7479 = vmatprep.mubr.f32.mxu0 0.0
      %7480 = vmatmul.mubr.f32.gmra.mxu0 %v7272
      %v7481 = vpop.f32.mrf.mxu0
      %v7482 = vadd.f32 0.0, %v7481
      %v7483 = vpop.f32.mrf.mxu0
      %7484 = vmatprep.mubr.f32.mxu0 0.0
      %7485 = vmatmul.mubr.f32.gmra.mxu0 %v7275
      %v7486 = vpop.f32.mrf.mxu0
      %v7487 = vadd.f32 0.0, %v7486
      %v7488 = vpop.f32.mrf.mxu0
      %7489 = vmatprep.mubr.f32.mxu0 0.0
      %7490 = vmatmul.mubr.f32.gmra.mxu0 %v7278
      %v7491 = vpop.f32.mrf.mxu0
      %v7492 = vadd.f32 0.0, %v7491
      %v7493 = vpop.f32.mrf.mxu0
      %7494 = vmatprep.mubr.f32.mxu0 0.0
      %7495 = vmatmul.mubr.f32.gmra.mxu0 %v7281
      %v7496 = vpop.f32.mrf.mxu0
      %v7497 = vadd.f32 0.0, %v7496
      %v7498 = vpop.f32.mrf.mxu0
      %7499 = vmatprep.mubr.f32.mxu0 0.0
      %7500 = vmatmul.mubr.f32.gmra.mxu0 %v7284
      %v7501 = vpop.f32.mrf.mxu0
      %v7502 = vadd.f32 0.0, %v7501
      %v7503 = vpop.f32.mrf.mxu0
      %7504 = vmatprep.mubr.f32.mxu0 0.0
      %7505 = vmatmul.mubr.f32.gmra.mxu0 %v7287
      %v7506 = vpop.f32.mrf.mxu0
      %v7507 = vadd.f32 0.0, %v7506
      %v7508 = vpop.f32.mrf.mxu0
      %7509 = vmatprep.mubr.f32.mxu0 0.0
      %7510 = vmatmul.mubr.f32.gmra.mxu0 %v7290
      %v7511 = vpop.f32.mrf.mxu0
      %v7512 = vadd.f32 0.0, %v7511
      %v7513 = vpop.f32.mrf.mxu0
      %7514 = vmatprep.mubr.f32.mxu0 0.0
      %7515 = vmatmul.mubr.f32.gmra.mxu0 %v7293
      %v7516 = vpop.f32.mrf.mxu0
      %v7517 = vadd.f32 0.0, %v7516
      %v7518 = vpop.f32.mrf.mxu0
      %7519 = vmatprep.mubr.f32.mxu0 0.0
      %7520 = vmatmul.mubr.f32.gmra.mxu0 %v7296
      %v7521 = vpop.f32.mrf.mxu0
      %v7522 = vadd.f32 0.0, %v7521
      %v7523 = vpop.f32.mrf.mxu0
      %7524 = vmatprep.mubr.f32.mxu0 0.0
      %7525 = vmatmul.mubr.f32.gmra.mxu0 %v7299
      %v7526 = vpop.f32.mrf.mxu0
      %v7527 = vadd.f32 0.0, %v7526
      %v7528 = vpop.f32.mrf.mxu0
      %7529 = vmatprep.mubr.f32.mxu0 0.0
      %7530 = vmatmul.mubr.f32.gmra.mxu0 %v7302
      %v7531 = vpop.f32.mrf.mxu0
      %v7532 = vadd.f32 0.0, %v7531
      %v7533 = vpop.f32.mrf.mxu0
      %7534 = vmatprep.mubr.f32.mxu0 0.0
      %7535 = vmatmul.mubr.f32.gmra.mxu0 %v7305
      %v7536 = vpop.f32.mrf.mxu0
      %v7537 = vadd.f32 0.0, %v7536
      %v7538 = vpop.f32.mrf.mxu0
      %7539 = vmatprep.mubr.f32.mxu0 0.0
      %7540 = vmatmul.mubr.f32.gmra.mxu0 %v7308
      %v7541 = vpop.f32.mrf.mxu0
      %v7542 = vadd.f32 0.0, %v7541
      %v7543 = vpop.f32.mrf.mxu0
      %7544 = vmatprep.mubr.f32.mxu0 0.0
      %7545 = vmatmul.mubr.f32.gmra.mxu0 %v7311
      %v7546 = vpop.f32.mrf.mxu0
      %v7547 = vadd.f32 0.0, %v7546
      %v7548 = vpop.f32.mrf.mxu0
      %7549 = vmatprep.mubr.f32.mxu0 0.0
      %7550 = vmatmul.mubr.f32.gmra.mxu0 %v7314
      %v7551 = vpop.f32.mrf.mxu0
      %v7552 = vadd.f32 0.0, %v7551
      %v7553 = vpop.f32.mrf.mxu0
      %7554 = vmatprep.mubr.f32.mxu0 0.0
      %7555 = vmatmul.mubr.f32.gmra.mxu0 %v7317
      %v7556 = vpop.f32.mrf.mxu0
      %v7557 = vadd.f32 0.0, %v7556
      %v7558 = vpop.f32.mrf.mxu0
      %7559 = vmatprep.mubr.f32.mxu0 0.0
      %7560 = vmatmul.mubr.f32.gmra.mxu0 %v7320
      %v7561 = vpop.f32.mrf.mxu0
      %v7562 = vadd.f32 0.0, %v7561
      %v7563 = vpop.f32.mrf.mxu0
      %7564 = vmatprep.mubr.f32.mxu0 0.0
      %7565 = vmatmul.mubr.f32.gmra.mxu0 %v7323
      %v7566 = vpop.f32.mrf.mxu0
      %v7567 = vadd.f32 0.0, %v7566
      %v7568 = vpop.f32.mrf.mxu0
      %7569 = vdwg.mxu0
      %v7570 = vadd.f32 %v7143, %v7392
      %v7571 = vadd.f32 %v7144, %v7397
      %v7572 = vadd.f32 %v7145, %v7402
      %v7573 = vadd.f32 %v7146, %v7407
      %v7574 = vadd.f32 %v7147, %v7412
      %v7575 = vadd.f32 %v7148, %v7417
      %v7576 = vadd.f32 %v7149, %v7422
      %v7577 = vadd.f32 %v7150, %v7427
      %v7578 = vadd.f32 %v7151, %v7432
      %v7579 = vadd.f32 %v7152, %v7437
      %v7580 = vadd.f32 %v7153, %v7442
      %v7581 = vadd.f32 %v7154, %v7447
      %v7582 = vadd.f32 %v7155, %v7452
      %v7583 = vadd.f32 %v7156, %v7457
      %v7584 = vadd.f32 %v7157, %v7462
      %v7585 = vadd.f32 %v7158, %v7467
      %v7586 = vadd.f32 %v7159, %v7472
      %v7587 = vadd.f32 %v7160, %v7477
      %v7588 = vadd.f32 %v7161, %v7482
      %v7589 = vadd.f32 %v7162, %v7487
      %v7590 = vadd.f32 %v7163, %v7492
      %v7591 = vadd.f32 %v7164, %v7497
      %v7592 = vadd.f32 %v7165, %v7502
      %v7593 = vadd.f32 %v7166, %v7507
      %v7594 = vadd.f32 %v7167, %v7512
      %v7595 = vadd.f32 %v7168, %v7517
      %v7596 = vadd.f32 %v7169, %v7522
      %v7597 = vadd.f32 %v7170, %v7527
      %v7598 = vadd.f32 %v7171, %v7532
      %v7599 = vadd.f32 %v7172, %v7537
      %v7600 = vadd.f32 %v7173, %v7542
      %v7601 = vadd.f32 %v7174, %v7547
      %v7602 = vadd.f32 %v7175, %v7552
      %v7603 = vadd.f32 %v7176, %v7557
      %v7604 = vadd.f32 %v7177, %v7562
      %v7605 = vadd.f32 %v7178, %v7567
      %v7606 = vld [vmem:[#allocation3 + $0x24] sm:$0xff]
      %v7607 = vld [vmem:[#allocation3 + $0x2c] sm:$0xff]
      %v7608 = vld [vmem:[#allocation3 + $0x34] sm:$0xff]
      %v7609 = vld [vmem:[#allocation3 + $0x3c] sm:$0xff]
      %v7610 = vld [vmem:[#allocation3 + $0x44] sm:$0xff]
      %v7611 = vld [vmem:[#allocation3 + $0x4c] sm:$0xff]
      %v7612 = vld [vmem:[#allocation3 + $0x54] sm:$0xff]
      %v7613 = vld [vmem:[#allocation3 + $0x5c] sm:$0xff]
      %v7614 = vld [vmem:[#allocation3 + $0x64] sm:$0xff]
      %v7615 = vld [vmem:[#allocation3 + $0x6c] sm:$0xff]
      %v7616 = vld [vmem:[#allocation3 + $0x74] sm:$0xff]
      %v7617 = vld [vmem:[#allocation3 + $0x7c] sm:$0xff]
      %v7618 = vld [vmem:[#allocation3 + $0x84] sm:$0xff]
      %v7619 = vld [vmem:[#allocation3 + $0x8c] sm:$0xff]
      %v7620 = vld [vmem:[#allocation3 + $0x94] sm:$0xff]
      %v7621 = vld [vmem:[#allocation3 + $0x9c] sm:$0xff]
      %v7622 = vld [vmem:[#allocation3 + $0xa4] sm:$0xff]
      %v7623 = vld [vmem:[#allocation3 + $0xac] sm:$0xff]
      %v7624 = vld [vmem:[#allocation3 + $0xb4] sm:$0xff]
      %v7625 = vld [vmem:[#allocation3 + $0xbc] sm:$0xff]
      %v7626 = vld [vmem:[#allocation3 + $0xc4] sm:$0xff]
      %v7627 = vld [vmem:[#allocation3 + $0xcc] sm:$0xff]
      %v7628 = vld [vmem:[#allocation3 + $0xd4] sm:$0xff]
      %v7629 = vld [vmem:[#allocation3 + $0xdc] sm:$0xff]
      %v7630 = vld [vmem:[#allocation3 + $0xe4] sm:$0xff]
      %v7631 = vld [vmem:[#allocation3 + $0xec] sm:$0xff]
      %v7632 = vld [vmem:[#allocation3 + $0xf4] sm:$0xff]
      %v7633 = vld [vmem:[#allocation3 + $0xfc] sm:$0xff]
      %v7634 = vld [vmem:[#allocation3 + $0x104] sm:$0xff]
      %v7635 = vld [vmem:[#allocation3 + $0x10c] sm:$0xff]
      %v7636 = vld [vmem:[#allocation3 + $0x114] sm:$0xff]
      %v7637 = vld [vmem:[#allocation3 + $0x11c] sm:$0xff]
      %v7638 = vld [vmem:[#allocation3 + $0x124] sm:$0xff]
      %v7639 = vld [vmem:[#allocation3 + $0x12c] sm:$0xff]
      %v7640 = vld [vmem:[#allocation3 + $0x134] sm:$0xff]
      %v7641 = vld [vmem:[#allocation3 + $0x13c] sm:$0xff]
      %s7642 = scalar_lea.vmem %s2, 48
      %v7643 = vld [vmem:[%s7642] sm:$0xff]
      %v7645 = vsel %vm171, %v7606, 0
      %v7648 = vsel %vm171, %v7607, 0
      %v7651 = vsel %vm171, %v7608, 0
      %v7654 = vsel %vm171, %v7609, 0
      %v7657 = vsel %vm171, %v7610, 0
      %v7660 = vsel %vm171, %v7611, 0
      %v7663 = vsel %vm171, %v7612, 0
      %v7666 = vsel %vm171, %v7613, 0
      %v7669 = vsel %vm171, %v7614, 0
      %v7672 = vsel %vm171, %v7615, 0
      %v7675 = vsel %vm171, %v7616, 0
      %v7678 = vsel %vm171, %v7617, 0
      %v7681 = vsel %vm171, %v7618, 0
      %v7684 = vsel %vm171, %v7619, 0
      %v7687 = vsel %vm171, %v7620, 0
      %v7690 = vsel %vm171, %v7621, 0
      %v7693 = vsel %vm171, %v7622, 0
      %v7696 = vsel %vm171, %v7623, 0
      %v7699 = vsel %vm171, %v7624, 0
      %v7702 = vsel %vm171, %v7625, 0
      %v7705 = vsel %vm171, %v7626, 0
      %v7708 = vsel %vm171, %v7627, 0
      %v7711 = vsel %vm171, %v7628, 0
      %v7714 = vsel %vm171, %v7629, 0
      %v7717 = vsel %vm171, %v7630, 0
      %v7720 = vsel %vm171, %v7631, 0
      %v7723 = vsel %vm171, %v7632, 0
      %v7726 = vsel %vm171, %v7633, 0
      %v7729 = vsel %vm171, %v7634, 0
      %v7732 = vsel %vm171, %v7635, 0
      %v7735 = vsel %vm171, %v7636, 0
      %v7738 = vsel %vm171, %v7637, 0
      %v7741 = vsel %vm171, %v7638, 0
      %v7744 = vsel %vm171, %v7639, 0
      %v7747 = vsel %vm171, %v7640, 0
      %v7750 = vsel %vm171, %v7641, 0
      %7752 = vmatprep.subr.mxu0 0.0
      %7753 = vmatpush1.msra.mxu0 0.0
      %7754 = vmatprep.subr.mxu0 0.0
      %7755 = vmatpush1.msra.mxu0 0.0
      %7756 = vmatprep.subr.mxu0 0.0
      %7757 = vmatpush1.msra.mxu0 0.0
      %7758 = vmatprep.subr.mxu0 0.0
      %7759 = vmatpush1.msra.mxu0 0.0
      %7760 = vmatprep.subr.mxu0 0.0
      %7761 = vmatpush1.msra.mxu0 0.0
      %7762 = vmatprep.subr.mxu0 0.0
      %7763 = vmatpush1.msra.mxu0 0.0
      %7764 = vmatprep.subr.mxu0 0.0
      %7765 = vmatpush1.msra.mxu0 0.0
      %7766 = vmatprep.subr.mxu0 0.0
      %7767 = vmatpush1.msra.mxu0 0.0
      %7768 = vmatprep.subr.mxu0 0.0
      %7769 = vmatpush1.msra.mxu0 0.0
      %7770 = vmatprep.subr.mxu0 0.0
      %7771 = vmatpush1.msra.mxu0 0.0
      %7772 = vmatprep.subr.mxu0 0.0
      %7773 = vmatpush1.msra.mxu0 0.0
      %7774 = vmatprep.subr.mxu0 0.0
      %7775 = vmatpush1.msra.mxu0 0.0
      %7776 = vmatprep.subr.mxu0 0.0
      %7777 = vmatpush1.msra.mxu0 0.0
      %7778 = vmatprep.subr.mxu0 0.0
      %7779 = vmatpush1.msra.mxu0 0.0
      %7780 = vmatprep.subr.mxu0 0.0
      %7781 = vmatpush1.msra.mxu0 0.0
      %7782 = vmatprep.subr.mxu0 0.0
      %7783 = vmatpush1.msra.mxu0 %v7643
      %7784 = vmatprep.subr.mxu0 0.0
      %7785 = vmatpush2.msra.mxu0 0.0
      %7786 = vmatprep.subr.mxu0 0.0
      %7787 = vmatpush2.msra.mxu0 0.0
      %7788 = vmatprep.subr.mxu0 0.0
      %7789 = vmatpush2.msra.mxu0 0.0
      %7790 = vmatprep.subr.mxu0 0.0
      %7791 = vmatpush2.msra.mxu0 0.0
      %7792 = vmatprep.subr.mxu0 0.0
      %7793 = vmatpush2.msra.mxu0 0.0
      %7794 = vmatprep.subr.mxu0 0.0
      %7795 = vmatpush2.msra.mxu0 0.0
      %7796 = vmatprep.subr.mxu0 0.0
      %7797 = vmatpush2.msra.mxu0 0.0
      %7798 = vmatprep.subr.mxu0 0.0
      %7799 = vmatpush2.msra.mxu0 0.0
      %7800 = vmatprep.subr.mxu0 0.0
      %7801 = vmatpush2.msra.mxu0 0.0
      %7802 = vmatprep.subr.mxu0 0.0
      %7803 = vmatpush2.msra.mxu0 0.0
      %7804 = vmatprep.subr.mxu0 0.0
      %7805 = vmatpush2.msra.mxu0 0.0
      %7806 = vmatprep.subr.mxu0 0.0
      %7807 = vmatpush2.msra.mxu0 0.0
      %7808 = vmatprep.subr.mxu0 0.0
      %7809 = vmatpush2.msra.mxu0 0.0
      %7810 = vmatprep.subr.mxu0 0.0
      %7811 = vmatpush2.msra.mxu0 0.0
      %7812 = vmatprep.subr.mxu0 0.0
      %7813 = vmatpush2.msra.mxu0 0.0
      %7814 = vmatprep.subr.mxu0 0.0
      %7815 = vmatpush2.msra.mxu0 0.0
      %7816 = vmatprep.mubr.f32.mxu0 0.0
      %7817 = vmatmul.mubr.f32.gmra.mxu0 %v7645
      %v7818 = vpop.f32.mrf.mxu0
      %v7819 = vadd.f32 0.0, %v7818
      %v7820 = vpop.f32.mrf.mxu0
      %7821 = vmatprep.mubr.f32.mxu0 0.0
      %7822 = vmatmul.mubr.f32.gmra.mxu0 %v7648
      %v7823 = vpop.f32.mrf.mxu0
      %v7824 = vadd.f32 0.0, %v7823
      %v7825 = vpop.f32.mrf.mxu0
      %7826 = vmatprep.mubr.f32.mxu0 0.0
      %7827 = vmatmul.mubr.f32.gmra.mxu0 %v7651
      %v7828 = vpop.f32.mrf.mxu0
      %v7829 = vadd.f32 0.0, %v7828
      %v7830 = vpop.f32.mrf.mxu0
      %7831 = vmatprep.mubr.f32.mxu0 0.0
      %7832 = vmatmul.mubr.f32.gmra.mxu0 %v7654
      %v7833 = vpop.f32.mrf.mxu0
      %v7834 = vadd.f32 0.0, %v7833
      %v7835 = vpop.f32.mrf.mxu0
      %7836 = vmatprep.mubr.f32.mxu0 0.0
      %7837 = vmatmul.mubr.f32.gmra.mxu0 %v7657
      %v7838 = vpop.f32.mrf.mxu0
      %v7839 = vadd.f32 0.0, %v7838
      %v7840 = vpop.f32.mrf.mxu0
      %7841 = vmatprep.mubr.f32.mxu0 0.0
      %7842 = vmatmul.mubr.f32.gmra.mxu0 %v7660
      %v7843 = vpop.f32.mrf.mxu0
      %v7844 = vadd.f32 0.0, %v7843
      %v7845 = vpop.f32.mrf.mxu0
      %7846 = vmatprep.mubr.f32.mxu0 0.0
      %7847 = vmatmul.mubr.f32.gmra.mxu0 %v7663
      %v7848 = vpop.f32.mrf.mxu0
      %v7849 = vadd.f32 0.0, %v7848
      %v7850 = vpop.f32.mrf.mxu0
      %7851 = vmatprep.mubr.f32.mxu0 0.0
      %7852 = vmatmul.mubr.f32.gmra.mxu0 %v7666
      %v7853 = vpop.f32.mrf.mxu0
      %v7854 = vadd.f32 0.0, %v7853
      %v7855 = vpop.f32.mrf.mxu0
      %7856 = vmatprep.mubr.f32.mxu0 0.0
      %7857 = vmatmul.mubr.f32.gmra.mxu0 %v7669
      %v7858 = vpop.f32.mrf.mxu0
      %v7859 = vadd.f32 0.0, %v7858
      %v7860 = vpop.f32.mrf.mxu0
      %7861 = vmatprep.mubr.f32.mxu0 0.0
      %7862 = vmatmul.mubr.f32.gmra.mxu0 %v7672
      %v7863 = vpop.f32.mrf.mxu0
      %v7864 = vadd.f32 0.0, %v7863
      %v7865 = vpop.f32.mrf.mxu0
      %7866 = vmatprep.mubr.f32.mxu0 0.0
      %7867 = vmatmul.mubr.f32.gmra.mxu0 %v7675
      %v7868 = vpop.f32.mrf.mxu0
      %v7869 = vadd.f32 0.0, %v7868
      %v7870 = vpop.f32.mrf.mxu0
      %7871 = vmatprep.mubr.f32.mxu0 0.0
      %7872 = vmatmul.mubr.f32.gmra.mxu0 %v7678
      %v7873 = vpop.f32.mrf.mxu0
      %v7874 = vadd.f32 0.0, %v7873
      %v7875 = vpop.f32.mrf.mxu0
      %7876 = vmatprep.mubr.f32.mxu0 0.0
      %7877 = vmatmul.mubr.f32.gmra.mxu0 %v7681
      %v7878 = vpop.f32.mrf.mxu0
      %v7879 = vadd.f32 0.0, %v7878
      %v7880 = vpop.f32.mrf.mxu0
      %7881 = vmatprep.mubr.f32.mxu0 0.0
      %7882 = vmatmul.mubr.f32.gmra.mxu0 %v7684
      %v7883 = vpop.f32.mrf.mxu0
      %v7884 = vadd.f32 0.0, %v7883
      %v7885 = vpop.f32.mrf.mxu0
      %7886 = vmatprep.mubr.f32.mxu0 0.0
      %7887 = vmatmul.mubr.f32.gmra.mxu0 %v7687
      %v7888 = vpop.f32.mrf.mxu0
      %v7889 = vadd.f32 0.0, %v7888
      %v7890 = vpop.f32.mrf.mxu0
      %7891 = vmatprep.mubr.f32.mxu0 0.0
      %7892 = vmatmul.mubr.f32.gmra.mxu0 %v7690
      %v7893 = vpop.f32.mrf.mxu0
      %v7894 = vadd.f32 0.0, %v7893
      %v7895 = vpop.f32.mrf.mxu0
      %7896 = vmatprep.mubr.f32.mxu0 0.0
      %7897 = vmatmul.mubr.f32.gmra.mxu0 %v7693
      %v7898 = vpop.f32.mrf.mxu0
      %v7899 = vadd.f32 0.0, %v7898
      %v7900 = vpop.f32.mrf.mxu0
      %7901 = vmatprep.mubr.f32.mxu0 0.0
      %7902 = vmatmul.mubr.f32.gmra.mxu0 %v7696
      %v7903 = vpop.f32.mrf.mxu0
      %v7904 = vadd.f32 0.0, %v7903
      %v7905 = vpop.f32.mrf.mxu0
      %7906 = vmatprep.mubr.f32.mxu0 0.0
      %7907 = vmatmul.mubr.f32.gmra.mxu0 %v7699
      %v7908 = vpop.f32.mrf.mxu0
      %v7909 = vadd.f32 0.0, %v7908
      %v7910 = vpop.f32.mrf.mxu0
      %7911 = vmatprep.mubr.f32.mxu0 0.0
      %7912 = vmatmul.mubr.f32.gmra.mxu0 %v7702
      %v7913 = vpop.f32.mrf.mxu0
      %v7914 = vadd.f32 0.0, %v7913
      %v7915 = vpop.f32.mrf.mxu0
      %7916 = vmatprep.mubr.f32.mxu0 0.0
      %7917 = vmatmul.mubr.f32.gmra.mxu0 %v7705
      %v7918 = vpop.f32.mrf.mxu0
      %v7919 = vadd.f32 0.0, %v7918
      %v7920 = vpop.f32.mrf.mxu0
      %7921 = vmatprep.mubr.f32.mxu0 0.0
      %7922 = vmatmul.mubr.f32.gmra.mxu0 %v7708
      %v7923 = vpop.f32.mrf.mxu0
      %v7924 = vadd.f32 0.0, %v7923
      %v7925 = vpop.f32.mrf.mxu0
      %7926 = vmatprep.mubr.f32.mxu0 0.0
      %7927 = vmatmul.mubr.f32.gmra.mxu0 %v7711
      %v7928 = vpop.f32.mrf.mxu0
      %v7929 = vadd.f32 0.0, %v7928
      %v7930 = vpop.f32.mrf.mxu0
      %7931 = vmatprep.mubr.f32.mxu0 0.0
      %7932 = vmatmul.mubr.f32.gmra.mxu0 %v7714
      %v7933 = vpop.f32.mrf.mxu0
      %v7934 = vadd.f32 0.0, %v7933
      %v7935 = vpop.f32.mrf.mxu0
      %7936 = vmatprep.mubr.f32.mxu0 0.0
      %7937 = vmatmul.mubr.f32.gmra.mxu0 %v7717
      %v7938 = vpop.f32.mrf.mxu0
      %v7939 = vadd.f32 0.0, %v7938
      %v7940 = vpop.f32.mrf.mxu0
      %7941 = vmatprep.mubr.f32.mxu0 0.0
      %7942 = vmatmul.mubr.f32.gmra.mxu0 %v7720
      %v7943 = vpop.f32.mrf.mxu0
      %v7944 = vadd.f32 0.0, %v7943
      %v7945 = vpop.f32.mrf.mxu0
      %7946 = vmatprep.mubr.f32.mxu0 0.0
      %7947 = vmatmul.mubr.f32.gmra.mxu0 %v7723
      %v7948 = vpop.f32.mrf.mxu0
      %v7949 = vadd.f32 0.0, %v7948
      %v7950 = vpop.f32.mrf.mxu0
      %7951 = vmatprep.mubr.f32.mxu0 0.0
      %7952 = vmatmul.mubr.f32.gmra.mxu0 %v7726
      %v7953 = vpop.f32.mrf.mxu0
      %v7954 = vadd.f32 0.0, %v7953
      %v7955 = vpop.f32.mrf.mxu0
      %7956 = vmatprep.mubr.f32.mxu0 0.0
      %7957 = vmatmul.mubr.f32.gmra.mxu0 %v7729
      %v7958 = vpop.f32.mrf.mxu0
      %v7959 = vadd.f32 0.0, %v7958
      %v7960 = vpop.f32.mrf.mxu0
      %7961 = vmatprep.mubr.f32.mxu0 0.0
      %7962 = vmatmul.mubr.f32.gmra.mxu0 %v7732
      %v7963 = vpop.f32.mrf.mxu0
      %v7964 = vadd.f32 0.0, %v7963
      %v7965 = vpop.f32.mrf.mxu0
      %7966 = vmatprep.mubr.f32.mxu0 0.0
      %7967 = vmatmul.mubr.f32.gmra.mxu0 %v7735
      %v7968 = vpop.f32.mrf.mxu0
      %v7969 = vadd.f32 0.0, %v7968
      %v7970 = vpop.f32.mrf.mxu0
      %7971 = vmatprep.mubr.f32.mxu0 0.0
      %7972 = vmatmul.mubr.f32.gmra.mxu0 %v7738
      %v7973 = vpop.f32.mrf.mxu0
      %v7974 = vadd.f32 0.0, %v7973
      %v7975 = vpop.f32.mrf.mxu0
      %7976 = vmatprep.mubr.f32.mxu0 0.0
      %7977 = vmatmul.mubr.f32.gmra.mxu0 %v7741
      %v7978 = vpop.f32.mrf.mxu0
      %v7979 = vadd.f32 0.0, %v7978
      %v7980 = vpop.f32.mrf.mxu0
      %7981 = vmatprep.mubr.f32.mxu0 0.0
      %7982 = vmatmul.mubr.f32.gmra.mxu0 %v7744
      %v7983 = vpop.f32.mrf.mxu0
      %v7984 = vadd.f32 0.0, %v7983
      %v7985 = vpop.f32.mrf.mxu0
      %7986 = vmatprep.mubr.f32.mxu0 0.0
      %7987 = vmatmul.mubr.f32.gmra.mxu0 %v7747
      %v7988 = vpop.f32.mrf.mxu0
      %v7989 = vadd.f32 0.0, %v7988
      %v7990 = vpop.f32.mrf.mxu0
      %7991 = vmatprep.mubr.f32.mxu0 0.0
      %7992 = vmatmul.mubr.f32.gmra.mxu0 %v7750
      %v7993 = vpop.f32.mrf.mxu0
      %v7994 = vadd.f32 0.0, %v7993
      %v7995 = vpop.f32.mrf.mxu0
      %7996 = vdwg.mxu0
      %v7997 = vadd.f32 %v7570, %v7819
      %v7998 = vadd.f32 %v7571, %v7824
      %v7999 = vadd.f32 %v7572, %v7829
      %v8000 = vadd.f32 %v7573, %v7834
      %v8001 = vadd.f32 %v7574, %v7839
      %v8002 = vadd.f32 %v7575, %v7844
      %v8003 = vadd.f32 %v7576, %v7849
      %v8004 = vadd.f32 %v7577, %v7854
      %v8005 = vadd.f32 %v7578, %v7859
      %v8006 = vadd.f32 %v7579, %v7864
      %v8007 = vadd.f32 %v7580, %v7869
      %v8008 = vadd.f32 %v7581, %v7874
      %v8009 = vadd.f32 %v7582, %v7879
      %v8010 = vadd.f32 %v7583, %v7884
      %v8011 = vadd.f32 %v7584, %v7889
      %v8012 = vadd.f32 %v7585, %v7894
      %v8013 = vadd.f32 %v7586, %v7899
      %v8014 = vadd.f32 %v7587, %v7904
      %v8015 = vadd.f32 %v7588, %v7909
      %v8016 = vadd.f32 %v7589, %v7914
      %v8017 = vadd.f32 %v7590, %v7919
      %v8018 = vadd.f32 %v7591, %v7924
      %v8019 = vadd.f32 %v7592, %v7929
      %v8020 = vadd.f32 %v7593, %v7934
      %v8021 = vadd.f32 %v7594, %v7939
      %v8022 = vadd.f32 %v7595, %v7944
      %v8023 = vadd.f32 %v7596, %v7949
      %v8024 = vadd.f32 %v7597, %v7954
      %v8025 = vadd.f32 %v7598, %v7959
      %v8026 = vadd.f32 %v7599, %v7964
      %v8027 = vadd.f32 %v7600, %v7969
      %v8028 = vadd.f32 %v7601, %v7974
      %v8029 = vadd.f32 %v7602, %v7979
      %v8030 = vadd.f32 %v7603, %v7984
      %v8031 = vadd.f32 %v7604, %v7989
      %v8032 = vadd.f32 %v7605, %v7994
      %v8033 = vld [vmem:[#allocation3 + $0x25] sm:$0xff]
      %v8034 = vld [vmem:[#allocation3 + $0x2d] sm:$0xff]
      %v8035 = vld [vmem:[#allocation3 + $0x35] sm:$0xff]
      %v8036 = vld [vmem:[#allocation3 + $0x3d] sm:$0xff]
      %v8037 = vld [vmem:[#allocation3 + $0x45] sm:$0xff]
      %v8038 = vld [vmem:[#allocation3 + $0x4d] sm:$0xff]
      %v8039 = vld [vmem:[#allocation3 + $0x55] sm:$0xff]
      %v8040 = vld [vmem:[#allocation3 + $0x5d] sm:$0xff]
      %v8041 = vld [vmem:[#allocation3 + $0x65] sm:$0xff]
      %v8042 = vld [vmem:[#allocation3 + $0x6d] sm:$0xff]
      %v8043 = vld [vmem:[#allocation3 + $0x75] sm:$0xff]
      %v8044 = vld [vmem:[#allocation3 + $0x7d] sm:$0xff]
      %v8045 = vld [vmem:[#allocation3 + $0x85] sm:$0xff]
      %v8046 = vld [vmem:[#allocation3 + $0x8d] sm:$0xff]
      %v8047 = vld [vmem:[#allocation3 + $0x95] sm:$0xff]
      %v8048 = vld [vmem:[#allocation3 + $0x9d] sm:$0xff]
      %v8049 = vld [vmem:[#allocation3 + $0xa5] sm:$0xff]
      %v8050 = vld [vmem:[#allocation3 + $0xad] sm:$0xff]
      %v8051 = vld [vmem:[#allocation3 + $0xb5] sm:$0xff]
      %v8052 = vld [vmem:[#allocation3 + $0xbd] sm:$0xff]
      %v8053 = vld [vmem:[#allocation3 + $0xc5] sm:$0xff]
      %v8054 = vld [vmem:[#allocation3 + $0xcd] sm:$0xff]
      %v8055 = vld [vmem:[#allocation3 + $0xd5] sm:$0xff]
      %v8056 = vld [vmem:[#allocation3 + $0xdd] sm:$0xff]
      %v8057 = vld [vmem:[#allocation3 + $0xe5] sm:$0xff]
      %v8058 = vld [vmem:[#allocation3 + $0xed] sm:$0xff]
      %v8059 = vld [vmem:[#allocation3 + $0xf5] sm:$0xff]
      %v8060 = vld [vmem:[#allocation3 + $0xfd] sm:$0xff]
      %v8061 = vld [vmem:[#allocation3 + $0x105] sm:$0xff]
      %v8062 = vld [vmem:[#allocation3 + $0x10d] sm:$0xff]
      %v8063 = vld [vmem:[#allocation3 + $0x115] sm:$0xff]
      %v8064 = vld [vmem:[#allocation3 + $0x11d] sm:$0xff]
      %v8065 = vld [vmem:[#allocation3 + $0x125] sm:$0xff]
      %v8066 = vld [vmem:[#allocation3 + $0x12d] sm:$0xff]
      %v8067 = vld [vmem:[#allocation3 + $0x135] sm:$0xff]
      %v8068 = vld [vmem:[#allocation3 + $0x13d] sm:$0xff]
      %s8069 = scalar_lea.vmem %s2, 56
      %v8070 = vld [vmem:[%s8069] sm:$0xff]
      %v8072 = vsel %vm171, %v8033, 0
      %v8075 = vsel %vm171, %v8034, 0
      %v8078 = vsel %vm171, %v8035, 0
      %v8081 = vsel %vm171, %v8036, 0
      %v8084 = vsel %vm171, %v8037, 0
      %v8087 = vsel %vm171, %v8038, 0
      %v8090 = vsel %vm171, %v8039, 0
      %v8093 = vsel %vm171, %v8040, 0
      %v8096 = vsel %vm171, %v8041, 0
      %v8099 = vsel %vm171, %v8042, 0
      %v8102 = vsel %vm171, %v8043, 0
      %v8105 = vsel %vm171, %v8044, 0
      %v8108 = vsel %vm171, %v8045, 0
      %v8111 = vsel %vm171, %v8046, 0
      %v8114 = vsel %vm171, %v8047, 0
      %v8117 = vsel %vm171, %v8048, 0
      %v8120 = vsel %vm171, %v8049, 0
      %v8123 = vsel %vm171, %v8050, 0
      %v8126 = vsel %vm171, %v8051, 0
      %v8129 = vsel %vm171, %v8052, 0
      %v8132 = vsel %vm171, %v8053, 0
      %v8135 = vsel %vm171, %v8054, 0
      %v8138 = vsel %vm171, %v8055, 0
      %v8141 = vsel %vm171, %v8056, 0
      %v8144 = vsel %vm171, %v8057, 0
      %v8147 = vsel %vm171, %v8058, 0
      %v8150 = vsel %vm171, %v8059, 0
      %v8153 = vsel %vm171, %v8060, 0
      %v8156 = vsel %vm171, %v8061, 0
      %v8159 = vsel %vm171, %v8062, 0
      %v8162 = vsel %vm171, %v8063, 0
      %v8165 = vsel %vm171, %v8064, 0
      %v8168 = vsel %vm171, %v8065, 0
      %v8171 = vsel %vm171, %v8066, 0
      %v8174 = vsel %vm171, %v8067, 0
      %v8177 = vsel %vm171, %v8068, 0
      %8179 = vmatprep.subr.mxu0 0.0
      %8180 = vmatpush1.msra.mxu0 0.0
      %8181 = vmatprep.subr.mxu0 0.0
      %8182 = vmatpush1.msra.mxu0 0.0
      %8183 = vmatprep.subr.mxu0 0.0
      %8184 = vmatpush1.msra.mxu0 0.0
      %8185 = vmatprep.subr.mxu0 0.0
      %8186 = vmatpush1.msra.mxu0 0.0
      %8187 = vmatprep.subr.mxu0 0.0
      %8188 = vmatpush1.msra.mxu0 0.0
      %8189 = vmatprep.subr.mxu0 0.0
      %8190 = vmatpush1.msra.mxu0 0.0
      %8191 = vmatprep.subr.mxu0 0.0
      %8192 = vmatpush1.msra.mxu0 0.0
      %8193 = vmatprep.subr.mxu0 0.0
      %8194 = vmatpush1.msra.mxu0 0.0
      %8195 = vmatprep.subr.mxu0 0.0
      %8196 = vmatpush1.msra.mxu0 0.0
      %8197 = vmatprep.subr.mxu0 0.0
      %8198 = vmatpush1.msra.mxu0 0.0
      %8199 = vmatprep.subr.mxu0 0.0
      %8200 = vmatpush1.msra.mxu0 0.0
      %8201 = vmatprep.subr.mxu0 0.0
      %8202 = vmatpush1.msra.mxu0 0.0
      %8203 = vmatprep.subr.mxu0 0.0
      %8204 = vmatpush1.msra.mxu0 0.0
      %8205 = vmatprep.subr.mxu0 0.0
      %8206 = vmatpush1.msra.mxu0 0.0
      %8207 = vmatprep.subr.mxu0 0.0
      %8208 = vmatpush1.msra.mxu0 0.0
      %8209 = vmatprep.subr.mxu0 0.0
      %8210 = vmatpush1.msra.mxu0 %v8070
      %8211 = vmatprep.subr.mxu0 0.0
      %8212 = vmatpush2.msra.mxu0 0.0
      %8213 = vmatprep.subr.mxu0 0.0
      %8214 = vmatpush2.msra.mxu0 0.0
      %8215 = vmatprep.subr.mxu0 0.0
      %8216 = vmatpush2.msra.mxu0 0.0
      %8217 = vmatprep.subr.mxu0 0.0
      %8218 = vmatpush2.msra.mxu0 0.0
      %8219 = vmatprep.subr.mxu0 0.0
      %8220 = vmatpush2.msra.mxu0 0.0
      %8221 = vmatprep.subr.mxu0 0.0
      %8222 = vmatpush2.msra.mxu0 0.0
      %8223 = vmatprep.subr.mxu0 0.0
      %8224 = vmatpush2.msra.mxu0 0.0
      %8225 = vmatprep.subr.mxu0 0.0
      %8226 = vmatpush2.msra.mxu0 0.0
      %8227 = vmatprep.subr.mxu0 0.0
      %8228 = vmatpush2.msra.mxu0 0.0
      %8229 = vmatprep.subr.mxu0 0.0
      %8230 = vmatpush2.msra.mxu0 0.0
      %8231 = vmatprep.subr.mxu0 0.0
      %8232 = vmatpush2.msra.mxu0 0.0
      %8233 = vmatprep.subr.mxu0 0.0
      %8234 = vmatpush2.msra.mxu0 0.0
      %8235 = vmatprep.subr.mxu0 0.0
      %8236 = vmatpush2.msra.mxu0 0.0
      %8237 = vmatprep.subr.mxu0 0.0
      %8238 = vmatpush2.msra.mxu0 0.0
      %8239 = vmatprep.subr.mxu0 0.0
      %8240 = vmatpush2.msra.mxu0 0.0
      %8241 = vmatprep.subr.mxu0 0.0
      %8242 = vmatpush2.msra.mxu0 0.0
      %8243 = vmatprep.mubr.f32.mxu0 0.0
      %8244 = vmatmul.mubr.f32.gmra.mxu0 %v8072
      %v8245 = vpop.f32.mrf.mxu0
      %v8246 = vadd.f32 0.0, %v8245
      %v8247 = vpop.f32.mrf.mxu0
      %8248 = vmatprep.mubr.f32.mxu0 0.0
      %8249 = vmatmul.mubr.f32.gmra.mxu0 %v8075
      %v8250 = vpop.f32.mrf.mxu0
      %v8251 = vadd.f32 0.0, %v8250
      %v8252 = vpop.f32.mrf.mxu0
      %8253 = vmatprep.mubr.f32.mxu0 0.0
      %8254 = vmatmul.mubr.f32.gmra.mxu0 %v8078
      %v8255 = vpop.f32.mrf.mxu0
      %v8256 = vadd.f32 0.0, %v8255
      %v8257 = vpop.f32.mrf.mxu0
      %8258 = vmatprep.mubr.f32.mxu0 0.0
      %8259 = vmatmul.mubr.f32.gmra.mxu0 %v8081
      %v8260 = vpop.f32.mrf.mxu0
      %v8261 = vadd.f32 0.0, %v8260
      %v8262 = vpop.f32.mrf.mxu0
      %8263 = vmatprep.mubr.f32.mxu0 0.0
      %8264 = vmatmul.mubr.f32.gmra.mxu0 %v8084
      %v8265 = vpop.f32.mrf.mxu0
      %v8266 = vadd.f32 0.0, %v8265
      %v8267 = vpop.f32.mrf.mxu0
      %8268 = vmatprep.mubr.f32.mxu0 0.0
      %8269 = vmatmul.mubr.f32.gmra.mxu0 %v8087
      %v8270 = vpop.f32.mrf.mxu0
      %v8271 = vadd.f32 0.0, %v8270
      %v8272 = vpop.f32.mrf.mxu0
      %8273 = vmatprep.mubr.f32.mxu0 0.0
      %8274 = vmatmul.mubr.f32.gmra.mxu0 %v8090
      %v8275 = vpop.f32.mrf.mxu0
      %v8276 = vadd.f32 0.0, %v8275
      %v8277 = vpop.f32.mrf.mxu0
      %8278 = vmatprep.mubr.f32.mxu0 0.0
      %8279 = vmatmul.mubr.f32.gmra.mxu0 %v8093
      %v8280 = vpop.f32.mrf.mxu0
      %v8281 = vadd.f32 0.0, %v8280
      %v8282 = vpop.f32.mrf.mxu0
      %8283 = vmatprep.mubr.f32.mxu0 0.0
      %8284 = vmatmul.mubr.f32.gmra.mxu0 %v8096
      %v8285 = vpop.f32.mrf.mxu0
      %v8286 = vadd.f32 0.0, %v8285
      %v8287 = vpop.f32.mrf.mxu0
      %8288 = vmatprep.mubr.f32.mxu0 0.0
      %8289 = vmatmul.mubr.f32.gmra.mxu0 %v8099
      %v8290 = vpop.f32.mrf.mxu0
      %v8291 = vadd.f32 0.0, %v8290
      %v8292 = vpop.f32.mrf.mxu0
      %8293 = vmatprep.mubr.f32.mxu0 0.0
      %8294 = vmatmul.mubr.f32.gmra.mxu0 %v8102
      %v8295 = vpop.f32.mrf.mxu0
      %v8296 = vadd.f32 0.0, %v8295
      %v8297 = vpop.f32.mrf.mxu0
      %8298 = vmatprep.mubr.f32.mxu0 0.0
      %8299 = vmatmul.mubr.f32.gmra.mxu0 %v8105
      %v8300 = vpop.f32.mrf.mxu0
      %v8301 = vadd.f32 0.0, %v8300
      %v8302 = vpop.f32.mrf.mxu0
      %8303 = vmatprep.mubr.f32.mxu0 0.0
      %8304 = vmatmul.mubr.f32.gmra.mxu0 %v8108
      %v8305 = vpop.f32.mrf.mxu0
      %v8306 = vadd.f32 0.0, %v8305
      %v8307 = vpop.f32.mrf.mxu0
      %8308 = vmatprep.mubr.f32.mxu0 0.0
      %8309 = vmatmul.mubr.f32.gmra.mxu0 %v8111
      %v8310 = vpop.f32.mrf.mxu0
      %v8311 = vadd.f32 0.0, %v8310
      %v8312 = vpop.f32.mrf.mxu0
      %8313 = vmatprep.mubr.f32.mxu0 0.0
      %8314 = vmatmul.mubr.f32.gmra.mxu0 %v8114
      %v8315 = vpop.f32.mrf.mxu0
      %v8316 = vadd.f32 0.0, %v8315
      %v8317 = vpop.f32.mrf.mxu0
      %8318 = vmatprep.mubr.f32.mxu0 0.0
      %8319 = vmatmul.mubr.f32.gmra.mxu0 %v8117
      %v8320 = vpop.f32.mrf.mxu0
      %v8321 = vadd.f32 0.0, %v8320
      %v8322 = vpop.f32.mrf.mxu0
      %8323 = vmatprep.mubr.f32.mxu0 0.0
      %8324 = vmatmul.mubr.f32.gmra.mxu0 %v8120
      %v8325 = vpop.f32.mrf.mxu0
      %v8326 = vadd.f32 0.0, %v8325
      %v8327 = vpop.f32.mrf.mxu0
      %8328 = vmatprep.mubr.f32.mxu0 0.0
      %8329 = vmatmul.mubr.f32.gmra.mxu0 %v8123
      %v8330 = vpop.f32.mrf.mxu0
      %v8331 = vadd.f32 0.0, %v8330
      %v8332 = vpop.f32.mrf.mxu0
      %8333 = vmatprep.mubr.f32.mxu0 0.0
      %8334 = vmatmul.mubr.f32.gmra.mxu0 %v8126
      %v8335 = vpop.f32.mrf.mxu0
      %v8336 = vadd.f32 0.0, %v8335
      %v8337 = vpop.f32.mrf.mxu0
      %8338 = vmatprep.mubr.f32.mxu0 0.0
      %8339 = vmatmul.mubr.f32.gmra.mxu0 %v8129
      %v8340 = vpop.f32.mrf.mxu0
      %v8341 = vadd.f32 0.0, %v8340
      %v8342 = vpop.f32.mrf.mxu0
      %8343 = vmatprep.mubr.f32.mxu0 0.0
      %8344 = vmatmul.mubr.f32.gmra.mxu0 %v8132
      %v8345 = vpop.f32.mrf.mxu0
      %v8346 = vadd.f32 0.0, %v8345
      %v8347 = vpop.f32.mrf.mxu0
      %8348 = vmatprep.mubr.f32.mxu0 0.0
      %8349 = vmatmul.mubr.f32.gmra.mxu0 %v8135
      %v8350 = vpop.f32.mrf.mxu0
      %v8351 = vadd.f32 0.0, %v8350
      %v8352 = vpop.f32.mrf.mxu0
      %8353 = vmatprep.mubr.f32.mxu0 0.0
      %8354 = vmatmul.mubr.f32.gmra.mxu0 %v8138
      %v8355 = vpop.f32.mrf.mxu0
      %v8356 = vadd.f32 0.0, %v8355
      %v8357 = vpop.f32.mrf.mxu0
      %8358 = vmatprep.mubr.f32.mxu0 0.0
      %8359 = vmatmul.mubr.f32.gmra.mxu0 %v8141
      %v8360 = vpop.f32.mrf.mxu0
      %v8361 = vadd.f32 0.0, %v8360
      %v8362 = vpop.f32.mrf.mxu0
      %8363 = vmatprep.mubr.f32.mxu0 0.0
      %8364 = vmatmul.mubr.f32.gmra.mxu0 %v8144
      %v8365 = vpop.f32.mrf.mxu0
      %v8366 = vadd.f32 0.0, %v8365
      %v8367 = vpop.f32.mrf.mxu0
      %8368 = vmatprep.mubr.f32.mxu0 0.0
      %8369 = vmatmul.mubr.f32.gmra.mxu0 %v8147
      %v8370 = vpop.f32.mrf.mxu0
      %v8371 = vadd.f32 0.0, %v8370
      %v8372 = vpop.f32.mrf.mxu0
      %8373 = vmatprep.mubr.f32.mxu0 0.0
      %8374 = vmatmul.mubr.f32.gmra.mxu0 %v8150
      %v8375 = vpop.f32.mrf.mxu0
      %v8376 = vadd.f32 0.0, %v8375
      %v8377 = vpop.f32.mrf.mxu0
      %8378 = vmatprep.mubr.f32.mxu0 0.0
      %8379 = vmatmul.mubr.f32.gmra.mxu0 %v8153
      %v8380 = vpop.f32.mrf.mxu0
      %v8381 = vadd.f32 0.0, %v8380
      %v8382 = vpop.f32.mrf.mxu0
      %8383 = vmatprep.mubr.f32.mxu0 0.0
      %8384 = vmatmul.mubr.f32.gmra.mxu0 %v8156
      %v8385 = vpop.f32.mrf.mxu0
      %v8386 = vadd.f32 0.0, %v8385
      %v8387 = vpop.f32.mrf.mxu0
      %8388 = vmatprep.mubr.f32.mxu0 0.0
      %8389 = vmatmul.mubr.f32.gmra.mxu0 %v8159
      %v8390 = vpop.f32.mrf.mxu0
      %v8391 = vadd.f32 0.0, %v8390
      %v8392 = vpop.f32.mrf.mxu0
      %8393 = vmatprep.mubr.f32.mxu0 0.0
      %8394 = vmatmul.mubr.f32.gmra.mxu0 %v8162
      %v8395 = vpop.f32.mrf.mxu0
      %v8396 = vadd.f32 0.0, %v8395
      %v8397 = vpop.f32.mrf.mxu0
      %8398 = vmatprep.mubr.f32.mxu0 0.0
      %8399 = vmatmul.mubr.f32.gmra.mxu0 %v8165
      %v8400 = vpop.f32.mrf.mxu0
      %v8401 = vadd.f32 0.0, %v8400
      %v8402 = vpop.f32.mrf.mxu0
      %8403 = vmatprep.mubr.f32.mxu0 0.0
      %8404 = vmatmul.mubr.f32.gmra.mxu0 %v8168
      %v8405 = vpop.f32.mrf.mxu0
      %v8406 = vadd.f32 0.0, %v8405
      %v8407 = vpop.f32.mrf.mxu0
      %8408 = vmatprep.mubr.f32.mxu0 0.0
      %8409 = vmatmul.mubr.f32.gmra.mxu0 %v8171
      %v8410 = vpop.f32.mrf.mxu0
      %v8411 = vadd.f32 0.0, %v8410
      %v8412 = vpop.f32.mrf.mxu0
      %8413 = vmatprep.mubr.f32.mxu0 0.0
      %8414 = vmatmul.mubr.f32.gmra.mxu0 %v8174
      %v8415 = vpop.f32.mrf.mxu0
      %v8416 = vadd.f32 0.0, %v8415
      %v8417 = vpop.f32.mrf.mxu0
      %8418 = vmatprep.mubr.f32.mxu0 0.0
      %8419 = vmatmul.mubr.f32.gmra.mxu0 %v8177
      %v8420 = vpop.f32.mrf.mxu0
      %v8421 = vadd.f32 0.0, %v8420
      %v8422 = vpop.f32.mrf.mxu0
      %8423 = vdwg.mxu0
      %v8424 = vadd.f32 %v7997, %v8246
      %v8425 = vadd.f32 %v7998, %v8251
      %v8426 = vadd.f32 %v7999, %v8256
      %v8427 = vadd.f32 %v8000, %v8261
      %v8428 = vadd.f32 %v8001, %v8266
      %v8429 = vadd.f32 %v8002, %v8271
      %v8430 = vadd.f32 %v8003, %v8276
      %v8431 = vadd.f32 %v8004, %v8281
      %v8432 = vadd.f32 %v8005, %v8286
      %v8433 = vadd.f32 %v8006, %v8291
      %v8434 = vadd.f32 %v8007, %v8296
      %v8435 = vadd.f32 %v8008, %v8301
      %v8436 = vadd.f32 %v8009, %v8306
      %v8437 = vadd.f32 %v8010, %v8311
      %v8438 = vadd.f32 %v8011, %v8316
      %v8439 = vadd.f32 %v8012, %v8321
      %v8440 = vadd.f32 %v8013, %v8326
      %v8441 = vadd.f32 %v8014, %v8331
      %v8442 = vadd.f32 %v8015, %v8336
      %v8443 = vadd.f32 %v8016, %v8341
      %v8444 = vadd.f32 %v8017, %v8346
      %v8445 = vadd.f32 %v8018, %v8351
      %v8446 = vadd.f32 %v8019, %v8356
      %v8447 = vadd.f32 %v8020, %v8361
      %v8448 = vadd.f32 %v8021, %v8366
      %v8449 = vadd.f32 %v8022, %v8371
      %v8450 = vadd.f32 %v8023, %v8376
      %v8451 = vadd.f32 %v8024, %v8381
      %v8452 = vadd.f32 %v8025, %v8386
      %v8453 = vadd.f32 %v8026, %v8391
      %v8454 = vadd.f32 %v8027, %v8396
      %v8455 = vadd.f32 %v8028, %v8401
      %v8456 = vadd.f32 %v8029, %v8406
      %v8457 = vadd.f32 %v8030, %v8411
      %v8458 = vadd.f32 %v8031, %v8416
      %v8459 = vadd.f32 %v8032, %v8421
      %v8460 = vld [vmem:[#allocation3 + $0x26] sm:$0xff]
      %v8461 = vld [vmem:[#allocation3 + $0x2e] sm:$0xff]
      %v8462 = vld [vmem:[#allocation3 + $0x36] sm:$0xff]
      %v8463 = vld [vmem:[#allocation3 + $0x3e] sm:$0xff]
      %v8464 = vld [vmem:[#allocation3 + $0x46] sm:$0xff]
      %v8465 = vld [vmem:[#allocation3 + $0x4e] sm:$0xff]
      %v8466 = vld [vmem:[#allocation3 + $0x56] sm:$0xff]
      %v8467 = vld [vmem:[#allocation3 + $0x5e] sm:$0xff]
      %v8468 = vld [vmem:[#allocation3 + $0x66] sm:$0xff]
      %v8469 = vld [vmem:[#allocation3 + $0x6e] sm:$0xff]
      %v8470 = vld [vmem:[#allocation3 + $0x76] sm:$0xff]
      %v8471 = vld [vmem:[#allocation3 + $0x7e] sm:$0xff]
      %v8472 = vld [vmem:[#allocation3 + $0x86] sm:$0xff]
      %v8473 = vld [vmem:[#allocation3 + $0x8e] sm:$0xff]
      %v8474 = vld [vmem:[#allocation3 + $0x96] sm:$0xff]
      %v8475 = vld [vmem:[#allocation3 + $0x9e] sm:$0xff]
      %v8476 = vld [vmem:[#allocation3 + $0xa6] sm:$0xff]
      %v8477 = vld [vmem:[#allocation3 + $0xae] sm:$0xff]
      %v8478 = vld [vmem:[#allocation3 + $0xb6] sm:$0xff]
      %v8479 = vld [vmem:[#allocation3 + $0xbe] sm:$0xff]
      %v8480 = vld [vmem:[#allocation3 + $0xc6] sm:$0xff]
      %v8481 = vld [vmem:[#allocation3 + $0xce] sm:$0xff]
      %v8482 = vld [vmem:[#allocation3 + $0xd6] sm:$0xff]
      %v8483 = vld [vmem:[#allocation3 + $0xde] sm:$0xff]
      %v8484 = vld [vmem:[#allocation3 + $0xe6] sm:$0xff]
      %v8485 = vld [vmem:[#allocation3 + $0xee] sm:$0xff]
      %v8486 = vld [vmem:[#allocation3 + $0xf6] sm:$0xff]
      %v8487 = vld [vmem:[#allocation3 + $0xfe] sm:$0xff]
      %v8488 = vld [vmem:[#allocation3 + $0x106] sm:$0xff]
      %v8489 = vld [vmem:[#allocation3 + $0x10e] sm:$0xff]
      %v8490 = vld [vmem:[#allocation3 + $0x116] sm:$0xff]
      %v8491 = vld [vmem:[#allocation3 + $0x11e] sm:$0xff]
      %v8492 = vld [vmem:[#allocation3 + $0x126] sm:$0xff]
      %v8493 = vld [vmem:[#allocation3 + $0x12e] sm:$0xff]
      %v8494 = vld [vmem:[#allocation3 + $0x136] sm:$0xff]
      %v8495 = vld [vmem:[#allocation3 + $0x13e] sm:$0xff]
      %s8496 = scalar_lea.vmem %s2, 64
      %v8497 = vld [vmem:[%s8496] sm:$0xff]
      %v8499 = vsel %vm171, %v8460, 0
      %v8502 = vsel %vm171, %v8461, 0
      %v8505 = vsel %vm171, %v8462, 0
      %v8508 = vsel %vm171, %v8463, 0
      %v8511 = vsel %vm171, %v8464, 0
      %v8514 = vsel %vm171, %v8465, 0
      %v8517 = vsel %vm171, %v8466, 0
      %v8520 = vsel %vm171, %v8467, 0
      %v8523 = vsel %vm171, %v8468, 0
      %v8526 = vsel %vm171, %v8469, 0
      %v8529 = vsel %vm171, %v8470, 0
      %v8532 = vsel %vm171, %v8471, 0
      %v8535 = vsel %vm171, %v8472, 0
      %v8538 = vsel %vm171, %v8473, 0
      %v8541 = vsel %vm171, %v8474, 0
      %v8544 = vsel %vm171, %v8475, 0
      %v8547 = vsel %vm171, %v8476, 0
      %v8550 = vsel %vm171, %v8477, 0
      %v8553 = vsel %vm171, %v8478, 0
      %v8556 = vsel %vm171, %v8479, 0
      %v8559 = vsel %vm171, %v8480, 0
      %v8562 = vsel %vm171, %v8481, 0
      %v8565 = vsel %vm171, %v8482, 0
      %v8568 = vsel %vm171, %v8483, 0
      %v8571 = vsel %vm171, %v8484, 0
      %v8574 = vsel %vm171, %v8485, 0
      %v8577 = vsel %vm171, %v8486, 0
      %v8580 = vsel %vm171, %v8487, 0
      %v8583 = vsel %vm171, %v8488, 0
      %v8586 = vsel %vm171, %v8489, 0
      %v8589 = vsel %vm171, %v8490, 0
      %v8592 = vsel %vm171, %v8491, 0
      %v8595 = vsel %vm171, %v8492, 0
      %v8598 = vsel %vm171, %v8493, 0
      %v8601 = vsel %vm171, %v8494, 0
      %v8604 = vsel %vm171, %v8495, 0
      %8606 = vmatprep.subr.mxu0 0.0
      %8607 = vmatpush1.msra.mxu0 0.0
      %8608 = vmatprep.subr.mxu0 0.0
      %8609 = vmatpush1.msra.mxu0 0.0
      %8610 = vmatprep.subr.mxu0 0.0
      %8611 = vmatpush1.msra.mxu0 0.0
      %8612 = vmatprep.subr.mxu0 0.0
      %8613 = vmatpush1.msra.mxu0 0.0
      %8614 = vmatprep.subr.mxu0 0.0
      %8615 = vmatpush1.msra.mxu0 0.0
      %8616 = vmatprep.subr.mxu0 0.0
      %8617 = vmatpush1.msra.mxu0 0.0
      %8618 = vmatprep.subr.mxu0 0.0
      %8619 = vmatpush1.msra.mxu0 0.0
      %8620 = vmatprep.subr.mxu0 0.0
      %8621 = vmatpush1.msra.mxu0 0.0
      %8622 = vmatprep.subr.mxu0 0.0
      %8623 = vmatpush1.msra.mxu0 0.0
      %8624 = vmatprep.subr.mxu0 0.0
      %8625 = vmatpush1.msra.mxu0 0.0
      %8626 = vmatprep.subr.mxu0 0.0
      %8627 = vmatpush1.msra.mxu0 0.0
      %8628 = vmatprep.subr.mxu0 0.0
      %8629 = vmatpush1.msra.mxu0 0.0
      %8630 = vmatprep.subr.mxu0 0.0
      %8631 = vmatpush1.msra.mxu0 0.0
      %8632 = vmatprep.subr.mxu0 0.0
      %8633 = vmatpush1.msra.mxu0 0.0
      %8634 = vmatprep.subr.mxu0 0.0
      %8635 = vmatpush1.msra.mxu0 0.0
      %8636 = vmatprep.subr.mxu0 0.0
      %8637 = vmatpush1.msra.mxu0 %v8497
      %8638 = vmatprep.subr.mxu0 0.0
      %8639 = vmatpush2.msra.mxu0 0.0
      %8640 = vmatprep.subr.mxu0 0.0
      %8641 = vmatpush2.msra.mxu0 0.0
      %8642 = vmatprep.subr.mxu0 0.0
      %8643 = vmatpush2.msra.mxu0 0.0
      %8644 = vmatprep.subr.mxu0 0.0
      %8645 = vmatpush2.msra.mxu0 0.0
      %8646 = vmatprep.subr.mxu0 0.0
      %8647 = vmatpush2.msra.mxu0 0.0
      %8648 = vmatprep.subr.mxu0 0.0
      %8649 = vmatpush2.msra.mxu0 0.0
      %8650 = vmatprep.subr.mxu0 0.0
      %8651 = vmatpush2.msra.mxu0 0.0
      %8652 = vmatprep.subr.mxu0 0.0
      %8653 = vmatpush2.msra.mxu0 0.0
      %8654 = vmatprep.subr.mxu0 0.0
      %8655 = vmatpush2.msra.mxu0 0.0
      %8656 = vmatprep.subr.mxu0 0.0
      %8657 = vmatpush2.msra.mxu0 0.0
      %8658 = vmatprep.subr.mxu0 0.0
      %8659 = vmatpush2.msra.mxu0 0.0
      %8660 = vmatprep.subr.mxu0 0.0
      %8661 = vmatpush2.msra.mxu0 0.0
      %8662 = vmatprep.subr.mxu0 0.0
      %8663 = vmatpush2.msra.mxu0 0.0
      %8664 = vmatprep.subr.mxu0 0.0
      %8665 = vmatpush2.msra.mxu0 0.0
      %8666 = vmatprep.subr.mxu0 0.0
      %8667 = vmatpush2.msra.mxu0 0.0
      %8668 = vmatprep.subr.mxu0 0.0
      %8669 = vmatpush2.msra.mxu0 0.0
      %8670 = vmatprep.mubr.f32.mxu0 0.0
      %8671 = vmatmul.mubr.f32.gmra.mxu0 %v8499
      %v8672 = vpop.f32.mrf.mxu0
      %v8673 = vadd.f32 0.0, %v8672
      %v8674 = vpop.f32.mrf.mxu0
      %8675 = vmatprep.mubr.f32.mxu0 0.0
      %8676 = vmatmul.mubr.f32.gmra.mxu0 %v8502
      %v8677 = vpop.f32.mrf.mxu0
      %v8678 = vadd.f32 0.0, %v8677
      %v8679 = vpop.f32.mrf.mxu0
      %8680 = vmatprep.mubr.f32.mxu0 0.0
      %8681 = vmatmul.mubr.f32.gmra.mxu0 %v8505
      %v8682 = vpop.f32.mrf.mxu0
      %v8683 = vadd.f32 0.0, %v8682
      %v8684 = vpop.f32.mrf.mxu0
      %8685 = vmatprep.mubr.f32.mxu0 0.0
      %8686 = vmatmul.mubr.f32.gmra.mxu0 %v8508
      %v8687 = vpop.f32.mrf.mxu0
      %v8688 = vadd.f32 0.0, %v8687
      %v8689 = vpop.f32.mrf.mxu0
      %8690 = vmatprep.mubr.f32.mxu0 0.0
      %8691 = vmatmul.mubr.f32.gmra.mxu0 %v8511
      %v8692 = vpop.f32.mrf.mxu0
      %v8693 = vadd.f32 0.0, %v8692
      %v8694 = vpop.f32.mrf.mxu0
      %8695 = vmatprep.mubr.f32.mxu0 0.0
      %8696 = vmatmul.mubr.f32.gmra.mxu0 %v8514
      %v8697 = vpop.f32.mrf.mxu0
      %v8698 = vadd.f32 0.0, %v8697
      %v8699 = vpop.f32.mrf.mxu0
      %8700 = vmatprep.mubr.f32.mxu0 0.0
      %8701 = vmatmul.mubr.f32.gmra.mxu0 %v8517
      %v8702 = vpop.f32.mrf.mxu0
      %v8703 = vadd.f32 0.0, %v8702
      %v8704 = vpop.f32.mrf.mxu0
      %8705 = vmatprep.mubr.f32.mxu0 0.0
      %8706 = vmatmul.mubr.f32.gmra.mxu0 %v8520
      %v8707 = vpop.f32.mrf.mxu0
      %v8708 = vadd.f32 0.0, %v8707
      %v8709 = vpop.f32.mrf.mxu0
      %8710 = vmatprep.mubr.f32.mxu0 0.0
      %8711 = vmatmul.mubr.f32.gmra.mxu0 %v8523
      %v8712 = vpop.f32.mrf.mxu0
      %v8713 = vadd.f32 0.0, %v8712
      %v8714 = vpop.f32.mrf.mxu0
      %8715 = vmatprep.mubr.f32.mxu0 0.0
      %8716 = vmatmul.mubr.f32.gmra.mxu0 %v8526
      %v8717 = vpop.f32.mrf.mxu0
      %v8718 = vadd.f32 0.0, %v8717
      %v8719 = vpop.f32.mrf.mxu0
      %8720 = vmatprep.mubr.f32.mxu0 0.0
      %8721 = vmatmul.mubr.f32.gmra.mxu0 %v8529
      %v8722 = vpop.f32.mrf.mxu0
      %v8723 = vadd.f32 0.0, %v8722
      %v8724 = vpop.f32.mrf.mxu0
      %8725 = vmatprep.mubr.f32.mxu0 0.0
      %8726 = vmatmul.mubr.f32.gmra.mxu0 %v8532
      %v8727 = vpop.f32.mrf.mxu0
      %v8728 = vadd.f32 0.0, %v8727
      %v8729 = vpop.f32.mrf.mxu0
      %8730 = vmatprep.mubr.f32.mxu0 0.0
      %8731 = vmatmul.mubr.f32.gmra.mxu0 %v8535
      %v8732 = vpop.f32.mrf.mxu0
      %v8733 = vadd.f32 0.0, %v8732
      %v8734 = vpop.f32.mrf.mxu0
      %8735 = vmatprep.mubr.f32.mxu0 0.0
      %8736 = vmatmul.mubr.f32.gmra.mxu0 %v8538
      %v8737 = vpop.f32.mrf.mxu0
      %v8738 = vadd.f32 0.0, %v8737
      %v8739 = vpop.f32.mrf.mxu0
      %8740 = vmatprep.mubr.f32.mxu0 0.0
      %8741 = vmatmul.mubr.f32.gmra.mxu0 %v8541
      %v8742 = vpop.f32.mrf.mxu0
      %v8743 = vadd.f32 0.0, %v8742
      %v8744 = vpop.f32.mrf.mxu0
      %8745 = vmatprep.mubr.f32.mxu0 0.0
      %8746 = vmatmul.mubr.f32.gmra.mxu0 %v8544
      %v8747 = vpop.f32.mrf.mxu0
      %v8748 = vadd.f32 0.0, %v8747
      %v8749 = vpop.f32.mrf.mxu0
      %8750 = vmatprep.mubr.f32.mxu0 0.0
      %8751 = vmatmul.mubr.f32.gmra.mxu0 %v8547
      %v8752 = vpop.f32.mrf.mxu0
      %v8753 = vadd.f32 0.0, %v8752
      %v8754 = vpop.f32.mrf.mxu0
      %8755 = vmatprep.mubr.f32.mxu0 0.0
      %8756 = vmatmul.mubr.f32.gmra.mxu0 %v8550
      %v8757 = vpop.f32.mrf.mxu0
      %v8758 = vadd.f32 0.0, %v8757
      %v8759 = vpop.f32.mrf.mxu0
      %8760 = vmatprep.mubr.f32.mxu0 0.0
      %8761 = vmatmul.mubr.f32.gmra.mxu0 %v8553
      %v8762 = vpop.f32.mrf.mxu0
      %v8763 = vadd.f32 0.0, %v8762
      %v8764 = vpop.f32.mrf.mxu0
      %8765 = vmatprep.mubr.f32.mxu0 0.0
      %8766 = vmatmul.mubr.f32.gmra.mxu0 %v8556
      %v8767 = vpop.f32.mrf.mxu0
      %v8768 = vadd.f32 0.0, %v8767
      %v8769 = vpop.f32.mrf.mxu0
      %8770 = vmatprep.mubr.f32.mxu0 0.0
      %8771 = vmatmul.mubr.f32.gmra.mxu0 %v8559
      %v8772 = vpop.f32.mrf.mxu0
      %v8773 = vadd.f32 0.0, %v8772
      %v8774 = vpop.f32.mrf.mxu0
      %8775 = vmatprep.mubr.f32.mxu0 0.0
      %8776 = vmatmul.mubr.f32.gmra.mxu0 %v8562
      %v8777 = vpop.f32.mrf.mxu0
      %v8778 = vadd.f32 0.0, %v8777
      %v8779 = vpop.f32.mrf.mxu0
      %8780 = vmatprep.mubr.f32.mxu0 0.0
      %8781 = vmatmul.mubr.f32.gmra.mxu0 %v8565
      %v8782 = vpop.f32.mrf.mxu0
      %v8783 = vadd.f32 0.0, %v8782
      %v8784 = vpop.f32.mrf.mxu0
      %8785 = vmatprep.mubr.f32.mxu0 0.0
      %8786 = vmatmul.mubr.f32.gmra.mxu0 %v8568
      %v8787 = vpop.f32.mrf.mxu0
      %v8788 = vadd.f32 0.0, %v8787
      %v8789 = vpop.f32.mrf.mxu0
      %8790 = vmatprep.mubr.f32.mxu0 0.0
      %8791 = vmatmul.mubr.f32.gmra.mxu0 %v8571
      %v8792 = vpop.f32.mrf.mxu0
      %v8793 = vadd.f32 0.0, %v8792
      %v8794 = vpop.f32.mrf.mxu0
      %8795 = vmatprep.mubr.f32.mxu0 0.0
      %8796 = vmatmul.mubr.f32.gmra.mxu0 %v8574
      %v8797 = vpop.f32.mrf.mxu0
      %v8798 = vadd.f32 0.0, %v8797
      %v8799 = vpop.f32.mrf.mxu0
      %8800 = vmatprep.mubr.f32.mxu0 0.0
      %8801 = vmatmul.mubr.f32.gmra.mxu0 %v8577
      %v8802 = vpop.f32.mrf.mxu0
      %v8803 = vadd.f32 0.0, %v8802
      %v8804 = vpop.f32.mrf.mxu0
      %8805 = vmatprep.mubr.f32.mxu0 0.0
      %8806 = vmatmul.mubr.f32.gmra.mxu0 %v8580
      %v8807 = vpop.f32.mrf.mxu0
      %v8808 = vadd.f32 0.0, %v8807
      %v8809 = vpop.f32.mrf.mxu0
      %8810 = vmatprep.mubr.f32.mxu0 0.0
      %8811 = vmatmul.mubr.f32.gmra.mxu0 %v8583
      %v8812 = vpop.f32.mrf.mxu0
      %v8813 = vadd.f32 0.0, %v8812
      %v8814 = vpop.f32.mrf.mxu0
      %8815 = vmatprep.mubr.f32.mxu0 0.0
      %8816 = vmatmul.mubr.f32.gmra.mxu0 %v8586
      %v8817 = vpop.f32.mrf.mxu0
      %v8818 = vadd.f32 0.0, %v8817
      %v8819 = vpop.f32.mrf.mxu0
      %8820 = vmatprep.mubr.f32.mxu0 0.0
      %8821 = vmatmul.mubr.f32.gmra.mxu0 %v8589
      %v8822 = vpop.f32.mrf.mxu0
      %v8823 = vadd.f32 0.0, %v8822
      %v8824 = vpop.f32.mrf.mxu0
      %8825 = vmatprep.mubr.f32.mxu0 0.0
      %8826 = vmatmul.mubr.f32.gmra.mxu0 %v8592
      %v8827 = vpop.f32.mrf.mxu0
      %v8828 = vadd.f32 0.0, %v8827
      %v8829 = vpop.f32.mrf.mxu0
      %8830 = vmatprep.mubr.f32.mxu0 0.0
      %8831 = vmatmul.mubr.f32.gmra.mxu0 %v8595
      %v8832 = vpop.f32.mrf.mxu0
      %v8833 = vadd.f32 0.0, %v8832
      %v8834 = vpop.f32.mrf.mxu0
      %8835 = vmatprep.mubr.f32.mxu0 0.0
      %8836 = vmatmul.mubr.f32.gmra.mxu0 %v8598
      %v8837 = vpop.f32.mrf.mxu0
      %v8838 = vadd.f32 0.0, %v8837
      %v8839 = vpop.f32.mrf.mxu0
      %8840 = vmatprep.mubr.f32.mxu0 0.0
      %8841 = vmatmul.mubr.f32.gmra.mxu0 %v8601
      %v8842 = vpop.f32.mrf.mxu0
      %v8843 = vadd.f32 0.0, %v8842
      %v8844 = vpop.f32.mrf.mxu0
      %8845 = vmatprep.mubr.f32.mxu0 0.0
      %8846 = vmatmul.mubr.f32.gmra.mxu0 %v8604
      %v8847 = vpop.f32.mrf.mxu0
      %v8848 = vadd.f32 0.0, %v8847
      %v8849 = vpop.f32.mrf.mxu0
      %8850 = vdwg.mxu0
      %v8851 = vadd.f32 %v8424, %v8673
      %v8852 = vadd.f32 %v8425, %v8678
      %v8853 = vadd.f32 %v8426, %v8683
      %v8854 = vadd.f32 %v8427, %v8688
      %v8855 = vadd.f32 %v8428, %v8693
      %v8856 = vadd.f32 %v8429, %v8698
      %v8857 = vadd.f32 %v8430, %v8703
      %v8858 = vadd.f32 %v8431, %v8708
      %v8859 = vadd.f32 %v8432, %v8713
      %v8860 = vadd.f32 %v8433, %v8718
      %v8861 = vadd.f32 %v8434, %v8723
      %v8862 = vadd.f32 %v8435, %v8728
      %v8863 = vadd.f32 %v8436, %v8733
      %v8864 = vadd.f32 %v8437, %v8738
      %v8865 = vadd.f32 %v8438, %v8743
      %v8866 = vadd.f32 %v8439, %v8748
      %v8867 = vadd.f32 %v8440, %v8753
      %v8868 = vadd.f32 %v8441, %v8758
      %v8869 = vadd.f32 %v8442, %v8763
      %v8870 = vadd.f32 %v8443, %v8768
      %v8871 = vadd.f32 %v8444, %v8773
      %v8872 = vadd.f32 %v8445, %v8778
      %v8873 = vadd.f32 %v8446, %v8783
      %v8874 = vadd.f32 %v8447, %v8788
      %v8875 = vadd.f32 %v8448, %v8793
      %v8876 = vadd.f32 %v8449, %v8798
      %v8877 = vadd.f32 %v8450, %v8803
      %v8878 = vadd.f32 %v8451, %v8808
      %v8879 = vadd.f32 %v8452, %v8813
      %v8880 = vadd.f32 %v8453, %v8818
      %v8881 = vadd.f32 %v8454, %v8823
      %v8882 = vadd.f32 %v8455, %v8828
      %v8883 = vadd.f32 %v8456, %v8833
      %v8884 = vadd.f32 %v8457, %v8838
      %v8885 = vadd.f32 %v8458, %v8843
      %v8886 = vadd.f32 %v8459, %v8848
      %8887 = vst.msk [vmem:[#allocation4] sm:$0xff] %vm171, %v8851
      %8888 = vst.msk [vmem:[#allocation4 + $0x8] sm:$0xff] %vm171, %v8852
      %8889 = vst.msk [vmem:[#allocation4 + $0x10] sm:$0xff] %vm171, %v8853
      %8890 = vst.msk [vmem:[#allocation4 + $0x18] sm:$0xff] %vm171, %v8854
      %8891 = vst.msk [vmem:[#allocation4 + $0x20] sm:$0xff] %vm171, %v8855
      %8892 = vst.msk [vmem:[#allocation4 + $0x28] sm:$0xff] %vm171, %v8856
      %8893 = vst.msk [vmem:[#allocation4 + $0x30] sm:$0xff] %vm171, %v8857
      %8894 = vst.msk [vmem:[#allocation4 + $0x38] sm:$0xff] %vm171, %v8858
      %8895 = vst.msk [vmem:[#allocation4 + $0x40] sm:$0xff] %vm171, %v8859
      %8896 = vst.msk [vmem:[#allocation4 + $0x48] sm:$0xff] %vm171, %v8860
      %8897 = vst.msk [vmem:[#allocation4 + $0x50] sm:$0xff] %vm171, %v8861
      %8898 = vst.msk [vmem:[#allocation4 + $0x58] sm:$0xff] %vm171, %v8862
      %8899 = vst.msk [vmem:[#allocation4 + $0x60] sm:$0xff] %vm171, %v8863
      %8900 = vst.msk [vmem:[#allocation4 + $0x68] sm:$0xff] %vm171, %v8864
      %8901 = vst.msk [vmem:[#allocation4 + $0x70] sm:$0xff] %vm171, %v8865
      %8902 = vst.msk [vmem:[#allocation4 + $0x78] sm:$0xff] %vm171, %v8866
      %8903 = vst.msk [vmem:[#allocation4 + $0x80] sm:$0xff] %vm171, %v8867
      %8904 = vst.msk [vmem:[#allocation4 + $0x88] sm:$0xff] %vm171, %v8868
      %8905 = vst.msk [vmem:[#allocation4 + $0x90] sm:$0xff] %vm171, %v8869
      %8906 = vst.msk [vmem:[#allocation4 + $0x98] sm:$0xff] %vm171, %v8870
      %8907 = vst.msk [vmem:[#allocation4 + $0xa0] sm:$0xff] %vm171, %v8871
      %8908 = vst.msk [vmem:[#allocation4 + $0xa8] sm:$0xff] %vm171, %v8872
      %8909 = vst.msk [vmem:[#allocation4 + $0xb0] sm:$0xff] %vm171, %v8873
      %8910 = vst.msk [vmem:[#allocation4 + $0xb8] sm:$0xff] %vm171, %v8874
      %8911 = vst.msk [vmem:[#allocation4 + $0xc0] sm:$0xff] %vm171, %v8875
      %8912 = vst.msk [vmem:[#allocation4 + $0xc8] sm:$0xff] %vm171, %v8876
      %8913 = vst.msk [vmem:[#allocation4 + $0xd0] sm:$0xff] %vm171, %v8877
      %8914 = vst.msk [vmem:[#allocation4 + $0xd8] sm:$0xff] %vm171, %v8878
      %8915 = vst.msk [vmem:[#allocation4 + $0xe0] sm:$0xff] %vm171, %v8879
      %8916 = vst.msk [vmem:[#allocation4 + $0xe8] sm:$0xff] %vm171, %v8880
      %8917 = vst.msk [vmem:[#allocation4 + $0xf0] sm:$0xff] %vm171, %v8881
      %8918 = vst.msk [vmem:[#allocation4 + $0xf8] sm:$0xff] %vm171, %v8882
      %8919 = vst.msk [vmem:[#allocation4 + $0x100] sm:$0xff] %vm171, %v8883
      %8920 = vst.msk [vmem:[#allocation4 + $0x108] sm:$0xff] %vm171, %v8884
      %8921 = vst.msk [vmem:[#allocation4 + $0x110] sm:$0xff] %vm171, %v8885
      %8922 = vst.msk [vmem:[#allocation4 + $0x118] sm:$0xff] %vm171, %v8886
      %v8923 = vld [vmem:[#allocation4] sm:$0xff]
      %v8924 = vld [vmem:[#allocation4 + $0x8] sm:$0xff]
      %8925 = vst.msk [vmem:[%s170] sm:$0xff] %vm171, %v8923
      %8926 = vst.msk [vmem:[%s170 + $0x8] sm:$0xff] %vm171, %v8924
      %v8927 = vld [vmem:[#allocation4 + $0x12] sm:$0xff]
      %v8928 = vld [vmem:[#allocation4 + $0x1a] sm:$0xff]
      %s8929 = scalar_lea.vmem %s170, 16
      %8930 = vst.msk [vmem:[%s8929] sm:$0xff] %vm171, %v8927
      %8931 = vst.msk [vmem:[%s8929 + $0x8] sm:$0xff] %vm171, %v8928
      %v8932 = vld [vmem:[#allocation4 + $0x24] sm:$0xff]
      %v8933 = vld [vmem:[#allocation4 + $0x2c] sm:$0xff]
      %s8934 = scalar_lea.vmem %s170, 32
      %8935 = vst.msk [vmem:[%s8934] sm:$0xff] %vm171, %v8932
      %8936 = vst.msk [vmem:[%s8934 + $0x8] sm:$0xff] %vm171, %v8933
      %v8937 = vld [vmem:[#allocation4 + $0x36] sm:$0xff]
      %v8938 = vld [vmem:[#allocation4 + $0x3e] sm:$0xff]
      %s8939 = scalar_lea.vmem %s170, 48
      %8940 = vst.msk [vmem:[%s8939] sm:$0xff] %vm171, %v8937
      %8941 = vst.msk [vmem:[%s8939 + $0x8] sm:$0xff] %vm171, %v8938
      %v8942 = vld [vmem:[#allocation4 + $0x48] sm:$0xff]
      %v8943 = vld [vmem:[#allocation4 + $0x50] sm:$0xff]
      %s8944 = scalar_lea.vmem %s170, 64
      %8945 = vst.msk [vmem:[%s8944] sm:$0xff] %vm171, %v8942
      %8946 = vst.msk [vmem:[%s8944 + $0x8] sm:$0xff] %vm171, %v8943
      %v8947 = vld [vmem:[#allocation4 + $0x5a] sm:$0xff]
      %v8948 = vld [vmem:[#allocation4 + $0x62] sm:$0xff]
      %s8949 = scalar_lea.vmem %s170, 80
      %8950 = vst.msk [vmem:[%s8949] sm:$0xff] %vm171, %v8947
      %8951 = vst.msk [vmem:[%s8949 + $0x8] sm:$0xff] %vm171, %v8948
      %v8952 = vld [vmem:[#allocation4 + $0x6c] sm:$0xff]
      %v8953 = vld [vmem:[#allocation4 + $0x74] sm:$0xff]
      %s8954 = scalar_lea.vmem %s170, 96
      %8955 = vst.msk [vmem:[%s8954] sm:$0xff] %vm171, %v8952
      %8956 = vst.msk [vmem:[%s8954 + $0x8] sm:$0xff] %vm171, %v8953
      %v8957 = vld [vmem:[#allocation4 + $0x7e] sm:$0xff]
      %v8958 = vld [vmem:[#allocation4 + $0x86] sm:$0xff]
      %s8959 = scalar_lea.vmem %s170, 112
      %8960 = vst.msk [vmem:[%s8959] sm:$0xff] %vm171, %v8957
      %8961 = vst.msk [vmem:[%s8959 + $0x8] sm:$0xff] %vm171, %v8958
      %v8962 = vld [vmem:[#allocation4 + $0x90] sm:$0xff]
      %v8963 = vld [vmem:[#allocation4 + $0x98] sm:$0xff]
      %s8964 = scalar_lea.vmem %s170, 128
      %8965 = vst.msk [vmem:[%s8964] sm:$0xff] %vm171, %v8962
      %8966 = vst.msk [vmem:[%s8964 + $0x8] sm:$0xff] %vm171, %v8963
      %v8967 = vld [vmem:[#allocation4 + $0xa2] sm:$0xff]
      %v8968 = vld [vmem:[#allocation4 + $0xaa] sm:$0xff]
      %s8969 = scalar_lea.vmem %s170, 144
      %8970 = vst.msk [vmem:[%s8969] sm:$0xff] %vm171, %v8967
      %8971 = vst.msk [vmem:[%s8969 + $0x8] sm:$0xff] %vm171, %v8968
      %v8972 = vld [vmem:[#allocation4 + $0xb4] sm:$0xff]
      %v8973 = vld [vmem:[#allocation4 + $0xbc] sm:$0xff]
      %s8974 = scalar_lea.vmem %s170, 160
      %8975 = vst.msk [vmem:[%s8974] sm:$0xff] %vm171, %v8972
      %8976 = vst.msk [vmem:[%s8974 + $0x8] sm:$0xff] %vm171, %v8973
      %v8977 = vld [vmem:[#allocation4 + $0xc6] sm:$0xff]
      %v8978 = vld [vmem:[#allocation4 + $0xce] sm:$0xff]
      %s8979 = scalar_lea.vmem %s170, 176
      %8980 = vst.msk [vmem:[%s8979] sm:$0xff] %vm171, %v8977
      %8981 = vst.msk [vmem:[%s8979 + $0x8] sm:$0xff] %vm171, %v8978
      %v8982 = vld [vmem:[#allocation4 + $0xd8] sm:$0xff]
      %v8983 = vld [vmem:[#allocation4 + $0xe0] sm:$0xff]
      %s8984 = scalar_lea.vmem %s170, 192
      %8985 = vst.msk [vmem:[%s8984] sm:$0xff] %vm171, %v8982
      %8986 = vst.msk [vmem:[%s8984 + $0x8] sm:$0xff] %vm171, %v8983
      %v8987 = vld [vmem:[#allocation4 + $0xea] sm:$0xff]
      %v8988 = vld [vmem:[#allocation4 + $0xf2] sm:$0xff]
      %s8989 = scalar_lea.vmem %s170, 208
      %8990 = vst.msk [vmem:[%s8989] sm:$0xff] %vm171, %v8987
      %8991 = vst.msk [vmem:[%s8989 + $0x8] sm:$0xff] %vm171, %v8988
      %v8992 = vld [vmem:[#allocation4 + $0xfc] sm:$0xff]
      %v8993 = vld [vmem:[#allocation4 + $0x104] sm:$0xff]
      %s8994 = scalar_lea.vmem %s170, 224
      %8995 = vst.msk [vmem:[%s8994] sm:$0xff] %vm171, %v8992
      %8996 = vst.msk [vmem:[%s8994 + $0x8] sm:$0xff] %vm171, %v8993
      %v8997 = vld [vmem:[#allocation4 + $0x10e] sm:$0xff]
      %v8998 = vld [vmem:[#allocation4 + $0x116] sm:$0xff]
      %s8999 = scalar_lea.vmem %s170, 240
      %9000 = vst.msk [vmem:[%s8999] sm:$0xff] %vm171, %v8997
      %9001 = vst.msk [vmem:[%s8999 + $0x8] sm:$0xff] %vm171, %v8998
      %p9002 = scmp.lt.s32.totalorder %s14, 1
      %s9003 = scalar_select %p9002, %s14, 1
      %s9004 = smul.addr %s9003, 32
      %s9005 = smul.addr %s9004, 8
      %s9006 = scalar_lea.vmem %s3, %s9005
      // Predicated region
      $region33: #{micro_block.1} parent=31 // pred_check
        %p9007 = pneg %p100
      $region34: #{micro_block.1} parent=31 // pred_check_branch
        %9009 = sbr.rel (%p9007) target = $region36
      $region35: #{micro_block.1} parent=31 // pred_region
        _
      $region36: #{micro_block.1} parent=31 // pred_fallthru
        _
    $region32: #{micro_block.1} parent=5 // pred_fallthru
      _
    %p9010 = scmp.le.s32.totalorder 2, %s9
    // Predicated region
    $region37: #{micro_block.1} parent=5 // pred_check
      %p9011 = pneg %p9010
    $region38: #{micro_block.1} parent=5 // pred_check_branch
      %9013 = sbr.rel (%p9011) target = $region40
    $region39: #{micro_block.1} parent=5 // pred_region
      %s9014 = ssub.s32 %s9, 2
      // Predicated region
      $region41: #{micro_block.1} parent=39 // pred_check
        %p9015 = pneg %p106
      $region42: #{micro_block.1} parent=39 // pred_check_branch
        %9017 = sbr.rel (%p9015) target = $region44
      $region43: #{micro_block.1} parent=39 // pred_region
        %p9018 = scmp.lt.s32.totalorder %s15, 1
        %s9019 = scalar_select %p9018, %s15, 1
        %s9020 = smul.addr %s9019, 32
        %s9021 = smul.addr %s9020, 8
        %s9022 = scalar_lea.vmem %s3, %s9021
      $region44: #{micro_block.1} parent=39 // pred_fallthru
        _
    $region40: #{micro_block.1} parent=5 // pred_fallthru
      _
  $region6: #{micro_block.1} parent=0 // loop_footer
    %s13 = sadd.s32 1, %s9
  $region7: #{micro_block.1} parent=0 // loop_footer_branch
    %8 = sbr.rel target = $region3
  $region8: #{micro_block.1} parent=0 // loop_exit
    _

</llo_original>
